<compile_context>
chip_gen: v7x
topology: tpu7x:2x2x1
jax: 0.10.0
libtpu: 0.0.40
codegen_flags: <defaults>
</compile_context>

<pallas_src>
import functools
import math

import jax
import jax.numpy as jnp
from jax.experimental import pallas as pl
from jax.experimental.pallas import tpu as pltpu

LANE = 128
SUB = 8


def _round_up(x, m):
    return (x + m - 1) // m * m


def _pick_tile(dim, cap, align):
    """Largest tile <= cap that divides dim and respects `align` (else the full dim)."""
    if dim <= cap:
        return dim
    t = (cap // align) * align
    while t >= align:
        if dim % t == 0:
            return t
        t -= align
    return dim


# ------------------------- generic tiled matmul kernel -------------------------

def _mm_kernel(x_ref, w_ref, b_ref, o_ref, acc_ref, *, relu):
    @pl.when(pl.program_id(2) == 0)
    def _init():
        acc_ref[...] = jnp.zeros_like(acc_ref)

    acc_ref[...] += jnp.dot(x_ref[...].astype(jnp.bfloat16),
                            w_ref[...].astype(jnp.bfloat16),
                            preferred_element_type=jnp.float32)

    @pl.when(pl.program_id(2) == pl.num_programs(2) - 1)
    def _finalize():
        y = acc_ref[...] + b_ref[...].astype(jnp.float32)
        if relu:
            y = jnp.maximum(y, 0.0)
        o_ref[...] = y.astype(o_ref.dtype)


def pallas_matmul(x, w, bias=None, relu=False, out_dtype=jnp.float32,
                  tm_cap=256, tn_cap=512, tk_cap=512):
    """y = act(x @ w + bias) with pre-padded operands (M%8==0, N%128==0, K%8==0).

    Tiled (M,N,K) grid, f32 VMEM accumulator, bf16 MXU operands, bias/ReLU fused
    into the epilogue.  M/N axes are 'parallel' (megacore), K is 'arbitrary'.
    Tile caps keep per-step VMEM well under the 32 MiB scoped default (v5e-v7x)."""
    M, K = x.shape
    K2, N = w.shape
    assert K == K2 and M % SUB == 0 and N % LANE == 0 and K % SUB == 0
    if bias is None:
        bias = jnp.zeros((1, N), jnp.float32)
    tm = _pick_tile(M, tm_cap, SUB)
    tn = _pick_tile(N, tn_cap, LANE)
    tk = _pick_tile(K, tk_cap, LANE) if K >= LANE else K
    grid = (M // tm, N // tn, K // tk)
    return pl.pallas_call(
        functools.partial(_mm_kernel, relu=relu),
        out_shape=jax.ShapeDtypeStruct((M, N), out_dtype),
        grid=grid,
        in_specs=[pl.BlockSpec((tm, tk), lambda i, j, k: (i, k)),
                  pl.BlockSpec((tk, tn), lambda i, j, k: (k, j)),
                  pl.BlockSpec((1, tn), lambda i, j, k: (0, j))],
        out_specs=pl.BlockSpec((tm, tn), lambda i, j, k: (i, j)),
        scratch_shapes=[pltpu.VMEM((tm, tn), jnp.float32)],
        compiler_params=pltpu.CompilerParams(
            dimension_semantics=("parallel", "parallel", "arbitrary")),
    )(x, w, bias)


# ------------------------- fused add + LayerNorm (+ row mask) kernel -------------------------

def _add_ln_kernel(x_ref, y_ref, rm_ref, g_ref, b_ref, o_ref, *, n_valid, eps=1e-5):
    """o = rowmask * LayerNorm(x + y) over the first n_valid feature columns."""
    h = x_ref[...] + y_ref[...]
    col = jax.lax.broadcasted_iota(jnp.int32, h.shape, 1)
    cm = (col < n_valid).astype(jnp.float32)
    inv = 1.0 / float(n_valid)
    mean = jnp.sum(h * cm, axis=-1, keepdims=True) * inv
    d = (h - mean) * cm
    var = jnp.sum(d * d, axis=-1, keepdims=True) * inv
    out = d * jax.lax.rsqrt(var + eps) * g_ref[...] + b_ref[...]
    o_ref[...] = (out * rm_ref[...]).astype(o_ref.dtype)


def pallas_add_layernorm(x, y, rowmask, gamma_row, beta_row, n_valid, tm_cap=512):
    """Residual add + LayerNorm (torch-style, biased var) + masked-row zeroing, fused.
    Row-tiled ('parallel' -> both v7x TensorCores); columns beyond n_valid stay 0."""
    M, Hp = x.shape
    tm = _pick_tile(M, tm_cap, SUB)
    return pl.pallas_call(
        functools.partial(_add_ln_kernel, n_valid=n_valid),
        out_shape=jax.ShapeDtypeStruct((M, Hp), jnp.float32),
        grid=(M // tm,),
        in_specs=[pl.BlockSpec((tm, Hp), lambda i: (i, 0)),
                  pl.BlockSpec((tm, Hp), lambda i: (i, 0)),
                  pl.BlockSpec((tm, 1), lambda i: (i, 0)),
                  pl.BlockSpec((1, Hp), lambda i: (0, 0)),
                  pl.BlockSpec((1, Hp), lambda i: (0, 0))],
        out_specs=pl.BlockSpec((tm, Hp), lambda i: (i, 0)),
        compiler_params=pltpu.CompilerParams(dimension_semantics=("parallel",)),
    )(x, y, rowmask, gamma_row, beta_row)


# ------------------------- fused masked-GIN layer kernel -------------------------

def _gin_layer_kernel(h0_ref, prev_ref, ma_ref, mb_ref,
                      w1_ref, g1_ref, b1_ref,
                      w2_ref, g2_ref, b2_ref,
                      go_ref, bo_ref, o_ref, *, first_layer, bn_eps=1e-5):
    """One GNN3d layer: 2-layer MaskedMLP of the GIN conv, x[~mask]=0, outer MaskedBN,
    ReLU and residual, all fused (activations stay resident in VMEM)."""
    ma = ma_ref[...]                               # [M,1] valid rows of the +x half
    mb = mb_ref[...]                               # [M,1] valid rows of the -x half
    inv_a = 1.0 / jnp.maximum(jnp.sum(ma, axis=0, keepdims=True), 1.0)
    inv_b = 1.0 / jnp.maximum(jnp.sum(mb, axis=0, keepdims=True), 1.0)

    def masked_bn(y, gamma, beta):
        # Per-sign-half batch statistics -> identical to running phi(x) and phi(-x)
        # through separate MaskedBN calls (the two passes are batched in one block).
        def stats(m, inv):
            mean = jnp.sum(y * m, axis=0, keepdims=True) * inv
            var = jnp.sum(((y - mean) * m) ** 2, axis=0, keepdims=True) * inv
            return mean, var
        mean_a, var_a = stats(ma, inv_a)
        mean_b, var_b = stats(mb, inv_b)
        mean = ma * mean_a + mb * mean_b           # row-wise select per half
        var = ma * var_a + mb * var_b
        return (y - mean) * jax.lax.rsqrt(var + bn_eps) * gamma + beta

    h0 = h0_ref[...]
    if first_layer:
        # d_in == 1: the "matmul" is a rank-1 broadcast multiply on the VPU
        # ((M,1) * (1,Hp) -> (M,Hp)); avoids a K=1 -> 128 padded MXU pass.
        y1 = h0 * w1_ref[...]
    else:
        y1 = jnp.dot(h0.astype(jnp.bfloat16), w1_ref[...],
                     preferred_element_type=jnp.float32)
    h1 = jnp.maximum(masked_bn(y1, g1_ref[...], b1_ref[...]), 0.0)

    y2 = jnp.dot(h1.astype(jnp.bfloat16), w2_ref[...],
                 preferred_element_type=jnp.float32)
    h2 = jnp.maximum(masked_bn(y2, g2_ref[...], b2_ref[...]), 0.0)

    valid = ma + mb
    z = h2 * valid                                 # x[~mask] = 0
    z = masked_bn(z, go_ref[...], bo_ref[...])     # outer MaskedBN
    z = jnp.maximum(z, 0.0) * valid                # ReLU; masked rows stay exactly 0
    o_ref[...] = z + prev_ref[...]                 # residual


def gin_fused_layer(lp, h0, prev, ma, mb, *, first_layer):
    M, Hp = prev.shape
    inputs = [h0, prev, ma, mb,
              lp['w1'], lp['g1'], lp['b1'],
              lp['w2'], lp['g2'], lp['b2'],
              lp['go'], lp['bo']]
    # BatchNorm statistics span all rows, so the whole (tiny) M block stays in one
    # VMEM-resident block; all weights + activations here are < 1 MiB.
    return pl.pallas_call(
        functools.partial(_gin_layer_kernel, first_layer=first_layer),
        out_shape=jax.ShapeDtypeStruct((M, Hp), jnp.float32),
        grid=(1,),
        in_specs=[pl.BlockSpec(a.shape, lambda i: (0, 0)) for a in inputs],
        out_specs=pl.BlockSpec((M, Hp), lambda i: (0, 0)),
        compiler_params=pltpu.CompilerParams(dimension_semantics=("arbitrary",)),
    )(*inputs)


# ------------------------- masked multi-head attention kernel -------------------------

def _attn_kernel(q_ref, k_ref, v_ref, m_ref, o_ref, *, scale):
    s = jnp.einsum('bqd,bkd->bqk', q_ref[...], k_ref[...],
                   preferred_element_type=jnp.float32) * scale
    # key-padding mask turned into an additive bias on the VPU (no HBM bias tensor)
    s = s + jnp.where(m_ref[...] > 0.5, 0.0, -1e30)
    m = jnp.max(s, axis=-1, keepdims=True)
    p = jnp.exp(s - m)                                            # softmax stays f32 (v5e-safe)
    p = p * pl.reciprocal(jnp.sum(p, axis=-1, keepdims=True), approx=True)
    o_ref[...] = jnp.einsum('bqk,bkd->bqd', p.astype(v_ref.dtype), v_ref[...],
                            preferred_element_type=jnp.float32).astype(o_ref.dtype)


def pallas_attention(q, k, v, kmask3, scale, heads_per_block=8):
    """q,k,v: [B*H, S, D] (bf16); kmask3: [B*H, 1, S] f32 (1 valid / 0 masked).
    Tiled over the batch*heads axis ('parallel' -> both v7x TensorCores)."""
    BH, S, D = q.shape
    bb = heads_per_block
    while bb > 1 and BH % bb:
        bb //= 2
    grid = (BH // bb,)
    return pl.pallas_call(
        functools.partial(_attn_kernel, scale=scale),
        out_shape=jax.ShapeDtypeStruct((BH, S, D), jnp.float32),
        grid=grid,
        in_specs=[pl.BlockSpec((bb, S, D), lambda i: (i, 0, 0)),
                  pl.BlockSpec((bb, S, D), lambda i: (i, 0, 0)),
                  pl.BlockSpec((bb, S, D), lambda i: (i, 0, 0)),
                  pl.BlockSpec((bb, 1, S), lambda i: (i, 0, 0))],
        out_specs=pl.BlockSpec((bb, S, D), lambda i: (i, 0, 0)),
        compiler_params=pltpu.CompilerParams(dimension_semantics=("parallel",)),
    )(q, k, v, kmask3)


# ------------------------- JAX glue (tiny normalisation ops) -------------------------

def masked_batchnorm_rows(p, x, row_valid, eps=1e-5):
    """BatchNorm1d with batch statistics over valid rows only (training-mode stats)."""
    m = row_valid.astype(x.dtype)[:, None]
    cnt = jnp.maximum(jnp.sum(m), 1.0)
    mean = jnp.sum(x * m, axis=0) / cnt
    var = jnp.sum(((x - mean) * m) ** 2, axis=0) / cnt
    return (x - mean) * jax.lax.rsqrt(var + eps) * p['gamma'] + p['beta']


# ------------------------- model blocks -------------------------

def transformer_layer(p, x, mask_f, *, n_hid, n_head):
    Np_, Sp, Hp = x.shape
    M = Np_ * Sp
    dh = n_hid // n_head
    x2 = x.reshape(M, Hp)
    rowmask = mask_f.reshape(M, 1)                  # per-(node,eig) validity

    # fused Q|K|V projection: one lane-dense matmul instead of three 32-wide ones
    qkv = pallas_matmul(x2, p['wqkv'], bias=p['bqkv'], out_dtype=jnp.bfloat16)
    qkv = qkv[:, :3 * n_hid].reshape(Np_, Sp, 3, n_head, dh)

    def heads(t):                                  # [Np,Sp,nh,dh] -> [Np*nh, Sp, LANE]
        t = jnp.transpose(t, (0, 2, 1, 3)).reshape(Np_ * n_head, Sp, dh)
        return jnp.pad(t, ((0, 0), (0, 0), (0, LANE - dh)))

    q, k, v = heads(qkv[:, :, 0]), heads(qkv[:, :, 1]), heads(qkv[:, :, 2])
    kmask3 = jnp.repeat(mask_f, n_head, axis=0)[:, None, :]        # [Np*nh, 1, Sp]

    attn = pallas_attention(q, k, v, kmask3, scale=1.0 / math.sqrt(dh))
    attn = attn[:, :, :dh].reshape(Np_, n_head, Sp, dh)
    attn = jnp.transpose(attn, (0, 2, 1, 3)).reshape(M, n_hid)
    Kr = _round_up(n_hid, SUB)                      # wo stored with true (8-aligned) K
    if Kr != n_hid:
        attn = jnp.pad(attn, ((0, 0), (0, Kr - n_hid)))
    attn = pallas_matmul(attn, p['wo'], bias=p['bo'])              # output projection

    # residual + LayerNorm + row mask, fused (LN over the n_hid valid columns)
    h = pallas_add_layernorm(x2, attn, rowmask,
                             p['ln1']['gamma'], p['ln1']['beta'], n_hid)
    ff = pallas_matmul(h, p['w1'], bias=p['b1'], relu=True, out_dtype=jnp.bfloat16)
    ff = pallas_matmul(ff, p['w2'], bias=p['b2'])
    h = pallas_add_layernorm(h, ff, rowmask,
                             p['ln2']['gamma'], p['ln2']['beta'], n_hid)
    return h.reshape(Np_, Sp, Hp)                   # masked positions are exactly 0


def set_transformer(p, x, mask_f, node_valid, *, n_hid, n_head):
    # pos is hard-coded to 0 in SignNet.forward, so x = x + 0
    for lp in p['layers']:
        x = transformer_layer(lp, x, mask_f, n_hid=n_hid, n_head=n_head)
    xs = jnp.sum(x, axis=1)                         # sum over the (masked) eig set
    xs = pallas_matmul(xs, p['out_w'])              # Linear(nhid, nhid, bias=False)
    return masked_batchnorm_rows(p['out_bn'], xs, node_valid)      # BatchNorm1d(nhid)


def sign_net(p, eigV_pad, adj, mask_full, node_valid, *, n_hid, n_head):
    Np_, Kp = eigV_pad.shape
    Hp = _round_up(n_hid, LANE)
    M = Np_ * 2 * Kp            # rows = (node, sign, eig): phi(x) and phi(-x) batched

    mask_f = mask_full.astype(jnp.float32)
    ma = jnp.concatenate([mask_f, jnp.zeros_like(mask_f)], axis=1).reshape(M, 1)
    mb = jnp.concatenate([jnp.zeros_like(mask_f), mask_f], axis=1).reshape(M, 1)

    eye = jnp.eye(Np_, dtype=jnp.float32)

    # ---- phi: GNN3d over the signed scalar eigenvector entries ----
    xs = jnp.concatenate([eigV_pad, -eigV_pad], axis=1)            # [Np, 2*Kp]
    cols = _round_up(2 * Kp, LANE)
    xs_pad = jnp.pad(xs, ((0, 0), (0, cols - 2 * Kp)))

    l0 = p['phi'][0]
    # GIN aggregation folded into one matmul: (1+eps)*x + sum_nb(x) = (adj + (1+eps)*I) @ x
    adj_hat0 = adj + (1.0 + l0['eps']) * eye
    h0 = pallas_matmul(adj_hat0, xs_pad)[:, :2 * Kp].reshape(M, 1)
    x2 = gin_fused_layer(l0, h0, jnp.zeros((M, Hp), jnp.float32), ma, mb,
                         first_layer=True)
    prev = x2
    for lp in p['phi'][1:]:
        adj_hat = adj + (1.0 + lp['eps']) * eye
        h = pallas_matmul(adj_hat, x2.reshape(Np_, 2 * Kp * Hp)).reshape(M, Hp)
        x2 = gin_fused_layer(lp, h, prev, ma, mb, first_layer=False)
        prev = x2

    # phi(x) + phi(-x): add the two sign halves
    xset = x2.reshape(Np_, 2, Kp, Hp)
    xset = xset[:, 0] + xset[:, 1]                                 # [Np, Kp, Hp]

    # ---- rho: SetTransformer ----
    return set_transformer(p['rho'], xset, mask_f, node_valid,
                           n_hid=n_hid, n_head=n_head)


def output_encoder(p, x, graph_valid):
    x = pallas_matmul(x, p['w0'], bias=p['b0'])
    x = masked_batchnorm_rows(p['bn0'], x, graph_valid)
    x = jax.nn.relu(x)
    x = pallas_matmul(x, p['w1'], bias=p['b1'])
    return x


def signnet_gnn_forward(params, eigV_pad, adj, batch_ext, mask_full,
                        node_valid, graph_valid, *, n_hid, n_head=4):
    pos = sign_net(params['sign_net'], eigV_pad, adj, mask_full, node_valid,
                   n_hid=n_hid, n_head=n_head)                     # [Np, Hp]
    Bp = graph_valid.shape[0]
    pos = jnp.zeros((Bp, pos.shape[-1]), pos.dtype).at[batch_ext].add(pos)  # scatter add
    y = output_encoder(params['out'], pos, graph_valid)
    return y[:, :1]                                                # only column 0 is real


# ------------------------- parameters -------------------------

def init_params(key, n_hid, nl_phi, nl_rho=1):
    """Un-padded 'logical' parameters mirroring the torch module layout."""
    keys = iter(jax.random.split(key, 256))

    def w(shape, scale=0.1):
        return jax.random.normal(next(keys), shape, jnp.float32) * scale

    def bn(d):
        return {'gamma': jnp.ones((d,), jnp.float32), 'beta': jnp.zeros((d,), jnp.float32)}

    phi = []
    nin = 1
    for _ in range(nl_phi):
        conv = {'eps': jnp.float32(0.0),
                'mlp': [{'w': w((nin, n_hid)), 'bn': bn(n_hid)},
                        {'w': w((n_hid, n_hid)), 'bn': bn(n_hid)}]}
        phi.append({'conv': conv, 'norm': bn(n_hid)})
        nin = n_hid

    rho_layers = []
    for _ in range(nl_rho):
        rho_layers.append({
            'wq': w((n_hid, n_hid)), 'bq': jnp.zeros((n_hid,), jnp.float32),
            'wk': w((n_hid, n_hid)), 'bk': jnp.zeros((n_hid,), jnp.float32),
            'wv': w((n_hid, n_hid)), 'bv': jnp.zeros((n_hid,), jnp.float32),
            'wo': w((n_hid, n_hid)), 'bo': jnp.zeros((n_hid,), jnp.float32),
            'ln1': bn(n_hid), 'ln2': bn(n_hid),
            'w1': w((n_hid, 2 * n_hid)), 'b1': jnp.zeros((2 * n_hid,), jnp.float32),
            'w2': w((2 * n_hid, n_hid)), 'b2': jnp.zeros((n_hid,), jnp.float32),
        })
    rho = {'layers': rho_layers, 'out_w': w((n_hid, n_hid)), 'out_bn': bn(n_hid)}

    out = {'w0': w((n_hid, n_hid)), 'b0': jnp.zeros((n_hid,), jnp.float32),
           'bn0': bn(n_hid),
           'w1': w((n_hid, 1)), 'b1': jnp.zeros((1,), jnp.float32)}

    return {'sign_net': {'phi': phi, 'rho': rho}, 'out': out}


def prepare_params(raw, n_hid):
    """Pad every weight ONCE to (8,128)-tiled shapes; matmul weights cast to bf16.
    Done outside the jitted forward so there are no per-call pad/slice copies."""
    Hp = _round_up(n_hid, LANE)
    F2p = _round_up(2 * n_hid, LANE)
    QKVp = _round_up(3 * n_hid, LANE)
    Kr = _round_up(n_hid, SUB)      # true (8-aligned) K for the attention out-projection

    def pad_mat(a, r, c, dtype=jnp.bfloat16):
        return jnp.pad(a, ((0, r - a.shape[0]), (0, c - a.shape[1]))).astype(dtype)

    def pad_row(v, c, dtype=jnp.float32):
        return jnp.pad(v, (0, c - v.shape[0])).reshape(1, c).astype(dtype)

    def pad_vec(v, c):
        return jnp.pad(v, (0, c - v.shape[0])).astype(jnp.float32)

    phi = []
    for i, lyr in enumerate(raw['sign_net']['phi']):
        conv = lyr['conv']
        m0, m1 = conv['mlp']
        if i == 0:
            w1 = pad_row(m0['w'][0], Hp)   # d_in == 1: kept f32, used as a broadcast row
        else:
            w1 = pad_mat(m0['w'], Hp, Hp)
        phi.append({
            'eps': conv['eps'],
            'w1': w1,
            'g1': pad_row(m0['bn']['gamma'], Hp), 'b1': pad_row(m0['bn']['beta'], Hp),
            'w2': pad_mat(m1['w'], Hp, Hp),
            'g2': pad_row(m1['bn']['gamma'], Hp), 'b2': pad_row(m1['bn']['beta'], Hp),
            'go': pad_row(lyr['norm']['gamma'], Hp), 'bo': pad_row(lyr['norm']['beta'], Hp),
        })

    rho_layers = []
    for lyr in raw['sign_net']['rho']['layers']:
        wqkv = jnp.concatenate([lyr['wq'], lyr['wk'], lyr['wv']], axis=1)
        bqkv = jnp.concatenate([lyr['bq'], lyr['bk'], lyr['bv']])
        rho_layers.append({
            'wqkv': pad_mat(wqkv, Hp, QKVp), 'bqkv': pad_row(bqkv, QKVp),
            'wo': pad_mat(lyr['wo'], Kr, Hp), 'bo': pad_row(lyr['bo'], Hp),
            'ln1': {'gamma': pad_row(lyr['ln1']['gamma'], Hp),
                    'beta': pad_row(lyr['ln1']['beta'], Hp)},
            'ln2': {'gamma': pad_row(lyr['ln2']['gamma'], Hp),
                    'beta': pad_row(lyr['ln2']['beta'], Hp)},
            'w1': pad_mat(lyr['w1'], Hp, F2p), 'b1': pad_row(lyr['b1'], F2p),
            'w2': pad_mat(lyr['w2'], F2p, Hp), 'b2': pad_row(lyr['b2'], Hp),
        })
    rho = {'layers': rho_layers,
           'out_w': pad_mat(raw['sign_net']['rho']['out_w'], Hp, Hp),
           'out_bn': {'gamma': pad_vec(raw['sign_net']['rho']['out_bn']['gamma'], Hp),
                      'beta': pad_vec(raw['sign_net']['rho']['out_bn']['beta'], Hp)}}

    o = raw['out']
    out = {'w0': pad_mat(o['w0'], Hp, Hp), 'b0': pad_row(o['b0'], Hp),
           'bn0': {'gamma': pad_vec(o['bn0']['gamma'], Hp),
                   'beta': pad_vec(o['bn0']['beta'], Hp)},
           'w1': pad_mat(o['w1'], Hp, LANE), 'b1': pad_row(o['b1'], LANE)}

    return {'sign_net': {'phi': phi, 'rho': rho}, 'out': out}


# ------------------------- driver -------------------------

if __name__ == "__main__":
    key = jax.random.PRNGKey(0)
    k_param, k_eig = jax.random.split(key)

    n_hid = 32
    n_head = 4
    nl_signnet = 2          # nl_phi for the GNN3d phi network
    nl_rho = 1              # SignNetGNN builds SignNet(..., nl_rho=1)

    # Two small graphs: sizes 5 and 3 (N = 8 nodes total, K = max graph size = 5)
    sizes = jnp.array([5, 3], dtype=jnp.int32)
    batch = jnp.array([0, 0, 0, 0, 0, 1, 1, 1], dtype=jnp.int32)
    N = int(batch.shape[0])
    B = int(sizes.shape[0])
    K = int(jnp.max(sizes))

    # Directed edge list (both directions) — cycles within each graph.
    src = jnp.array([0, 1, 2, 3, 4, 1, 2, 3, 4, 0, 5, 6, 7, 6, 7, 5], dtype=jnp.int32)
    dst = jnp.array([1, 2, 3, 4, 0, 0, 1, 2, 3, 4, 6, 7, 5, 5, 6, 7], dtype=jnp.int32)

    # padded sizes — activations stay in this layout end-to-end
    Np = _round_up(N, SUB)
    Kp = _round_up(K, SUB)
    Bp = _round_up(B + 1, SUB)      # +1 dummy bucket for (possible) padded node rows

    # dense adjacency: adj[target, source] = 1 (GIN sums messages source -> target)
    adj = jnp.zeros((Np, Np), jnp.float32).at[dst, src].add(1.0)

    batch_ext = jnp.concatenate([batch, jnp.full((Np - N,), B, jnp.int32)])
    node_valid = jnp.arange(Np) < N
    graph_valid = jnp.arange(Bp) < B
    mask_full = (jnp.arange(Kp)[None, :] < sizes[:, None])[batch]          # [N, Kp]
    mask_full = jnp.concatenate(
        [mask_full, jnp.zeros((Np - N, Kp), dtype=bool)], axis=0)          # [Np, Kp]
    eigV = jax.random.normal(k_eig, (Np, Kp), jnp.float32) * mask_full.astype(jnp.float32)

    raw = init_params(k_param, n_hid, nl_signnet, nl_rho)
    params = prepare_params(raw, n_hid)            # pad / cast weights ONCE

    fwd = jax.jit(functools.partial(signnet_gnn_forward, n_hid=n_hid, n_head=n_head))
    out = fwd(params, eigV, adj, batch_ext, mask_full, node_valid, graph_valid)
    out = jax.block_until_ready(out)[:B]

    assert out.shape == (B, 1) and bool(jnp.all(jnp.isfinite(out)))
    print("KERNEL_OK")
</pallas_src>

<mosaic_0001>
module attributes {stable_mosaic.version = 11 : i64} {
  func.func @_mm_kernel(%arg0: i32, %arg1: i32, %arg2: i32, %arg3: memref<8x8xf32, #tpu.memory_space<vmem>>, %arg4: memref<8x512xf32, #tpu.memory_space<vmem>>, %arg5: memref<1x512xf32, #tpu.memory_space<vmem>>, %arg6: memref<8x512xf32, #tpu.memory_space<vmem>>, %arg7: memref<8x512xf32, #tpu.memory_space<vmem>>) attributes {dimension_semantics = [#tpu.dimension_semantics<parallel>, #tpu.dimension_semantics<parallel>, #tpu.dimension_semantics<arbitrary>], iteration_bounds = array<i64: 1, 4, 1>, scalar_prefetch = 0 : i64, scratch_operands = 1 : i64, tpu.core_type = #tpu.core_type<tc>, window_params = [{transform_indices = @transform_0, window_bounds = array<i64: 8, 8>}, {transform_indices = @transform_1, window_bounds = array<i64: 8, 512>}, {transform_indices = @transform_2, window_bounds = array<i64: 1, 512>}, {transform_indices = @transform_3, window_bounds = array<i64: 8, 512>}]} {
    %c0_i32 = arith.constant 0 : i32
    %0 = arith.cmpi eq, %arg2, %c0_i32 : i32
    %1 = arith.extui %0 : i1 to i32
    %c0_i32_0 = arith.constant 0 : i32
    %2 = arith.cmpi ne, %1, %c0_i32_0 : i32
    scf.if %2 {
      %cst_10 = arith.constant 0.000000e+00 : f32
      %14 = vector.broadcast %cst_10 : f32 to vector<8x512xf32>
      %c0_11 = arith.constant 0 : index
      %c0_12 = arith.constant 0 : index
      %15 = vector.load %arg7[%c0_11, %c0_12] : memref<8x512xf32, #tpu.memory_space<vmem>>, vector<8x512xf32>
      tpu.vector_store %arg7[%c0_11, %c0_12], %14 {strides = array<i32>} : memref<8x512xf32, #tpu.memory_space<vmem>>, vector<8x512xf32>,
    } else {
    }
    %c0 = arith.constant 0 : index
    %c0_1 = arith.constant 0 : index
    %3 = vector.load %arg7[%c0, %c0_1] : memref<8x512xf32, #tpu.memory_space<vmem>>, vector<8x512xf32>
    %c0_2 = arith.constant 0 : index
    %c0_3 = arith.constant 0 : index
    %4 = vector.load %arg3[%c0_2, %c0_3] : memref<8x8xf32, #tpu.memory_space<vmem>>, vector<8x8xf32>
    %5 = arith.truncf %4 : vector<8x8xf32> to vector<8x8xbf16>
    %c0_4 = arith.constant 0 : index
    %c0_5 = arith.constant 0 : index
    %6 = vector.load %arg4[%c0_4, %c0_5] : memref<8x512xf32, #tpu.memory_space<vmem>>, vector<8x512xf32>
    %7 = arith.truncf %6 : vector<8x512xf32> to vector<8x512xbf16>
    %cst = arith.constant dense<0.000000e+00> : vector<8x512xf32>
    %8 = tpu.matmul %5, %7, %cst {dimension_numbers = #tpu.dot_dimension_numbers<[1], [0], [0], [1], [0, 0, 1, 1], [], []>} : vector<8x8xbf16>, vector<8x512xbf16>, vector<8x512xf32> -> vector<8x512xf32>
    %9 = arith.addf %3, %8 : vector<8x512xf32>
    %c0_6 = arith.constant 0 : index
    %c0_7 = arith.constant 0 : index
    %10 = vector.load %arg7[%c0_6, %c0_7] : memref<8x512xf32, #tpu.memory_space<vmem>>, vector<8x512xf32>
    tpu.vector_store %arg7[%c0_6, %c0_7], %9 {strides = array<i32>} : memref<8x512xf32, #tpu.memory_space<vmem>>, vector<8x512xf32>,
    %c0_i32_8 = arith.constant 0 : i32
    %11 = arith.cmpi eq, %arg2, %c0_i32_8 : i32
    %12 = arith.extui %11 : i1 to i32
    %c0_i32_9 = arith.constant 0 : i32
    %13 = arith.cmpi ne, %12, %c0_i32_9 : i32
    scf.if %13 {
      %c0_10 = arith.constant 0 : index
      %c0_11 = arith.constant 0 : index
      %14 = vector.load %arg7[%c0_10, %c0_11] : memref<8x512xf32, #tpu.memory_space<vmem>>, vector<8x512xf32>
      %c0_12 = arith.constant 0 : index
      %c0_13 = arith.constant 0 : index
      %15 = vector.load %arg5[%c0_12, %c0_13] : memref<1x512xf32, #tpu.memory_space<vmem>>, vector<1x512xf32>
      %16 = vector.broadcast %15 : vector<1x512xf32> to vector<8x512xf32>
      %17 = arith.addf %14, %16 : vector<8x512xf32>
      %c0_14 = arith.constant 0 : index
      %c0_15 = arith.constant 0 : index
      %18 = vector.load %arg6[%c0_14, %c0_15] : memref<8x512xf32, #tpu.memory_space<vmem>>, vector<8x512xf32>
      tpu.vector_store %arg6[%c0_14, %c0_15], %17 {strides = array<i32>} : memref<8x512xf32, #tpu.memory_space<vmem>>, vector<8x512xf32>,
    } else {
    }
    return
  }
  func.func @transform_0(%arg0: i32, %arg1: i32, %arg2: i32) -> (i32, i32) {
    %c0_i32 = arith.constant 0 : i32
    return %arg0, %arg2 : i32, i32
  }
  func.func @transform_1(%arg0: i32, %arg1: i32, %arg2: i32) -> (i32, i32) {
    %c0_i32 = arith.constant 0 : i32
    return %arg2, %arg1 : i32, i32
  }
  func.func @transform_2(%arg0: i32, %arg1: i32, %arg2: i32) -> (i32, i32) {
    %c0_i32 = arith.constant 0 : i32
    %c0_i32_0 = arith.constant 0 : i32
    return %c0_i32, %arg1 : i32, i32
  }
  func.func @transform_3(%arg0: i32, %arg1: i32, %arg2: i32) -> (i32, i32) {
    %c0_i32 = arith.constant 0 : i32
    return %arg0, %arg1 : i32, i32
  }
}

module attributes {stable_mosaic.version = 11 : i64} {
  func.func @_gin_layer_kernel(%arg0: i32, %arg1: memref<128x1xf32, #tpu.memory_space<vmem>>, %arg2: memref<128x128xf32, #tpu.memory_space<vmem>>, %arg3: memref<128x1xf32, #tpu.memory_space<vmem>>, %arg4: memref<128x1xf32, #tpu.memory_space<vmem>>, %arg5: memref<1x128xf32, #tpu.memory_space<vmem>>, %arg6: memref<1x128xf32, #tpu.memory_space<vmem>>, %arg7: memref<1x128xf32, #tpu.memory_space<vmem>>, %arg8: memref<128x128xbf16, #tpu.memory_space<vmem>>, %arg9: memref<1x128xf32, #tpu.memory_space<vmem>>, %arg10: memref<1x128xf32, #tpu.memory_space<vmem>>, %arg11: memref<1x128xf32, #tpu.memory_space<vmem>>, %arg12: memref<1x128xf32, #tpu.memory_space<vmem>>, %arg13: memref<128x128xf32, #tpu.memory_space<vmem>>) attributes {dimension_semantics = [#tpu.dimension_semantics<arbitrary>], iteration_bounds = array<i64: 1>, scalar_prefetch = 0 : i64, scratch_operands = 0 : i64, tpu.core_type = #tpu.core_type<tc>, window_params = [{pipeline_mode = #tpu.pipeline_mode<synchronous>, transform_indices = @transform_0, window_bounds = array<i64: 128, 1>}, {pipeline_mode = #tpu.pipeline_mode<synchronous>, transform_indices = @transform_1, window_bounds = array<i64: 128, 128>}, {pipeline_mode = #tpu.pipeline_mode<synchronous>, transform_indices = @transform_2, window_bounds = array<i64: 128, 1>}, {pipeline_mode = #tpu.pipeline_mode<synchronous>, transform_indices = @transform_3, window_bounds = array<i64: 128, 1>}, {pipeline_mode = #tpu.pipeline_mode<synchronous>, transform_indices = @transform_4, window_bounds = array<i64: 1, 128>}, {pipeline_mode = #tpu.pipeline_mode<synchronous>, transform_indices = @transform_5, window_bounds = array<i64: 1, 128>}, {pipeline_mode = #tpu.pipeline_mode<synchronous>, transform_indices = @transform_6, window_bounds = array<i64: 1, 128>}, {pipeline_mode = #tpu.pipeline_mode<synchronous>, transform_indices = @transform_7, window_bounds = array<i64: 128, 128>}, {pipeline_mode = #tpu.pipeline_mode<synchronous>, transform_indices = @transform_8, window_bounds = array<i64: 1, 128>}, {pipeline_mode = #tpu.pipeline_mode<synchronous>, transform_indices = @transform_9, window_bounds = array<i64: 1, 128>}, {pipeline_mode = #tpu.pipeline_mode<synchronous>, transform_indices = @transform_10, window_bounds = array<i64: 1, 128>}, {pipeline_mode = #tpu.pipeline_mode<synchronous>, transform_indices = @transform_11, window_bounds = array<i64: 1, 128>}, {pipeline_mode = #tpu.pipeline_mode<synchronous>, transform_indices = @transform_12, window_bounds = array<i64: 128, 128>}]} {
    %c0 = arith.constant 0 : index
    %c0_0 = arith.constant 0 : index
    %0 = vector.load %arg3[%c0, %c0_0] : memref<128x1xf32, #tpu.memory_space<vmem>>, vector<128x1xf32>
    %c0_1 = arith.constant 0 : index
    %c0_2 = arith.constant 0 : index
    %1 = vector.load %arg4[%c0_1, %c0_2] : memref<128x1xf32, #tpu.memory_space<vmem>>, vector<128x1xf32>
    %cst = arith.constant dense<0.000000e+00> : vector<1xf32>
    %2 = vector.multi_reduction <add>, %0, %cst [0] : vector<128x1xf32> to vector<1xf32>
    %3 = vector.shape_cast %2 : vector<1xf32> to vector<1x1xf32>
    %cst_3 = arith.constant 1.000000e+00 : f32
    %4 = vector.broadcast %cst_3 : f32 to vector<1x1xf32>
    %5 = arith.maximumf %3, %4 : vector<1x1xf32>
    %cst_4 = arith.constant 1.000000e+00 : f32
    %6 = vector.broadcast %cst_4 : f32 to vector<1x1xf32>
    %7 = arith.divf %6, %5 : vector<1x1xf32>
    %cst_5 = arith.constant dense<0.000000e+00> : vector<1xf32>
    %8 = vector.multi_reduction <add>, %1, %cst_5 [0] : vector<128x1xf32> to vector<1xf32>
    %9 = vector.shape_cast %8 : vector<1xf32> to vector<1x1xf32>
    %cst_6 = arith.constant 1.000000e+00 : f32
    %10 = vector.broadcast %cst_6 : f32 to vector<1x1xf32>
    %11 = arith.maximumf %9, %10 : vector<1x1xf32>
    %cst_7 = arith.constant 1.000000e+00 : f32
    %12 = vector.broadcast %cst_7 : f32 to vector<1x1xf32>
    %13 = arith.divf %12, %11 : vector<1x1xf32>
    %c0_8 = arith.constant 0 : index
    %c0_9 = arith.constant 0 : index
    %14 = vector.load %arg1[%c0_8, %c0_9] : memref<128x1xf32, #tpu.memory_space<vmem>>, vector<128x1xf32>
    %c0_10 = arith.constant 0 : index
    %c0_11 = arith.constant 0 : index
    %15 = vector.load %arg5[%c0_10, %c0_11] : memref<1x128xf32, #tpu.memory_space<vmem>>, vector<1x128xf32>
    %16 = vector.broadcast %14 : vector<128x1xf32> to vector<128x128xf32>
    %17 = vector.broadcast %15 : vector<1x128xf32> to vector<128x128xf32>
    %18 = arith.mulf %16, %17 : vector<128x128xf32>
    %c0_12 = arith.constant 0 : index
    %c0_13 = arith.constant 0 : index
    %19 = vector.load %arg6[%c0_12, %c0_13] : memref<1x128xf32, #tpu.memory_space<vmem>>, vector<1x128xf32>
    %c0_14 = arith.constant 0 : index
    %c0_15 = arith.constant 0 : index
    %20 = vector.load %arg7[%c0_14, %c0_15] : memref<1x128xf32, #tpu.memory_space<vmem>>, vector<1x128xf32>
    %21 = vector.broadcast %0 : vector<128x1xf32> to vector<128x128xf32>
    %22 = arith.mulf %18, %21 : vector<128x128xf32>
    %cst_16 = arith.constant dense<0.000000e+00> : vector<128xf32>
    %23 = vector.multi_reduction <add>, %22, %cst_16 [0] : vector<128x128xf32> to vector<128xf32>
    %24 = vector.shape_cast %23 : vector<128xf32> to vector<1x128xf32>
    %25 = vector.broadcast %7 : vector<1x1xf32> to vector<1x128xf32>
    %26 = arith.mulf %24, %25 : vector<1x128xf32>
    %27 = vector.broadcast %26 : vector<1x128xf32> to vector<128x128xf32>
    %28 = arith.subf %18, %27 : vector<128x128xf32>
    %29 = vector.broadcast %0 : vector<128x1xf32> to vector<128x128xf32>
    %30 = arith.mulf %28, %29 : vector<128x128xf32>
    %31 = arith.mulf %30, %30 : vector<128x128xf32>
    %cst_17 = arith.constant dense<0.000000e+00> : vector<128xf32>
    %32 = vector.multi_reduction <add>, %31, %cst_17 [0] : vector<128x128xf32> to vector<128xf32>
    %33 = vector.shape_cast %32 : vector<128xf32> to vector<1x128xf32>
    %34 = vector.broadcast %7 : vector<1x1xf32> to vector<1x128xf32>
    %35 = arith.mulf %33, %34 : vector<1x128xf32>
    %36 = vector.broadcast %1 : vector<128x1xf32> to vector<128x128xf32>
    %37 = arith.mulf %18, %36 : vector<128x128xf32>
    %cst_18 = arith.constant dense<0.000000e+00> : vector<128xf32>
    %38 = vector.multi_reduction <add>, %37, %cst_18 [0] : vector<128x128xf32> to vector<128xf32>
    %39 = vector.shape_cast %38 : vector<128xf32> to vector<1x128xf32>
    %40 = vector.broadcast %13 : vector<1x1xf32> to vector<1x128xf32>
    %41 = arith.mulf %39, %40 : vector<1x128xf32>
    %42 = vector.broadcast %41 : vector<1x128xf32> to vector<128x128xf32>
    %43 = arith.subf %18, %42 : vector<128x128xf32>
    %44 = vector.broadcast %1 : vector<128x1xf32> to vector<128x128xf32>
    %45 = arith.mulf %43, %44 : vector<128x128xf32>
    %46 = arith.mulf %45, %45 : vector<128x128xf32>
    %cst_19 = arith.constant dense<0.000000e+00> : vector<128xf32>
    %47 = vector.multi_reduction <add>, %46, %cst_19 [0] : vector<128x128xf32> to vector<128xf32>
    %48 = vector.shape_cast %47 : vector<128xf32> to vector<1x128xf32>
    %49 = vector.broadcast %13 : vector<1x1xf32> to vector<1x128xf32>
    %50 = arith.mulf %48, %49 : vector<1x128xf32>
    %51 = vector.broadcast %0 : vector<128x1xf32> to vector<128x128xf32>
    %52 = vector.broadcast %26 : vector<1x128xf32> to vector<128x128xf32>
    %53 = arith.mulf %51, %52 : vector<128x128xf32>
    %54 = vector.broadcast %1 : vector<128x1xf32> to vector<128x128xf32>
    %55 = vector.broadcast %41 : vector<1x128xf32> to vector<128x128xf32>
    %56 = arith.mulf %54, %55 : vector<128x128xf32>
    %57 = arith.addf %53, %56 : vector<128x128xf32>
    %58 = vector.broadcast %0 : vector<128x1xf32> to vector<128x128xf32>
    %59 = vector.broadcast %35 : vector<1x128xf32> to vector<128x128xf32>
    %60 = arith.mulf %58, %59 : vector<128x128xf32>
    %61 = vector.broadcast %1 : vector<128x1xf32> to vector<128x128xf32>
    %62 = vector.broadcast %50 : vector<1x128xf32> to vector<128x128xf32>
    %63 = arith.mulf %61, %62 : vector<128x128xf32>
    %64 = arith.addf %60, %63 : vector<128x128xf32>
    %65 = arith.subf %18, %57 : vector<128x128xf32>
    %cst_20 = arith.constant 9.99999974E-6 : f32
    %66 = vector.broadcast %cst_20 : f32 to vector<128x128xf32>
    %67 = arith.addf %64, %66 : vector<128x128xf32>
    %68 = math.rsqrt %67 : vector<128x128xf32>
    %69 = arith.mulf %65, %68 : vector<128x128xf32>
    %70 = vector.broadcast %19 : vector<1x128xf32> to vector<128x128xf32>
    %71 = arith.mulf %69, %70 : vector<128x128xf32>
    %72 = vector.broadcast %20 : vector<1x128xf32> to vector<128x128xf32>
    %73 = arith.addf %71, %72 : vector<128x128xf32>
    %cst_21 = arith.constant 0.000000e+00 : f32
    %74 = vector.broadcast %cst_21 : f32 to vector<128x128xf32>
    %75 = arith.maximumf %73, %74 : vector<128x128xf32>
    %76 = arith.truncf %75 : vector<128x128xf32> to vector<128x128xbf16>
    %c0_22 = arith.constant 0 : index
    %c0_23 = arith.constant 0 : index
    %77 = vector.load %arg8[%c0_22, %c0_23] : memref<128x128xbf16, #tpu.memory_space<vmem>>, vector<128x128xbf16>
    %cst_24 = arith.constant dense<0.000000e+00> : vector<128x128xf32>
    %78 = tpu.matmul %76, %77, %cst_24 {dimension_numbers = #tpu.dot_dimension_numbers<[1], [0], [0], [1], [0, 0, 1, 1], [], []>} : vector<128x128xbf16>, vector<128x128xbf16>, vector<128x128xf32> -> vector<128x128xf32>
    %c0_25 = arith.constant 0 : index
    %c0_26 = arith.constant 0 : index
    %79 = vector.load %arg9[%c0_25, %c0_26] : memref<1x128xf32, #tpu.memory_space<vmem>>, vector<1x128xf32>
    %c0_27 = arith.constant 0 : index
    %c0_28 = arith.constant 0 : index
    %80 = vector.load %arg10[%c0_27, %c0_28] : memref<1x128xf32, #tpu.memory_space<vmem>>, vector<1x128xf32>
    %81 = vector.broadcast %0 : vector<128x1xf32> to vector<128x128xf32>
    %82 = arith.mulf %78, %81 : vector<128x128xf32>
    %cst_29 = arith.constant dense<0.000000e+00> : vector<128xf32>
    %83 = vector.multi_reduction <add>, %82, %cst_29 [0] : vector<128x128xf32> to vector<128xf32>
    %84 = vector.shape_cast %83 : vector<128xf32> to vector<1x128xf32>
    %85 = vector.broadcast %7 : vector<1x1xf32> to vector<1x128xf32>
    %86 = arith.mulf %84, %85 : vector<1x128xf32>
    %87 = vector.broadcast %86 : vector<1x128xf32> to vector<128x128xf32>
    %88 = arith.subf %78, %87 : vector<128x128xf32>
    %89 = vector.broadcast %0 : vector<128x1xf32> to vector<128x128xf32>
    %90 = arith.mulf %88, %89 : vector<128x128xf32>
    %91 = arith.mulf %90, %90 : vector<128x128xf32>
    %cst_30 = arith.constant dense<0.000000e+00> : vector<128xf32>
    %92 = vector.multi_reduction <add>, %91, %cst_30 [0] : vector<128x128xf32> to vector<128xf32>
    %93 = vector.shape_cast %92 : vector<128xf32> to vector<1x128xf32>
    %94 = vector.broadcast %7 : vector<1x1xf32> to vector<1x128xf32>
    %95 = arith.mulf %93, %94 : vector<1x128xf32>
    %96 = vector.broadcast %1 : vector<128x1xf32> to vector<128x128xf32>
    %97 = arith.mulf %78, %96 : vector<128x128xf32>
    %cst_31 = arith.constant dense<0.000000e+00> : vector<128xf32>
    %98 = vector.multi_reduction <add>, %97, %cst_31 [0] : vector<128x128xf32> to vector<128xf32>
    %99 = vector.shape_cast %98 : vector<128xf32> to vector<1x128xf32>
    %100 = vector.broadcast %13 : vector<1x1xf32> to vector<1x128xf32>
    %101 = arith.mulf %99, %100 : vector<1x128xf32>
    %102 = vector.broadcast %101 : vector<1x128xf32> to vector<128x128xf32>
    %103 = arith.subf %78, %102 : vector<128x128xf32>
    %104 = vector.broadcast %1 : vector<128x1xf32> to vector<128x128xf32>
    %105 = arith.mulf %103, %104 : vector<128x128xf32>
    %106 = arith.mulf %105, %105 : vector<128x128xf32>
    %cst_32 = arith.constant dense<0.000000e+00> : vector<128xf32>
    %107 = vector.multi_reduction <add>, %106, %cst_32 [0] : vector<128x128xf32> to vector<128xf32>
    %108 = vector.shape_cast %107 : vector<128xf32> to vector<1x128xf32>
    %109 = vector.broadcast %13 : vector<1x1xf32> to vector<1x128xf32>
    %110 = arith.mulf %108, %109 : vector<1x128xf32>
    %111 = vector.broadcast %0 : vector<128x1xf32> to vector<128x128xf32>
    %112 = vector.broadcast %86 : vector<1x128xf32> to vector<128x128xf32>
    %113 = arith.mulf %111, %112 : vector<128x128xf32>
    %114 = vector.broadcast %1 : vector<128x1xf32> to vector<128x128xf32>
    %115 = vector.broadcast %101 : vector<1x128xf32> to vector<128x128xf32>
    %116 = arith.mulf %114, %115 : vector<128x128xf32>
    %117 = arith.addf %113, %116 : vector<128x128xf32>
    %118 = vector.broadcast %0 : vector<128x1xf32> to vector<128x128xf32>
    %119 = vector.broadcast %95 : vector<1x128xf32> to vector<128x128xf32>
    %120 = arith.mulf %118, %119 : vector<128x128xf32>
    %121 = vector.broadcast %1 : vector<128x1xf32> to vector<128x128xf32>
    %122 = vector.broadcast %110 : vector<1x128xf32> to vector<128x128xf32>
    %123 = arith.mulf %121, %122 : vector<128x128xf32>
    %124 = arith.addf %120, %123 : vector<128x128xf32>
    %125 = arith.subf %78, %117 : vector<128x128xf32>
    %cst_33 = arith.constant 9.99999974E-6 : f32
    %126 = vector.broadcast %cst_33 : f32 to vector<128x128xf32>
    %127 = arith.addf %124, %126 : vector<128x128xf32>
    %128 = math.rsqrt %127 : vector<128x128xf32>
    %129 = arith.mulf %125, %128 : vector<128x128xf32>
    %130 = vector.broadcast %79 : vector<1x128xf32> to vector<128x128xf32>
    %131 = arith.mulf %129, %130 : vector<128x128xf32>
    %132 = vector.broadcast %80 : vector<1x128xf32> to vector<128x128xf32>
    %133 = arith.addf %131, %132 : vector<128x128xf32>
    %cst_34 = arith.constant 0.000000e+00 : f32
    %134 = vector.broadcast %cst_34 : f32 to vector<128x128xf32>
    %135 = arith.maximumf %133, %134 : vector<128x128xf32>
    %136 = arith.addf %0, %1 : vector<128x1xf32>
    %137 = vector.broadcast %136 : vector<128x1xf32> to vector<128x128xf32>
    %138 = arith.mulf %135, %137 : vector<128x128xf32>
    %c0_35 = arith.constant 0 : index
    %c0_36 = arith.constant 0 : index
    %139 = vector.load %arg11[%c0_35, %c0_36] : memref<1x128xf32, #tpu.memory_space<vmem>>, vector<1x128xf32>
    %c0_37 = arith.constant 0 : index
    %c0_38 = arith.constant 0 : index
    %140 = vector.load %arg12[%c0_37, %c0_38] : memref<1x128xf32, #tpu.memory_space<vmem>>, vector<1x128xf32>
    %141 = vector.broadcast %0 : vector<128x1xf32> to vector<128x128xf32>
    %142 = arith.mulf %138, %141 : vector<128x128xf32>
    %cst_39 = arith.constant dense<0.000000e+00> : vector<128xf32>
    %143 = vector.multi_reduction <add>, %142, %cst_39 [0] : vector<128x128xf32> to vector<128xf32>
    %144 = vector.shape_cast %143 : vector<128xf32> to vector<1x128xf32>
    %145 = vector.broadcast %7 : vector<1x1xf32> to vector<1x128xf32>
    %146 = arith.mulf %144, %145 : vector<1x128xf32>
    %147 = vector.broadcast %146 : vector<1x128xf32> to vector<128x128xf32>
    %148 = arith.subf %138, %147 : vector<128x128xf32>
    %149 = vector.broadcast %0 : vector<128x1xf32> to vector<128x128xf32>
    %150 = arith.mulf %148, %149 : vector<128x128xf32>
    %151 = arith.mulf %150, %150 : vector<128x128xf32>
    %cst_40 = arith.constant dense<0.000000e+00> : vector<128xf32>
    %152 = vector.multi_reduction <add>, %151, %cst_40 [0] : vector<128x128xf32> to vector<128xf32>
    %153 = vector.shape_cast %152 : vector<128xf32> to vector<1x128xf32>
    %154 = vector.broadcast %7 : vector<1x1xf32> to vector<1x128xf32>
    %155 = arith.mulf %153, %154 : vector<1x128xf32>
    %156 = vector.broadcast %1 : vector<128x1xf32> to vector<128x128xf32>
    %157 = arith.mulf %138, %156 : vector<128x128xf32>
    %cst_41 = arith.constant dense<0.000000e+00> : vector<128xf32>
    %158 = vector.multi_reduction <add>, %157, %cst_41 [0] : vector<128x128xf32> to vector<128xf32>
    %159 = vector.shape_cast %158 : vector<128xf32> to vector<1x128xf32>
    %160 = vector.broadcast %13 : vector<1x1xf32> to vector<1x128xf32>
    %161 = arith.mulf %159, %160 : vector<1x128xf32>
    %162 = vector.broadcast %161 : vector<1x128xf32> to vector<128x128xf32>
    %163 = arith.subf %138, %162 : vector<128x128xf32>
    %164 = vector.broadcast %1 : vector<128x1xf32> to vector<128x128xf32>
    %165 = arith.mulf %163, %164 : vector<128x128xf32>
    %166 = arith.mulf %165, %165 : vector<128x128xf32>
    %cst_42 = arith.constant dense<0.000000e+00> : vector<128xf32>
    %167 = vector.multi_reduction <add>, %166, %cst_42 [0] : vector<128x128xf32> to vector<128xf32>
    %168 = vector.shape_cast %167 : vector<128xf32> to vector<1x128xf32>
    %169 = vector.broadcast %13 : vector<1x1xf32> to vector<1x128xf32>
    %170 = arith.mulf %168, %169 : vector<1x128xf32>
    %171 = vector.broadcast %0 : vector<128x1xf32> to vector<128x128xf32>
    %172 = vector.broadcast %146 : vector<1x128xf32> to vector<128x128xf32>
    %173 = arith.mulf %171, %172 : vector<128x128xf32>
    %174 = vector.broadcast %1 : vector<128x1xf32> to vector<128x128xf32>
    %175 = vector.broadcast %161 : vector<1x128xf32> to vector<128x128xf32>
    %176 = arith.mulf %174, %175 : vector<128x128xf32>
    %177 = arith.addf %173, %176 : vector<128x128xf32>
    %178 = vector.broadcast %0 : vector<128x1xf32> to vector<128x128xf32>
    %179 = vector.broadcast %155 : vector<1x128xf32> to vector<128x128xf32>
    %180 = arith.mulf %178, %179 : vector<128x128xf32>
    %181 = vector.broadcast %1 : vector<128x1xf32> to vector<128x128xf32>
    %182 = vector.broadcast %170 : vector<1x128xf32> to vector<128x128xf32>
    %183 = arith.mulf %181, %182 : vector<128x128xf32>
    %184 = arith.addf %180, %183 : vector<128x128xf32>
    %185 = arith.subf %138, %177 : vector<128x128xf32>
    %cst_43 = arith.constant 9.99999974E-6 : f32
    %186 = vector.broadcast %cst_43 : f32 to vector<128x128xf32>
    %187 = arith.addf %184, %186 : vector<128x128xf32>
    %188 = math.rsqrt %187 : vector<128x128xf32>
    %189 = arith.mulf %185, %188 : vector<128x128xf32>
    %190 = vector.broadcast %139 : vector<1x128xf32> to vector<128x128xf32>
    %191 = arith.mulf %189, %190 : vector<128x128xf32>
    %192 = vector.broadcast %140 : vector<1x128xf32> to vector<128x128xf32>
    %193 = arith.addf %191, %192 : vector<128x128xf32>
    %cst_44 = arith.constant 0.000000e+00 : f32
    %194 = vector.broadcast %cst_44 : f32 to vector<128x128xf32>
    %195 = arith.maximumf %193, %194 : vector<128x128xf32>
    %196 = vector.broadcast %136 : vector<128x1xf32> to vector<128x128xf32>
    %197 = arith.mulf %195, %196 : vector<128x128xf32>
    %c0_45 = arith.constant 0 : index
    %c0_46 = arith.constant 0 : index
    %198 = vector.load %arg2[%c0_45, %c0_46] : memref<128x128xf32, #tpu.memory_space<vmem>>, vector<128x128xf32>
    %199 = arith.addf %197, %198 : vector<128x128xf32>
    %c0_47 = arith.constant 0 : index
    %c0_48 = arith.constant 0 : index
    %200 = vector.load %arg13[%c0_47, %c0_48] : memref<128x128xf32, #tpu.memory_space<vmem>>, vector<128x128xf32>
    tpu.vector_store %arg13[%c0_47, %c0_48], %199 {strides = array<i32>} : memref<128x128xf32, #tpu.memory_space<vmem>>, vector<128x128xf32>,
    return
  }
  func.func @transform_0(%arg0: i32) -> (i32, i32) {
    %c0_i32 = arith.constant 0 : i32
    %c0_i32_0 = arith.constant 0 : i32
    %c0_i32_1 = arith.constant 0 : i32
    return %c0_i32, %c0_i32_0 : i32, i32
  }
  func.func @transform_1(%arg0: i32) -> (i32, i32) {
    %c0_i32 = arith.constant 0 : i32
    %c0_i32_0 = arith.constant 0 : i32
    %c0_i32_1 = arith.constant 0 : i32
    return %c0_i32, %c0_i32_0 : i32, i32
  }
  func.func @transform_2(%arg0: i32) -> (i32, i32) {
    %c0_i32 = arith.constant 0 : i32
    %c0_i32_0 = arith.constant 0 : i32
    %c0_i32_1 = arith.constant 0 : i32
    return %c0_i32, %c0_i32_0 : i32, i32
  }
  func.func @transform_3(%arg0: i32) -> (i32, i32) {
    %c0_i32 = arith.constant 0 : i32
    %c0_i32_0 = arith.constant 0 : i32
    %c0_i32_1 = arith.constant 0 : i32
    return %c0_i32, %c0_i32_0 : i32, i32
  }
  func.func @transform_4(%arg0: i32) -> (i32, i32) {
    %c0_i32 = arith.constant 0 : i32
    %c0_i32_0 = arith.constant 0 : i32
    %c0_i32_1 = arith.constant 0 : i32
    return %c0_i32, %c0_i32_0 : i32, i32
  }
  func.func @transform_5(%arg0: i32) -> (i32, i32) {
    %c0_i32 = arith.constant 0 : i32
    %c0_i32_0 = arith.constant 0 : i32
    %c0_i32_1 = arith.constant 0 : i32
    return %c0_i32, %c0_i32_0 : i32, i32
  }
  func.func @transform_6(%arg0: i32) -> (i32, i32) {
    %c0_i32 = arith.constant 0 : i32
    %c0_i32_0 = arith.constant 0 : i32
    %c0_i32_1 = arith.constant 0 : i32
    return %c0_i32, %c0_i32_0 : i32, i32
  }
  func.func @transform_7(%arg0: i32) -> (i32, i32) {
    %c0_i32 = arith.constant 0 : i32
    %c0_i32_0 = arith.constant 0 : i32
    %c0_i32_1 = arith.constant 0 : i32
    return %c0_i32, %c0_i32_0 : i32, i32
  }
  func.func @transform_8(%arg0: i32) -> (i32, i32) {
    %c0_i32 = arith.constant 0 : i32
    %c0_i32_0 = arith.constant 0 : i32
    %c0_i32_1 = arith.constant 0 : i32
    return %c0_i32, %c0_i32_0 : i32, i32
  }
  func.func @transform_9(%arg0: i32) -> (i32, i32) {
    %c0_i32 = arith.constant 0 : i32
    %c0_i32_0 = arith.constant 0 : i32
    %c0_i32_1 = arith.constant 0 : i32
    return %c0_i32, %c0_i32_0 : i32, i32
  }
  func.func @transform_10(%arg0: i32) -> (i32, i32) {
    %c0_i32 = arith.constant 0 : i32
    %c0_i32_0 = arith.constant 0 : i32
    %c0_i32_1 = arith.constant 0 : i32
    return %c0_i32, %c0_i32_0 : i32, i32
  }
  func.func @transform_11(%arg0: i32) -> (i32, i32) {
    %c0_i32 = arith.constant 0 : i32
    %c0_i32_0 = arith.constant 0 : i32
    %c0_i32_1 = arith.constant 0 : i32
    return %c0_i32, %c0_i32_0 : i32, i32
  }
  func.func @transform_12(%arg0: i32) -> (i32, i32) {
    %c0_i32 = arith.constant 0 : i32
    %c0_i32_0 = arith.constant 0 : i32
    %c0_i32_1 = arith.constant 0 : i32
    return %c0_i32, %c0_i32_0 : i32, i32
  }
}

module attributes {stable_mosaic.version = 11 : i64} {
  func.func @_mm_kernel(%arg0: i32, %arg1: i32, %arg2: i32, %arg3: memref<8x8xf32, #tpu.memory_space<vmem>>, %arg4: memref<8x128xf32, #tpu.memory_space<vmem>>, %arg5: memref<1x128xf32, #tpu.memory_space<vmem>>, %arg6: memref<8x128xf32, #tpu.memory_space<vmem>>, %arg7: memref<8x128xf32, #tpu.memory_space<vmem>>) attributes {dimension_semantics = [#tpu.dimension_semantics<parallel>, #tpu.dimension_semantics<parallel>, #tpu.dimension_semantics<arbitrary>], iteration_bounds = array<i64: 1, 1, 1>, scalar_prefetch = 0 : i64, scratch_operands = 1 : i64, tpu.core_type = #tpu.core_type<tc>, window_params = [{transform_indices = @transform_0, window_bounds = array<i64: 8, 8>}, {transform_indices = @transform_1, window_bounds = array<i64: 8, 128>}, {transform_indices = @transform_2, window_bounds = array<i64: 1, 128>}, {transform_indices = @transform_3, window_bounds = array<i64: 8, 128>}]} {
    %c0_i32 = arith.constant 0 : i32
    %0 = arith.cmpi eq, %arg2, %c0_i32 : i32
    %1 = arith.extui %0 : i1 to i32
    %c0_i32_0 = arith.constant 0 : i32
    %2 = arith.cmpi ne, %1, %c0_i32_0 : i32
    scf.if %2 {
      %cst_10 = arith.constant 0.000000e+00 : f32
      %14 = vector.broadcast %cst_10 : f32 to vector<8x128xf32>
      %c0_11 = arith.constant 0 : index
      %c0_12 = arith.constant 0 : index
      %15 = vector.load %arg7[%c0_11, %c0_12] : memref<8x128xf32, #tpu.memory_space<vmem>>, vector<8x128xf32>
      tpu.vector_store %arg7[%c0_11, %c0_12], %14 {strides = array<i32>} : memref<8x128xf32, #tpu.memory_space<vmem>>, vector<8x128xf32>,
    } else {
    }
    %c0 = arith.constant 0 : index
    %c0_1 = arith.constant 0 : index
    %3 = vector.load %arg7[%c0, %c0_1] : memref<8x128xf32, #tpu.memory_space<vmem>>, vector<8x128xf32>
    %c0_2 = arith.constant 0 : index
    %c0_3 = arith.constant 0 : index
    %4 = vector.load %arg3[%c0_2, %c0_3] : memref<8x8xf32, #tpu.memory_space<vmem>>, vector<8x8xf32>
    %5 = arith.truncf %4 : vector<8x8xf32> to vector<8x8xbf16>
    %c0_4 = arith.constant 0 : index
    %c0_5 = arith.constant 0 : index
    %6 = vector.load %arg4[%c0_4, %c0_5] : memref<8x128xf32, #tpu.memory_space<vmem>>, vector<8x128xf32>
    %7 = arith.truncf %6 : vector<8x128xf32> to vector<8x128xbf16>
    %cst = arith.constant dense<0.000000e+00> : vector<8x128xf32>
    %8 = tpu.matmul %5, %7, %cst {dimension_numbers = #tpu.dot_dimension_numbers<[1], [0], [0], [1], [0, 0, 1, 1], [], []>} : vector<8x8xbf16>, vector<8x128xbf16>, vector<8x128xf32> -> vector<8x128xf32>
    %9 = arith.addf %3, %8 : vector<8x128xf32>
    %c0_6 = arith.constant 0 : index
    %c0_7 = arith.constant 0 : index
    %10 = vector.load %arg7[%c0_6, %c0_7] : memref<8x128xf32, #tpu.memory_space<vmem>>, vector<8x128xf32>
    tpu.vector_store %arg7[%c0_6, %c0_7], %9 {strides = array<i32>} : memref<8x128xf32, #tpu.memory_space<vmem>>, vector<8x128xf32>,
    %c0_i32_8 = arith.constant 0 : i32
    %11 = arith.cmpi eq, %arg2, %c0_i32_8 : i32
    %12 = arith.extui %11 : i1 to i32
    %c0_i32_9 = arith.constant 0 : i32
    %13 = arith.cmpi ne, %12, %c0_i32_9 : i32
    scf.if %13 {
      %c0_10 = arith.constant 0 : index
      %c0_11 = arith.constant 0 : index
      %14 = vector.load %arg7[%c0_10, %c0_11] : memref<8x128xf32, #tpu.memory_space<vmem>>, vector<8x128xf32>
      %c0_12 = arith.constant 0 : index
      %c0_13 = arith.constant 0 : index
      %15 = vector.load %arg5[%c0_12, %c0_13] : memref<1x128xf32, #tpu.memory_space<vmem>>, vector<1x128xf32>
      %16 = vector.broadcast %15 : vector<1x128xf32> to vector<8x128xf32>
      %17 = arith.addf %14, %16 : vector<8x128xf32>
      %c0_14 = arith.constant 0 : index
      %c0_15 = arith.constant 0 : index
      %18 = vector.load %arg6[%c0_14, %c0_15] : memref<8x128xf32, #tpu.memory_space<vmem>>, vector<8x128xf32>
      tpu.vector_store %arg6[%c0_14, %c0_15], %17 {strides = array<i32>} : memref<8x128xf32, #tpu.memory_space<vmem>>, vector<8x128xf32>,
    } else {
    }
    return
  }
  func.func @transform_0(%arg0: i32, %arg1: i32, %arg2: i32) -> (i32, i32) {
    %c0_i32 = arith.constant 0 : i32
    return %arg0, %arg2 : i32, i32
  }
  func.func @transform_1(%arg0: i32, %arg1: i32, %arg2: i32) -> (i32, i32) {
    %c0_i32 = arith.constant 0 : i32
    return %arg2, %arg1 : i32, i32
  }
  func.func @transform_2(%arg0: i32, %arg1: i32, %arg2: i32) -> (i32, i32) {
    %c0_i32 = arith.constant 0 : i32
    %c0_i32_0 = arith.constant 0 : i32
    return %c0_i32, %arg1 : i32, i32
  }
  func.func @transform_3(%arg0: i32, %arg1: i32, %arg2: i32) -> (i32, i32) {
    %c0_i32 = arith.constant 0 : i32
    return %arg0, %arg1 : i32, i32
  }
}

module attributes {stable_mosaic.version = 11 : i64} {
  func.func @_gin_layer_kernel(%arg0: i32, %arg1: memref<128x128xf32, #tpu.memory_space<vmem>>, %arg2: memref<128x128xf32, #tpu.memory_space<vmem>>, %arg3: memref<128x1xf32, #tpu.memory_space<vmem>>, %arg4: memref<128x1xf32, #tpu.memory_space<vmem>>, %arg5: memref<128x128xbf16, #tpu.memory_space<vmem>>, %arg6: memref<1x128xf32, #tpu.memory_space<vmem>>, %arg7: memref<1x128xf32, #tpu.memory_space<vmem>>, %arg8: memref<128x128xbf16, #tpu.memory_space<vmem>>, %arg9: memref<1x128xf32, #tpu.memory_space<vmem>>, %arg10: memref<1x128xf32, #tpu.memory_space<vmem>>, %arg11: memref<1x128xf32, #tpu.memory_space<vmem>>, %arg12: memref<1x128xf32, #tpu.memory_space<vmem>>, %arg13: memref<128x128xf32, #tpu.memory_space<vmem>>) attributes {dimension_semantics = [#tpu.dimension_semantics<arbitrary>], iteration_bounds = array<i64: 1>, scalar_prefetch = 0 : i64, scratch_operands = 0 : i64, tpu.core_type = #tpu.core_type<tc>, window_params = [{pipeline_mode = #tpu.pipeline_mode<synchronous>, transform_indices = @transform_0, window_bounds = array<i64: 128, 128>}, {pipeline_mode = #tpu.pipeline_mode<synchronous>, transform_indices = @transform_1, window_bounds = array<i64: 128, 128>}, {pipeline_mode = #tpu.pipeline_mode<synchronous>, transform_indices = @transform_2, window_bounds = array<i64: 128, 1>}, {pipeline_mode = #tpu.pipeline_mode<synchronous>, transform_indices = @transform_3, window_bounds = array<i64: 128, 1>}, {pipeline_mode = #tpu.pipeline_mode<synchronous>, transform_indices = @transform_4, window_bounds = array<i64: 128, 128>}, {pipeline_mode = #tpu.pipeline_mode<synchronous>, transform_indices = @transform_5, window_bounds = array<i64: 1, 128>}, {pipeline_mode = #tpu.pipeline_mode<synchronous>, transform_indices = @transform_6, window_bounds = array<i64: 1, 128>}, {pipeline_mode = #tpu.pipeline_mode<synchronous>, transform_indices = @transform_7, window_bounds = array<i64: 128, 128>}, {pipeline_mode = #tpu.pipeline_mode<synchronous>, transform_indices = @transform_8, window_bounds = array<i64: 1, 128>}, {pipeline_mode = #tpu.pipeline_mode<synchronous>, transform_indices = @transform_9, window_bounds = array<i64: 1, 128>}, {pipeline_mode = #tpu.pipeline_mode<synchronous>, transform_indices = @transform_10, window_bounds = array<i64: 1, 128>}, {pipeline_mode = #tpu.pipeline_mode<synchronous>, transform_indices = @transform_11, window_bounds = array<i64: 1, 128>}, {pipeline_mode = #tpu.pipeline_mode<synchronous>, transform_indices = @transform_12, window_bounds = array<i64: 128, 128>}]} {
    %c0 = arith.constant 0 : index
    %c0_0 = arith.constant 0 : index
    %0 = vector.load %arg3[%c0, %c0_0] : memref<128x1xf32, #tpu.memory_space<vmem>>, vector<128x1xf32>
    %c0_1 = arith.constant 0 : index
    %c0_2 = arith.constant 0 : index
    %1 = vector.load %arg4[%c0_1, %c0_2] : memref<128x1xf32, #tpu.memory_space<vmem>>, vector<128x1xf32>
    %cst = arith.constant dense<0.000000e+00> : vector<1xf32>
    %2 = vector.multi_reduction <add>, %0, %cst [0] : vector<128x1xf32> to vector<1xf32>
    %3 = vector.shape_cast %2 : vector<1xf32> to vector<1x1xf32>
    %cst_3 = arith.constant 1.000000e+00 : f32
    %4 = vector.broadcast %cst_3 : f32 to vector<1x1xf32>
    %5 = arith.maximumf %3, %4 : vector<1x1xf32>
    %cst_4 = arith.constant 1.000000e+00 : f32
    %6 = vector.broadcast %cst_4 : f32 to vector<1x1xf32>
    %7 = arith.divf %6, %5 : vector<1x1xf32>
    %cst_5 = arith.constant dense<0.000000e+00> : vector<1xf32>
    %8 = vector.multi_reduction <add>, %1, %cst_5 [0] : vector<128x1xf32> to vector<1xf32>
    %9 = vector.shape_cast %8 : vector<1xf32> to vector<1x1xf32>
    %cst_6 = arith.constant 1.000000e+00 : f32
    %10 = vector.broadcast %cst_6 : f32 to vector<1x1xf32>
    %11 = arith.maximumf %9, %10 : vector<1x1xf32>
    %cst_7 = arith.constant 1.000000e+00 : f32
    %12 = vector.broadcast %cst_7 : f32 to vector<1x1xf32>
    %13 = arith.divf %12, %11 : vector<1x1xf32>
    %c0_8 = arith.constant 0 : index
    %c0_9 = arith.constant 0 : index
    %14 = vector.load %arg1[%c0_8, %c0_9] : memref<128x128xf32, #tpu.memory_space<vmem>>, vector<128x128xf32>
    %15 = arith.truncf %14 : vector<128x128xf32> to vector<128x128xbf16>
    %c0_10 = arith.constant 0 : index
    %c0_11 = arith.constant 0 : index
    %16 = vector.load %arg5[%c0_10, %c0_11] : memref<128x128xbf16, #tpu.memory_space<vmem>>, vector<128x128xbf16>
    %cst_12 = arith.constant dense<0.000000e+00> : vector<128x128xf32>
    %17 = tpu.matmul %15, %16, %cst_12 {dimension_numbers = #tpu.dot_dimension_numbers<[1], [0], [0], [1], [0, 0, 1, 1], [], []>} : vector<128x128xbf16>, vector<128x128xbf16>, vector<128x128xf32> -> vector<128x128xf32>
    %c0_13 = arith.constant 0 : index
    %c0_14 = arith.constant 0 : index
    %18 = vector.load %arg6[%c0_13, %c0_14] : memref<1x128xf32, #tpu.memory_space<vmem>>, vector<1x128xf32>
    %c0_15 = arith.constant 0 : index
    %c0_16 = arith.constant 0 : index
    %19 = vector.load %arg7[%c0_15, %c0_16] : memref<1x128xf32, #tpu.memory_space<vmem>>, vector<1x128xf32>
    %20 = vector.broadcast %0 : vector<128x1xf32> to vector<128x128xf32>
    %21 = arith.mulf %17, %20 : vector<128x128xf32>
    %cst_17 = arith.constant dense<0.000000e+00> : vector<128xf32>
    %22 = vector.multi_reduction <add>, %21, %cst_17 [0] : vector<128x128xf32> to vector<128xf32>
    %23 = vector.shape_cast %22 : vector<128xf32> to vector<1x128xf32>
    %24 = vector.broadcast %7 : vector<1x1xf32> to vector<1x128xf32>
    %25 = arith.mulf %23, %24 : vector<1x128xf32>
    %26 = vector.broadcast %25 : vector<1x128xf32> to vector<128x128xf32>
    %27 = arith.subf %17, %26 : vector<128x128xf32>
    %28 = vector.broadcast %0 : vector<128x1xf32> to vector<128x128xf32>
    %29 = arith.mulf %27, %28 : vector<128x128xf32>
    %30 = arith.mulf %29, %29 : vector<128x128xf32>
    %cst_18 = arith.constant dense<0.000000e+00> : vector<128xf32>
    %31 = vector.multi_reduction <add>, %30, %cst_18 [0] : vector<128x128xf32> to vector<128xf32>
    %32 = vector.shape_cast %31 : vector<128xf32> to vector<1x128xf32>
    %33 = vector.broadcast %7 : vector<1x1xf32> to vector<1x128xf32>
    %34 = arith.mulf %32, %33 : vector<1x128xf32>
    %35 = vector.broadcast %1 : vector<128x1xf32> to vector<128x128xf32>
    %36 = arith.mulf %17, %35 : vector<128x128xf32>
    %cst_19 = arith.constant dense<0.000000e+00> : vector<128xf32>
    %37 = vector.multi_reduction <add>, %36, %cst_19 [0] : vector<128x128xf32> to vector<128xf32>
    %38 = vector.shape_cast %37 : vector<128xf32> to vector<1x128xf32>
    %39 = vector.broadcast %13 : vector<1x1xf32> to vector<1x128xf32>
    %40 = arith.mulf %38, %39 : vector<1x128xf32>
    %41 = vector.broadcast %40 : vector<1x128xf32> to vector<128x128xf32>
    %42 = arith.subf %17, %41 : vector<128x128xf32>
    %43 = vector.broadcast %1 : vector<128x1xf32> to vector<128x128xf32>
    %44 = arith.mulf %42, %43 : vector<128x128xf32>
    %45 = arith.mulf %44, %44 : vector<128x128xf32>
    %cst_20 = arith.constant dense<0.000000e+00> : vector<128xf32>
    %46 = vector.multi_reduction <add>, %45, %cst_20 [0] : vector<128x128xf32> to vector<128xf32>
    %47 = vector.shape_cast %46 : vector<128xf32> to vector<1x128xf32>
    %48 = vector.broadcast %13 : vector<1x1xf32> to vector<1x128xf32>
    %49 = arith.mulf %47, %48 : vector<1x128xf32>
    %50 = vector.broadcast %0 : vector<128x1xf32> to vector<128x128xf32>
    %51 = vector.broadcast %25 : vector<1x128xf32> to vector<128x128xf32>
    %52 = arith.mulf %50, %51 : vector<128x128xf32>
    %53 = vector.broadcast %1 : vector<128x1xf32> to vector<128x128xf32>
    %54 = vector.broadcast %40 : vector<1x128xf32> to vector<128x128xf32>
    %55 = arith.mulf %53, %54 : vector<128x128xf32>
    %56 = arith.addf %52, %55 : vector<128x128xf32>
    %57 = vector.broadcast %0 : vector<128x1xf32> to vector<128x128xf32>
    %58 = vector.broadcast %34 : vector<1x128xf32> to vector<128x128xf32>
    %59 = arith.mulf %57, %58 : vector<128x128xf32>
    %60 = vector.broadcast %1 : vector<128x1xf32> to vector<128x128xf32>
    %61 = vector.broadcast %49 : vector<1x128xf32> to vector<128x128xf32>
    %62 = arith.mulf %60, %61 : vector<128x128xf32>
    %63 = arith.addf %59, %62 : vector<128x128xf32>
    %64 = arith.subf %17, %56 : vector<128x128xf32>
    %cst_21 = arith.constant 9.99999974E-6 : f32
    %65 = vector.broadcast %cst_21 : f32 to vector<128x128xf32>
    %66 = arith.addf %63, %65 : vector<128x128xf32>
    %67 = math.rsqrt %66 : vector<128x128xf32>
    %68 = arith.mulf %64, %67 : vector<128x128xf32>
    %69 = vector.broadcast %18 : vector<1x128xf32> to vector<128x128xf32>
    %70 = arith.mulf %68, %69 : vector<128x128xf32>
    %71 = vector.broadcast %19 : vector<1x128xf32> to vector<128x128xf32>
    %72 = arith.addf %70, %71 : vector<128x128xf32>
    %cst_22 = arith.constant 0.000000e+00 : f32
    %73 = vector.broadcast %cst_22 : f32 to vector<128x128xf32>
    %74 = arith.maximumf %72, %73 : vector<128x128xf32>
    %75 = arith.truncf %74 : vector<128x128xf32> to vector<128x128xbf16>
    %c0_23 = arith.constant 0 : index
    %c0_24 = arith.constant 0 : index
    %76 = vector.load %arg8[%c0_23, %c0_24] : memref<128x128xbf16, #tpu.memory_space<vmem>>, vector<128x128xbf16>
    %cst_25 = arith.constant dense<0.000000e+00> : vector<128x128xf32>
    %77 = tpu.matmul %75, %76, %cst_25 {dimension_numbers = #tpu.dot_dimension_numbers<[1], [0], [0], [1], [0, 0, 1, 1], [], []>} : vector<128x128xbf16>, vector<128x128xbf16>, vector<128x128xf32> -> vector<128x128xf32>
    %c0_26 = arith.constant 0 : index
    %c0_27 = arith.constant 0 : index
    %78 = vector.load %arg9[%c0_26, %c0_27] : memref<1x128xf32, #tpu.memory_space<vmem>>, vector<1x128xf32>
    %c0_28 = arith.constant 0 : index
    %c0_29 = arith.constant 0 : index
    %79 = vector.load %arg10[%c0_28, %c0_29] : memref<1x128xf32, #tpu.memory_space<vmem>>, vector<1x128xf32>
    %80 = vector.broadcast %0 : vector<128x1xf32> to vector<128x128xf32>
    %81 = arith.mulf %77, %80 : vector<128x128xf32>
    %cst_30 = arith.constant dense<0.000000e+00> : vector<128xf32>
    %82 = vector.multi_reduction <add>, %81, %cst_30 [0] : vector<128x128xf32> to vector<128xf32>
    %83 = vector.shape_cast %82 : vector<128xf32> to vector<1x128xf32>
    %84 = vector.broadcast %7 : vector<1x1xf32> to vector<1x128xf32>
    %85 = arith.mulf %83, %84 : vector<1x128xf32>
    %86 = vector.broadcast %85 : vector<1x128xf32> to vector<128x128xf32>
    %87 = arith.subf %77, %86 : vector<128x128xf32>
    %88 = vector.broadcast %0 : vector<128x1xf32> to vector<128x128xf32>
    %89 = arith.mulf %87, %88 : vector<128x128xf32>
    %90 = arith.mulf %89, %89 : vector<128x128xf32>
    %cst_31 = arith.constant dense<0.000000e+00> : vector<128xf32>
    %91 = vector.multi_reduction <add>, %90, %cst_31 [0] : vector<128x128xf32> to vector<128xf32>
    %92 = vector.shape_cast %91 : vector<128xf32> to vector<1x128xf32>
    %93 = vector.broadcast %7 : vector<1x1xf32> to vector<1x128xf32>
    %94 = arith.mulf %92, %93 : vector<1x128xf32>
    %95 = vector.broadcast %1 : vector<128x1xf32> to vector<128x128xf32>
    %96 = arith.mulf %77, %95 : vector<128x128xf32>
    %cst_32 = arith.constant dense<0.000000e+00> : vector<128xf32>
    %97 = vector.multi_reduction <add>, %96, %cst_32 [0] : vector<128x128xf32> to vector<128xf32>
    %98 = vector.shape_cast %97 : vector<128xf32> to vector<1x128xf32>
    %99 = vector.broadcast %13 : vector<1x1xf32> to vector<1x128xf32>
    %100 = arith.mulf %98, %99 : vector<1x128xf32>
    %101 = vector.broadcast %100 : vector<1x128xf32> to vector<128x128xf32>
    %102 = arith.subf %77, %101 : vector<128x128xf32>
    %103 = vector.broadcast %1 : vector<128x1xf32> to vector<128x128xf32>
    %104 = arith.mulf %102, %103 : vector<128x128xf32>
    %105 = arith.mulf %104, %104 : vector<128x128xf32>
    %cst_33 = arith.constant dense<0.000000e+00> : vector<128xf32>
    %106 = vector.multi_reduction <add>, %105, %cst_33 [0] : vector<128x128xf32> to vector<128xf32>
    %107 = vector.shape_cast %106 : vector<128xf32> to vector<1x128xf32>
    %108 = vector.broadcast %13 : vector<1x1xf32> to vector<1x128xf32>
    %109 = arith.mulf %107, %108 : vector<1x128xf32>
    %110 = vector.broadcast %0 : vector<128x1xf32> to vector<128x128xf32>
    %111 = vector.broadcast %85 : vector<1x128xf32> to vector<128x128xf32>
    %112 = arith.mulf %110, %111 : vector<128x128xf32>
    %113 = vector.broadcast %1 : vector<128x1xf32> to vector<128x128xf32>
    %114 = vector.broadcast %100 : vector<1x128xf32> to vector<128x128xf32>
    %115 = arith.mulf %113, %114 : vector<128x128xf32>
    %116 = arith.addf %112, %115 : vector<128x128xf32>
    %117 = vector.broadcast %0 : vector<128x1xf32> to vector<128x128xf32>
    %118 = vector.broadcast %94 : vector<1x128xf32> to vector<128x128xf32>
    %119 = arith.mulf %117, %118 : vector<128x128xf32>
    %120 = vector.broadcast %1 : vector<128x1xf32> to vector<128x128xf32>
    %121 = vector.broadcast %109 : vector<1x128xf32> to vector<128x128xf32>
    %122 = arith.mulf %120, %121 : vector<128x128xf32>
    %123 = arith.addf %119, %122 : vector<128x128xf32>
    %124 = arith.subf %77, %116 : vector<128x128xf32>
    %cst_34 = arith.constant 9.99999974E-6 : f32
    %125 = vector.broadcast %cst_34 : f32 to vector<128x128xf32>
    %126 = arith.addf %123, %125 : vector<128x128xf32>
    %127 = math.rsqrt %126 : vector<128x128xf32>
    %128 = arith.mulf %124, %127 : vector<128x128xf32>
    %129 = vector.broadcast %78 : vector<1x128xf32> to vector<128x128xf32>
    %130 = arith.mulf %128, %129 : vector<128x128xf32>
    %131 = vector.broadcast %79 : vector<1x128xf32> to vector<128x128xf32>
    %132 = arith.addf %130, %131 : vector<128x128xf32>
    %cst_35 = arith.constant 0.000000e+00 : f32
    %133 = vector.broadcast %cst_35 : f32 to vector<128x128xf32>
    %134 = arith.maximumf %132, %133 : vector<128x128xf32>
    %135 = arith.addf %0, %1 : vector<128x1xf32>
    %136 = vector.broadcast %135 : vector<128x1xf32> to vector<128x128xf32>
    %137 = arith.mulf %134, %136 : vector<128x128xf32>
    %c0_36 = arith.constant 0 : index
    %c0_37 = arith.constant 0 : index
    %138 = vector.load %arg11[%c0_36, %c0_37] : memref<1x128xf32, #tpu.memory_space<vmem>>, vector<1x128xf32>
    %c0_38 = arith.constant 0 : index
    %c0_39 = arith.constant 0 : index
    %139 = vector.load %arg12[%c0_38, %c0_39] : memref<1x128xf32, #tpu.memory_space<vmem>>, vector<1x128xf32>
    %140 = vector.broadcast %0 : vector<128x1xf32> to vector<128x128xf32>
    %141 = arith.mulf %137, %140 : vector<128x128xf32>
    %cst_40 = arith.constant dense<0.000000e+00> : vector<128xf32>
    %142 = vector.multi_reduction <add>, %141, %cst_40 [0] : vector<128x128xf32> to vector<128xf32>
    %143 = vector.shape_cast %142 : vector<128xf32> to vector<1x128xf32>
    %144 = vector.broadcast %7 : vector<1x1xf32> to vector<1x128xf32>
    %145 = arith.mulf %143, %144 : vector<1x128xf32>
    %146 = vector.broadcast %145 : vector<1x128xf32> to vector<128x128xf32>
    %147 = arith.subf %137, %146 : vector<128x128xf32>
    %148 = vector.broadcast %0 : vector<128x1xf32> to vector<128x128xf32>
    %149 = arith.mulf %147, %148 : vector<128x128xf32>
    %150 = arith.mulf %149, %149 : vector<128x128xf32>
    %cst_41 = arith.constant dense<0.000000e+00> : vector<128xf32>
    %151 = vector.multi_reduction <add>, %150, %cst_41 [0] : vector<128x128xf32> to vector<128xf32>
    %152 = vector.shape_cast %151 : vector<128xf32> to vector<1x128xf32>
    %153 = vector.broadcast %7 : vector<1x1xf32> to vector<1x128xf32>
    %154 = arith.mulf %152, %153 : vector<1x128xf32>
    %155 = vector.broadcast %1 : vector<128x1xf32> to vector<128x128xf32>
    %156 = arith.mulf %137, %155 : vector<128x128xf32>
    %cst_42 = arith.constant dense<0.000000e+00> : vector<128xf32>
    %157 = vector.multi_reduction <add>, %156, %cst_42 [0] : vector<128x128xf32> to vector<128xf32>
    %158 = vector.shape_cast %157 : vector<128xf32> to vector<1x128xf32>
    %159 = vector.broadcast %13 : vector<1x1xf32> to vector<1x128xf32>
    %160 = arith.mulf %158, %159 : vector<1x128xf32>
    %161 = vector.broadcast %160 : vector<1x128xf32> to vector<128x128xf32>
    %162 = arith.subf %137, %161 : vector<128x128xf32>
    %163 = vector.broadcast %1 : vector<128x1xf32> to vector<128x128xf32>
    %164 = arith.mulf %162, %163 : vector<128x128xf32>
    %165 = arith.mulf %164, %164 : vector<128x128xf32>
    %cst_43 = arith.constant dense<0.000000e+00> : vector<128xf32>
    %166 = vector.multi_reduction <add>, %165, %cst_43 [0] : vector<128x128xf32> to vector<128xf32>
    %167 = vector.shape_cast %166 : vector<128xf32> to vector<1x128xf32>
    %168 = vector.broadcast %13 : vector<1x1xf32> to vector<1x128xf32>
    %169 = arith.mulf %167, %168 : vector<1x128xf32>
    %170 = vector.broadcast %0 : vector<128x1xf32> to vector<128x128xf32>
    %171 = vector.broadcast %145 : vector<1x128xf32> to vector<128x128xf32>
    %172 = arith.mulf %170, %171 : vector<128x128xf32>
    %173 = vector.broadcast %1 : vector<128x1xf32> to vector<128x128xf32>
    %174 = vector.broadcast %160 : vector<1x128xf32> to vector<128x128xf32>
    %175 = arith.mulf %173, %174 : vector<128x128xf32>
    %176 = arith.addf %172, %175 : vector<128x128xf32>
    %177 = vector.broadcast %0 : vector<128x1xf32> to vector<128x128xf32>
    %178 = vector.broadcast %154 : vector<1x128xf32> to vector<128x128xf32>
    %179 = arith.mulf %177, %178 : vector<128x128xf32>
    %180 = vector.broadcast %1 : vector<128x1xf32> to vector<128x128xf32>
    %181 = vector.broadcast %169 : vector<1x128xf32> to vector<128x128xf32>
    %182 = arith.mulf %180, %181 : vector<128x128xf32>
    %183 = arith.addf %179, %182 : vector<128x128xf32>
    %184 = arith.subf %137, %176 : vector<128x128xf32>
    %cst_44 = arith.constant 9.99999974E-6 : f32
    %185 = vector.broadcast %cst_44 : f32 to vector<128x128xf32>
    %186 = arith.addf %183, %185 : vector<128x128xf32>
    %187 = math.rsqrt %186 : vector<128x128xf32>
    %188 = arith.mulf %184, %187 : vector<128x128xf32>
    %189 = vector.broadcast %138 : vector<1x128xf32> to vector<128x128xf32>
    %190 = arith.mulf %188, %189 : vector<128x128xf32>
    %191 = vector.broadcast %139 : vector<1x128xf32> to vector<128x128xf32>
    %192 = arith.addf %190, %191 : vector<128x128xf32>
    %cst_45 = arith.constant 0.000000e+00 : f32
    %193 = vector.broadcast %cst_45 : f32 to vector<128x128xf32>
    %194 = arith.maximumf %192, %193 : vector<128x128xf32>
    %195 = vector.broadcast %135 : vector<128x1xf32> to vector<128x128xf32>
    %196 = arith.mulf %194, %195 : vector<128x128xf32>
    %c0_46 = arith.constant 0 : index
    %c0_47 = arith.constant 0 : index
    %197 = vector.load %arg2[%c0_46, %c0_47] : memref<128x128xf32, #tpu.memory_space<vmem>>, vector<128x128xf32>
    %198 = arith.addf %196, %197 : vector<128x128xf32>
    %c0_48 = arith.constant 0 : index
    %c0_49 = arith.constant 0 : index
    %199 = vector.load %arg13[%c0_48, %c0_49] : memref<128x128xf32, #tpu.memory_space<vmem>>, vector<128x128xf32>
    tpu.vector_store %arg13[%c0_48, %c0_49], %198 {strides = array<i32>} : memref<128x128xf32, #tpu.memory_space<vmem>>, vector<128x128xf32>,
    return
  }
  func.func @transform_0(%arg0: i32) -> (i32, i32) {
    %c0_i32 = arith.constant 0 : i32
    %c0_i32_0 = arith.constant 0 : i32
    %c0_i32_1 = arith.constant 0 : i32
    return %c0_i32, %c0_i32_0 : i32, i32
  }
  func.func @transform_1(%arg0: i32) -> (i32, i32) {
    %c0_i32 = arith.constant 0 : i32
    %c0_i32_0 = arith.constant 0 : i32
    %c0_i32_1 = arith.constant 0 : i32
    return %c0_i32, %c0_i32_0 : i32, i32
  }
  func.func @transform_2(%arg0: i32) -> (i32, i32) {
    %c0_i32 = arith.constant 0 : i32
    %c0_i32_0 = arith.constant 0 : i32
    %c0_i32_1 = arith.constant 0 : i32
    return %c0_i32, %c0_i32_0 : i32, i32
  }
  func.func @transform_3(%arg0: i32) -> (i32, i32) {
    %c0_i32 = arith.constant 0 : i32
    %c0_i32_0 = arith.constant 0 : i32
    %c0_i32_1 = arith.constant 0 : i32
    return %c0_i32, %c0_i32_0 : i32, i32
  }
  func.func @transform_4(%arg0: i32) -> (i32, i32) {
    %c0_i32 = arith.constant 0 : i32
    %c0_i32_0 = arith.constant 0 : i32
    %c0_i32_1 = arith.constant 0 : i32
    return %c0_i32, %c0_i32_0 : i32, i32
  }
  func.func @transform_5(%arg0: i32) -> (i32, i32) {
    %c0_i32 = arith.constant 0 : i32
    %c0_i32_0 = arith.constant 0 : i32
    %c0_i32_1 = arith.constant 0 : i32
    return %c0_i32, %c0_i32_0 : i32, i32
  }
  func.func @transform_6(%arg0: i32) -> (i32, i32) {
    %c0_i32 = arith.constant 0 : i32
    %c0_i32_0 = arith.constant 0 : i32
    %c0_i32_1 = arith.constant 0 : i32
    return %c0_i32, %c0_i32_0 : i32, i32
  }
  func.func @transform_7(%arg0: i32) -> (i32, i32) {
    %c0_i32 = arith.constant 0 : i32
    %c0_i32_0 = arith.constant 0 : i32
    %c0_i32_1 = arith.constant 0 : i32
    return %c0_i32, %c0_i32_0 : i32, i32
  }
  func.func @transform_8(%arg0: i32) -> (i32, i32) {
    %c0_i32 = arith.constant 0 : i32
    %c0_i32_0 = arith.constant 0 : i32
    %c0_i32_1 = arith.constant 0 : i32
    return %c0_i32, %c0_i32_0 : i32, i32
  }
  func.func @transform_9(%arg0: i32) -> (i32, i32) {
    %c0_i32 = arith.constant 0 : i32
    %c0_i32_0 = arith.constant 0 : i32
    %c0_i32_1 = arith.constant 0 : i32
    return %c0_i32, %c0_i32_0 : i32, i32
  }
  func.func @transform_10(%arg0: i32) -> (i32, i32) {
    %c0_i32 = arith.constant 0 : i32
    %c0_i32_0 = arith.constant 0 : i32
    %c0_i32_1 = arith.constant 0 : i32
    return %c0_i32, %c0_i32_0 : i32, i32
  }
  func.func @transform_11(%arg0: i32) -> (i32, i32) {
    %c0_i32 = arith.constant 0 : i32
    %c0_i32_0 = arith.constant 0 : i32
    %c0_i32_1 = arith.constant 0 : i32
    return %c0_i32, %c0_i32_0 : i32, i32
  }
  func.func @transform_12(%arg0: i32) -> (i32, i32) {
    %c0_i32 = arith.constant 0 : i32
    %c0_i32_0 = arith.constant 0 : i32
    %c0_i32_1 = arith.constant 0 : i32
    return %c0_i32, %c0_i32_0 : i32, i32
  }
}

module attributes {stable_mosaic.version = 11 : i64} {
  func.func @_mm_kernel(%arg0: i32, %arg1: i32, %arg2: i32, %arg3: memref<64x128xf32, #tpu.memory_space<vmem>>, %arg4: memref<128x128xbf16, #tpu.memory_space<vmem>>, %arg5: memref<1x128xf32, #tpu.memory_space<vmem>>, %arg6: memref<64x128xbf16, #tpu.memory_space<vmem>>, %arg7: memref<64x128xf32, #tpu.memory_space<vmem>>) attributes {dimension_semantics = [#tpu.dimension_semantics<parallel>, #tpu.dimension_semantics<parallel>, #tpu.dimension_semantics<arbitrary>], iteration_bounds = array<i64: 1, 1, 1>, scalar_prefetch = 0 : i64, scratch_operands = 1 : i64, tpu.core_type = #tpu.core_type<tc>, window_params = [{transform_indices = @transform_0, window_bounds = array<i64: 64, 128>}, {transform_indices = @transform_1, window_bounds = array<i64: 128, 128>}, {transform_indices = @transform_2, window_bounds = array<i64: 1, 128>}, {transform_indices = @transform_3, window_bounds = array<i64: 64, 128>}]} {
    %c0_i32 = arith.constant 0 : i32
    %0 = arith.cmpi eq, %arg2, %c0_i32 : i32
    %1 = arith.extui %0 : i1 to i32
    %c0_i32_0 = arith.constant 0 : i32
    %2 = arith.cmpi ne, %1, %c0_i32_0 : i32
    scf.if %2 {
      %cst_10 = arith.constant 0.000000e+00 : f32
      %13 = vector.broadcast %cst_10 : f32 to vector<64x128xf32>
      %c0_11 = arith.constant 0 : index
      %c0_12 = arith.constant 0 : index
      %14 = vector.load %arg7[%c0_11, %c0_12] : memref<64x128xf32, #tpu.memory_space<vmem>>, vector<64x128xf32>
      tpu.vector_store %arg7[%c0_11, %c0_12], %13 {strides = array<i32>} : memref<64x128xf32, #tpu.memory_space<vmem>>, vector<64x128xf32>,
    } else {
    }
    %c0 = arith.constant 0 : index
    %c0_1 = arith.constant 0 : index
    %3 = vector.load %arg7[%c0, %c0_1] : memref<64x128xf32, #tpu.memory_space<vmem>>, vector<64x128xf32>
    %c0_2 = arith.constant 0 : index
    %c0_3 = arith.constant 0 : index
    %4 = vector.load %arg3[%c0_2, %c0_3] : memref<64x128xf32, #tpu.memory_space<vmem>>, vector<64x128xf32>
    %5 = arith.truncf %4 : vector<64x128xf32> to vector<64x128xbf16>
    %c0_4 = arith.constant 0 : index
    %c0_5 = arith.constant 0 : index
    %6 = vector.load %arg4[%c0_4, %c0_5] : memref<128x128xbf16, #tpu.memory_space<vmem>>, vector<128x128xbf16>
    %cst = arith.constant dense<0.000000e+00> : vector<64x128xf32>
    %7 = tpu.matmul %5, %6, %cst {dimension_numbers = #tpu.dot_dimension_numbers<[1], [0], [0], [1], [0, 0, 1, 1], [], []>} : vector<64x128xbf16>, vector<128x128xbf16>, vector<64x128xf32> -> vector<64x128xf32>
    %8 = arith.addf %3, %7 : vector<64x128xf32>
    %c0_6 = arith.constant 0 : index
    %c0_7 = arith.constant 0 : index
    %9 = vector.load %arg7[%c0_6, %c0_7] : memref<64x128xf32, #tpu.memory_space<vmem>>, vector<64x128xf32>
    tpu.vector_store %arg7[%c0_6, %c0_7], %8 {strides = array<i32>} : memref<64x128xf32, #tpu.memory_space<vmem>>, vector<64x128xf32>,
    %c0_i32_8 = arith.constant 0 : i32
    %10 = arith.cmpi eq, %arg2, %c0_i32_8 : i32
    %11 = arith.extui %10 : i1 to i32
    %c0_i32_9 = arith.constant 0 : i32
    %12 = arith.cmpi ne, %11, %c0_i32_9 : i32
    scf.if %12 {
      %c0_10 = arith.constant 0 : index
      %c0_11 = arith.constant 0 : index
      %13 = vector.load %arg7[%c0_10, %c0_11] : memref<64x128xf32, #tpu.memory_space<vmem>>, vector<64x128xf32>
      %c0_12 = arith.constant 0 : index
      %c0_13 = arith.constant 0 : index
      %14 = vector.load %arg5[%c0_12, %c0_13] : memref<1x128xf32, #tpu.memory_space<vmem>>, vector<1x128xf32>
      %15 = vector.broadcast %14 : vector<1x128xf32> to vector<64x128xf32>
      %16 = arith.addf %13, %15 : vector<64x128xf32>
      %17 = arith.truncf %16 : vector<64x128xf32> to vector<64x128xbf16>
      %c0_14 = arith.constant 0 : index
      %c0_15 = arith.constant 0 : index
      %18 = vector.load %arg6[%c0_14, %c0_15] : memref<64x128xbf16, #tpu.memory_space<vmem>>, vector<64x128xbf16>
      tpu.vector_store %arg6[%c0_14, %c0_15], %17 {strides = array<i32>} : memref<64x128xbf16, #tpu.memory_space<vmem>>, vector<64x128xbf16>,
    } else {
    }
    return
  }
  func.func @transform_0(%arg0: i32, %arg1: i32, %arg2: i32) -> (i32, i32) {
    %c0_i32 = arith.constant 0 : i32
    return %arg0, %arg2 : i32, i32
  }
  func.func @transform_1(%arg0: i32, %arg1: i32, %arg2: i32) -> (i32, i32) {
    %c0_i32 = arith.constant 0 : i32
    return %arg2, %arg1 : i32, i32
  }
  func.func @transform_2(%arg0: i32, %arg1: i32, %arg2: i32) -> (i32, i32) {
    %c0_i32 = arith.constant 0 : i32
    %c0_i32_0 = arith.constant 0 : i32
    return %c0_i32, %arg1 : i32, i32
  }
  func.func @transform_3(%arg0: i32, %arg1: i32, %arg2: i32) -> (i32, i32) {
    %c0_i32 = arith.constant 0 : i32
    return %arg0, %arg1 : i32, i32
  }
}

module attributes {stable_mosaic.version = 11 : i64} {
  func.func @_attn_kernel(%arg0: i32, %arg1: memref<8x8x128xbf16, #tpu.memory_space<vmem>>, %arg2: memref<8x8x128xbf16, #tpu.memory_space<vmem>>, %arg3: memref<8x8x128xbf16, #tpu.memory_space<vmem>>, %arg4: memref<8x1x8xf32, #tpu.memory_space<vmem>>, %arg5: memref<8x8x128xf32, #tpu.memory_space<vmem>>) attributes {dimension_semantics = [#tpu.dimension_semantics<parallel>], iteration_bounds = array<i64: 4>, scalar_prefetch = 0 : i64, scratch_operands = 0 : i64, tpu.core_type = #tpu.core_type<tc>, window_params = [{transform_indices = @transform_0, window_bounds = array<i64: 8, 8, 128>}, {transform_indices = @transform_1, window_bounds = array<i64: 8, 8, 128>}, {transform_indices = @transform_2, window_bounds = array<i64: 8, 8, 128>}, {transform_indices = @transform_3, window_bounds = array<i64: 8, 1, 8>}, {transform_indices = @transform_4, window_bounds = array<i64: 8, 8, 128>}]} {
    %c0 = arith.constant 0 : index
    %c0_0 = arith.constant 0 : index
    %c0_1 = arith.constant 0 : index
    %0 = vector.load %arg1[%c0, %c0_0, %c0_1] : memref<8x8x128xbf16, #tpu.memory_space<vmem>>, vector<8x8x128xbf16>
    %c0_2 = arith.constant 0 : index
    %c0_3 = arith.constant 0 : index
    %c0_4 = arith.constant 0 : index
    %1 = vector.load %arg2[%c0_2, %c0_3, %c0_4] : memref<8x8x128xbf16, #tpu.memory_space<vmem>>, vector<8x8x128xbf16>
    "tpu.trace_start"() <{level = 10 : i32, message = "bqd,bkd->bqk"}> : () -> ()
    %cst = arith.constant dense<0.000000e+00> : vector<8x8x8xf32>
    %2 = tpu.matmul %0, %1, %cst {dimension_numbers = #tpu.dot_dimension_numbers<[2], [2], [1], [1], [0, 0, 0, 1, 1, 1], [0], [0]>} : vector<8x8x128xbf16>, vector<8x8x128xbf16>, vector<8x8x8xf32> -> vector<8x8x8xf32>
    "tpu.trace_stop"() : () -> ()
    %cst_5 = arith.constant 0.353553385 : f32
    %3 = vector.broadcast %cst_5 : f32 to vector<8x8x8xf32>
    %4 = arith.mulf %2, %3 : vector<8x8x8xf32>
    %c0_6 = arith.constant 0 : index
    %c0_7 = arith.constant 0 : index
    %c0_8 = arith.constant 0 : index
    %5 = vector.load %arg4[%c0_6, %c0_7, %c0_8] : memref<8x1x8xf32, #tpu.memory_space<vmem>>, vector<8x1x8xf32>
    %cst_9 = arith.constant 5.000000e-01 : f32
    %6 = vector.broadcast %cst_9 : f32 to vector<8x1x8xf32>
    %7 = arith.cmpf ogt, %5, %6 : vector<8x1x8xf32>
    %cst_10 = arith.constant 0.000000e+00 : f32
    %cst_11 = arith.constant -1.000000e+30 : f32
    %8 = vector.broadcast %cst_10 : f32 to vector<8x1x8xf32>
    %9 = vector.broadcast %cst_11 : f32 to vector<8x1x8xf32>
    %10 = arith.select %7, %8, %9 : vector<8x1x8xi1>, vector<8x1x8xf32>
    %11 = vector.broadcast %10 : vector<8x1x8xf32> to vector<8x8x8xf32>
    %12 = arith.addf %4, %11 : vector<8x8x8xf32>
    %cst_12 = arith.constant dense<0xFF800000> : vector<8x8xf32>
    %13 = vector.multi_reduction <maximumf>, %12, %cst_12 [2] : vector<8x8x8xf32> to vector<8x8xf32>
    %14 = vector.shape_cast %13 : vector<8x8xf32> to vector<8x8x1xf32>
    %15 = vector.broadcast %14 : vector<8x8x1xf32> to vector<8x8x8xf32>
    %16 = arith.subf %12, %15 : vector<8x8x8xf32>
    %17 = math.exp %16 : vector<8x8x8xf32>
    %cst_13 = arith.constant dense<0.000000e+00> : vector<8x8xf32>
    %18 = vector.multi_reduction <add>, %17, %cst_13 [2] : vector<8x8x8xf32> to vector<8x8xf32>
    %19 = vector.shape_cast %18 : vector<8x8xf32> to vector<8x8x1xf32>
    %20 = tpu.reciprocal %19 {approx = true} : vector<8x8x1xf32> -> vector<8x8x1xf32>
    %21 = vector.broadcast %20 : vector<8x8x1xf32> to vector<8x8x8xf32>
    %22 = arith.mulf %17, %21 : vector<8x8x8xf32>
    %23 = arith.truncf %22 : vector<8x8x8xf32> to vector<8x8x8xbf16>
    %c0_14 = arith.constant 0 : index
    %c0_15 = arith.constant 0 : index
    %c0_16 = arith.constant 0 : index
    %24 = vector.load %arg3[%c0_14, %c0_15, %c0_16] : memref<8x8x128xbf16, #tpu.memory_space<vmem>>, vector<8x8x128xbf16>
    "tpu.trace_start"() <{level = 10 : i32, message = "bqk,bkd->bqd"}> : () -> ()
    %cst_17 = arith.constant dense<0.000000e+00> : vector<8x8x128xf32>
    %25 = tpu.matmul %23, %24, %cst_17 {dimension_numbers = #tpu.dot_dimension_numbers<[2], [1], [1], [2], [0, 0, 0, 1, 1, 2], [0], [0]>} : vector<8x8x8xbf16>, vector<8x8x128xbf16>, vector<8x8x128xf32> -> vector<8x8x128xf32>
    "tpu.trace_stop"() : () -> ()
    %c0_18 = arith.constant 0 : index
    %c0_19 = arith.constant 0 : index
    %c0_20 = arith.constant 0 : index
    %26 = vector.load %arg5[%c0_18, %c0_19, %c0_20] : memref<8x8x128xf32, #tpu.memory_space<vmem>>, vector<8x8x128xf32>
    tpu.vector_store %arg5[%c0_18, %c0_19, %c0_20], %25 {strides = array<i32>} : memref<8x8x128xf32, #tpu.memory_space<vmem>>, vector<8x8x128xf32>,
    return
  }
  func.func @transform_0(%arg0: i32) -> (i32, i32, i32) {
    %c0_i32 = arith.constant 0 : i32
    %c0_i32_0 = arith.constant 0 : i32
    %c0_i32_1 = arith.constant 0 : i32
    return %arg0, %c0_i32, %c0_i32_0 : i32, i32, i32
  }
  func.func @transform_1(%arg0: i32) -> (i32, i32, i32) {
    %c0_i32 = arith.constant 0 : i32
    %c0_i32_0 = arith.constant 0 : i32
    %c0_i32_1 = arith.constant 0 : i32
    return %arg0, %c0_i32, %c0_i32_0 : i32, i32, i32
  }
  func.func @transform_2(%arg0: i32) -> (i32, i32, i32) {
    %c0_i32 = arith.constant 0 : i32
    %c0_i32_0 = arith.constant 0 : i32
    %c0_i32_1 = arith.constant 0 : i32
    return %arg0, %c0_i32, %c0_i32_0 : i32, i32, i32
  }
  func.func @transform_3(%arg0: i32) -> (i32, i32, i32) {
    %c0_i32 = arith.constant 0 : i32
    %c0_i32_0 = arith.constant 0 : i32
    %c0_i32_1 = arith.constant 0 : i32
    return %arg0, %c0_i32, %c0_i32_0 : i32, i32, i32
  }
  func.func @transform_4(%arg0: i32) -> (i32, i32, i32) {
    %c0_i32 = arith.constant 0 : i32
    %c0_i32_0 = arith.constant 0 : i32
    %c0_i32_1 = arith.constant 0 : i32
    return %arg0, %c0_i32, %c0_i32_0 : i32, i32, i32
  }
}

module attributes {stable_mosaic.version = 11 : i64} {
  func.func @_mm_kernel(%arg0: i32, %arg1: i32, %arg2: i32, %arg3: memref<64x32xf32, #tpu.memory_space<vmem>>, %arg4: memref<32x128xbf16, #tpu.memory_space<vmem>>, %arg5: memref<1x128xf32, #tpu.memory_space<vmem>>, %arg6: memref<64x128xf32, #tpu.memory_space<vmem>>, %arg7: memref<64x128xf32, #tpu.memory_space<vmem>>) attributes {dimension_semantics = [#tpu.dimension_semantics<parallel>, #tpu.dimension_semantics<parallel>, #tpu.dimension_semantics<arbitrary>], iteration_bounds = array<i64: 1, 1, 1>, scalar_prefetch = 0 : i64, scratch_operands = 1 : i64, tpu.core_type = #tpu.core_type<tc>, window_params = [{transform_indices = @transform_0, window_bounds = array<i64: 64, 32>}, {transform_indices = @transform_1, window_bounds = array<i64: 32, 128>}, {transform_indices = @transform_2, window_bounds = array<i64: 1, 128>}, {transform_indices = @transform_3, window_bounds = array<i64: 64, 128>}]} {
    %c0_i32 = arith.constant 0 : i32
    %0 = arith.cmpi eq, %arg2, %c0_i32 : i32
    %1 = arith.extui %0 : i1 to i32
    %c0_i32_0 = arith.constant 0 : i32
    %2 = arith.cmpi ne, %1, %c0_i32_0 : i32
    scf.if %2 {
      %cst_10 = arith.constant 0.000000e+00 : f32
      %13 = vector.broadcast %cst_10 : f32 to vector<64x128xf32>
      %c0_11 = arith.constant 0 : index
      %c0_12 = arith.constant 0 : index
      %14 = vector.load %arg7[%c0_11, %c0_12] : memref<64x128xf32, #tpu.memory_space<vmem>>, vector<64x128xf32>
      tpu.vector_store %arg7[%c0_11, %c0_12], %13 {strides = array<i32>} : memref<64x128xf32, #tpu.memory_space<vmem>>, vector<64x128xf32>,
    } else {
    }
    %c0 = arith.constant 0 : index
    %c0_1 = arith.constant 0 : index
    %3 = vector.load %arg7[%c0, %c0_1] : memref<64x128xf32, #tpu.memory_space<vmem>>, vector<64x128xf32>
    %c0_2 = arith.constant 0 : index
    %c0_3 = arith.constant 0 : index
    %4 = vector.load %arg3[%c0_2, %c0_3] : memref<64x32xf32, #tpu.memory_space<vmem>>, vector<64x32xf32>
    %5 = arith.truncf %4 : vector<64x32xf32> to vector<64x32xbf16>
    %c0_4 = arith.constant 0 : index
    %c0_5 = arith.constant 0 : index
    %6 = vector.load %arg4[%c0_4, %c0_5] : memref<32x128xbf16, #tpu.memory_space<vmem>>, vector<32x128xbf16>
    %cst = arith.constant dense<0.000000e+00> : vector<64x128xf32>
    %7 = tpu.matmul %5, %6, %cst {dimension_numbers = #tpu.dot_dimension_numbers<[1], [0], [0], [1], [0, 0, 1, 1], [], []>} : vector<64x32xbf16>, vector<32x128xbf16>, vector<64x128xf32> -> vector<64x128xf32>
    %8 = arith.addf %3, %7 : vector<64x128xf32>
    %c0_6 = arith.constant 0 : index
    %c0_7 = arith.constant 0 : index
    %9 = vector.load %arg7[%c0_6, %c0_7] : memref<64x128xf32, #tpu.memory_space<vmem>>, vector<64x128xf32>
    tpu.vector_store %arg7[%c0_6, %c0_7], %8 {strides = array<i32>} : memref<64x128xf32, #tpu.memory_space<vmem>>, vector<64x128xf32>,
    %c0_i32_8 = arith.constant 0 : i32
    %10 = arith.cmpi eq, %arg2, %c0_i32_8 : i32
    %11 = arith.extui %10 : i1 to i32
    %c0_i32_9 = arith.constant 0 : i32
    %12 = arith.cmpi ne, %11, %c0_i32_9 : i32
    scf.if %12 {
      %c0_10 = arith.constant 0 : index
      %c0_11 = arith.constant 0 : index
      %13 = vector.load %arg7[%c0_10, %c0_11] : memref<64x128xf32, #tpu.memory_space<vmem>>, vector<64x128xf32>
      %c0_12 = arith.constant 0 : index
      %c0_13 = arith.constant 0 : index
      %14 = vector.load %arg5[%c0_12, %c0_13] : memref<1x128xf32, #tpu.memory_space<vmem>>, vector<1x128xf32>
      %15 = vector.broadcast %14 : vector<1x128xf32> to vector<64x128xf32>
      %16 = arith.addf %13, %15 : vector<64x128xf32>
      %c0_14 = arith.constant 0 : index
      %c0_15 = arith.constant 0 : index
      %17 = vector.load %arg6[%c0_14, %c0_15] : memref<64x128xf32, #tpu.memory_space<vmem>>, vector<64x128xf32>
      tpu.vector_store %arg6[%c0_14, %c0_15], %16 {strides = array<i32>} : memref<64x128xf32, #tpu.memory_space<vmem>>, vector<64x128xf32>,
    } else {
    }
    return
  }
  func.func @transform_0(%arg0: i32, %arg1: i32, %arg2: i32) -> (i32, i32) {
    %c0_i32 = arith.constant 0 : i32
    return %arg0, %arg2 : i32, i32
  }
  func.func @transform_1(%arg0: i32, %arg1: i32, %arg2: i32) -> (i32, i32) {
    %c0_i32 = arith.constant 0 : i32
    return %arg2, %arg1 : i32, i32
  }
  func.func @transform_2(%arg0: i32, %arg1: i32, %arg2: i32) -> (i32, i32) {
    %c0_i32 = arith.constant 0 : i32
    %c0_i32_0 = arith.constant 0 : i32
    return %c0_i32, %arg1 : i32, i32
  }
  func.func @transform_3(%arg0: i32, %arg1: i32, %arg2: i32) -> (i32, i32) {
    %c0_i32 = arith.constant 0 : i32
    return %arg0, %arg1 : i32, i32
  }
}

module attributes {stable_mosaic.version = 11 : i64} {
  func.func @_mm_kernel(%arg0: i32, %arg1: i32, %arg2: i32, %arg3: memref<64x128xf32, #tpu.memory_space<vmem>>, %arg4: memref<128x128xbf16, #tpu.memory_space<vmem>>, %arg5: memref<1x128xf32, #tpu.memory_space<vmem>>, %arg6: memref<64x128xbf16, #tpu.memory_space<vmem>>, %arg7: memref<64x128xf32, #tpu.memory_space<vmem>>) attributes {dimension_semantics = [#tpu.dimension_semantics<parallel>, #tpu.dimension_semantics<parallel>, #tpu.dimension_semantics<arbitrary>], iteration_bounds = array<i64: 1, 1, 1>, scalar_prefetch = 0 : i64, scratch_operands = 1 : i64, tpu.core_type = #tpu.core_type<tc>, window_params = [{transform_indices = @transform_0, window_bounds = array<i64: 64, 128>}, {transform_indices = @transform_1, window_bounds = array<i64: 128, 128>}, {transform_indices = @transform_2, window_bounds = array<i64: 1, 128>}, {transform_indices = @transform_3, window_bounds = array<i64: 64, 128>}]} {
    %c0_i32 = arith.constant 0 : i32
    %0 = arith.cmpi eq, %arg2, %c0_i32 : i32
    %1 = arith.extui %0 : i1 to i32
    %c0_i32_0 = arith.constant 0 : i32
    %2 = arith.cmpi ne, %1, %c0_i32_0 : i32
    scf.if %2 {
      %cst_10 = arith.constant 0.000000e+00 : f32
      %13 = vector.broadcast %cst_10 : f32 to vector<64x128xf32>
      %c0_11 = arith.constant 0 : index
      %c0_12 = arith.constant 0 : index
      %14 = vector.load %arg7[%c0_11, %c0_12] : memref<64x128xf32, #tpu.memory_space<vmem>>, vector<64x128xf32>
      tpu.vector_store %arg7[%c0_11, %c0_12], %13 {strides = array<i32>} : memref<64x128xf32, #tpu.memory_space<vmem>>, vector<64x128xf32>,
    } else {
    }
    %c0 = arith.constant 0 : index
    %c0_1 = arith.constant 0 : index
    %3 = vector.load %arg7[%c0, %c0_1] : memref<64x128xf32, #tpu.memory_space<vmem>>, vector<64x128xf32>
    %c0_2 = arith.constant 0 : index
    %c0_3 = arith.constant 0 : index
    %4 = vector.load %arg3[%c0_2, %c0_3] : memref<64x128xf32, #tpu.memory_space<vmem>>, vector<64x128xf32>
    %5 = arith.truncf %4 : vector<64x128xf32> to vector<64x128xbf16>
    %c0_4 = arith.constant 0 : index
    %c0_5 = arith.constant 0 : index
    %6 = vector.load %arg4[%c0_4, %c0_5] : memref<128x128xbf16, #tpu.memory_space<vmem>>, vector<128x128xbf16>
    %cst = arith.constant dense<0.000000e+00> : vector<64x128xf32>
    %7 = tpu.matmul %5, %6, %cst {dimension_numbers = #tpu.dot_dimension_numbers<[1], [0], [0], [1], [0, 0, 1, 1], [], []>} : vector<64x128xbf16>, vector<128x128xbf16>, vector<64x128xf32> -> vector<64x128xf32>
    %8 = arith.addf %3, %7 : vector<64x128xf32>
    %c0_6 = arith.constant 0 : index
    %c0_7 = arith.constant 0 : index
    %9 = vector.load %arg7[%c0_6, %c0_7] : memref<64x128xf32, #tpu.memory_space<vmem>>, vector<64x128xf32>
    tpu.vector_store %arg7[%c0_6, %c0_7], %8 {strides = array<i32>} : memref<64x128xf32, #tpu.memory_space<vmem>>, vector<64x128xf32>,
    %c0_i32_8 = arith.constant 0 : i32
    %10 = arith.cmpi eq, %arg2, %c0_i32_8 : i32
    %11 = arith.extui %10 : i1 to i32
    %c0_i32_9 = arith.constant 0 : i32
    %12 = arith.cmpi ne, %11, %c0_i32_9 : i32
    scf.if %12 {
      %c0_10 = arith.constant 0 : index
      %c0_11 = arith.constant 0 : index
      %13 = vector.load %arg7[%c0_10, %c0_11] : memref<64x128xf32, #tpu.memory_space<vmem>>, vector<64x128xf32>
      %c0_12 = arith.constant 0 : index
      %c0_13 = arith.constant 0 : index
      %14 = vector.load %arg5[%c0_12, %c0_13] : memref<1x128xf32, #tpu.memory_space<vmem>>, vector<1x128xf32>
      %15 = vector.broadcast %14 : vector<1x128xf32> to vector<64x128xf32>
      %16 = arith.addf %13, %15 : vector<64x128xf32>
      %cst_14 = arith.constant 0.000000e+00 : f32
      %17 = vector.broadcast %cst_14 : f32 to vector<64x128xf32>
      %18 = arith.maximumf %16, %17 : vector<64x128xf32>
      %19 = arith.truncf %18 : vector<64x128xf32> to vector<64x128xbf16>
      %c0_15 = arith.constant 0 : index
      %c0_16 = arith.constant 0 : index
      %20 = vector.load %arg6[%c0_15, %c0_16] : memref<64x128xbf16, #tpu.memory_space<vmem>>, vector<64x128xbf16>
      tpu.vector_store %arg6[%c0_15, %c0_16], %19 {strides = array<i32>} : memref<64x128xbf16, #tpu.memory_space<vmem>>, vector<64x128xbf16>,
    } else {
    }
    return
  }
  func.func @transform_0(%arg0: i32, %arg1: i32, %arg2: i32) -> (i32, i32) {
    %c0_i32 = arith.constant 0 : i32
    return %arg0, %arg2 : i32, i32
  }
  func.func @transform_1(%arg0: i32, %arg1: i32, %arg2: i32) -> (i32, i32) {
    %c0_i32 = arith.constant 0 : i32
    return %arg2, %arg1 : i32, i32
  }
  func.func @transform_2(%arg0: i32, %arg1: i32, %arg2: i32) -> (i32, i32) {
    %c0_i32 = arith.constant 0 : i32
    %c0_i32_0 = arith.constant 0 : i32
    return %c0_i32, %arg1 : i32, i32
  }
  func.func @transform_3(%arg0: i32, %arg1: i32, %arg2: i32) -> (i32, i32) {
    %c0_i32 = arith.constant 0 : i32
    return %arg0, %arg1 : i32, i32
  }
}

module attributes {stable_mosaic.version = 11 : i64} {
  func.func @_add_ln_kernel(%arg0: i32, %arg1: memref<64x128xf32, #tpu.memory_space<vmem>>, %arg2: memref<64x128xf32, #tpu.memory_space<vmem>>, %arg3: memref<64x1xf32, #tpu.memory_space<vmem>>, %arg4: memref<1x128xf32, #tpu.memory_space<vmem>>, %arg5: memref<1x128xf32, #tpu.memory_space<vmem>>, %arg6: memref<64x128xf32, #tpu.memory_space<vmem>>) attributes {dimension_semantics = [#tpu.dimension_semantics<parallel>], iteration_bounds = array<i64: 1>, scalar_prefetch = 0 : i64, scratch_operands = 0 : i64, tpu.core_type = #tpu.core_type<tc>, window_params = [{transform_indices = @transform_0, window_bounds = array<i64: 64, 128>}, {transform_indices = @transform_1, window_bounds = array<i64: 64, 128>}, {transform_indices = @transform_2, window_bounds = array<i64: 64, 1>}, {pipeline_mode = #tpu.pipeline_mode<synchronous>, transform_indices = @transform_3, window_bounds = array<i64: 1, 128>}, {pipeline_mode = #tpu.pipeline_mode<synchronous>, transform_indices = @transform_4, window_bounds = array<i64: 1, 128>}, {transform_indices = @transform_5, window_bounds = array<i64: 64, 128>}]} {
    %c0 = arith.constant 0 : index
    %c0_0 = arith.constant 0 : index
    %0 = vector.load %arg1[%c0, %c0_0] : memref<64x128xf32, #tpu.memory_space<vmem>>, vector<64x128xf32>
    %c0_1 = arith.constant 0 : index
    %c0_2 = arith.constant 0 : index
    %1 = vector.load %arg2[%c0_1, %c0_2] : memref<64x128xf32, #tpu.memory_space<vmem>>, vector<64x128xf32>
    %2 = arith.addf %0, %1 : vector<64x128xf32>
    %3 = tpu.iota {dimensions = array<i32: 1>} : vector<64x128xi32>
    %c32_i32 = arith.constant 32 : i32
    %4 = vector.broadcast %c32_i32 : i32 to vector<64x128xi32>
    %5 = arith.cmpi slt, %3, %4 : vector<64x128xi32>
    %6 = arith.extui %5 : vector<64x128xi1> to vector<64x128xi32>
    %7 = arith.sitofp %6 : vector<64x128xi32> to vector<64x128xf32>
    %8 = arith.mulf %2, %7 : vector<64x128xf32>
    %cst = arith.constant dense<0.000000e+00> : vector<64xf32>
    %9 = vector.multi_reduction <add>, %8, %cst [1] : vector<64x128xf32> to vector<64xf32>
    %10 = vector.shape_cast %9 : vector<64xf32> to vector<64x1xf32>
    %cst_3 = arith.constant 3.125000e-02 : f32
    %11 = vector.broadcast %cst_3 : f32 to vector<64x1xf32>
    %12 = arith.mulf %10, %11 : vector<64x1xf32>
    %13 = vector.broadcast %12 : vector<64x1xf32> to vector<64x128xf32>
    %14 = arith.subf %2, %13 : vector<64x128xf32>
    %15 = arith.mulf %14, %7 : vector<64x128xf32>
    %16 = arith.mulf %15, %15 : vector<64x128xf32>
    %cst_4 = arith.constant dense<0.000000e+00> : vector<64xf32>
    %17 = vector.multi_reduction <add>, %16, %cst_4 [1] : vector<64x128xf32> to vector<64xf32>
    %18 = vector.shape_cast %17 : vector<64xf32> to vector<64x1xf32>
    %cst_5 = arith.constant 3.125000e-02 : f32
    %19 = vector.broadcast %cst_5 : f32 to vector<64x1xf32>
    %20 = arith.mulf %18, %19 : vector<64x1xf32>
    %cst_6 = arith.constant 9.99999974E-6 : f32
    %21 = vector.broadcast %cst_6 : f32 to vector<64x1xf32>
    %22 = arith.addf %20, %21 : vector<64x1xf32>
    %23 = math.rsqrt %22 : vector<64x1xf32>
    %24 = vector.broadcast %23 : vector<64x1xf32> to vector<64x128xf32>
    %25 = arith.mulf %15, %24 : vector<64x128xf32>
    %c0_7 = arith.constant 0 : index
    %c0_8 = arith.constant 0 : index
    %26 = vector.load %arg4[%c0_7, %c0_8] : memref<1x128xf32, #tpu.memory_space<vmem>>, vector<1x128xf32>
    %27 = vector.broadcast %26 : vector<1x128xf32> to vector<64x128xf32>
    %28 = arith.mulf %25, %27 : vector<64x128xf32>
    %c0_9 = arith.constant 0 : index
    %c0_10 = arith.constant 0 : index
    %29 = vector.load %arg5[%c0_9, %c0_10] : memref<1x128xf32, #tpu.memory_space<vmem>>, vector<1x128xf32>
    %30 = vector.broadcast %29 : vector<1x128xf32> to vector<64x128xf32>
    %31 = arith.addf %28, %30 : vector<64x128xf32>
    %c0_11 = arith.constant 0 : index
    %c0_12 = arith.constant 0 : index
    %32 = vector.load %arg3[%c0_11, %c0_12] : memref<64x1xf32, #tpu.memory_space<vmem>>, vector<64x1xf32>
    %33 = vector.broadcast %32 : vector<64x1xf32> to vector<64x128xf32>
    %34 = arith.mulf %31, %33 : vector<64x128xf32>
    %c0_13 = arith.constant 0 : index
    %c0_14 = arith.constant 0 : index
    %35 = vector.load %arg6[%c0_13, %c0_14] : memref<64x128xf32, #tpu.memory_space<vmem>>, vector<64x128xf32>
    tpu.vector_store %arg6[%c0_13, %c0_14], %34 {strides = array<i32>} : memref<64x128xf32, #tpu.memory_space<vmem>>, vector<64x128xf32>,
    return
  }
  func.func @transform_0(%arg0: i32) -> (i32, i32) {
    %c0_i32 = arith.constant 0 : i32
    %c0_i32_0 = arith.constant 0 : i32
    return %arg0, %c0_i32 : i32, i32
  }
  func.func @transform_1(%arg0: i32) -> (i32, i32) {
    %c0_i32 = arith.constant 0 : i32
    %c0_i32_0 = arith.constant 0 : i32
    return %arg0, %c0_i32 : i32, i32
  }
  func.func @transform_2(%arg0: i32) -> (i32, i32) {
    %c0_i32 = arith.constant 0 : i32
    %c0_i32_0 = arith.constant 0 : i32
    return %arg0, %c0_i32 : i32, i32
  }
  func.func @transform_3(%arg0: i32) -> (i32, i32) {
    %c0_i32 = arith.constant 0 : i32
    %c0_i32_0 = arith.constant 0 : i32
    %c0_i32_1 = arith.constant 0 : i32
    return %c0_i32, %c0_i32_0 : i32, i32
  }
  func.func @transform_4(%arg0: i32) -> (i32, i32) {
    %c0_i32 = arith.constant 0 : i32
    %c0_i32_0 = arith.constant 0 : i32
    %c0_i32_1 = arith.constant 0 : i32
    return %c0_i32, %c0_i32_0 : i32, i32
  }
  func.func @transform_5(%arg0: i32) -> (i32, i32) {
    %c0_i32 = arith.constant 0 : i32
    %c0_i32_0 = arith.constant 0 : i32
    return %arg0, %c0_i32 : i32, i32
  }
}

module attributes {stable_mosaic.version = 11 : i64} {
  func.func @_mm_kernel(%arg0: i32, %arg1: i32, %arg2: i32, %arg3: memref<64x128xbf16, #tpu.memory_space<vmem>>, %arg4: memref<128x128xbf16, #tpu.memory_space<vmem>>, %arg5: memref<1x128xf32, #tpu.memory_space<vmem>>, %arg6: memref<64x128xf32, #tpu.memory_space<vmem>>, %arg7: memref<64x128xf32, #tpu.memory_space<vmem>>) attributes {dimension_semantics = [#tpu.dimension_semantics<parallel>, #tpu.dimension_semantics<parallel>, #tpu.dimension_semantics<arbitrary>], iteration_bounds = array<i64: 1, 1, 1>, scalar_prefetch = 0 : i64, scratch_operands = 1 : i64, tpu.core_type = #tpu.core_type<tc>, window_params = [{transform_indices = @transform_0, window_bounds = array<i64: 64, 128>}, {transform_indices = @transform_1, window_bounds = array<i64: 128, 128>}, {transform_indices = @transform_2, window_bounds = array<i64: 1, 128>}, {transform_indices = @transform_3, window_bounds = array<i64: 64, 128>}]} {
    %c0_i32 = arith.constant 0 : i32
    %0 = arith.cmpi eq, %arg2, %c0_i32 : i32
    %1 = arith.extui %0 : i1 to i32
    %c0_i32_0 = arith.constant 0 : i32
    %2 = arith.cmpi ne, %1, %c0_i32_0 : i32
    scf.if %2 {
      %cst_10 = arith.constant 0.000000e+00 : f32
      %12 = vector.broadcast %cst_10 : f32 to vector<64x128xf32>
      %c0_11 = arith.constant 0 : index
      %c0_12 = arith.constant 0 : index
      %13 = vector.load %arg7[%c0_11, %c0_12] : memref<64x128xf32, #tpu.memory_space<vmem>>, vector<64x128xf32>
      tpu.vector_store %arg7[%c0_11, %c0_12], %12 {strides = array<i32>} : memref<64x128xf32, #tpu.memory_space<vmem>>, vector<64x128xf32>,
    } else {
    }
    %c0 = arith.constant 0 : index
    %c0_1 = arith.constant 0 : index
    %3 = vector.load %arg7[%c0, %c0_1] : memref<64x128xf32, #tpu.memory_space<vmem>>, vector<64x128xf32>
    %c0_2 = arith.constant 0 : index
    %c0_3 = arith.constant 0 : index
    %4 = vector.load %arg3[%c0_2, %c0_3] : memref<64x128xbf16, #tpu.memory_space<vmem>>, vector<64x128xbf16>
    %c0_4 = arith.constant 0 : index
    %c0_5 = arith.constant 0 : index
    %5 = vector.load %arg4[%c0_4, %c0_5] : memref<128x128xbf16, #tpu.memory_space<vmem>>, vector<128x128xbf16>
    %cst = arith.constant dense<0.000000e+00> : vector<64x128xf32>
    %6 = tpu.matmul %4, %5, %cst {dimension_numbers = #tpu.dot_dimension_numbers<[1], [0], [0], [1], [0, 0, 1, 1], [], []>} : vector<64x128xbf16>, vector<128x128xbf16>, vector<64x128xf32> -> vector<64x128xf32>
    %7 = arith.addf %3, %6 : vector<64x128xf32>
    %c0_6 = arith.constant 0 : index
    %c0_7 = arith.constant 0 : index
    %8 = vector.load %arg7[%c0_6, %c0_7] : memref<64x128xf32, #tpu.memory_space<vmem>>, vector<64x128xf32>
    tpu.vector_store %arg7[%c0_6, %c0_7], %7 {strides = array<i32>} : memref<64x128xf32, #tpu.memory_space<vmem>>, vector<64x128xf32>,
    %c0_i32_8 = arith.constant 0 : i32
    %9 = arith.cmpi eq, %arg2, %c0_i32_8 : i32
    %10 = arith.extui %9 : i1 to i32
    %c0_i32_9 = arith.constant 0 : i32
    %11 = arith.cmpi ne, %10, %c0_i32_9 : i32
    scf.if %11 {
      %c0_10 = arith.constant 0 : index
      %c0_11 = arith.constant 0 : index
      %12 = vector.load %arg7[%c0_10, %c0_11] : memref<64x128xf32, #tpu.memory_space<vmem>>, vector<64x128xf32>
      %c0_12 = arith.constant 0 : index
      %c0_13 = arith.constant 0 : index
      %13 = vector.load %arg5[%c0_12, %c0_13] : memref<1x128xf32, #tpu.memory_space<vmem>>, vector<1x128xf32>
      %14 = vector.broadcast %13 : vector<1x128xf32> to vector<64x128xf32>
      %15 = arith.addf %12, %14 : vector<64x128xf32>
      %c0_14 = arith.constant 0 : index
      %c0_15 = arith.constant 0 : index
      %16 = vector.load %arg6[%c0_14, %c0_15] : memref<64x128xf32, #tpu.memory_space<vmem>>, vector<64x128xf32>
      tpu.vector_store %arg6[%c0_14, %c0_15], %15 {strides = array<i32>} : memref<64x128xf32, #tpu.memory_space<vmem>>, vector<64x128xf32>,
    } else {
    }
    return
  }
  func.func @transform_0(%arg0: i32, %arg1: i32, %arg2: i32) -> (i32, i32) {
    %c0_i32 = arith.constant 0 : i32
    return %arg0, %arg2 : i32, i32
  }
  func.func @transform_1(%arg0: i32, %arg1: i32, %arg2: i32) -> (i32, i32) {
    %c0_i32 = arith.constant 0 : i32
    return %arg2, %arg1 : i32, i32
  }
  func.func @transform_2(%arg0: i32, %arg1: i32, %arg2: i32) -> (i32, i32) {
    %c0_i32 = arith.constant 0 : i32
    %c0_i32_0 = arith.constant 0 : i32
    return %c0_i32, %arg1 : i32, i32
  }
  func.func @transform_3(%arg0: i32, %arg1: i32, %arg2: i32) -> (i32, i32) {
    %c0_i32 = arith.constant 0 : i32
    return %arg0, %arg1 : i32, i32
  }
}

module attributes {stable_mosaic.version = 11 : i64} {
  func.func @_mm_kernel(%arg0: i32, %arg1: i32, %arg2: i32, %arg3: memref<8x128xf32, #tpu.memory_space<vmem>>, %arg4: memref<128x128xbf16, #tpu.memory_space<vmem>>, %arg5: memref<1x128xf32, #tpu.memory_space<vmem>>, %arg6: memref<8x128xf32, #tpu.memory_space<vmem>>, %arg7: memref<8x128xf32, #tpu.memory_space<vmem>>) attributes {dimension_semantics = [#tpu.dimension_semantics<parallel>, #tpu.dimension_semantics<parallel>, #tpu.dimension_semantics<arbitrary>], iteration_bounds = array<i64: 1, 1, 1>, scalar_prefetch = 0 : i64, scratch_operands = 1 : i64, tpu.core_type = #tpu.core_type<tc>, window_params = [{transform_indices = @transform_0, window_bounds = array<i64: 8, 128>}, {transform_indices = @transform_1, window_bounds = array<i64: 128, 128>}, {transform_indices = @transform_2, window_bounds = array<i64: 1, 128>}, {transform_indices = @transform_3, window_bounds = array<i64: 8, 128>}]} {
    %c0_i32 = arith.constant 0 : i32
    %0 = arith.cmpi eq, %arg2, %c0_i32 : i32
    %1 = arith.extui %0 : i1 to i32
    %c0_i32_0 = arith.constant 0 : i32
    %2 = arith.cmpi ne, %1, %c0_i32_0 : i32
    scf.if %2 {
      %cst_10 = arith.constant 0.000000e+00 : f32
      %13 = vector.broadcast %cst_10 : f32 to vector<8x128xf32>
      %c0_11 = arith.constant 0 : index
      %c0_12 = arith.constant 0 : index
      %14 = vector.load %arg7[%c0_11, %c0_12] : memref<8x128xf32, #tpu.memory_space<vmem>>, vector<8x128xf32>
      tpu.vector_store %arg7[%c0_11, %c0_12], %13 {strides = array<i32>} : memref<8x128xf32, #tpu.memory_space<vmem>>, vector<8x128xf32>,
    } else {
    }
    %c0 = arith.constant 0 : index
    %c0_1 = arith.constant 0 : index
    %3 = vector.load %arg7[%c0, %c0_1] : memref<8x128xf32, #tpu.memory_space<vmem>>, vector<8x128xf32>
    %c0_2 = arith.constant 0 : index
    %c0_3 = arith.constant 0 : index
    %4 = vector.load %arg3[%c0_2, %c0_3] : memref<8x128xf32, #tpu.memory_space<vmem>>, vector<8x128xf32>
    %5 = arith.truncf %4 : vector<8x128xf32> to vector<8x128xbf16>
    %c0_4 = arith.constant 0 : index
    %c0_5 = arith.constant 0 : index
    %6 = vector.load %arg4[%c0_4, %c0_5] : memref<128x128xbf16, #tpu.memory_space<vmem>>, vector<128x128xbf16>
    %cst = arith.constant dense<0.000000e+00> : vector<8x128xf32>
    %7 = tpu.matmul %5, %6, %cst {dimension_numbers = #tpu.dot_dimension_numbers<[1], [0], [0], [1], [0, 0, 1, 1], [], []>} : vector<8x128xbf16>, vector<128x128xbf16>, vector<8x128xf32> -> vector<8x128xf32>
    %8 = arith.addf %3, %7 : vector<8x128xf32>
    %c0_6 = arith.constant 0 : index
    %c0_7 = arith.constant 0 : index
    %9 = vector.load %arg7[%c0_6, %c0_7] : memref<8x128xf32, #tpu.memory_space<vmem>>, vector<8x128xf32>
    tpu.vector_store %arg7[%c0_6, %c0_7], %8 {strides = array<i32>} : memref<8x128xf32, #tpu.memory_space<vmem>>, vector<8x128xf32>,
    %c0_i32_8 = arith.constant 0 : i32
    %10 = arith.cmpi eq, %arg2, %c0_i32_8 : i32
    %11 = arith.extui %10 : i1 to i32
    %c0_i32_9 = arith.constant 0 : i32
    %12 = arith.cmpi ne, %11, %c0_i32_9 : i32
    scf.if %12 {
      %c0_10 = arith.constant 0 : index
      %c0_11 = arith.constant 0 : index
      %13 = vector.load %arg7[%c0_10, %c0_11] : memref<8x128xf32, #tpu.memory_space<vmem>>, vector<8x128xf32>
      %c0_12 = arith.constant 0 : index
      %c0_13 = arith.constant 0 : index
      %14 = vector.load %arg5[%c0_12, %c0_13] : memref<1x128xf32, #tpu.memory_space<vmem>>, vector<1x128xf32>
      %15 = vector.broadcast %14 : vector<1x128xf32> to vector<8x128xf32>
      %16 = arith.addf %13, %15 : vector<8x128xf32>
      %c0_14 = arith.constant 0 : index
      %c0_15 = arith.constant 0 : index
      %17 = vector.load %arg6[%c0_14, %c0_15] : memref<8x128xf32, #tpu.memory_space<vmem>>, vector<8x128xf32>
      tpu.vector_store %arg6[%c0_14, %c0_15], %16 {strides = array<i32>} : memref<8x128xf32, #tpu.memory_space<vmem>>, vector<8x128xf32>,
    } else {
    }
    return
  }
  func.func @transform_0(%arg0: i32, %arg1: i32, %arg2: i32) -> (i32, i32) {
    %c0_i32 = arith.constant 0 : i32
    return %arg0, %arg2 : i32, i32
  }
  func.func @transform_1(%arg0: i32, %arg1: i32, %arg2: i32) -> (i32, i32) {
    %c0_i32 = arith.constant 0 : i32
    return %arg2, %arg1 : i32, i32
  }
  func.func @transform_2(%arg0: i32, %arg1: i32, %arg2: i32) -> (i32, i32) {
    %c0_i32 = arith.constant 0 : i32
    %c0_i32_0 = arith.constant 0 : i32
    return %c0_i32, %arg1 : i32, i32
  }
  func.func @transform_3(%arg0: i32, %arg1: i32, %arg2: i32) -> (i32, i32) {
    %c0_i32 = arith.constant 0 : i32
    return %arg0, %arg1 : i32, i32
  }
}

</mosaic_0001>

<llo_original>
// kernel: neg.1
$region0: #{neg.1}
  #allocation0 [shape = 's32[1]{0}', space=sflag, size = 0x4, scoped, tag = 'scoped memory for neg.1']
  %s0 = inlined_call_operand.vmem [shape: f32[8,8], index: 0, kind: input, shape index: {}]
  %s1 = inlined_call_operand.vmem [shape: f32[8,8], index: 1, kind: output, shape index: {}]
  %v2 = vld [vmem:[%s0] sm:$0xff]
  %3 = xla_tuple %v2
  %4 = xla_tuple %3
  %v5 = vxor.u32 %v2, 2147483648
  %6 = xla_tuple %v5
  %7 = vst [vmem:[%s1] sm:$0xff] %v5

// kernel: signnet_gnn_forward.16
$region0: #{signnet_gnn_forward.16}
  #allocation0 [shape = 'u32[]', space=smem, size = 0x4, offset = 0x4, fixed_abs, tag = 'smem constant byte address 0x4 - core index']
  #allocation1 [shape = 'u32[144,128]{1,0:T(1,128)}', space=vmem, size = 0x12000, scoped, tag = 'internal scratch']
  #allocation2 [shape = 'f32[8,512]{1,0:T(8,128)}', space=vmem, size = 0x4000, scoped, tag = 'scratch operand']
  %s0 = inlined_call_operand.vmem [shape: f32[8,8], index: 0, kind: input, shape index: {}]
  %s1 = inlined_call_operand.vmem [shape: f32[8,2048], index: 1, kind: input, shape index: {}]
  %s2 = inlined_call_operand.vmem [shape: f32[1,2048], index: 2, kind: input, shape index: {}]
  %s3 = inlined_call_operand.vmem [shape: f32[8,2048], index: 3, kind: output, shape index: {}]
  %s4 = sld [smem:[#allocation0]]
  $region53: #{signnet_gnn_forward.16} parent=0
    _
  %s6 = ssub.s32 1, %s4
  %s7 = scalar_select 0, %s6, %s4
  loop: start=0, step=1, limit=6
  $region2: #{signnet_gnn_forward.16} parent=0 // loop_pre_header
    _
  $region3: #{signnet_gnn_forward.16} parent=0 // loop_header
    %s9 = sphi 0, %s13
    %p10 = scmp.ge.s32.totalorder %s9, 6
    %s16 = sphi 0, %s35
    %s17 = sphi 0, %s31
    %s18 = sphi 0, %s27
    %s19 = sphi 0, %s16
    %s20 = sphi 0, %s17
    %s21 = sphi 0, %s18
    %s22 = sphi 0, %s19
    %s23 = sphi 0, %s20
    %s24 = sphi 0, %s21
    %s40 = sphi 0, %s42
    %s43 = sphi 0, %s40
    %s44 = sphi 0, %s43
    %s60 = sphi 0, %s44
    %s68 = sphi 0, %s70
    %s71 = sphi 0, %s68
    %s72 = sphi 0, %s71
    %s88 = sphi 0, %s72
    %s94 = sphi 0, %s96
    %s97 = sphi 0, %s94
    %s98 = sphi 0, %s97
    %s114 = sphi 0, %s98
    %s122 = sphi 0, %s124
    %s125 = sphi 0, %s122
    %s126 = sphi 0, %s125
    %s142 = sphi 0, %s126
  $region4: #{signnet_gnn_forward.16} parent=0 // loop_header_branch
    %12 = sbr.rel (%p10) target = $region8
  $region5: #{signnet_gnn_forward.16} parent=0 // loop_body
    %s14 = ssub.s32 %s9, 1
    %s15 = ssub.s32 %s9, 2
    %s25 = sadd.s32 1, %s18
    %p26 = scmp.ge.s32.totalorder %s25, 1
    %s27 = scalar_select %p26, 0, %s25
    %s28 = sadd.s32 1, %s17
    %s29 = scalar_select %p26, %s28, %s17
    %p30 = scmp.ge.s32.totalorder %s29, 4
    %s31 = scalar_select %p30, 0, %s29
    %s32 = sadd.s32 1, %s16
    %s33 = scalar_select %p30, %s32, %s16
    %p34 = scmp.ge.s32.totalorder %s33, 1
    %s35 = scalar_select %p34, 0, %s33
    %s36 = ssub.s32 %s16, %s35
    %s37 = ssub.s32 %s18, %s27
    %s38 = sor.u32 %s36, %s37
    %p39 = scmp.eq.s32.totalorder %s38, 0
    %s41 = sadd.s32 %s40, 1
    %s42 = scalar_select %p39, %s40, %s41
    %p45 = pneg %p39
    %p46 = scmp.eq.s32.totalorder %s9, 3
    %p47 = por %p45, %p46
    %p48 = scmp.ne.s32.totalorder %s40, %s43
    %p49 = scmp.eq.s32.totalorder %s9, 0
    %p50 = por %p48, %p49
    %p51 = scmp.ne.s32.totalorder %s40, %s43
    %p52 = scmp.eq.s32.totalorder %s14, 3
    %p53 = por %p51, %p52
    %p54 = scmp.ne.s32.totalorder %s43, %s44
    %p55 = scmp.eq.s32.totalorder %s14, 0
    %p56 = por %p54, %p55
    %p57 = scmp.ne.s32.totalorder %s43, %s44
    %p58 = scmp.eq.s32.totalorder %s15, 3
    %p59 = por %p57, %p58
    %p61 = scmp.ne.s32.totalorder %s44, %s60
    %p62 = scmp.eq.s32.totalorder %s15, 0
    %p63 = por %p61, %p62
    %s64 = ssub.s32 %s18, %s27
    %s65 = ssub.s32 %s17, %s31
    %s66 = sor.u32 %s64, %s65
    %p67 = scmp.eq.s32.totalorder %s66, 0
    %s69 = sadd.s32 %s68, 1
    %s70 = scalar_select %p67, %s68, %s69
    %p73 = pneg %p67
    %p74 = scmp.eq.s32.totalorder %s9, 3
    %p75 = por %p73, %p74
    %p76 = scmp.ne.s32.totalorder %s68, %s71
    %p77 = scmp.eq.s32.totalorder %s9, 0
    %p78 = por %p76, %p77
    %p79 = scmp.ne.s32.totalorder %s68, %s71
    %p80 = scmp.eq.s32.totalorder %s14, 3
    %p81 = por %p79, %p80
    %p82 = scmp.ne.s32.totalorder %s71, %s72
    %p83 = scmp.eq.s32.totalorder %s14, 0
    %p84 = por %p82, %p83
    %p85 = scmp.ne.s32.totalorder %s71, %s72
    %p86 = scmp.eq.s32.totalorder %s15, 3
    %p87 = por %p85, %p86
    %p89 = scmp.ne.s32.totalorder %s72, %s88
    %p90 = scmp.eq.s32.totalorder %s15, 0
    %p91 = por %p89, %p90
    %s92 = ssub.s32 %s17, %s31
    %p93 = scmp.eq.s32.totalorder %s92, 0
    %s95 = sadd.s32 %s94, 1
    %s96 = scalar_select %p93, %s94, %s95
    %p99 = pneg %p93
    %p100 = scmp.eq.s32.totalorder %s9, 3
    %p101 = por %p99, %p100
    %p102 = scmp.ne.s32.totalorder %s94, %s97
    %p103 = scmp.eq.s32.totalorder %s9, 0
    %p104 = por %p102, %p103
    %p105 = scmp.ne.s32.totalorder %s94, %s97
    %p106 = scmp.eq.s32.totalorder %s14, 3
    %p107 = por %p105, %p106
    %p108 = scmp.ne.s32.totalorder %s97, %s98
    %p109 = scmp.eq.s32.totalorder %s14, 0
    %p110 = por %p108, %p109
    %p111 = scmp.ne.s32.totalorder %s97, %s98
    %p112 = scmp.eq.s32.totalorder %s15, 3
    %p113 = por %p111, %p112
    %p115 = scmp.ne.s32.totalorder %s98, %s114
    %p116 = scmp.eq.s32.totalorder %s15, 0
    %p117 = por %p115, %p116
    %s118 = ssub.s32 %s16, %s35
    %s119 = ssub.s32 %s17, %s31
    %s120 = sor.u32 %s118, %s119
    %p121 = scmp.eq.s32.totalorder %s120, 0
    %s123 = sadd.s32 %s122, 1
    %s124 = scalar_select %p121, %s122, %s123
    %p127 = pneg %p121
    %p128 = scmp.eq.s32.totalorder %s9, 3
    %p129 = por %p127, %p128
    %p130 = scmp.ne.s32.totalorder %s122, %s125
    %p131 = scmp.eq.s32.totalorder %s9, 0
    %p132 = por %p130, %p131
    %p133 = scmp.ne.s32.totalorder %s122, %s125
    %p134 = scmp.eq.s32.totalorder %s14, 3
    %p135 = por %p133, %p134
    %p136 = scmp.ne.s32.totalorder %s125, %s126
    %p137 = scmp.eq.s32.totalorder %s14, 0
    %p138 = por %p136, %p137
    %p139 = scmp.ne.s32.totalorder %s125, %s126
    %p140 = scmp.eq.s32.totalorder %s15, 3
    %p141 = por %p139, %p140
    %p143 = scmp.ne.s32.totalorder %s126, %s142
    %p144 = scmp.eq.s32.totalorder %s15, 0
    %p145 = por %p143, %p144
    %p146 = scmp.le.s32.totalorder 1, %s9
    %p147 = scmp.lt.s32.totalorder %s9, 5
    %p148 = pnand %p146, %p147
    %p149 = pneg %p148
    // Predicated region
    $region9: #{signnet_gnn_forward.16} parent=5 // pred_check
      _
    $region10: #{signnet_gnn_forward.16} parent=5 // pred_check_branch
      %151 = sbr.rel (%p148) target = $region12
    $region11: #{signnet_gnn_forward.16} parent=5 // pred_region
      %s152 = ssub.s32 %s9, 1
      // Predicated region
      $region13: #{signnet_gnn_forward.16} parent=11 // pred_check
        %p153 = pneg %p56
      $region14: #{signnet_gnn_forward.16} parent=11 // pred_check_branch
        %155 = sbr.rel (%p153) target = $region16
      $region15: #{signnet_gnn_forward.16} parent=11 // pred_region
        %p156 = scmp.lt.s32.totalorder %s19, 0
        %s157 = scalar_select %p156, %s19, 0
        %p158 = scmp.lt.s32.totalorder %s21, 0
        %s159 = scalar_select %p158, %s21, 0
        %s160 = sadd.s32 %s159, %s157
        %s161 = smul.addr %s160, 8
        %s162 = scalar_lea.vmem %s0, %s161
      $region16: #{signnet_gnn_forward.16} parent=11 // pred_fallthru
        _
    $region12: #{signnet_gnn_forward.16} parent=5 // pred_fallthru
      _
    %p163 = scmp.lt.s32.totalorder %s9, 4
    // Predicated region
    $region17: #{signnet_gnn_forward.16} parent=5 // pred_check
      %p164 = pneg %p163
    $region18: #{signnet_gnn_forward.16} parent=5 // pred_check_branch
      %166 = sbr.rel (%p164) target = $region20
    $region19: #{signnet_gnn_forward.16} parent=5 // pred_region
      // Predicated region
      $region21: #{signnet_gnn_forward.16} parent=19 // pred_check
        %p167 = pneg %p78
      $region22: #{signnet_gnn_forward.16} parent=19 // pred_check_branch
        %169 = sbr.rel (%p167) target = $region24
      $region23: #{signnet_gnn_forward.16} parent=19 // pred_region
        %s170 = smul.u32 4, %s17
        %p171 = scmp.lt.s32.totalorder %s18, 0
        %s172 = scalar_select %p171, %s18, 0
        %p173 = scmp.lt.s32.totalorder %s170, 15
        %s174 = scalar_select %p173, %s170, 15
        %s175 = smul.addr %s172, 16
        %s176 = sadd.s32 %s174, %s175
        %s177 = smul.addr %s176, 8
        %s178 = scalar_lea.vmem %s1, %s177
        %s179 = smul.u32 4, %s17
      $region24: #{signnet_gnn_forward.16} parent=19 // pred_fallthru
        _
      // Predicated region
      $region25: #{signnet_gnn_forward.16} parent=19 // pred_check
        %p180 = pneg %p104
      $region26: #{signnet_gnn_forward.16} parent=19 // pred_check_branch
        %182 = sbr.rel (%p180) target = $region28
      $region27: #{signnet_gnn_forward.16} parent=19 // pred_region
        %s183 = smul.u32 4, %s17
        %p184 = scmp.lt.s32.totalorder %s183, 15
        %s185 = scalar_select %p184, %s183, 15
        %s186 = scalar_lea.vmem %s2, %s185
        %s187 = smul.u32 4, %s17
      $region28: #{signnet_gnn_forward.16} parent=19 // pred_fallthru
        _
    $region20: #{signnet_gnn_forward.16} parent=5 // pred_fallthru
      _
    %p188 = scmp.le.s32.totalorder 1, %s9
    %p189 = scmp.lt.s32.totalorder %s9, 5
    %p190 = pnand %p188, %p189
    %p191 = pneg %p190
    // Predicated region
    $region29: #{signnet_gnn_forward.16} parent=5 // pred_check
      _
    $region30: #{signnet_gnn_forward.16} parent=5 // pred_check_branch
      %193 = sbr.rel (%p190) target = $region32
    $region31: #{signnet_gnn_forward.16} parent=5 // pred_region
      %s194 = ssub.s32 %s9, 1
      %p195 = scmp.lt.s32.totalorder %s19, 0
      %s196 = scalar_select %p195, %s19, 0
      %p197 = scmp.lt.s32.totalorder %s21, 0
      %s198 = scalar_select %p197, %s21, 0
      %s199 = sadd.s32 %s198, %s196
      %s200 = smul.addr %s199, 8
      %s201 = scalar_lea.vmem %s0, %s200
      %p202 = pneg %p56
      %p203 = pneg %p53
      %s204 = smul.u32 4, %s20
      %p205 = scmp.lt.s32.totalorder %s21, 0
      %s206 = scalar_select %p205, %s21, 0
      %p207 = scmp.lt.s32.totalorder %s204, 15
      %s208 = scalar_select %p207, %s204, 15
      %s209 = smul.addr %s206, 16
      %s210 = sadd.s32 %s208, %s209
      %s211 = smul.addr %s210, 8
      %s212 = scalar_lea.vmem %s1, %s211
      %p213 = pneg %p84
      %p214 = pneg %p81
      %s215 = smul.u32 4, %s20
      %p216 = scmp.lt.s32.totalorder %s215, 15
      %s217 = scalar_select %p216, %s215, 15
      %s218 = scalar_lea.vmem %s2, %s217
      %p219 = pneg %p110
      %p220 = pneg %p107
      %p221 = pneg %p138
      %p222 = pneg %p135
      %s223 = smul.u32 4, %s20
      %p224 = scmp.lt.s32.totalorder %s19, 0
      %s225 = scalar_select %p224, %s19, 0
      %p226 = scmp.lt.s32.totalorder %s223, 15
      %s227 = scalar_select %p226, %s223, 15
      %s228 = smul.addr %s225, 16
      %s229 = sadd.s32 %s227, %s228
      %s230 = smul.addr %s229, 8
      %s231 = scalar_lea.vmem %s3, %s230
      %p232 = scmp.lt.s32.totalorder %s19, 0
      %s233 = scalar_select %p232, %s19, 0
      %p234 = scmp.lt.s32.totalorder %s21, 0
      %s235 = scalar_select %p234, %s21, 0
      %s236 = sadd.s32 %s235, %s233
      %s237 = smul.addr %s236, 8
      %s238 = scalar_lea.vmem %s0, %s237
      %s239 = smul.u32 4, %s20
      %p240 = scmp.lt.s32.totalorder %s21, 0
      %s241 = scalar_select %p240, %s21, 0
      %p242 = scmp.lt.s32.totalorder %s239, 15
      %s243 = scalar_select %p242, %s239, 15
      %s244 = smul.addr %s241, 16
      %s245 = sadd.s32 %s243, %s244
      %s246 = smul.addr %s245, 8
      %s247 = scalar_lea.vmem %s1, %s246
      %s248 = smul.u32 4, %s20
      %s249 = smul.u32 4, %s20
      %p250 = scmp.lt.s32.totalorder %s249, 15
      %s251 = scalar_select %p250, %s249, 15
      %s252 = scalar_lea.vmem %s2, %s251
      %s253 = smul.u32 4, %s20
      %s254 = smul.u32 4, %s20
      %p255 = scmp.lt.s32.totalorder %s19, 0
      %s256 = scalar_select %p255, %s19, 0
      %p257 = scmp.lt.s32.totalorder %s254, 15
      %s258 = scalar_select %p257, %s254, 15
      %s259 = smul.addr %s256, 16
      %s260 = sadd.s32 %s258, %s259
      %s261 = smul.addr %s260, 8
      %s262 = scalar_lea.vmem %s3, %s261
      %s263 = smul.u32 4, %s20
      %p265 = scmp.eq.s32.totalorder %s21, 0
      // Predicated region
      $region33: #{signnet_gnn_forward.16} parent=31 // pred_check
        %p266 = pneg %p265
      $region34: #{signnet_gnn_forward.16} parent=31 // pred_check_branch
        %268 = sbr.rel (%p266) target = $region36
      $region35: #{signnet_gnn_forward.16} parent=31 // pred_region
        %269 = vst [vmem:[#allocation2] sm:$0xff] 0.0
        %270 = vst [vmem:[#allocation2 + $0x8] sm:$0xff] 0.0
        %271 = vst [vmem:[#allocation2 + $0x10] sm:$0xff] 0.0
        %272 = vst [vmem:[#allocation2 + $0x18] sm:$0xff] 0.0
      $region36: #{signnet_gnn_forward.16} parent=31 // pred_fallthru
        _
      %v273 = vld [vmem:[#allocation2] sm:$0xff]
      %v274 = vld [vmem:[#allocation2 + $0x8] sm:$0xff]
      %v275 = vld [vmem:[#allocation2 + $0x10] sm:$0xff]
      %v276 = vld [vmem:[#allocation2 + $0x18] sm:$0xff]
      %v277 = vld [vmem:[%s238] sm:$0xff]
      %v278 = vpack.c.bf16 %v277, %v277
      %v279 = vld [vmem:[%s247] sm:$0xff]
      %v280 = vld [vmem:[%s247 + $0x8] sm:$0xff]
      %v281 = vld [vmem:[%s247 + $0x10] sm:$0xff]
      %v282 = vld [vmem:[%s247 + $0x18] sm:$0xff]
      %v283 = vpack.c.bf16 %v279, %v279
      %v284 = vpack.c.bf16 %v280, %v280
      %v285 = vpack.c.bf16 %v281, %v281
      %v286 = vpack.c.bf16 %v282, %v282
      %vm287 = vcmask 64512
      %v289 = vsel %vm287, %v278, 0
      %vm291 = vcmask 1043456
      %v293 = vsel %vm291, %v283, 0
      %v296 = vsel %vm291, %v284, 0
      %v299 = vsel %vm291, %v285, 0
      %v302 = vsel %vm291, %v286, 0
      %304 = vmatprep.subr.bf16.mxu0 %v296
      %305 = vmatpush1.bf16.msra.mxu0 %v293
      %306 = vmatprep.subr.bf16.mxu0 0
      %307 = vmatpush1.bf16.msra.mxu0 0
      %308 = vmatprep.subr.bf16.mxu0 0
      %309 = vmatpush1.bf16.msra.mxu0 0
      %310 = vmatprep.subr.bf16.mxu0 0
      %311 = vmatpush1.bf16.msra.mxu0 0
      %312 = vmatprep.subr.bf16.mxu0 0
      %313 = vmatpush1.bf16.msra.mxu0 0
      %314 = vmatprep.subr.bf16.mxu0 0
      %315 = vmatpush1.bf16.msra.mxu0 0
      %316 = vmatprep.subr.bf16.mxu0 0
      %317 = vmatpush1.bf16.msra.mxu0 0
      %318 = vmatprep.subr.bf16.mxu0 0
      %319 = vmatpush1.bf16.msra.mxu0 0
      %320 = vmatprep.subr.bf16.mxu0 0
      %321 = vmatpush1.bf16.msra.mxu0 0
      %322 = vmatprep.subr.bf16.mxu0 0
      %323 = vmatpush1.bf16.msra.mxu0 0
      %324 = vmatprep.subr.bf16.mxu0 0
      %325 = vmatpush1.bf16.msra.mxu0 0
      %326 = vmatprep.subr.bf16.mxu0 0
      %327 = vmatpush1.bf16.msra.mxu0 0
      %328 = vmatprep.subr.bf16.mxu0 0
      %329 = vmatpush1.bf16.msra.mxu0 0
      %330 = vmatprep.subr.bf16.mxu0 0
      %331 = vmatpush1.bf16.msra.mxu0 0
      %332 = vmatprep.subr.bf16.mxu0 0
      %333 = vmatpush1.bf16.msra.mxu0 0
      %334 = vmatprep.subr.bf16.mxu0 0
      %335 = vmatpush1.bf16.msra.mxu0 0
      %336 = vmatprep.mubr.bf16.mxu0 0
      %337 = vmatmul.mubr.bf16.gmra.mrb[0].mxu0 %v289
      %v338 = vpop.f32.mrb[0].mxu0
      %v339 = vadd.f32 0.0, %v338
      %v340 = vpop.f32.mrb[0].mxu0
      %v341 = vadd.f32 0.0, %v340
      %v342 = vpop.f32.mrb[0].mxu0
      %v343 = vpop.f32.mrb[0].mxu0
      %344 = vdwg.mxu0
      %345 = vmatprep.subr.bf16.mxu0 %v302
      %346 = vmatpush1.bf16.msra.mxu0 %v299
      %347 = vmatprep.subr.bf16.mxu0 0
      %348 = vmatpush1.bf16.msra.mxu0 0
      %349 = vmatprep.subr.bf16.mxu0 0
      %350 = vmatpush1.bf16.msra.mxu0 0
      %351 = vmatprep.subr.bf16.mxu0 0
      %352 = vmatpush1.bf16.msra.mxu0 0
      %353 = vmatprep.subr.bf16.mxu0 0
      %354 = vmatpush1.bf16.msra.mxu0 0
      %355 = vmatprep.subr.bf16.mxu0 0
      %356 = vmatpush1.bf16.msra.mxu0 0
      %357 = vmatprep.subr.bf16.mxu0 0
      %358 = vmatpush1.bf16.msra.mxu0 0
      %359 = vmatprep.subr.bf16.mxu0 0
      %360 = vmatpush1.bf16.msra.mxu0 0
      %361 = vmatprep.subr.bf16.mxu0 0
      %362 = vmatpush1.bf16.msra.mxu0 0
      %363 = vmatprep.subr.bf16.mxu0 0
      %364 = vmatpush1.bf16.msra.mxu0 0
      %365 = vmatprep.subr.bf16.mxu0 0
      %366 = vmatpush1.bf16.msra.mxu0 0
      %367 = vmatprep.subr.bf16.mxu0 0
      %368 = vmatpush1.bf16.msra.mxu0 0
      %369 = vmatprep.subr.bf16.mxu0 0
      %370 = vmatpush1.bf16.msra.mxu0 0
      %371 = vmatprep.subr.bf16.mxu0 0
      %372 = vmatpush1.bf16.msra.mxu0 0
      %373 = vmatprep.subr.bf16.mxu0 0
      %374 = vmatpush1.bf16.msra.mxu0 0
      %375 = vmatprep.subr.bf16.mxu0 0
      %376 = vmatpush1.bf16.msra.mxu0 0
      %377 = vmatprep.mubr.bf16.mxu0 0
      %378 = vmatmul.mubr.bf16.gmra.mrb[0].mxu0 %v289
      %v379 = vpop.f32.mrb[0].mxu0
      %v380 = vadd.f32 0.0, %v379
      %v381 = vpop.f32.mrb[0].mxu0
      %v382 = vadd.f32 0.0, %v381
      %v383 = vpop.f32.mrb[0].mxu0
      %v384 = vpop.f32.mrb[0].mxu0
      %385 = vdwg.mxu0
      %v386 = vadd.f32 %v273, %v339
      %v387 = vadd.f32 %v274, %v341
      %v388 = vadd.f32 %v275, %v380
      %v389 = vadd.f32 %v276, %v382
      %390 = vst [vmem:[#allocation2] sm:$0xff] %v386
      %391 = vst [vmem:[#allocation2 + $0x8] sm:$0xff] %v387
      %392 = vst [vmem:[#allocation2 + $0x10] sm:$0xff] %v388
      %393 = vst [vmem:[#allocation2 + $0x18] sm:$0xff] %v389
      // Predicated region
      $region37: #{signnet_gnn_forward.16} parent=31 // pred_check
        %p394 = pneg %p265
      $region38: #{signnet_gnn_forward.16} parent=31 // pred_check_branch
        %396 = sbr.rel (%p394) target = $region40
      $region39: #{signnet_gnn_forward.16} parent=31 // pred_region
        %v397 = vld [vmem:[#allocation2] sm:$0xff]
        %v398 = vld [vmem:[#allocation2 + $0x8] sm:$0xff]
        %v399 = vld [vmem:[#allocation2 + $0x10] sm:$0xff]
        %v400 = vld [vmem:[#allocation2 + $0x18] sm:$0xff]
        %v401 = vld [vmem:[%s252] sm:$0xf]
        %v403 = vlaneseq
        %v404 = vshrl.u32 %v403, 7
        %v405 = vsub.s32 0, %v404
        %v406 = vrot.slane %v401, %v405
        %v407 = vlaneseq
        %v408 = vshrl.u32 %v407, 7
        %v409 = vsub.s32 1, %v408
        %v410 = vrot.slane %v401, %v409
        %v411 = vlaneseq
        %v412 = vshrl.u32 %v411, 7
        %v413 = vsub.s32 2, %v412
        %v414 = vrot.slane %v401, %v413
        %v415 = vlaneseq
        %v416 = vshrl.u32 %v415, 7
        %v417 = vsub.s32 3, %v416
        %v418 = vrot.slane %v401, %v417
        %v423 = vadd.f32 %v397, %v406
        %v424 = vadd.f32 %v398, %v410
        %v425 = vadd.f32 %v399, %v414
        %v426 = vadd.f32 %v400, %v418
        %427 = vst [vmem:[%s262] sm:$0xff] %v423
        %428 = vst [vmem:[%s262 + $0x8] sm:$0xff] %v424
        %429 = vst [vmem:[%s262 + $0x10] sm:$0xff] %v425
        %430 = vst [vmem:[%s262 + $0x18] sm:$0xff] %v426
      $region40: #{signnet_gnn_forward.16} parent=31 // pred_fallthru
        _
      %s431 = smul.u32 4, %s20
      %p432 = scmp.lt.s32.totalorder %s19, 0
      %s433 = scalar_select %p432, %s19, 0
      %p434 = scmp.lt.s32.totalorder %s431, 15
      %s435 = scalar_select %p434, %s431, 15
      %s436 = smul.addr %s433, 16
      %s437 = sadd.s32 %s435, %s436
      %s438 = smul.addr %s437, 8
      %s439 = scalar_lea.vmem %s3, %s438
      // Predicated region
      $region41: #{signnet_gnn_forward.16} parent=31 // pred_check
        %p440 = pneg %p135
      $region42: #{signnet_gnn_forward.16} parent=31 // pred_check_branch
        %442 = sbr.rel (%p440) target = $region44
      $region43: #{signnet_gnn_forward.16} parent=31 // pred_region
        %s443 = smul.u32 4, %s20
      $region44: #{signnet_gnn_forward.16} parent=31 // pred_fallthru
        _
    $region32: #{signnet_gnn_forward.16} parent=5 // pred_fallthru
      _
    %p444 = scmp.le.s32.totalorder 2, %s9
    // Predicated region
    $region45: #{signnet_gnn_forward.16} parent=5 // pred_check
      %p445 = pneg %p444
    $region46: #{signnet_gnn_forward.16} parent=5 // pred_check_branch
      %447 = sbr.rel (%p445) target = $region48
    $region47: #{signnet_gnn_forward.16} parent=5 // pred_region
      %s448 = ssub.s32 %s9, 2
      // Predicated region
      $region49: #{signnet_gnn_forward.16} parent=47 // pred_check
        %p449 = pneg %p141
      $region50: #{signnet_gnn_forward.16} parent=47 // pred_check_branch
        %451 = sbr.rel (%p449) target = $region52
      $region51: #{signnet_gnn_forward.16} parent=47 // pred_region
        %s452 = smul.u32 4, %s23
        %p453 = scmp.lt.s32.totalorder %s22, 0
        %s454 = scalar_select %p453, %s22, 0
        %p455 = scmp.lt.s32.totalorder %s452, 15
        %s456 = scalar_select %p455, %s452, 15
        %s457 = smul.addr %s454, 16
        %s458 = sadd.s32 %s456, %s457
        %s459 = smul.addr %s458, 8
        %s460 = scalar_lea.vmem %s3, %s459
      $region52: #{signnet_gnn_forward.16} parent=47 // pred_fallthru
        _
    $region48: #{signnet_gnn_forward.16} parent=5 // pred_fallthru
      _
  $region6: #{signnet_gnn_forward.16} parent=0 // loop_footer
    %s13 = sadd.s32 1, %s9
  $region7: #{signnet_gnn_forward.16} parent=0 // loop_footer_branch
    %8 = sbr.rel target = $region3
  $region8: #{signnet_gnn_forward.16} parent=0 // loop_exit
    _

// kernel: signnet_gnn_forward.14
$region0: #{signnet_gnn_forward.14}
  #allocation0 [shape = 'u32[]', space=smem, size = 0x4, offset = 0x4, fixed_abs, tag = 'smem constant byte address 0x4 - core index']
  #allocation1 [shape = 'u32[144,128]{1,0:T(1,128)}', space=vmem, size = 0x12000, scoped, tag = 'internal scratch']
  #allocation2 [shape = 'f32[8,128]{1,0:T(8,128)}', space=vmem, size = 0x1000, scoped, tag = 'scratch operand']
  %s0 = inlined_call_operand.vmem [shape: f32[8,8], index: 0, kind: input, shape index: {}]
  %s1 = inlined_call_operand.vmem [shape: f32[8,128], index: 1, kind: input, shape index: {}]
  %s2 = inlined_call_operand.vmem [shape: f32[1,128], index: 2, kind: input, shape index: {}]
  %s3 = inlined_call_operand.vmem [shape: f32[8,128], index: 3, kind: output, shape index: {}]
  %s4 = sld [smem:[#allocation0]]
  $region30: #{signnet_gnn_forward.14} parent=0
    _
  %s6 = ssub.s32 1, %s4
  %s7 = scalar_select 0, %s6, %s4
  // Predicated region
  $region2: #{signnet_gnn_forward.14} parent=0 // pred_check
    _
  $region3: #{signnet_gnn_forward.14} parent=0 // pred_check_branch
    %9 = sbr.rel (0) target = $region5
  $region4: #{signnet_gnn_forward.14} parent=0 // pred_region
    _
  $region5: #{signnet_gnn_forward.14} parent=0 // pred_fallthru
    _
  // Predicated region
  $region6: #{signnet_gnn_forward.14} parent=0 // pred_check
    _
  $region7: #{signnet_gnn_forward.14} parent=0 // pred_check_branch
    %11 = sbr.rel (0) target = $region9
  $region8: #{signnet_gnn_forward.14} parent=0 // pred_region
    _
  $region9: #{signnet_gnn_forward.14} parent=0 // pred_fallthru
    _
  // Predicated region
  $region10: #{signnet_gnn_forward.14} parent=0 // pred_check
    _
  $region11: #{signnet_gnn_forward.14} parent=0 // pred_check_branch
    %13 = sbr.rel (0) target = $region13
  $region12: #{signnet_gnn_forward.14} parent=0 // pred_region
    _
  $region13: #{signnet_gnn_forward.14} parent=0 // pred_fallthru
    _
  %p15 = scmp.eq.s32.totalorder 0, 0
  // Predicated region
  $region14: #{signnet_gnn_forward.14} parent=0 // pred_check
    %p16 = pneg %p15
  $region15: #{signnet_gnn_forward.14} parent=0 // pred_check_branch
    %18 = sbr.rel (%p16) target = $region17
  $region16: #{signnet_gnn_forward.14} parent=0 // pred_region
    %19 = vst [vmem:[#allocation2] sm:$0xff] 0.0
  $region17: #{signnet_gnn_forward.14} parent=0 // pred_fallthru
    _
  %v20 = vld [vmem:[#allocation2] sm:$0xff]
  %v21 = vld [vmem:[%s0] sm:$0xff]
  %v22 = vpack.c.bf16 %v21, %v21
  %v23 = vld [vmem:[%s1] sm:$0xff]
  %v24 = vpack.c.bf16 %v23, %v23
  %vm25 = vcmask 64512
  %v27 = vsel %vm25, %v22, 0
  %vm29 = vcmask 1043456
  %v31 = vsel %vm29, %v24, 0
  %33 = vmatprep.subr.bf16.mxu0 0
  %34 = vmatpush1.bf16.msra.mxu0 %v31
  %35 = vmatprep.subr.bf16.mxu0 0
  %36 = vmatpush1.bf16.msra.mxu0 0
  %37 = vmatprep.subr.bf16.mxu0 0
  %38 = vmatpush1.bf16.msra.mxu0 0
  %39 = vmatprep.subr.bf16.mxu0 0
  %40 = vmatpush1.bf16.msra.mxu0 0
  %41 = vmatprep.subr.bf16.mxu0 0
  %42 = vmatpush1.bf16.msra.mxu0 0
  %43 = vmatprep.subr.bf16.mxu0 0
  %44 = vmatpush1.bf16.msra.mxu0 0
  %45 = vmatprep.subr.bf16.mxu0 0
  %46 = vmatpush1.bf16.msra.mxu0 0
  %47 = vmatprep.subr.bf16.mxu0 0
  %48 = vmatpush1.bf16.msra.mxu0 0
  %49 = vmatprep.subr.bf16.mxu0 0
  %50 = vmatpush1.bf16.msra.mxu0 0
  %51 = vmatprep.subr.bf16.mxu0 0
  %52 = vmatpush1.bf16.msra.mxu0 0
  %53 = vmatprep.subr.bf16.mxu0 0
  %54 = vmatpush1.bf16.msra.mxu0 0
  %55 = vmatprep.subr.bf16.mxu0 0
  %56 = vmatpush1.bf16.msra.mxu0 0
  %57 = vmatprep.subr.bf16.mxu0 0
  %58 = vmatpush1.bf16.msra.mxu0 0
  %59 = vmatprep.subr.bf16.mxu0 0
  %60 = vmatpush1.bf16.msra.mxu0 0
  %61 = vmatprep.subr.bf16.mxu0 0
  %62 = vmatpush1.bf16.msra.mxu0 0
  %63 = vmatprep.subr.bf16.mxu0 0
  %64 = vmatpush1.bf16.msra.mxu0 0
  %65 = vmatprep.mubr.bf16.mxu0 0
  %66 = vmatmul.mubr.bf16.gmra.mrb[0].mxu0 %v27
  %v67 = vpop.f32.mrb[0].mxu0
  %v68 = vadd.f32 0.0, %v67
  %v69 = vpop.f32.mrb[0].mxu0
  %v70 = vpop.f32.mrb[0].mxu0
  %v71 = vpop.f32.mrb[0].mxu0
  %72 = vdwg.mxu0
  %v73 = vadd.f32 %v20, %v68
  %74 = vst [vmem:[#allocation2] sm:$0xff] %v73
  // Predicated region
  $region18: #{signnet_gnn_forward.14} parent=0 // pred_check
    %p75 = pneg %p15
  $region19: #{signnet_gnn_forward.14} parent=0 // pred_check_branch
    %77 = sbr.rel (%p75) target = $region21
  $region20: #{signnet_gnn_forward.14} parent=0 // pred_region
    %v78 = vld [vmem:[#allocation2] sm:$0xff]
    %v79 = vld [vmem:[%s2] sm:$0x1]
    %v81 = vlaneseq
    %v82 = vshrl.u32 %v81, 7
    %v83 = vsub.s32 0, %v82
    %v84 = vrot.slane %v79, %v83
    %v86 = vadd.f32 %v78, %v84
    %87 = vst [vmem:[%s3] sm:$0xff] %v86
  $region21: #{signnet_gnn_forward.14} parent=0 // pred_fallthru
    _
  // Predicated region
  $region22: #{signnet_gnn_forward.14} parent=0 // pred_check
    _
  $region23: #{signnet_gnn_forward.14} parent=0 // pred_check_branch
    %89 = sbr.rel (0) target = $region25
  $region24: #{signnet_gnn_forward.14} parent=0 // pred_region
    _
  $region25: #{signnet_gnn_forward.14} parent=0 // pred_fallthru
    _
  // Predicated region
  $region26: #{signnet_gnn_forward.14} parent=0 // pred_check
    _
  $region27: #{signnet_gnn_forward.14} parent=0 // pred_check_branch
    %91 = sbr.rel (0) target = $region29
  $region28: #{signnet_gnn_forward.14} parent=0 // pred_region
    _
  $region29: #{signnet_gnn_forward.14} parent=0 // pred_fallthru
    _

// kernel: signnet_gnn_forward.15
$region0: #{signnet_gnn_forward.15}
  #allocation0 [shape = 'u32[]', space=smem, size = 0x4, offset = 0x4, fixed_abs, tag = 'smem constant byte address 0x4 - core index']
  #allocation1 [shape = 'u32[144,128]{1,0:T(1,128)}', space=vmem, size = 0x12000, scoped, tag = 'internal scratch']
  %s0 = inlined_call_operand.vmem [shape: f32[128,1], index: 0, kind: input, shape index: {}]
  %s1 = inlined_call_operand.vmem [shape: f32[128,128], index: 1, kind: input, shape index: {}]
  %s2 = inlined_call_operand.vmem [shape: f32[128,1], index: 2, kind: input, shape index: {}]
  %s3 = inlined_call_operand.vmem [shape: f32[128,1], index: 3, kind: input, shape index: {}]
  %s4 = inlined_call_operand.vmem [shape: f32[1,128], index: 4, kind: input, shape index: {}]
  %s5 = inlined_call_operand.vmem [shape: f32[1,128], index: 5, kind: input, shape index: {}]
  %s6 = inlined_call_operand.vmem [shape: f32[1,128], index: 6, kind: input, shape index: {}]
  %s7 = inlined_call_operand.vmem [shape: bf16[128,128], index: 7, kind: input, shape index: {}]
  %s8 = inlined_call_operand.vmem [shape: f32[1,128], index: 8, kind: input, shape index: {}]
  %s9 = inlined_call_operand.vmem [shape: f32[1,128], index: 9, kind: input, shape index: {}]
  %s10 = inlined_call_operand.vmem [shape: f32[1,128], index: 10, kind: input, shape index: {}]
  %s11 = inlined_call_operand.vmem [shape: f32[1,128], index: 11, kind: input, shape index: {}]
  %s12 = inlined_call_operand.vmem [shape: f32[128,128], index: 12, kind: output, shape index: {}]
  %s13 = sld [smem:[#allocation0]]
  $region58: #{signnet_gnn_forward.15} parent=0
    _
  %s15 = ssub.s32 1, %s13
  %s16 = scalar_select 0, %s15, %s13
  // Predicated region
  $region2: #{signnet_gnn_forward.15} parent=0 // pred_check
    _
  $region3: #{signnet_gnn_forward.15} parent=0 // pred_check_branch
    %18 = sbr.rel (0) target = $region5
  $region4: #{signnet_gnn_forward.15} parent=0 // pred_region
    _
  $region5: #{signnet_gnn_forward.15} parent=0 // pred_fallthru
    _
  // Predicated region
  $region6: #{signnet_gnn_forward.15} parent=0 // pred_check
    _
  $region7: #{signnet_gnn_forward.15} parent=0 // pred_check_branch
    %20 = sbr.rel (0) target = $region9
  $region8: #{signnet_gnn_forward.15} parent=0 // pred_region
    _
  $region9: #{signnet_gnn_forward.15} parent=0 // pred_fallthru
    _
  // Predicated region
  $region10: #{signnet_gnn_forward.15} parent=0 // pred_check
    _
  $region11: #{signnet_gnn_forward.15} parent=0 // pred_check_branch
    %22 = sbr.rel (0) target = $region13
  $region12: #{signnet_gnn_forward.15} parent=0 // pred_region
    _
  $region13: #{signnet_gnn_forward.15} parent=0 // pred_fallthru
    _
  // Predicated region
  $region14: #{signnet_gnn_forward.15} parent=0 // pred_check
    _
  $region15: #{signnet_gnn_forward.15} parent=0 // pred_check_branch
    %24 = sbr.rel (0) target = $region17
  $region16: #{signnet_gnn_forward.15} parent=0 // pred_region
    _
  $region17: #{signnet_gnn_forward.15} parent=0 // pred_fallthru
    _
  // Predicated region
  $region18: #{signnet_gnn_forward.15} parent=0 // pred_check
    _
  $region19: #{signnet_gnn_forward.15} parent=0 // pred_check_branch
    %26 = sbr.rel (0) target = $region21
  $region20: #{signnet_gnn_forward.15} parent=0 // pred_region
    _
  $region21: #{signnet_gnn_forward.15} parent=0 // pred_fallthru
    _
  // Predicated region
  $region22: #{signnet_gnn_forward.15} parent=0 // pred_check
    _
  $region23: #{signnet_gnn_forward.15} parent=0 // pred_check_branch
    %28 = sbr.rel (0) target = $region25
  $region24: #{signnet_gnn_forward.15} parent=0 // pred_region
    _
  $region25: #{signnet_gnn_forward.15} parent=0 // pred_fallthru
    _
  // Predicated region
  $region26: #{signnet_gnn_forward.15} parent=0 // pred_check
    _
  $region27: #{signnet_gnn_forward.15} parent=0 // pred_check_branch
    %30 = sbr.rel (0) target = $region29
  $region28: #{signnet_gnn_forward.15} parent=0 // pred_region
    _
  $region29: #{signnet_gnn_forward.15} parent=0 // pred_fallthru
    _
  // Predicated region
  $region30: #{signnet_gnn_forward.15} parent=0 // pred_check
    _
  $region31: #{signnet_gnn_forward.15} parent=0 // pred_check_branch
    %32 = sbr.rel (0) target = $region33
  $region32: #{signnet_gnn_forward.15} parent=0 // pred_region
    _
  $region33: #{signnet_gnn_forward.15} parent=0 // pred_fallthru
    _
  // Predicated region
  $region34: #{signnet_gnn_forward.15} parent=0 // pred_check
    _
  $region35: #{signnet_gnn_forward.15} parent=0 // pred_check_branch
    %34 = sbr.rel (0) target = $region37
  $region36: #{signnet_gnn_forward.15} parent=0 // pred_region
    _
  $region37: #{signnet_gnn_forward.15} parent=0 // pred_fallthru
    _
  // Predicated region
  $region38: #{signnet_gnn_forward.15} parent=0 // pred_check
    _
  $region39: #{signnet_gnn_forward.15} parent=0 // pred_check_branch
    %36 = sbr.rel (0) target = $region41
  $region40: #{signnet_gnn_forward.15} parent=0 // pred_region
    _
  $region41: #{signnet_gnn_forward.15} parent=0 // pred_fallthru
    _
  // Predicated region
  $region42: #{signnet_gnn_forward.15} parent=0 // pred_check
    _
  $region43: #{signnet_gnn_forward.15} parent=0 // pred_check_branch
    %38 = sbr.rel (0) target = $region45
  $region44: #{signnet_gnn_forward.15} parent=0 // pred_region
    _
  $region45: #{signnet_gnn_forward.15} parent=0 // pred_fallthru
    _
  // Predicated region
  $region46: #{signnet_gnn_forward.15} parent=0 // pred_check
    _
  $region47: #{signnet_gnn_forward.15} parent=0 // pred_check_branch
    %40 = sbr.rel (0) target = $region49
  $region48: #{signnet_gnn_forward.15} parent=0 // pred_region
    _
  $region49: #{signnet_gnn_forward.15} parent=0 // pred_fallthru
    _
  %v42 = vld [vmem:[%s2] sm:$0xff]
  %v43 = vld [vmem:[%s2 + $0x8] sm:$0xff]
  %v44 = vld [vmem:[%s2 + $0x10] sm:$0xff]
  %v45 = vld [vmem:[%s2 + $0x18] sm:$0xff]
  %v46 = vld [vmem:[%s2 + $0x20] sm:$0xff]
  %v47 = vld [vmem:[%s2 + $0x28] sm:$0xff]
  %v48 = vld [vmem:[%s2 + $0x30] sm:$0xff]
  %v49 = vld [vmem:[%s2 + $0x38] sm:$0xff]
  %v50 = vld [vmem:[%s2 + $0x40] sm:$0xff]
  %v51 = vld [vmem:[%s2 + $0x48] sm:$0xff]
  %v52 = vld [vmem:[%s2 + $0x50] sm:$0xff]
  %v53 = vld [vmem:[%s2 + $0x58] sm:$0xff]
  %v54 = vld [vmem:[%s2 + $0x60] sm:$0xff]
  %v55 = vld [vmem:[%s2 + $0x68] sm:$0xff]
  %v56 = vld [vmem:[%s2 + $0x70] sm:$0xff]
  %v57 = vld [vmem:[%s2 + $0x78] sm:$0xff]
  %v58 = vld [vmem:[%s3] sm:$0xff]
  %v59 = vld [vmem:[%s3 + $0x8] sm:$0xff]
  %v60 = vld [vmem:[%s3 + $0x10] sm:$0xff]
  %v61 = vld [vmem:[%s3 + $0x18] sm:$0xff]
  %v62 = vld [vmem:[%s3 + $0x20] sm:$0xff]
  %v63 = vld [vmem:[%s3 + $0x28] sm:$0xff]
  %v64 = vld [vmem:[%s3 + $0x30] sm:$0xff]
  %v65 = vld [vmem:[%s3 + $0x38] sm:$0xff]
  %v66 = vld [vmem:[%s3 + $0x40] sm:$0xff]
  %v67 = vld [vmem:[%s3 + $0x48] sm:$0xff]
  %v68 = vld [vmem:[%s3 + $0x50] sm:$0xff]
  %v69 = vld [vmem:[%s3 + $0x58] sm:$0xff]
  %v70 = vld [vmem:[%s3 + $0x60] sm:$0xff]
  %v71 = vld [vmem:[%s3 + $0x68] sm:$0xff]
  %v72 = vld [vmem:[%s3 + $0x70] sm:$0xff]
  %v73 = vld [vmem:[%s3 + $0x78] sm:$0xff]
  %vm74 = vcmask 7168
  %v75 = vsel %vm74, %v42, 0.0
  %v76 = vsel %vm74, %v43, 0.0
  %v77 = vadd.f32 %v75, %v76
  %v78 = vsel %vm74, %v44, 0.0
  %v79 = vadd.f32 %v77, %v78
  %v80 = vsel %vm74, %v45, 0.0
  %v81 = vadd.f32 %v79, %v80
  %v82 = vsel %vm74, %v46, 0.0
  %v83 = vadd.f32 %v81, %v82
  %v84 = vsel %vm74, %v47, 0.0
  %v85 = vadd.f32 %v83, %v84
  %v86 = vsel %vm74, %v48, 0.0
  %v87 = vadd.f32 %v85, %v86
  %v88 = vsel %vm74, %v49, 0.0
  %v89 = vadd.f32 %v87, %v88
  %v90 = vsel %vm74, %v50, 0.0
  %v91 = vadd.f32 %v89, %v90
  %v92 = vsel %vm74, %v51, 0.0
  %v93 = vadd.f32 %v91, %v92
  %v94 = vsel %vm74, %v52, 0.0
  %v95 = vadd.f32 %v93, %v94
  %v96 = vsel %vm74, %v53, 0.0
  %v97 = vadd.f32 %v95, %v96
  %v98 = vsel %vm74, %v54, 0.0
  %v99 = vadd.f32 %v97, %v98
  %v100 = vsel %vm74, %v55, 0.0
  %v101 = vadd.f32 %v99, %v100
  %v102 = vsel %vm74, %v56, 0.0
  %v103 = vadd.f32 %v101, %v102
  %v104 = vsel %vm74, %v57, 0.0
  %v105 = vadd.f32 %v103, %v104
  %v106 = vrot.slane %v105, 4
  %v107 = vadd.f32 %v105, %v106
  %v108 = vrot.slane %v107, 2
  %v109 = vadd.f32 %v107, %v108
  %v110 = vrot.slane %v109, 1
  %v111 = vadd.f32 %v109, %v110
  %v112 = vmax.f32 %v111, 1.0
  %v113 = vrcp.pop %v112
  %v114 = vmul.f32 1.0, %v113
  %v115 = vsel %vm74, %v58, 0.0
  %v116 = vsel %vm74, %v59, 0.0
  %v117 = vadd.f32 %v115, %v116
  %v118 = vsel %vm74, %v60, 0.0
  %v119 = vadd.f32 %v117, %v118
  %v120 = vsel %vm74, %v61, 0.0
  %v121 = vadd.f32 %v119, %v120
  %v122 = vsel %vm74, %v62, 0.0
  %v123 = vadd.f32 %v121, %v122
  %v124 = vsel %vm74, %v63, 0.0
  %v125 = vadd.f32 %v123, %v124
  %v126 = vsel %vm74, %v64, 0.0
  %v127 = vadd.f32 %v125, %v126
  %v128 = vsel %vm74, %v65, 0.0
  %v129 = vadd.f32 %v127, %v128
  %v130 = vsel %vm74, %v66, 0.0
  %v131 = vadd.f32 %v129, %v130
  %v132 = vsel %vm74, %v67, 0.0
  %v133 = vadd.f32 %v131, %v132
  %v134 = vsel %vm74, %v68, 0.0
  %v135 = vadd.f32 %v133, %v134
  %v136 = vsel %vm74, %v69, 0.0
  %v137 = vadd.f32 %v135, %v136
  %v138 = vsel %vm74, %v70, 0.0
  %v139 = vadd.f32 %v137, %v138
  %v140 = vsel %vm74, %v71, 0.0
  %v141 = vadd.f32 %v139, %v140
  %v142 = vsel %vm74, %v72, 0.0
  %v143 = vadd.f32 %v141, %v142
  %v144 = vsel %vm74, %v73, 0.0
  %v145 = vadd.f32 %v143, %v144
  %v146 = vrot.slane %v145, 4
  %v147 = vadd.f32 %v145, %v146
  %v148 = vrot.slane %v147, 2
  %v149 = vadd.f32 %v147, %v148
  %v150 = vrot.slane %v149, 1
  %v151 = vadd.f32 %v149, %v150
  %v152 = vmax.f32 %v151, 1.0
  %v153 = vrcp.pop %v152
  %v154 = vmul.f32 1.0, %v153
  %v155 = vld [vmem:[%s0] sm:$0xff]
  %v156 = vld [vmem:[%s0 + $0x8] sm:$0xff]
  %v157 = vld [vmem:[%s0 + $0x10] sm:$0xff]
  %v158 = vld [vmem:[%s0 + $0x18] sm:$0xff]
  %v159 = vld [vmem:[%s0 + $0x20] sm:$0xff]
  %v160 = vld [vmem:[%s0 + $0x28] sm:$0xff]
  %v161 = vld [vmem:[%s0 + $0x30] sm:$0xff]
  %v162 = vld [vmem:[%s0 + $0x38] sm:$0xff]
  %v163 = vld [vmem:[%s0 + $0x40] sm:$0xff]
  %v164 = vld [vmem:[%s0 + $0x48] sm:$0xff]
  %v165 = vld [vmem:[%s0 + $0x50] sm:$0xff]
  %v166 = vld [vmem:[%s0 + $0x58] sm:$0xff]
  %v167 = vld [vmem:[%s0 + $0x60] sm:$0xff]
  %v168 = vld [vmem:[%s0 + $0x68] sm:$0xff]
  %v169 = vld [vmem:[%s0 + $0x70] sm:$0xff]
  %v170 = vld [vmem:[%s0 + $0x78] sm:$0xff]
  %v171 = vld [vmem:[%s4] sm:$0x1]
  %173 = vset.pattern.permute.xlu0 0
  %174 = vperm.xlu0 %173, %v155
  %v175 = vpop.permute.xlu0 %174
  %178 = vset.pattern.permute.xlu0 0
  %179 = vperm.xlu0 %178, %v156
  %v180 = vpop.permute.xlu0 %179
  %183 = vset.pattern.permute.xlu0 0
  %184 = vperm.xlu0 %183, %v157
  %v185 = vpop.permute.xlu0 %184
  %188 = vset.pattern.permute.xlu0 0
  %189 = vperm.xlu0 %188, %v158
  %v190 = vpop.permute.xlu0 %189
  %193 = vset.pattern.permute.xlu0 0
  %194 = vperm.xlu0 %193, %v159
  %v195 = vpop.permute.xlu0 %194
  %198 = vset.pattern.permute.xlu0 0
  %199 = vperm.xlu0 %198, %v160
  %v200 = vpop.permute.xlu0 %199
  %203 = vset.pattern.permute.xlu0 0
  %204 = vperm.xlu0 %203, %v161
  %v205 = vpop.permute.xlu0 %204
  %208 = vset.pattern.permute.xlu0 0
  %209 = vperm.xlu0 %208, %v162
  %v210 = vpop.permute.xlu0 %209
  %213 = vset.pattern.permute.xlu0 0
  %214 = vperm.xlu0 %213, %v163
  %v215 = vpop.permute.xlu0 %214
  %218 = vset.pattern.permute.xlu0 0
  %219 = vperm.xlu0 %218, %v164
  %v220 = vpop.permute.xlu0 %219
  %223 = vset.pattern.permute.xlu0 0
  %224 = vperm.xlu0 %223, %v165
  %v225 = vpop.permute.xlu0 %224
  %228 = vset.pattern.permute.xlu0 0
  %229 = vperm.xlu0 %228, %v166
  %v230 = vpop.permute.xlu0 %229
  %233 = vset.pattern.permute.xlu0 0
  %234 = vperm.xlu0 %233, %v167
  %v235 = vpop.permute.xlu0 %234
  %238 = vset.pattern.permute.xlu0 0
  %239 = vperm.xlu0 %238, %v168
  %v240 = vpop.permute.xlu0 %239
  %243 = vset.pattern.permute.xlu0 0
  %244 = vperm.xlu0 %243, %v169
  %v245 = vpop.permute.xlu0 %244
  %248 = vset.pattern.permute.xlu0 0
  %249 = vperm.xlu0 %248, %v170
  %v250 = vpop.permute.xlu0 %249
  %v253 = vlaneseq
  %v254 = vshrl.u32 %v253, 7
  %v255 = vsub.s32 0, %v254
  %v256 = vrot.slane %v171, %v255
  %v258 = vmul.f32 %v175, %v256
  %v259 = vmul.f32 %v180, %v256
  %v260 = vmul.f32 %v185, %v256
  %v261 = vmul.f32 %v190, %v256
  %v262 = vmul.f32 %v195, %v256
  %v263 = vmul.f32 %v200, %v256
  %v264 = vmul.f32 %v205, %v256
  %v265 = vmul.f32 %v210, %v256
  %v266 = vmul.f32 %v215, %v256
  %v267 = vmul.f32 %v220, %v256
  %v268 = vmul.f32 %v225, %v256
  %v269 = vmul.f32 %v230, %v256
  %v270 = vmul.f32 %v235, %v256
  %v271 = vmul.f32 %v240, %v256
  %v272 = vmul.f32 %v245, %v256
  %v273 = vmul.f32 %v250, %v256
  %v274 = vld [vmem:[%s5] sm:$0x1]
  %v275 = vld [vmem:[%s6] sm:$0x1]
  %277 = vset.pattern.permute.xlu0 0
  %278 = vperm.xlu0 %277, %v42
  %v279 = vpop.permute.xlu0 %278
  %282 = vset.pattern.permute.xlu0 0
  %283 = vperm.xlu0 %282, %v43
  %v284 = vpop.permute.xlu0 %283
  %287 = vset.pattern.permute.xlu0 0
  %288 = vperm.xlu0 %287, %v44
  %v289 = vpop.permute.xlu0 %288
  %292 = vset.pattern.permute.xlu0 0
  %293 = vperm.xlu0 %292, %v45
  %v294 = vpop.permute.xlu0 %293
  %297 = vset.pattern.permute.xlu0 0
  %298 = vperm.xlu0 %297, %v46
  %v299 = vpop.permute.xlu0 %298
  %302 = vset.pattern.permute.xlu0 0
  %303 = vperm.xlu0 %302, %v47
  %v304 = vpop.permute.xlu0 %303
  %307 = vset.pattern.permute.xlu0 0
  %308 = vperm.xlu0 %307, %v48
  %v309 = vpop.permute.xlu0 %308
  %312 = vset.pattern.permute.xlu0 0
  %313 = vperm.xlu0 %312, %v49
  %v314 = vpop.permute.xlu0 %313
  %317 = vset.pattern.permute.xlu0 0
  %318 = vperm.xlu0 %317, %v50
  %v319 = vpop.permute.xlu0 %318
  %322 = vset.pattern.permute.xlu0 0
  %323 = vperm.xlu0 %322, %v51
  %v324 = vpop.permute.xlu0 %323
  %327 = vset.pattern.permute.xlu0 0
  %328 = vperm.xlu0 %327, %v52
  %v329 = vpop.permute.xlu0 %328
  %332 = vset.pattern.permute.xlu0 0
  %333 = vperm.xlu0 %332, %v53
  %v334 = vpop.permute.xlu0 %333
  %337 = vset.pattern.permute.xlu0 0
  %338 = vperm.xlu0 %337, %v54
  %v339 = vpop.permute.xlu0 %338
  %342 = vset.pattern.permute.xlu0 0
  %343 = vperm.xlu0 %342, %v55
  %v344 = vpop.permute.xlu0 %343
  %347 = vset.pattern.permute.xlu0 0
  %348 = vperm.xlu0 %347, %v56
  %v349 = vpop.permute.xlu0 %348
  %352 = vset.pattern.permute.xlu0 0
  %353 = vperm.xlu0 %352, %v57
  %v354 = vpop.permute.xlu0 %353
  %v356 = vmul.f32 %v258, %v279
  %v357 = vmul.f32 %v259, %v284
  %v358 = vmul.f32 %v260, %v289
  %v359 = vmul.f32 %v261, %v294
  %v360 = vmul.f32 %v262, %v299
  %v361 = vmul.f32 %v263, %v304
  %v362 = vmul.f32 %v264, %v309
  %v363 = vmul.f32 %v265, %v314
  %v364 = vmul.f32 %v266, %v319
  %v365 = vmul.f32 %v267, %v324
  %v366 = vmul.f32 %v268, %v329
  %v367 = vmul.f32 %v269, %v334
  %v368 = vmul.f32 %v270, %v339
  %v369 = vmul.f32 %v271, %v344
  %v370 = vmul.f32 %v272, %v349
  %v371 = vmul.f32 %v273, %v354
  %v372 = vadd.f32 %v356, %v357
  %v373 = vadd.f32 %v372, %v358
  %v374 = vadd.f32 %v373, %v359
  %v375 = vadd.f32 %v374, %v360
  %v376 = vadd.f32 %v375, %v361
  %v377 = vadd.f32 %v376, %v362
  %v378 = vadd.f32 %v377, %v363
  %v379 = vadd.f32 %v378, %v364
  %v380 = vadd.f32 %v379, %v365
  %v381 = vadd.f32 %v380, %v366
  %v382 = vadd.f32 %v381, %v367
  %v383 = vadd.f32 %v382, %v368
  %v384 = vadd.f32 %v383, %v369
  %v385 = vadd.f32 %v384, %v370
  %v386 = vadd.f32 %v385, %v371
  %v387 = vrot.slane %v386, 4
  %v388 = vadd.f32 %v386, %v387
  %v389 = vrot.slane %v388, 2
  %v390 = vadd.f32 %v388, %v389
  %v391 = vrot.slane %v390, 1
  %v392 = vadd.f32 %v390, %v391
  %394 = vset.pattern.permute.xlu0 0
  %395 = vperm.xlu0 %394, %v114
  %v396 = vpop.permute.xlu0 %395
  %v398 = vmul.f32 %v392, %v396
  %v399 = vsub.f32 %v258, %v398
  %v400 = vsub.f32 %v259, %v398
  %v401 = vsub.f32 %v260, %v398
  %v402 = vsub.f32 %v261, %v398
  %v403 = vsub.f32 %v262, %v398
  %v404 = vsub.f32 %v263, %v398
  %v405 = vsub.f32 %v264, %v398
  %v406 = vsub.f32 %v265, %v398
  %v407 = vsub.f32 %v266, %v398
  %v408 = vsub.f32 %v267, %v398
  %v409 = vsub.f32 %v268, %v398
  %v410 = vsub.f32 %v269, %v398
  %v411 = vsub.f32 %v270, %v398
  %v412 = vsub.f32 %v271, %v398
  %v413 = vsub.f32 %v272, %v398
  %v414 = vsub.f32 %v273, %v398
  %v415 = vmul.f32 %v399, %v279
  %v416 = vmul.f32 %v400, %v284
  %v417 = vmul.f32 %v401, %v289
  %v418 = vmul.f32 %v402, %v294
  %v419 = vmul.f32 %v403, %v299
  %v420 = vmul.f32 %v404, %v304
  %v421 = vmul.f32 %v405, %v309
  %v422 = vmul.f32 %v406, %v314
  %v423 = vmul.f32 %v407, %v319
  %v424 = vmul.f32 %v408, %v324
  %v425 = vmul.f32 %v409, %v329
  %v426 = vmul.f32 %v410, %v334
  %v427 = vmul.f32 %v411, %v339
  %v428 = vmul.f32 %v412, %v344
  %v429 = vmul.f32 %v413, %v349
  %v430 = vmul.f32 %v414, %v354
  %v431 = vmul.f32 %v415, %v415
  %v432 = vmul.f32 %v416, %v416
  %v433 = vmul.f32 %v417, %v417
  %v434 = vmul.f32 %v418, %v418
  %v435 = vmul.f32 %v419, %v419
  %v436 = vmul.f32 %v420, %v420
  %v437 = vmul.f32 %v421, %v421
  %v438 = vmul.f32 %v422, %v422
  %v439 = vmul.f32 %v423, %v423
  %v440 = vmul.f32 %v424, %v424
  %v441 = vmul.f32 %v425, %v425
  %v442 = vmul.f32 %v426, %v426
  %v443 = vmul.f32 %v427, %v427
  %v444 = vmul.f32 %v428, %v428
  %v445 = vmul.f32 %v429, %v429
  %v446 = vmul.f32 %v430, %v430
  %v447 = vadd.f32 %v431, %v432
  %v448 = vadd.f32 %v447, %v433
  %v449 = vadd.f32 %v448, %v434
  %v450 = vadd.f32 %v449, %v435
  %v451 = vadd.f32 %v450, %v436
  %v452 = vadd.f32 %v451, %v437
  %v453 = vadd.f32 %v452, %v438
  %v454 = vadd.f32 %v453, %v439
  %v455 = vadd.f32 %v454, %v440
  %v456 = vadd.f32 %v455, %v441
  %v457 = vadd.f32 %v456, %v442
  %v458 = vadd.f32 %v457, %v443
  %v459 = vadd.f32 %v458, %v444
  %v460 = vadd.f32 %v459, %v445
  %v461 = vadd.f32 %v460, %v446
  %v462 = vrot.slane %v461, 4
  %v463 = vadd.f32 %v461, %v462
  %v464 = vrot.slane %v463, 2
  %v465 = vadd.f32 %v463, %v464
  %v466 = vrot.slane %v465, 1
  %v467 = vadd.f32 %v465, %v466
  %v468 = vmul.f32 %v467, %v396
  %470 = vset.pattern.permute.xlu0 0
  %471 = vperm.xlu0 %470, %v58
  %v472 = vpop.permute.xlu0 %471
  %475 = vset.pattern.permute.xlu0 0
  %476 = vperm.xlu0 %475, %v59
  %v477 = vpop.permute.xlu0 %476
  %480 = vset.pattern.permute.xlu0 0
  %481 = vperm.xlu0 %480, %v60
  %v482 = vpop.permute.xlu0 %481
  %485 = vset.pattern.permute.xlu0 0
  %486 = vperm.xlu0 %485, %v61
  %v487 = vpop.permute.xlu0 %486
  %490 = vset.pattern.permute.xlu0 0
  %491 = vperm.xlu0 %490, %v62
  %v492 = vpop.permute.xlu0 %491
  %495 = vset.pattern.permute.xlu0 0
  %496 = vperm.xlu0 %495, %v63
  %v497 = vpop.permute.xlu0 %496
  %500 = vset.pattern.permute.xlu0 0
  %501 = vperm.xlu0 %500, %v64
  %v502 = vpop.permute.xlu0 %501
  %505 = vset.pattern.permute.xlu0 0
  %506 = vperm.xlu0 %505, %v65
  %v507 = vpop.permute.xlu0 %506
  %510 = vset.pattern.permute.xlu0 0
  %511 = vperm.xlu0 %510, %v66
  %v512 = vpop.permute.xlu0 %511
  %515 = vset.pattern.permute.xlu0 0
  %516 = vperm.xlu0 %515, %v67
  %v517 = vpop.permute.xlu0 %516
  %520 = vset.pattern.permute.xlu0 0
  %521 = vperm.xlu0 %520, %v68
  %v522 = vpop.permute.xlu0 %521
  %525 = vset.pattern.permute.xlu0 0
  %526 = vperm.xlu0 %525, %v69
  %v527 = vpop.permute.xlu0 %526
  %530 = vset.pattern.permute.xlu0 0
  %531 = vperm.xlu0 %530, %v70
  %v532 = vpop.permute.xlu0 %531
  %535 = vset.pattern.permute.xlu0 0
  %536 = vperm.xlu0 %535, %v71
  %v537 = vpop.permute.xlu0 %536
  %540 = vset.pattern.permute.xlu0 0
  %541 = vperm.xlu0 %540, %v72
  %v542 = vpop.permute.xlu0 %541
  %545 = vset.pattern.permute.xlu0 0
  %546 = vperm.xlu0 %545, %v73
  %v547 = vpop.permute.xlu0 %546
  %v549 = vmul.f32 %v258, %v472
  %v550 = vmul.f32 %v259, %v477
  %v551 = vmul.f32 %v260, %v482
  %v552 = vmul.f32 %v261, %v487
  %v553 = vmul.f32 %v262, %v492
  %v554 = vmul.f32 %v263, %v497
  %v555 = vmul.f32 %v264, %v502
  %v556 = vmul.f32 %v265, %v507
  %v557 = vmul.f32 %v266, %v512
  %v558 = vmul.f32 %v267, %v517
  %v559 = vmul.f32 %v268, %v522
  %v560 = vmul.f32 %v269, %v527
  %v561 = vmul.f32 %v270, %v532
  %v562 = vmul.f32 %v271, %v537
  %v563 = vmul.f32 %v272, %v542
  %v564 = vmul.f32 %v273, %v547
  %v565 = vadd.f32 %v549, %v550
  %v566 = vadd.f32 %v565, %v551
  %v567 = vadd.f32 %v566, %v552
  %v568 = vadd.f32 %v567, %v553
  %v569 = vadd.f32 %v568, %v554
  %v570 = vadd.f32 %v569, %v555
  %v571 = vadd.f32 %v570, %v556
  %v572 = vadd.f32 %v571, %v557
  %v573 = vadd.f32 %v572, %v558
  %v574 = vadd.f32 %v573, %v559
  %v575 = vadd.f32 %v574, %v560
  %v576 = vadd.f32 %v575, %v561
  %v577 = vadd.f32 %v576, %v562
  %v578 = vadd.f32 %v577, %v563
  %v579 = vadd.f32 %v578, %v564
  %v580 = vrot.slane %v579, 4
  %v581 = vadd.f32 %v579, %v580
  %v582 = vrot.slane %v581, 2
  %v583 = vadd.f32 %v581, %v582
  %v584 = vrot.slane %v583, 1
  %v585 = vadd.f32 %v583, %v584
  %587 = vset.pattern.permute.xlu0 0
  %588 = vperm.xlu0 %587, %v154
  %v589 = vpop.permute.xlu0 %588
  %v591 = vmul.f32 %v585, %v589
  %v592 = vsub.f32 %v258, %v591
  %v593 = vsub.f32 %v259, %v591
  %v594 = vsub.f32 %v260, %v591
  %v595 = vsub.f32 %v261, %v591
  %v596 = vsub.f32 %v262, %v591
  %v597 = vsub.f32 %v263, %v591
  %v598 = vsub.f32 %v264, %v591
  %v599 = vsub.f32 %v265, %v591
  %v600 = vsub.f32 %v266, %v591
  %v601 = vsub.f32 %v267, %v591
  %v602 = vsub.f32 %v268, %v591
  %v603 = vsub.f32 %v269, %v591
  %v604 = vsub.f32 %v270, %v591
  %v605 = vsub.f32 %v271, %v591
  %v606 = vsub.f32 %v272, %v591
  %v607 = vsub.f32 %v273, %v591
  %v608 = vmul.f32 %v592, %v472
  %v609 = vmul.f32 %v593, %v477
  %v610 = vmul.f32 %v594, %v482
  %v611 = vmul.f32 %v595, %v487
  %v612 = vmul.f32 %v596, %v492
  %v613 = vmul.f32 %v597, %v497
  %v614 = vmul.f32 %v598, %v502
  %v615 = vmul.f32 %v599, %v507
  %v616 = vmul.f32 %v600, %v512
  %v617 = vmul.f32 %v601, %v517
  %v618 = vmul.f32 %v602, %v522
  %v619 = vmul.f32 %v603, %v527
  %v620 = vmul.f32 %v604, %v532
  %v621 = vmul.f32 %v605, %v537
  %v622 = vmul.f32 %v606, %v542
  %v623 = vmul.f32 %v607, %v547
  %v624 = vmul.f32 %v608, %v608
  %v625 = vmul.f32 %v609, %v609
  %v626 = vmul.f32 %v610, %v610
  %v627 = vmul.f32 %v611, %v611
  %v628 = vmul.f32 %v612, %v612
  %v629 = vmul.f32 %v613, %v613
  %v630 = vmul.f32 %v614, %v614
  %v631 = vmul.f32 %v615, %v615
  %v632 = vmul.f32 %v616, %v616
  %v633 = vmul.f32 %v617, %v617
  %v634 = vmul.f32 %v618, %v618
  %v635 = vmul.f32 %v619, %v619
  %v636 = vmul.f32 %v620, %v620
  %v637 = vmul.f32 %v621, %v621
  %v638 = vmul.f32 %v622, %v622
  %v639 = vmul.f32 %v623, %v623
  %v640 = vadd.f32 %v624, %v625
  %v641 = vadd.f32 %v640, %v626
  %v642 = vadd.f32 %v641, %v627
  %v643 = vadd.f32 %v642, %v628
  %v644 = vadd.f32 %v643, %v629
  %v645 = vadd.f32 %v644, %v630
  %v646 = vadd.f32 %v645, %v631
  %v647 = vadd.f32 %v646, %v632
  %v648 = vadd.f32 %v647, %v633
  %v649 = vadd.f32 %v648, %v634
  %v650 = vadd.f32 %v649, %v635
  %v651 = vadd.f32 %v650, %v636
  %v652 = vadd.f32 %v651, %v637
  %v653 = vadd.f32 %v652, %v638
  %v654 = vadd.f32 %v653, %v639
  %v655 = vrot.slane %v654, 4
  %v656 = vadd.f32 %v654, %v655
  %v657 = vrot.slane %v656, 2
  %v658 = vadd.f32 %v656, %v657
  %v659 = vrot.slane %v658, 1
  %v660 = vadd.f32 %v658, %v659
  %v661 = vmul.f32 %v660, %v589
  %v662 = vmul.f32 %v279, %v398
  %v663 = vmul.f32 %v284, %v398
  %v664 = vmul.f32 %v289, %v398
  %v665 = vmul.f32 %v294, %v398
  %v666 = vmul.f32 %v299, %v398
  %v667 = vmul.f32 %v304, %v398
  %v668 = vmul.f32 %v309, %v398
  %v669 = vmul.f32 %v314, %v398
  %v670 = vmul.f32 %v319, %v398
  %v671 = vmul.f32 %v324, %v398
  %v672 = vmul.f32 %v329, %v398
  %v673 = vmul.f32 %v334, %v398
  %v674 = vmul.f32 %v339, %v398
  %v675 = vmul.f32 %v344, %v398
  %v676 = vmul.f32 %v349, %v398
  %v677 = vmul.f32 %v354, %v398
  %v678 = vmul.f32 %v472, %v591
  %v679 = vmul.f32 %v477, %v591
  %v680 = vmul.f32 %v482, %v591
  %v681 = vmul.f32 %v487, %v591
  %v682 = vmul.f32 %v492, %v591
  %v683 = vmul.f32 %v497, %v591
  %v684 = vmul.f32 %v502, %v591
  %v685 = vmul.f32 %v507, %v591
  %v686 = vmul.f32 %v512, %v591
  %v687 = vmul.f32 %v517, %v591
  %v688 = vmul.f32 %v522, %v591
  %v689 = vmul.f32 %v527, %v591
  %v690 = vmul.f32 %v532, %v591
  %v691 = vmul.f32 %v537, %v591
  %v692 = vmul.f32 %v542, %v591
  %v693 = vmul.f32 %v547, %v591
  %v694 = vadd.f32 %v662, %v678
  %v695 = vadd.f32 %v663, %v679
  %v696 = vadd.f32 %v664, %v680
  %v697 = vadd.f32 %v665, %v681
  %v698 = vadd.f32 %v666, %v682
  %v699 = vadd.f32 %v667, %v683
  %v700 = vadd.f32 %v668, %v684
  %v701 = vadd.f32 %v669, %v685
  %v702 = vadd.f32 %v670, %v686
  %v703 = vadd.f32 %v671, %v687
  %v704 = vadd.f32 %v672, %v688
  %v705 = vadd.f32 %v673, %v689
  %v706 = vadd.f32 %v674, %v690
  %v707 = vadd.f32 %v675, %v691
  %v708 = vadd.f32 %v676, %v692
  %v709 = vadd.f32 %v677, %v693
  %v710 = vmul.f32 %v279, %v468
  %v711 = vmul.f32 %v284, %v468
  %v712 = vmul.f32 %v289, %v468
  %v713 = vmul.f32 %v294, %v468
  %v714 = vmul.f32 %v299, %v468
  %v715 = vmul.f32 %v304, %v468
  %v716 = vmul.f32 %v309, %v468
  %v717 = vmul.f32 %v314, %v468
  %v718 = vmul.f32 %v319, %v468
  %v719 = vmul.f32 %v324, %v468
  %v720 = vmul.f32 %v329, %v468
  %v721 = vmul.f32 %v334, %v468
  %v722 = vmul.f32 %v339, %v468
  %v723 = vmul.f32 %v344, %v468
  %v724 = vmul.f32 %v349, %v468
  %v725 = vmul.f32 %v354, %v468
  %v726 = vmul.f32 %v472, %v661
  %v727 = vmul.f32 %v477, %v661
  %v728 = vmul.f32 %v482, %v661
  %v729 = vmul.f32 %v487, %v661
  %v730 = vmul.f32 %v492, %v661
  %v731 = vmul.f32 %v497, %v661
  %v732 = vmul.f32 %v502, %v661
  %v733 = vmul.f32 %v507, %v661
  %v734 = vmul.f32 %v512, %v661
  %v735 = vmul.f32 %v517, %v661
  %v736 = vmul.f32 %v522, %v661
  %v737 = vmul.f32 %v527, %v661
  %v738 = vmul.f32 %v532, %v661
  %v739 = vmul.f32 %v537, %v661
  %v740 = vmul.f32 %v542, %v661
  %v741 = vmul.f32 %v547, %v661
  %v742 = vadd.f32 %v710, %v726
  %v743 = vadd.f32 %v711, %v727
  %v744 = vadd.f32 %v712, %v728
  %v745 = vadd.f32 %v713, %v729
  %v746 = vadd.f32 %v714, %v730
  %v747 = vadd.f32 %v715, %v731
  %v748 = vadd.f32 %v716, %v732
  %v749 = vadd.f32 %v717, %v733
  %v750 = vadd.f32 %v718, %v734
  %v751 = vadd.f32 %v719, %v735
  %v752 = vadd.f32 %v720, %v736
  %v753 = vadd.f32 %v721, %v737
  %v754 = vadd.f32 %v722, %v738
  %v755 = vadd.f32 %v723, %v739
  %v756 = vadd.f32 %v724, %v740
  %v757 = vadd.f32 %v725, %v741
  %v758 = vsub.f32 %v258, %v694
  %v759 = vsub.f32 %v259, %v695
  %v760 = vsub.f32 %v260, %v696
  %v761 = vsub.f32 %v261, %v697
  %v762 = vsub.f32 %v262, %v698
  %v763 = vsub.f32 %v263, %v699
  %v764 = vsub.f32 %v264, %v700
  %v765 = vsub.f32 %v265, %v701
  %v766 = vsub.f32 %v266, %v702
  %v767 = vsub.f32 %v267, %v703
  %v768 = vsub.f32 %v268, %v704
  %v769 = vsub.f32 %v269, %v705
  %v770 = vsub.f32 %v270, %v706
  %v771 = vsub.f32 %v271, %v707
  %v772 = vsub.f32 %v272, %v708
  %v773 = vsub.f32 %v273, %v709
  %v774 = vadd.f32 %v742, 1e-05
  %v775 = vadd.f32 %v743, 1e-05
  %v776 = vadd.f32 %v744, 1e-05
  %v777 = vadd.f32 %v745, 1e-05
  %v778 = vadd.f32 %v746, 1e-05
  %v779 = vadd.f32 %v747, 1e-05
  %v780 = vadd.f32 %v748, 1e-05
  %v781 = vadd.f32 %v749, 1e-05
  %v782 = vadd.f32 %v750, 1e-05
  %v783 = vadd.f32 %v751, 1e-05
  %v784 = vadd.f32 %v752, 1e-05
  %v785 = vadd.f32 %v753, 1e-05
  %v786 = vadd.f32 %v754, 1e-05
  %v787 = vadd.f32 %v755, 1e-05
  %v788 = vadd.f32 %v756, 1e-05
  %v789 = vadd.f32 %v757, 1e-05
  %v790 = vrsqrt.pop %v774
  %v791 = vrsqrt.pop %v775
  %v792 = vrsqrt.pop %v776
  %v793 = vrsqrt.pop %v777
  %v794 = vrsqrt.pop %v778
  %v795 = vrsqrt.pop %v779
  %v796 = vrsqrt.pop %v780
  %v797 = vrsqrt.pop %v781
  %v798 = vrsqrt.pop %v782
  %v799 = vrsqrt.pop %v783
  %v800 = vrsqrt.pop %v784
  %v801 = vrsqrt.pop %v785
  %v802 = vrsqrt.pop %v786
  %v803 = vrsqrt.pop %v787
  %v804 = vrsqrt.pop %v788
  %v805 = vrsqrt.pop %v789
  %v806 = vmul.f32 %v758, %v790
  %v807 = vmul.f32 %v759, %v791
  %v808 = vmul.f32 %v760, %v792
  %v809 = vmul.f32 %v761, %v793
  %v810 = vmul.f32 %v762, %v794
  %v811 = vmul.f32 %v763, %v795
  %v812 = vmul.f32 %v764, %v796
  %v813 = vmul.f32 %v765, %v797
  %v814 = vmul.f32 %v766, %v798
  %v815 = vmul.f32 %v767, %v799
  %v816 = vmul.f32 %v768, %v800
  %v817 = vmul.f32 %v769, %v801
  %v818 = vmul.f32 %v770, %v802
  %v819 = vmul.f32 %v771, %v803
  %v820 = vmul.f32 %v772, %v804
  %v821 = vmul.f32 %v773, %v805
  %v823 = vlaneseq
  %v824 = vshrl.u32 %v823, 7
  %v825 = vsub.s32 0, %v824
  %v826 = vrot.slane %v274, %v825
  %v828 = vmul.f32 %v806, %v826
  %v829 = vmul.f32 %v807, %v826
  %v830 = vmul.f32 %v808, %v826
  %v831 = vmul.f32 %v809, %v826
  %v832 = vmul.f32 %v810, %v826
  %v833 = vmul.f32 %v811, %v826
  %v834 = vmul.f32 %v812, %v826
  %v835 = vmul.f32 %v813, %v826
  %v836 = vmul.f32 %v814, %v826
  %v837 = vmul.f32 %v815, %v826
  %v838 = vmul.f32 %v816, %v826
  %v839 = vmul.f32 %v817, %v826
  %v840 = vmul.f32 %v818, %v826
  %v841 = vmul.f32 %v819, %v826
  %v842 = vmul.f32 %v820, %v826
  %v843 = vmul.f32 %v821, %v826
  %v845 = vlaneseq
  %v846 = vshrl.u32 %v845, 7
  %v847 = vsub.s32 0, %v846
  %v848 = vrot.slane %v275, %v847
  %v850 = vadd.f32 %v828, %v848
  %v851 = vadd.f32 %v829, %v848
  %v852 = vadd.f32 %v830, %v848
  %v853 = vadd.f32 %v831, %v848
  %v854 = vadd.f32 %v832, %v848
  %v855 = vadd.f32 %v833, %v848
  %v856 = vadd.f32 %v834, %v848
  %v857 = vadd.f32 %v835, %v848
  %v858 = vadd.f32 %v836, %v848
  %v859 = vadd.f32 %v837, %v848
  %v860 = vadd.f32 %v838, %v848
  %v861 = vadd.f32 %v839, %v848
  %v862 = vadd.f32 %v840, %v848
  %v863 = vadd.f32 %v841, %v848
  %v864 = vadd.f32 %v842, %v848
  %v865 = vadd.f32 %v843, %v848
  %v866 = vmax.f32 %v850, 0.0
  %v867 = vmax.f32 %v851, 0.0
  %v868 = vmax.f32 %v852, 0.0
  %v869 = vmax.f32 %v853, 0.0
  %v870 = vmax.f32 %v854, 0.0
  %v871 = vmax.f32 %v855, 0.0
  %v872 = vmax.f32 %v856, 0.0
  %v873 = vmax.f32 %v857, 0.0
  %v874 = vmax.f32 %v858, 0.0
  %v875 = vmax.f32 %v859, 0.0
  %v876 = vmax.f32 %v860, 0.0
  %v877 = vmax.f32 %v861, 0.0
  %v878 = vmax.f32 %v862, 0.0
  %v879 = vmax.f32 %v863, 0.0
  %v880 = vmax.f32 %v864, 0.0
  %v881 = vmax.f32 %v865, 0.0
  %v882 = vpack.c.bf16 %v867, %v866
  %v883 = vpack.c.bf16 %v869, %v868
  %v884 = vpack.c.bf16 %v871, %v870
  %v885 = vpack.c.bf16 %v873, %v872
  %v886 = vpack.c.bf16 %v875, %v874
  %v887 = vpack.c.bf16 %v877, %v876
  %v888 = vpack.c.bf16 %v879, %v878
  %v889 = vpack.c.bf16 %v881, %v880
  %v890 = vld [vmem:[%s7] sm:$0xf]
  %v891 = vld [vmem:[%s7 + $0x4] sm:$0xf]
  %v892 = vld [vmem:[%s7 + $0x8] sm:$0xf]
  %v893 = vld [vmem:[%s7 + $0xc] sm:$0xf]
  %v894 = vld [vmem:[%s7 + $0x10] sm:$0xf]
  %v895 = vld [vmem:[%s7 + $0x14] sm:$0xf]
  %v896 = vld [vmem:[%s7 + $0x18] sm:$0xf]
  %v897 = vld [vmem:[%s7 + $0x1c] sm:$0xf]
  %v898 = vld [vmem:[%s7 + $0x20] sm:$0xf]
  %v899 = vld [vmem:[%s7 + $0x24] sm:$0xf]
  %v900 = vld [vmem:[%s7 + $0x28] sm:$0xf]
  %v901 = vld [vmem:[%s7 + $0x2c] sm:$0xf]
  %v902 = vld [vmem:[%s7 + $0x30] sm:$0xf]
  %v903 = vld [vmem:[%s7 + $0x34] sm:$0xf]
  %v904 = vld [vmem:[%s7 + $0x38] sm:$0xf]
  %v905 = vld [vmem:[%s7 + $0x3c] sm:$0xf]
  %v922 = vunpack.c.l.b16 %v890
  %v923 = vunpack.c.l.b16 %v891
  %v924 = vunpack.c.l.b16 %v892
  %v925 = vunpack.c.l.b16 %v893
  %v926 = vunpack.c.l.b16 %v894
  %v927 = vunpack.c.l.b16 %v895
  %v928 = vunpack.c.l.b16 %v896
  %v929 = vunpack.c.l.b16 %v897
  %v930 = vunpack.c.l.b16 %v898
  %v931 = vunpack.c.l.b16 %v899
  %v932 = vunpack.c.l.b16 %v900
  %v933 = vunpack.c.l.b16 %v901
  %v934 = vunpack.c.l.b16 %v902
  %v935 = vunpack.c.l.b16 %v903
  %v936 = vunpack.c.l.b16 %v904
  %v937 = vunpack.c.l.b16 %v905
  %v938 = vpack.c.b16 %v923, %v922
  %v939 = vpack.c.b16 %v925, %v924
  %v940 = vpack.c.b16 %v927, %v926
  %v941 = vpack.c.b16 %v929, %v928
  %v942 = vpack.c.b16 %v931, %v930
  %v943 = vpack.c.b16 %v933, %v932
  %v944 = vpack.c.b16 %v935, %v934
  %v945 = vpack.c.b16 %v937, %v936
  %954 = vmatprep.subr.bf16.mxu0 0
  %955 = vmatpush1.bf16.msra.mxu0 %v938
  %956 = vmatprep.subr.bf16.mxu0 0
  %957 = vmatpush1.bf16.msra.mxu0 %v939
  %958 = vmatprep.subr.bf16.mxu0 0
  %959 = vmatpush1.bf16.msra.mxu0 %v940
  %960 = vmatprep.subr.bf16.mxu0 0
  %961 = vmatpush1.bf16.msra.mxu0 %v941
  %962 = vmatprep.subr.bf16.mxu0 0
  %963 = vmatpush1.bf16.msra.mxu0 %v942
  %964 = vmatprep.subr.bf16.mxu0 0
  %965 = vmatpush1.bf16.msra.mxu0 %v943
  %966 = vmatprep.subr.bf16.mxu0 0
  %967 = vmatpush1.bf16.msra.mxu0 %v944
  %968 = vmatprep.subr.bf16.mxu0 0
  %969 = vmatpush1.bf16.msra.mxu0 %v945
  %970 = vmatprep.subr.bf16.mxu0 0
  %971 = vmatpush1.bf16.msra.mxu0 0
  %972 = vmatprep.subr.bf16.mxu0 0
  %973 = vmatpush1.bf16.msra.mxu0 0
  %974 = vmatprep.subr.bf16.mxu0 0
  %975 = vmatpush1.bf16.msra.mxu0 0
  %976 = vmatprep.subr.bf16.mxu0 0
  %977 = vmatpush1.bf16.msra.mxu0 0
  %978 = vmatprep.subr.bf16.mxu0 0
  %979 = vmatpush1.bf16.msra.mxu0 0
  %980 = vmatprep.subr.bf16.mxu0 0
  %981 = vmatpush1.bf16.msra.mxu0 0
  %982 = vmatprep.subr.bf16.mxu0 0
  %983 = vmatpush1.bf16.msra.mxu0 0
  %984 = vmatprep.subr.bf16.mxu0 0
  %985 = vmatpush1.bf16.msra.mxu0 0
  %986 = vmatprep.mubr.bf16.mxu0 0
  %987 = vmatmul.mubr.bf16.gmra.mrb[0].mxu0 %v882
  %v988 = vpop.f32.mrb[0].mxu0
  %v989 = vadd.f32 0.0, %v988
  %v990 = vpop.f32.mrb[0].mxu0
  %v991 = vpop.f32.mrb[0].mxu0
  %v992 = vadd.f32 0.0, %v991
  %v993 = vpop.f32.mrb[0].mxu0
  %994 = vmatprep.mubr.bf16.mxu0 0
  %995 = vmatmul.mubr.bf16.gmra.mrb[0].mxu0 %v883
  %v996 = vpop.f32.mrb[0].mxu0
  %v997 = vadd.f32 0.0, %v996
  %v998 = vpop.f32.mrb[0].mxu0
  %v999 = vpop.f32.mrb[0].mxu0
  %v1000 = vadd.f32 0.0, %v999
  %v1001 = vpop.f32.mrb[0].mxu0
  %1002 = vmatprep.mubr.bf16.mxu0 0
  %1003 = vmatmul.mubr.bf16.gmra.mrb[0].mxu0 %v884
  %v1004 = vpop.f32.mrb[0].mxu0
  %v1005 = vadd.f32 0.0, %v1004
  %v1006 = vpop.f32.mrb[0].mxu0
  %v1007 = vpop.f32.mrb[0].mxu0
  %v1008 = vadd.f32 0.0, %v1007
  %v1009 = vpop.f32.mrb[0].mxu0
  %1010 = vmatprep.mubr.bf16.mxu0 0
  %1011 = vmatmul.mubr.bf16.gmra.mrb[0].mxu0 %v885
  %v1012 = vpop.f32.mrb[0].mxu0
  %v1013 = vadd.f32 0.0, %v1012
  %v1014 = vpop.f32.mrb[0].mxu0
  %v1015 = vpop.f32.mrb[0].mxu0
  %v1016 = vadd.f32 0.0, %v1015
  %v1017 = vpop.f32.mrb[0].mxu0
  %1018 = vmatprep.mubr.bf16.mxu0 0
  %1019 = vmatmul.mubr.bf16.gmra.mrb[0].mxu0 %v886
  %v1020 = vpop.f32.mrb[0].mxu0
  %v1021 = vadd.f32 0.0, %v1020
  %v1022 = vpop.f32.mrb[0].mxu0
  %v1023 = vpop.f32.mrb[0].mxu0
  %v1024 = vadd.f32 0.0, %v1023
  %v1025 = vpop.f32.mrb[0].mxu0
  %1026 = vmatprep.mubr.bf16.mxu0 0
  %1027 = vmatmul.mubr.bf16.gmra.mrb[0].mxu0 %v887
  %v1028 = vpop.f32.mrb[0].mxu0
  %v1029 = vadd.f32 0.0, %v1028
  %v1030 = vpop.f32.mrb[0].mxu0
  %v1031 = vpop.f32.mrb[0].mxu0
  %v1032 = vadd.f32 0.0, %v1031
  %v1033 = vpop.f32.mrb[0].mxu0
  %1034 = vmatprep.mubr.bf16.mxu0 0
  %1035 = vmatmul.mubr.bf16.gmra.mrb[0].mxu0 %v888
  %v1036 = vpop.f32.mrb[0].mxu0
  %v1037 = vadd.f32 0.0, %v1036
  %v1038 = vpop.f32.mrb[0].mxu0
  %v1039 = vpop.f32.mrb[0].mxu0
  %v1040 = vadd.f32 0.0, %v1039
  %v1041 = vpop.f32.mrb[0].mxu0
  %1042 = vmatprep.mubr.bf16.mxu0 0
  %1043 = vmatmul.mubr.bf16.gmra.mrb[0].mxu0 %v889
  %v1044 = vpop.f32.mrb[0].mxu0
  %v1045 = vadd.f32 0.0, %v1044
  %v1046 = vpop.f32.mrb[0].mxu0
  %v1047 = vpop.f32.mrb[0].mxu0
  %v1048 = vadd.f32 0.0, %v1047
  %v1049 = vpop.f32.mrb[0].mxu0
  %1050 = vdwg.mxu0
  %v1051 = vld [vmem:[%s8] sm:$0x1]
  %v1052 = vld [vmem:[%s9] sm:$0x1]
  %v1053 = vmul.f32 %v989, %v279
  %v1054 = vmul.f32 %v992, %v284
  %v1055 = vmul.f32 %v997, %v289
  %v1056 = vmul.f32 %v1000, %v294
  %v1057 = vmul.f32 %v1005, %v299
  %v1058 = vmul.f32 %v1008, %v304
  %v1059 = vmul.f32 %v1013, %v309
  %v1060 = vmul.f32 %v1016, %v314
  %v1061 = vmul.f32 %v1021, %v319
  %v1062 = vmul.f32 %v1024, %v324
  %v1063 = vmul.f32 %v1029, %v329
  %v1064 = vmul.f32 %v1032, %v334
  %v1065 = vmul.f32 %v1037, %v339
  %v1066 = vmul.f32 %v1040, %v344
  %v1067 = vmul.f32 %v1045, %v349
  %v1068 = vmul.f32 %v1048, %v354
  %v1069 = vadd.f32 %v1053, %v1054
  %v1070 = vadd.f32 %v1069, %v1055
  %v1071 = vadd.f32 %v1070, %v1056
  %v1072 = vadd.f32 %v1071, %v1057
  %v1073 = vadd.f32 %v1072, %v1058
  %v1074 = vadd.f32 %v1073, %v1059
  %v1075 = vadd.f32 %v1074, %v1060
  %v1076 = vadd.f32 %v1075, %v1061
  %v1077 = vadd.f32 %v1076, %v1062
  %v1078 = vadd.f32 %v1077, %v1063
  %v1079 = vadd.f32 %v1078, %v1064
  %v1080 = vadd.f32 %v1079, %v1065
  %v1081 = vadd.f32 %v1080, %v1066
  %v1082 = vadd.f32 %v1081, %v1067
  %v1083 = vadd.f32 %v1082, %v1068
  %v1084 = vrot.slane %v1083, 4
  %v1085 = vadd.f32 %v1083, %v1084
  %v1086 = vrot.slane %v1085, 2
  %v1087 = vadd.f32 %v1085, %v1086
  %v1088 = vrot.slane %v1087, 1
  %v1089 = vadd.f32 %v1087, %v1088
  %v1090 = vmul.f32 %v1089, %v396
  %v1091 = vsub.f32 %v989, %v1090
  %v1092 = vsub.f32 %v992, %v1090
  %v1093 = vsub.f32 %v997, %v1090
  %v1094 = vsub.f32 %v1000, %v1090
  %v1095 = vsub.f32 %v1005, %v1090
  %v1096 = vsub.f32 %v1008, %v1090
  %v1097 = vsub.f32 %v1013, %v1090
  %v1098 = vsub.f32 %v1016, %v1090
  %v1099 = vsub.f32 %v1021, %v1090
  %v1100 = vsub.f32 %v1024, %v1090
  %v1101 = vsub.f32 %v1029, %v1090
  %v1102 = vsub.f32 %v1032, %v1090
  %v1103 = vsub.f32 %v1037, %v1090
  %v1104 = vsub.f32 %v1040, %v1090
  %v1105 = vsub.f32 %v1045, %v1090
  %v1106 = vsub.f32 %v1048, %v1090
  %v1107 = vmul.f32 %v1091, %v279
  %v1108 = vmul.f32 %v1092, %v284
  %v1109 = vmul.f32 %v1093, %v289
  %v1110 = vmul.f32 %v1094, %v294
  %v1111 = vmul.f32 %v1095, %v299
  %v1112 = vmul.f32 %v1096, %v304
  %v1113 = vmul.f32 %v1097, %v309
  %v1114 = vmul.f32 %v1098, %v314
  %v1115 = vmul.f32 %v1099, %v319
  %v1116 = vmul.f32 %v1100, %v324
  %v1117 = vmul.f32 %v1101, %v329
  %v1118 = vmul.f32 %v1102, %v334
  %v1119 = vmul.f32 %v1103, %v339
  %v1120 = vmul.f32 %v1104, %v344
  %v1121 = vmul.f32 %v1105, %v349
  %v1122 = vmul.f32 %v1106, %v354
  %v1123 = vmul.f32 %v1107, %v1107
  %v1124 = vmul.f32 %v1108, %v1108
  %v1125 = vmul.f32 %v1109, %v1109
  %v1126 = vmul.f32 %v1110, %v1110
  %v1127 = vmul.f32 %v1111, %v1111
  %v1128 = vmul.f32 %v1112, %v1112
  %v1129 = vmul.f32 %v1113, %v1113
  %v1130 = vmul.f32 %v1114, %v1114
  %v1131 = vmul.f32 %v1115, %v1115
  %v1132 = vmul.f32 %v1116, %v1116
  %v1133 = vmul.f32 %v1117, %v1117
  %v1134 = vmul.f32 %v1118, %v1118
  %v1135 = vmul.f32 %v1119, %v1119
  %v1136 = vmul.f32 %v1120, %v1120
  %v1137 = vmul.f32 %v1121, %v1121
  %v1138 = vmul.f32 %v1122, %v1122
  %v1139 = vadd.f32 %v1123, %v1124
  %v1140 = vadd.f32 %v1139, %v1125
  %v1141 = vadd.f32 %v1140, %v1126
  %v1142 = vadd.f32 %v1141, %v1127
  %v1143 = vadd.f32 %v1142, %v1128
  %v1144 = vadd.f32 %v1143, %v1129
  %v1145 = vadd.f32 %v1144, %v1130
  %v1146 = vadd.f32 %v1145, %v1131
  %v1147 = vadd.f32 %v1146, %v1132
  %v1148 = vadd.f32 %v1147, %v1133
  %v1149 = vadd.f32 %v1148, %v1134
  %v1150 = vadd.f32 %v1149, %v1135
  %v1151 = vadd.f32 %v1150, %v1136
  %v1152 = vadd.f32 %v1151, %v1137
  %v1153 = vadd.f32 %v1152, %v1138
  %v1154 = vrot.slane %v1153, 4
  %v1155 = vadd.f32 %v1153, %v1154
  %v1156 = vrot.slane %v1155, 2
  %v1157 = vadd.f32 %v1155, %v1156
  %v1158 = vrot.slane %v1157, 1
  %v1159 = vadd.f32 %v1157, %v1158
  %v1160 = vmul.f32 %v1159, %v396
  %v1161 = vmul.f32 %v989, %v472
  %v1162 = vmul.f32 %v992, %v477
  %v1163 = vmul.f32 %v997, %v482
  %v1164 = vmul.f32 %v1000, %v487
  %v1165 = vmul.f32 %v1005, %v492
  %v1166 = vmul.f32 %v1008, %v497
  %v1167 = vmul.f32 %v1013, %v502
  %v1168 = vmul.f32 %v1016, %v507
  %v1169 = vmul.f32 %v1021, %v512
  %v1170 = vmul.f32 %v1024, %v517
  %v1171 = vmul.f32 %v1029, %v522
  %v1172 = vmul.f32 %v1032, %v527
  %v1173 = vmul.f32 %v1037, %v532
  %v1174 = vmul.f32 %v1040, %v537
  %v1175 = vmul.f32 %v1045, %v542
  %v1176 = vmul.f32 %v1048, %v547
  %v1177 = vadd.f32 %v1161, %v1162
  %v1178 = vadd.f32 %v1177, %v1163
  %v1179 = vadd.f32 %v1178, %v1164
  %v1180 = vadd.f32 %v1179, %v1165
  %v1181 = vadd.f32 %v1180, %v1166
  %v1182 = vadd.f32 %v1181, %v1167
  %v1183 = vadd.f32 %v1182, %v1168
  %v1184 = vadd.f32 %v1183, %v1169
  %v1185 = vadd.f32 %v1184, %v1170
  %v1186 = vadd.f32 %v1185, %v1171
  %v1187 = vadd.f32 %v1186, %v1172
  %v1188 = vadd.f32 %v1187, %v1173
  %v1189 = vadd.f32 %v1188, %v1174
  %v1190 = vadd.f32 %v1189, %v1175
  %v1191 = vadd.f32 %v1190, %v1176
  %v1192 = vrot.slane %v1191, 4
  %v1193 = vadd.f32 %v1191, %v1192
  %v1194 = vrot.slane %v1193, 2
  %v1195 = vadd.f32 %v1193, %v1194
  %v1196 = vrot.slane %v1195, 1
  %v1197 = vadd.f32 %v1195, %v1196
  %v1198 = vmul.f32 %v1197, %v589
  %v1199 = vsub.f32 %v989, %v1198
  %v1200 = vsub.f32 %v992, %v1198
  %v1201 = vsub.f32 %v997, %v1198
  %v1202 = vsub.f32 %v1000, %v1198
  %v1203 = vsub.f32 %v1005, %v1198
  %v1204 = vsub.f32 %v1008, %v1198
  %v1205 = vsub.f32 %v1013, %v1198
  %v1206 = vsub.f32 %v1016, %v1198
  %v1207 = vsub.f32 %v1021, %v1198
  %v1208 = vsub.f32 %v1024, %v1198
  %v1209 = vsub.f32 %v1029, %v1198
  %v1210 = vsub.f32 %v1032, %v1198
  %v1211 = vsub.f32 %v1037, %v1198
  %v1212 = vsub.f32 %v1040, %v1198
  %v1213 = vsub.f32 %v1045, %v1198
  %v1214 = vsub.f32 %v1048, %v1198
  %v1215 = vmul.f32 %v1199, %v472
  %v1216 = vmul.f32 %v1200, %v477
  %v1217 = vmul.f32 %v1201, %v482
  %v1218 = vmul.f32 %v1202, %v487
  %v1219 = vmul.f32 %v1203, %v492
  %v1220 = vmul.f32 %v1204, %v497
  %v1221 = vmul.f32 %v1205, %v502
  %v1222 = vmul.f32 %v1206, %v507
  %v1223 = vmul.f32 %v1207, %v512
  %v1224 = vmul.f32 %v1208, %v517
  %v1225 = vmul.f32 %v1209, %v522
  %v1226 = vmul.f32 %v1210, %v527
  %v1227 = vmul.f32 %v1211, %v532
  %v1228 = vmul.f32 %v1212, %v537
  %v1229 = vmul.f32 %v1213, %v542
  %v1230 = vmul.f32 %v1214, %v547
  %v1231 = vmul.f32 %v1215, %v1215
  %v1232 = vmul.f32 %v1216, %v1216
  %v1233 = vmul.f32 %v1217, %v1217
  %v1234 = vmul.f32 %v1218, %v1218
  %v1235 = vmul.f32 %v1219, %v1219
  %v1236 = vmul.f32 %v1220, %v1220
  %v1237 = vmul.f32 %v1221, %v1221
  %v1238 = vmul.f32 %v1222, %v1222
  %v1239 = vmul.f32 %v1223, %v1223
  %v1240 = vmul.f32 %v1224, %v1224
  %v1241 = vmul.f32 %v1225, %v1225
  %v1242 = vmul.f32 %v1226, %v1226
  %v1243 = vmul.f32 %v1227, %v1227
  %v1244 = vmul.f32 %v1228, %v1228
  %v1245 = vmul.f32 %v1229, %v1229
  %v1246 = vmul.f32 %v1230, %v1230
  %v1247 = vadd.f32 %v1231, %v1232
  %v1248 = vadd.f32 %v1247, %v1233
  %v1249 = vadd.f32 %v1248, %v1234
  %v1250 = vadd.f32 %v1249, %v1235
  %v1251 = vadd.f32 %v1250, %v1236
  %v1252 = vadd.f32 %v1251, %v1237
  %v1253 = vadd.f32 %v1252, %v1238
  %v1254 = vadd.f32 %v1253, %v1239
  %v1255 = vadd.f32 %v1254, %v1240
  %v1256 = vadd.f32 %v1255, %v1241
  %v1257 = vadd.f32 %v1256, %v1242
  %v1258 = vadd.f32 %v1257, %v1243
  %v1259 = vadd.f32 %v1258, %v1244
  %v1260 = vadd.f32 %v1259, %v1245
  %v1261 = vadd.f32 %v1260, %v1246
  %v1262 = vrot.slane %v1261, 4
  %v1263 = vadd.f32 %v1261, %v1262
  %v1264 = vrot.slane %v1263, 2
  %v1265 = vadd.f32 %v1263, %v1264
  %v1266 = vrot.slane %v1265, 1
  %v1267 = vadd.f32 %v1265, %v1266
  %v1268 = vmul.f32 %v1267, %v589
  %v1269 = vmul.f32 %v279, %v1090
  %v1270 = vmul.f32 %v284, %v1090
  %v1271 = vmul.f32 %v289, %v1090
  %v1272 = vmul.f32 %v294, %v1090
  %v1273 = vmul.f32 %v299, %v1090
  %v1274 = vmul.f32 %v304, %v1090
  %v1275 = vmul.f32 %v309, %v1090
  %v1276 = vmul.f32 %v314, %v1090
  %v1277 = vmul.f32 %v319, %v1090
  %v1278 = vmul.f32 %v324, %v1090
  %v1279 = vmul.f32 %v329, %v1090
  %v1280 = vmul.f32 %v334, %v1090
  %v1281 = vmul.f32 %v339, %v1090
  %v1282 = vmul.f32 %v344, %v1090
  %v1283 = vmul.f32 %v349, %v1090
  %v1284 = vmul.f32 %v354, %v1090
  %v1285 = vmul.f32 %v472, %v1198
  %v1286 = vmul.f32 %v477, %v1198
  %v1287 = vmul.f32 %v482, %v1198
  %v1288 = vmul.f32 %v487, %v1198
  %v1289 = vmul.f32 %v492, %v1198
  %v1290 = vmul.f32 %v497, %v1198
  %v1291 = vmul.f32 %v502, %v1198
  %v1292 = vmul.f32 %v507, %v1198
  %v1293 = vmul.f32 %v512, %v1198
  %v1294 = vmul.f32 %v517, %v1198
  %v1295 = vmul.f32 %v522, %v1198
  %v1296 = vmul.f32 %v527, %v1198
  %v1297 = vmul.f32 %v532, %v1198
  %v1298 = vmul.f32 %v537, %v1198
  %v1299 = vmul.f32 %v542, %v1198
  %v1300 = vmul.f32 %v547, %v1198
  %v1301 = vadd.f32 %v1269, %v1285
  %v1302 = vadd.f32 %v1270, %v1286
  %v1303 = vadd.f32 %v1271, %v1287
  %v1304 = vadd.f32 %v1272, %v1288
  %v1305 = vadd.f32 %v1273, %v1289
  %v1306 = vadd.f32 %v1274, %v1290
  %v1307 = vadd.f32 %v1275, %v1291
  %v1308 = vadd.f32 %v1276, %v1292
  %v1309 = vadd.f32 %v1277, %v1293
  %v1310 = vadd.f32 %v1278, %v1294
  %v1311 = vadd.f32 %v1279, %v1295
  %v1312 = vadd.f32 %v1280, %v1296
  %v1313 = vadd.f32 %v1281, %v1297
  %v1314 = vadd.f32 %v1282, %v1298
  %v1315 = vadd.f32 %v1283, %v1299
  %v1316 = vadd.f32 %v1284, %v1300
  %v1317 = vmul.f32 %v279, %v1160
  %v1318 = vmul.f32 %v284, %v1160
  %v1319 = vmul.f32 %v289, %v1160
  %v1320 = vmul.f32 %v294, %v1160
  %v1321 = vmul.f32 %v299, %v1160
  %v1322 = vmul.f32 %v304, %v1160
  %v1323 = vmul.f32 %v309, %v1160
  %v1324 = vmul.f32 %v314, %v1160
  %v1325 = vmul.f32 %v319, %v1160
  %v1326 = vmul.f32 %v324, %v1160
  %v1327 = vmul.f32 %v329, %v1160
  %v1328 = vmul.f32 %v334, %v1160
  %v1329 = vmul.f32 %v339, %v1160
  %v1330 = vmul.f32 %v344, %v1160
  %v1331 = vmul.f32 %v349, %v1160
  %v1332 = vmul.f32 %v354, %v1160
  %v1333 = vmul.f32 %v472, %v1268
  %v1334 = vmul.f32 %v477, %v1268
  %v1335 = vmul.f32 %v482, %v1268
  %v1336 = vmul.f32 %v487, %v1268
  %v1337 = vmul.f32 %v492, %v1268
  %v1338 = vmul.f32 %v497, %v1268
  %v1339 = vmul.f32 %v502, %v1268
  %v1340 = vmul.f32 %v507, %v1268
  %v1341 = vmul.f32 %v512, %v1268
  %v1342 = vmul.f32 %v517, %v1268
  %v1343 = vmul.f32 %v522, %v1268
  %v1344 = vmul.f32 %v527, %v1268
  %v1345 = vmul.f32 %v532, %v1268
  %v1346 = vmul.f32 %v537, %v1268
  %v1347 = vmul.f32 %v542, %v1268
  %v1348 = vmul.f32 %v547, %v1268
  %v1349 = vadd.f32 %v1317, %v1333
  %v1350 = vadd.f32 %v1318, %v1334
  %v1351 = vadd.f32 %v1319, %v1335
  %v1352 = vadd.f32 %v1320, %v1336
  %v1353 = vadd.f32 %v1321, %v1337
  %v1354 = vadd.f32 %v1322, %v1338
  %v1355 = vadd.f32 %v1323, %v1339
  %v1356 = vadd.f32 %v1324, %v1340
  %v1357 = vadd.f32 %v1325, %v1341
  %v1358 = vadd.f32 %v1326, %v1342
  %v1359 = vadd.f32 %v1327, %v1343
  %v1360 = vadd.f32 %v1328, %v1344
  %v1361 = vadd.f32 %v1329, %v1345
  %v1362 = vadd.f32 %v1330, %v1346
  %v1363 = vadd.f32 %v1331, %v1347
  %v1364 = vadd.f32 %v1332, %v1348
  %v1365 = vsub.f32 %v989, %v1301
  %v1366 = vsub.f32 %v992, %v1302
  %v1367 = vsub.f32 %v997, %v1303
  %v1368 = vsub.f32 %v1000, %v1304
  %v1369 = vsub.f32 %v1005, %v1305
  %v1370 = vsub.f32 %v1008, %v1306
  %v1371 = vsub.f32 %v1013, %v1307
  %v1372 = vsub.f32 %v1016, %v1308
  %v1373 = vsub.f32 %v1021, %v1309
  %v1374 = vsub.f32 %v1024, %v1310
  %v1375 = vsub.f32 %v1029, %v1311
  %v1376 = vsub.f32 %v1032, %v1312
  %v1377 = vsub.f32 %v1037, %v1313
  %v1378 = vsub.f32 %v1040, %v1314
  %v1379 = vsub.f32 %v1045, %v1315
  %v1380 = vsub.f32 %v1048, %v1316
  %v1381 = vadd.f32 %v1349, 1e-05
  %v1382 = vadd.f32 %v1350, 1e-05
  %v1383 = vadd.f32 %v1351, 1e-05
  %v1384 = vadd.f32 %v1352, 1e-05
  %v1385 = vadd.f32 %v1353, 1e-05
  %v1386 = vadd.f32 %v1354, 1e-05
  %v1387 = vadd.f32 %v1355, 1e-05
  %v1388 = vadd.f32 %v1356, 1e-05
  %v1389 = vadd.f32 %v1357, 1e-05
  %v1390 = vadd.f32 %v1358, 1e-05
  %v1391 = vadd.f32 %v1359, 1e-05
  %v1392 = vadd.f32 %v1360, 1e-05
  %v1393 = vadd.f32 %v1361, 1e-05
  %v1394 = vadd.f32 %v1362, 1e-05
  %v1395 = vadd.f32 %v1363, 1e-05
  %v1396 = vadd.f32 %v1364, 1e-05
  %v1397 = vrsqrt.pop %v1381
  %v1398 = vrsqrt.pop %v1382
  %v1399 = vrsqrt.pop %v1383
  %v1400 = vrsqrt.pop %v1384
  %v1401 = vrsqrt.pop %v1385
  %v1402 = vrsqrt.pop %v1386
  %v1403 = vrsqrt.pop %v1387
  %v1404 = vrsqrt.pop %v1388
  %v1405 = vrsqrt.pop %v1389
  %v1406 = vrsqrt.pop %v1390
  %v1407 = vrsqrt.pop %v1391
  %v1408 = vrsqrt.pop %v1392
  %v1409 = vrsqrt.pop %v1393
  %v1410 = vrsqrt.pop %v1394
  %v1411 = vrsqrt.pop %v1395
  %v1412 = vrsqrt.pop %v1396
  %v1413 = vmul.f32 %v1365, %v1397
  %v1414 = vmul.f32 %v1366, %v1398
  %v1415 = vmul.f32 %v1367, %v1399
  %v1416 = vmul.f32 %v1368, %v1400
  %v1417 = vmul.f32 %v1369, %v1401
  %v1418 = vmul.f32 %v1370, %v1402
  %v1419 = vmul.f32 %v1371, %v1403
  %v1420 = vmul.f32 %v1372, %v1404
  %v1421 = vmul.f32 %v1373, %v1405
  %v1422 = vmul.f32 %v1374, %v1406
  %v1423 = vmul.f32 %v1375, %v1407
  %v1424 = vmul.f32 %v1376, %v1408
  %v1425 = vmul.f32 %v1377, %v1409
  %v1426 = vmul.f32 %v1378, %v1410
  %v1427 = vmul.f32 %v1379, %v1411
  %v1428 = vmul.f32 %v1380, %v1412
  %v1430 = vlaneseq
  %v1431 = vshrl.u32 %v1430, 7
  %v1432 = vsub.s32 0, %v1431
  %v1433 = vrot.slane %v1051, %v1432
  %v1435 = vmul.f32 %v1413, %v1433
  %v1436 = vmul.f32 %v1414, %v1433
  %v1437 = vmul.f32 %v1415, %v1433
  %v1438 = vmul.f32 %v1416, %v1433
  %v1439 = vmul.f32 %v1417, %v1433
  %v1440 = vmul.f32 %v1418, %v1433
  %v1441 = vmul.f32 %v1419, %v1433
  %v1442 = vmul.f32 %v1420, %v1433
  %v1443 = vmul.f32 %v1421, %v1433
  %v1444 = vmul.f32 %v1422, %v1433
  %v1445 = vmul.f32 %v1423, %v1433
  %v1446 = vmul.f32 %v1424, %v1433
  %v1447 = vmul.f32 %v1425, %v1433
  %v1448 = vmul.f32 %v1426, %v1433
  %v1449 = vmul.f32 %v1427, %v1433
  %v1450 = vmul.f32 %v1428, %v1433
  %v1452 = vlaneseq
  %v1453 = vshrl.u32 %v1452, 7
  %v1454 = vsub.s32 0, %v1453
  %v1455 = vrot.slane %v1052, %v1454
  %v1457 = vadd.f32 %v1435, %v1455
  %v1458 = vadd.f32 %v1436, %v1455
  %v1459 = vadd.f32 %v1437, %v1455
  %v1460 = vadd.f32 %v1438, %v1455
  %v1461 = vadd.f32 %v1439, %v1455
  %v1462 = vadd.f32 %v1440, %v1455
  %v1463 = vadd.f32 %v1441, %v1455
  %v1464 = vadd.f32 %v1442, %v1455
  %v1465 = vadd.f32 %v1443, %v1455
  %v1466 = vadd.f32 %v1444, %v1455
  %v1467 = vadd.f32 %v1445, %v1455
  %v1468 = vadd.f32 %v1446, %v1455
  %v1469 = vadd.f32 %v1447, %v1455
  %v1470 = vadd.f32 %v1448, %v1455
  %v1471 = vadd.f32 %v1449, %v1455
  %v1472 = vadd.f32 %v1450, %v1455
  %v1473 = vmax.f32 %v1457, 0.0
  %v1474 = vmax.f32 %v1458, 0.0
  %v1475 = vmax.f32 %v1459, 0.0
  %v1476 = vmax.f32 %v1460, 0.0
  %v1477 = vmax.f32 %v1461, 0.0
  %v1478 = vmax.f32 %v1462, 0.0
  %v1479 = vmax.f32 %v1463, 0.0
  %v1480 = vmax.f32 %v1464, 0.0
  %v1481 = vmax.f32 %v1465, 0.0
  %v1482 = vmax.f32 %v1466, 0.0
  %v1483 = vmax.f32 %v1467, 0.0
  %v1484 = vmax.f32 %v1468, 0.0
  %v1485 = vmax.f32 %v1469, 0.0
  %v1486 = vmax.f32 %v1470, 0.0
  %v1487 = vmax.f32 %v1471, 0.0
  %v1488 = vmax.f32 %v1472, 0.0
  %v1489 = vadd.f32 %v42, %v58
  %v1490 = vadd.f32 %v43, %v59
  %v1491 = vadd.f32 %v44, %v60
  %v1492 = vadd.f32 %v45, %v61
  %v1493 = vadd.f32 %v46, %v62
  %v1494 = vadd.f32 %v47, %v63
  %v1495 = vadd.f32 %v48, %v64
  %v1496 = vadd.f32 %v49, %v65
  %v1497 = vadd.f32 %v50, %v66
  %v1498 = vadd.f32 %v51, %v67
  %v1499 = vadd.f32 %v52, %v68
  %v1500 = vadd.f32 %v53, %v69
  %v1501 = vadd.f32 %v54, %v70
  %v1502 = vadd.f32 %v55, %v71
  %v1503 = vadd.f32 %v56, %v72
  %v1504 = vadd.f32 %v57, %v73
  %1506 = vset.pattern.permute.xlu0 0
  %1507 = vperm.xlu0 %1506, %v1489
  %v1508 = vpop.permute.xlu0 %1507
  %1511 = vset.pattern.permute.xlu0 0
  %1512 = vperm.xlu0 %1511, %v1490
  %v1513 = vpop.permute.xlu0 %1512
  %1516 = vset.pattern.permute.xlu0 0
  %1517 = vperm.xlu0 %1516, %v1491
  %v1518 = vpop.permute.xlu0 %1517
  %1521 = vset.pattern.permute.xlu0 0
  %1522 = vperm.xlu0 %1521, %v1492
  %v1523 = vpop.permute.xlu0 %1522
  %1526 = vset.pattern.permute.xlu0 0
  %1527 = vperm.xlu0 %1526, %v1493
  %v1528 = vpop.permute.xlu0 %1527
  %1531 = vset.pattern.permute.xlu0 0
  %1532 = vperm.xlu0 %1531, %v1494
  %v1533 = vpop.permute.xlu0 %1532
  %1536 = vset.pattern.permute.xlu0 0
  %1537 = vperm.xlu0 %1536, %v1495
  %v1538 = vpop.permute.xlu0 %1537
  %1541 = vset.pattern.permute.xlu0 0
  %1542 = vperm.xlu0 %1541, %v1496
  %v1543 = vpop.permute.xlu0 %1542
  %1546 = vset.pattern.permute.xlu0 0
  %1547 = vperm.xlu0 %1546, %v1497
  %v1548 = vpop.permute.xlu0 %1547
  %1551 = vset.pattern.permute.xlu0 0
  %1552 = vperm.xlu0 %1551, %v1498
  %v1553 = vpop.permute.xlu0 %1552
  %1556 = vset.pattern.permute.xlu0 0
  %1557 = vperm.xlu0 %1556, %v1499
  %v1558 = vpop.permute.xlu0 %1557
  %1561 = vset.pattern.permute.xlu0 0
  %1562 = vperm.xlu0 %1561, %v1500
  %v1563 = vpop.permute.xlu0 %1562
  %1566 = vset.pattern.permute.xlu0 0
  %1567 = vperm.xlu0 %1566, %v1501
  %v1568 = vpop.permute.xlu0 %1567
  %1571 = vset.pattern.permute.xlu0 0
  %1572 = vperm.xlu0 %1571, %v1502
  %v1573 = vpop.permute.xlu0 %1572
  %1576 = vset.pattern.permute.xlu0 0
  %1577 = vperm.xlu0 %1576, %v1503
  %v1578 = vpop.permute.xlu0 %1577
  %1581 = vset.pattern.permute.xlu0 0
  %1582 = vperm.xlu0 %1581, %v1504
  %v1583 = vpop.permute.xlu0 %1582
  %v1585 = vmul.f32 %v1473, %v1508
  %v1586 = vmul.f32 %v1474, %v1513
  %v1587 = vmul.f32 %v1475, %v1518
  %v1588 = vmul.f32 %v1476, %v1523
  %v1589 = vmul.f32 %v1477, %v1528
  %v1590 = vmul.f32 %v1478, %v1533
  %v1591 = vmul.f32 %v1479, %v1538
  %v1592 = vmul.f32 %v1480, %v1543
  %v1593 = vmul.f32 %v1481, %v1548
  %v1594 = vmul.f32 %v1482, %v1553
  %v1595 = vmul.f32 %v1483, %v1558
  %v1596 = vmul.f32 %v1484, %v1563
  %v1597 = vmul.f32 %v1485, %v1568
  %v1598 = vmul.f32 %v1486, %v1573
  %v1599 = vmul.f32 %v1487, %v1578
  %v1600 = vmul.f32 %v1488, %v1583
  %v1601 = vld [vmem:[%s10] sm:$0x1]
  %v1602 = vld [vmem:[%s11] sm:$0x1]
  %v1603 = vmul.f32 %v1585, %v279
  %v1604 = vmul.f32 %v1586, %v284
  %v1605 = vmul.f32 %v1587, %v289
  %v1606 = vmul.f32 %v1588, %v294
  %v1607 = vmul.f32 %v1589, %v299
  %v1608 = vmul.f32 %v1590, %v304
  %v1609 = vmul.f32 %v1591, %v309
  %v1610 = vmul.f32 %v1592, %v314
  %v1611 = vmul.f32 %v1593, %v319
  %v1612 = vmul.f32 %v1594, %v324
  %v1613 = vmul.f32 %v1595, %v329
  %v1614 = vmul.f32 %v1596, %v334
  %v1615 = vmul.f32 %v1597, %v339
  %v1616 = vmul.f32 %v1598, %v344
  %v1617 = vmul.f32 %v1599, %v349
  %v1618 = vmul.f32 %v1600, %v354
  %v1619 = vadd.f32 %v1603, %v1604
  %v1620 = vadd.f32 %v1619, %v1605
  %v1621 = vadd.f32 %v1620, %v1606
  %v1622 = vadd.f32 %v1621, %v1607
  %v1623 = vadd.f32 %v1622, %v1608
  %v1624 = vadd.f32 %v1623, %v1609
  %v1625 = vadd.f32 %v1624, %v1610
  %v1626 = vadd.f32 %v1625, %v1611
  %v1627 = vadd.f32 %v1626, %v1612
  %v1628 = vadd.f32 %v1627, %v1613
  %v1629 = vadd.f32 %v1628, %v1614
  %v1630 = vadd.f32 %v1629, %v1615
  %v1631 = vadd.f32 %v1630, %v1616
  %v1632 = vadd.f32 %v1631, %v1617
  %v1633 = vadd.f32 %v1632, %v1618
  %v1634 = vrot.slane %v1633, 4
  %v1635 = vadd.f32 %v1633, %v1634
  %v1636 = vrot.slane %v1635, 2
  %v1637 = vadd.f32 %v1635, %v1636
  %v1638 = vrot.slane %v1637, 1
  %v1639 = vadd.f32 %v1637, %v1638
  %v1640 = vmul.f32 %v1639, %v396
  %v1641 = vsub.f32 %v1585, %v1640
  %v1642 = vsub.f32 %v1586, %v1640
  %v1643 = vsub.f32 %v1587, %v1640
  %v1644 = vsub.f32 %v1588, %v1640
  %v1645 = vsub.f32 %v1589, %v1640
  %v1646 = vsub.f32 %v1590, %v1640
  %v1647 = vsub.f32 %v1591, %v1640
  %v1648 = vsub.f32 %v1592, %v1640
  %v1649 = vsub.f32 %v1593, %v1640
  %v1650 = vsub.f32 %v1594, %v1640
  %v1651 = vsub.f32 %v1595, %v1640
  %v1652 = vsub.f32 %v1596, %v1640
  %v1653 = vsub.f32 %v1597, %v1640
  %v1654 = vsub.f32 %v1598, %v1640
  %v1655 = vsub.f32 %v1599, %v1640
  %v1656 = vsub.f32 %v1600, %v1640
  %v1657 = vmul.f32 %v1641, %v279
  %v1658 = vmul.f32 %v1642, %v284
  %v1659 = vmul.f32 %v1643, %v289
  %v1660 = vmul.f32 %v1644, %v294
  %v1661 = vmul.f32 %v1645, %v299
  %v1662 = vmul.f32 %v1646, %v304
  %v1663 = vmul.f32 %v1647, %v309
  %v1664 = vmul.f32 %v1648, %v314
  %v1665 = vmul.f32 %v1649, %v319
  %v1666 = vmul.f32 %v1650, %v324
  %v1667 = vmul.f32 %v1651, %v329
  %v1668 = vmul.f32 %v1652, %v334
  %v1669 = vmul.f32 %v1653, %v339
  %v1670 = vmul.f32 %v1654, %v344
  %v1671 = vmul.f32 %v1655, %v349
  %v1672 = vmul.f32 %v1656, %v354
  %v1673 = vmul.f32 %v1657, %v1657
  %v1674 = vmul.f32 %v1658, %v1658
  %v1675 = vmul.f32 %v1659, %v1659
  %v1676 = vmul.f32 %v1660, %v1660
  %v1677 = vmul.f32 %v1661, %v1661
  %v1678 = vmul.f32 %v1662, %v1662
  %v1679 = vmul.f32 %v1663, %v1663
  %v1680 = vmul.f32 %v1664, %v1664
  %v1681 = vmul.f32 %v1665, %v1665
  %v1682 = vmul.f32 %v1666, %v1666
  %v1683 = vmul.f32 %v1667, %v1667
  %v1684 = vmul.f32 %v1668, %v1668
  %v1685 = vmul.f32 %v1669, %v1669
  %v1686 = vmul.f32 %v1670, %v1670
  %v1687 = vmul.f32 %v1671, %v1671
  %v1688 = vmul.f32 %v1672, %v1672
  %v1689 = vadd.f32 %v1673, %v1674
  %v1690 = vadd.f32 %v1689, %v1675
  %v1691 = vadd.f32 %v1690, %v1676
  %v1692 = vadd.f32 %v1691, %v1677
  %v1693 = vadd.f32 %v1692, %v1678
  %v1694 = vadd.f32 %v1693, %v1679
  %v1695 = vadd.f32 %v1694, %v1680
  %v1696 = vadd.f32 %v1695, %v1681
  %v1697 = vadd.f32 %v1696, %v1682
  %v1698 = vadd.f32 %v1697, %v1683
  %v1699 = vadd.f32 %v1698, %v1684
  %v1700 = vadd.f32 %v1699, %v1685
  %v1701 = vadd.f32 %v1700, %v1686
  %v1702 = vadd.f32 %v1701, %v1687
  %v1703 = vadd.f32 %v1702, %v1688
  %v1704 = vrot.slane %v1703, 4
  %v1705 = vadd.f32 %v1703, %v1704
  %v1706 = vrot.slane %v1705, 2
  %v1707 = vadd.f32 %v1705, %v1706
  %v1708 = vrot.slane %v1707, 1
  %v1709 = vadd.f32 %v1707, %v1708
  %v1710 = vmul.f32 %v1709, %v396
  %v1711 = vmul.f32 %v1585, %v472
  %v1712 = vmul.f32 %v1586, %v477
  %v1713 = vmul.f32 %v1587, %v482
  %v1714 = vmul.f32 %v1588, %v487
  %v1715 = vmul.f32 %v1589, %v492
  %v1716 = vmul.f32 %v1590, %v497
  %v1717 = vmul.f32 %v1591, %v502
  %v1718 = vmul.f32 %v1592, %v507
  %v1719 = vmul.f32 %v1593, %v512
  %v1720 = vmul.f32 %v1594, %v517
  %v1721 = vmul.f32 %v1595, %v522
  %v1722 = vmul.f32 %v1596, %v527
  %v1723 = vmul.f32 %v1597, %v532
  %v1724 = vmul.f32 %v1598, %v537
  %v1725 = vmul.f32 %v1599, %v542
  %v1726 = vmul.f32 %v1600, %v547
  %v1727 = vadd.f32 %v1711, %v1712
  %v1728 = vadd.f32 %v1727, %v1713
  %v1729 = vadd.f32 %v1728, %v1714
  %v1730 = vadd.f32 %v1729, %v1715
  %v1731 = vadd.f32 %v1730, %v1716
  %v1732 = vadd.f32 %v1731, %v1717
  %v1733 = vadd.f32 %v1732, %v1718
  %v1734 = vadd.f32 %v1733, %v1719
  %v1735 = vadd.f32 %v1734, %v1720
  %v1736 = vadd.f32 %v1735, %v1721
  %v1737 = vadd.f32 %v1736, %v1722
  %v1738 = vadd.f32 %v1737, %v1723
  %v1739 = vadd.f32 %v1738, %v1724
  %v1740 = vadd.f32 %v1739, %v1725
  %v1741 = vadd.f32 %v1740, %v1726
  %v1742 = vrot.slane %v1741, 4
  %v1743 = vadd.f32 %v1741, %v1742
  %v1744 = vrot.slane %v1743, 2
  %v1745 = vadd.f32 %v1743, %v1744
  %v1746 = vrot.slane %v1745, 1
  %v1747 = vadd.f32 %v1745, %v1746
  %v1748 = vmul.f32 %v1747, %v589
  %v1749 = vsub.f32 %v1585, %v1748
  %v1750 = vsub.f32 %v1586, %v1748
  %v1751 = vsub.f32 %v1587, %v1748
  %v1752 = vsub.f32 %v1588, %v1748
  %v1753 = vsub.f32 %v1589, %v1748
  %v1754 = vsub.f32 %v1590, %v1748
  %v1755 = vsub.f32 %v1591, %v1748
  %v1756 = vsub.f32 %v1592, %v1748
  %v1757 = vsub.f32 %v1593, %v1748
  %v1758 = vsub.f32 %v1594, %v1748
  %v1759 = vsub.f32 %v1595, %v1748
  %v1760 = vsub.f32 %v1596, %v1748
  %v1761 = vsub.f32 %v1597, %v1748
  %v1762 = vsub.f32 %v1598, %v1748
  %v1763 = vsub.f32 %v1599, %v1748
  %v1764 = vsub.f32 %v1600, %v1748
  %v1765 = vmul.f32 %v1749, %v472
  %v1766 = vmul.f32 %v1750, %v477
  %v1767 = vmul.f32 %v1751, %v482
  %v1768 = vmul.f32 %v1752, %v487
  %v1769 = vmul.f32 %v1753, %v492
  %v1770 = vmul.f32 %v1754, %v497
  %v1771 = vmul.f32 %v1755, %v502
  %v1772 = vmul.f32 %v1756, %v507
  %v1773 = vmul.f32 %v1757, %v512
  %v1774 = vmul.f32 %v1758, %v517
  %v1775 = vmul.f32 %v1759, %v522
  %v1776 = vmul.f32 %v1760, %v527
  %v1777 = vmul.f32 %v1761, %v532
  %v1778 = vmul.f32 %v1762, %v537
  %v1779 = vmul.f32 %v1763, %v542
  %v1780 = vmul.f32 %v1764, %v547
  %v1781 = vmul.f32 %v1765, %v1765
  %v1782 = vmul.f32 %v1766, %v1766
  %v1783 = vmul.f32 %v1767, %v1767
  %v1784 = vmul.f32 %v1768, %v1768
  %v1785 = vmul.f32 %v1769, %v1769
  %v1786 = vmul.f32 %v1770, %v1770
  %v1787 = vmul.f32 %v1771, %v1771
  %v1788 = vmul.f32 %v1772, %v1772
  %v1789 = vmul.f32 %v1773, %v1773
  %v1790 = vmul.f32 %v1774, %v1774
  %v1791 = vmul.f32 %v1775, %v1775
  %v1792 = vmul.f32 %v1776, %v1776
  %v1793 = vmul.f32 %v1777, %v1777
  %v1794 = vmul.f32 %v1778, %v1778
  %v1795 = vmul.f32 %v1779, %v1779
  %v1796 = vmul.f32 %v1780, %v1780
  %v1797 = vadd.f32 %v1781, %v1782
  %v1798 = vadd.f32 %v1797, %v1783
  %v1799 = vadd.f32 %v1798, %v1784
  %v1800 = vadd.f32 %v1799, %v1785
  %v1801 = vadd.f32 %v1800, %v1786
  %v1802 = vadd.f32 %v1801, %v1787
  %v1803 = vadd.f32 %v1802, %v1788
  %v1804 = vadd.f32 %v1803, %v1789
  %v1805 = vadd.f32 %v1804, %v1790
  %v1806 = vadd.f32 %v1805, %v1791
  %v1807 = vadd.f32 %v1806, %v1792
  %v1808 = vadd.f32 %v1807, %v1793
  %v1809 = vadd.f32 %v1808, %v1794
  %v1810 = vadd.f32 %v1809, %v1795
  %v1811 = vadd.f32 %v1810, %v1796
  %v1812 = vrot.slane %v1811, 4
  %v1813 = vadd.f32 %v1811, %v1812
  %v1814 = vrot.slane %v1813, 2
  %v1815 = vadd.f32 %v1813, %v1814
  %v1816 = vrot.slane %v1815, 1
  %v1817 = vadd.f32 %v1815, %v1816
  %v1818 = vmul.f32 %v1817, %v589
  %v1819 = vmul.f32 %v279, %v1640
  %v1820 = vmul.f32 %v284, %v1640
  %v1821 = vmul.f32 %v289, %v1640
  %v1822 = vmul.f32 %v294, %v1640
  %v1823 = vmul.f32 %v299, %v1640
  %v1824 = vmul.f32 %v304, %v1640
  %v1825 = vmul.f32 %v309, %v1640
  %v1826 = vmul.f32 %v314, %v1640
  %v1827 = vmul.f32 %v319, %v1640
  %v1828 = vmul.f32 %v324, %v1640
  %v1829 = vmul.f32 %v329, %v1640
  %v1830 = vmul.f32 %v334, %v1640
  %v1831 = vmul.f32 %v339, %v1640
  %v1832 = vmul.f32 %v344, %v1640
  %v1833 = vmul.f32 %v349, %v1640
  %v1834 = vmul.f32 %v354, %v1640
  %v1835 = vmul.f32 %v472, %v1748
  %v1836 = vmul.f32 %v477, %v1748
  %v1837 = vmul.f32 %v482, %v1748
  %v1838 = vmul.f32 %v487, %v1748
  %v1839 = vmul.f32 %v492, %v1748
  %v1840 = vmul.f32 %v497, %v1748
  %v1841 = vmul.f32 %v502, %v1748
  %v1842 = vmul.f32 %v507, %v1748
  %v1843 = vmul.f32 %v512, %v1748
  %v1844 = vmul.f32 %v517, %v1748
  %v1845 = vmul.f32 %v522, %v1748
  %v1846 = vmul.f32 %v527, %v1748
  %v1847 = vmul.f32 %v532, %v1748
  %v1848 = vmul.f32 %v537, %v1748
  %v1849 = vmul.f32 %v542, %v1748
  %v1850 = vmul.f32 %v547, %v1748
  %v1851 = vadd.f32 %v1819, %v1835
  %v1852 = vadd.f32 %v1820, %v1836
  %v1853 = vadd.f32 %v1821, %v1837
  %v1854 = vadd.f32 %v1822, %v1838
  %v1855 = vadd.f32 %v1823, %v1839
  %v1856 = vadd.f32 %v1824, %v1840
  %v1857 = vadd.f32 %v1825, %v1841
  %v1858 = vadd.f32 %v1826, %v1842
  %v1859 = vadd.f32 %v1827, %v1843
  %v1860 = vadd.f32 %v1828, %v1844
  %v1861 = vadd.f32 %v1829, %v1845
  %v1862 = vadd.f32 %v1830, %v1846
  %v1863 = vadd.f32 %v1831, %v1847
  %v1864 = vadd.f32 %v1832, %v1848
  %v1865 = vadd.f32 %v1833, %v1849
  %v1866 = vadd.f32 %v1834, %v1850
  %v1867 = vmul.f32 %v279, %v1710
  %v1868 = vmul.f32 %v284, %v1710
  %v1869 = vmul.f32 %v289, %v1710
  %v1870 = vmul.f32 %v294, %v1710
  %v1871 = vmul.f32 %v299, %v1710
  %v1872 = vmul.f32 %v304, %v1710
  %v1873 = vmul.f32 %v309, %v1710
  %v1874 = vmul.f32 %v314, %v1710
  %v1875 = vmul.f32 %v319, %v1710
  %v1876 = vmul.f32 %v324, %v1710
  %v1877 = vmul.f32 %v329, %v1710
  %v1878 = vmul.f32 %v334, %v1710
  %v1879 = vmul.f32 %v339, %v1710
  %v1880 = vmul.f32 %v344, %v1710
  %v1881 = vmul.f32 %v349, %v1710
  %v1882 = vmul.f32 %v354, %v1710
  %v1883 = vmul.f32 %v472, %v1818
  %v1884 = vmul.f32 %v477, %v1818
  %v1885 = vmul.f32 %v482, %v1818
  %v1886 = vmul.f32 %v487, %v1818
  %v1887 = vmul.f32 %v492, %v1818
  %v1888 = vmul.f32 %v497, %v1818
  %v1889 = vmul.f32 %v502, %v1818
  %v1890 = vmul.f32 %v507, %v1818
  %v1891 = vmul.f32 %v512, %v1818
  %v1892 = vmul.f32 %v517, %v1818
  %v1893 = vmul.f32 %v522, %v1818
  %v1894 = vmul.f32 %v527, %v1818
  %v1895 = vmul.f32 %v532, %v1818
  %v1896 = vmul.f32 %v537, %v1818
  %v1897 = vmul.f32 %v542, %v1818
  %v1898 = vmul.f32 %v547, %v1818
  %v1899 = vadd.f32 %v1867, %v1883
  %v1900 = vadd.f32 %v1868, %v1884
  %v1901 = vadd.f32 %v1869, %v1885
  %v1902 = vadd.f32 %v1870, %v1886
  %v1903 = vadd.f32 %v1871, %v1887
  %v1904 = vadd.f32 %v1872, %v1888
  %v1905 = vadd.f32 %v1873, %v1889
  %v1906 = vadd.f32 %v1874, %v1890
  %v1907 = vadd.f32 %v1875, %v1891
  %v1908 = vadd.f32 %v1876, %v1892
  %v1909 = vadd.f32 %v1877, %v1893
  %v1910 = vadd.f32 %v1878, %v1894
  %v1911 = vadd.f32 %v1879, %v1895
  %v1912 = vadd.f32 %v1880, %v1896
  %v1913 = vadd.f32 %v1881, %v1897
  %v1914 = vadd.f32 %v1882, %v1898
  %v1915 = vsub.f32 %v1585, %v1851
  %v1916 = vsub.f32 %v1586, %v1852
  %v1917 = vsub.f32 %v1587, %v1853
  %v1918 = vsub.f32 %v1588, %v1854
  %v1919 = vsub.f32 %v1589, %v1855
  %v1920 = vsub.f32 %v1590, %v1856
  %v1921 = vsub.f32 %v1591, %v1857
  %v1922 = vsub.f32 %v1592, %v1858
  %v1923 = vsub.f32 %v1593, %v1859
  %v1924 = vsub.f32 %v1594, %v1860
  %v1925 = vsub.f32 %v1595, %v1861
  %v1926 = vsub.f32 %v1596, %v1862
  %v1927 = vsub.f32 %v1597, %v1863
  %v1928 = vsub.f32 %v1598, %v1864
  %v1929 = vsub.f32 %v1599, %v1865
  %v1930 = vsub.f32 %v1600, %v1866
  %v1931 = vadd.f32 %v1899, 1e-05
  %v1932 = vadd.f32 %v1900, 1e-05
  %v1933 = vadd.f32 %v1901, 1e-05
  %v1934 = vadd.f32 %v1902, 1e-05
  %v1935 = vadd.f32 %v1903, 1e-05
  %v1936 = vadd.f32 %v1904, 1e-05
  %v1937 = vadd.f32 %v1905, 1e-05
  %v1938 = vadd.f32 %v1906, 1e-05
  %v1939 = vadd.f32 %v1907, 1e-05
  %v1940 = vadd.f32 %v1908, 1e-05
  %v1941 = vadd.f32 %v1909, 1e-05
  %v1942 = vadd.f32 %v1910, 1e-05
  %v1943 = vadd.f32 %v1911, 1e-05
  %v1944 = vadd.f32 %v1912, 1e-05
  %v1945 = vadd.f32 %v1913, 1e-05
  %v1946 = vadd.f32 %v1914, 1e-05
  %v1947 = vrsqrt.pop %v1931
  %v1948 = vrsqrt.pop %v1932
  %v1949 = vrsqrt.pop %v1933
  %v1950 = vrsqrt.pop %v1934
  %v1951 = vrsqrt.pop %v1935
  %v1952 = vrsqrt.pop %v1936
  %v1953 = vrsqrt.pop %v1937
  %v1954 = vrsqrt.pop %v1938
  %v1955 = vrsqrt.pop %v1939
  %v1956 = vrsqrt.pop %v1940
  %v1957 = vrsqrt.pop %v1941
  %v1958 = vrsqrt.pop %v1942
  %v1959 = vrsqrt.pop %v1943
  %v1960 = vrsqrt.pop %v1944
  %v1961 = vrsqrt.pop %v1945
  %v1962 = vrsqrt.pop %v1946
  %v1963 = vmul.f32 %v1915, %v1947
  %v1964 = vmul.f32 %v1916, %v1948
  %v1965 = vmul.f32 %v1917, %v1949
  %v1966 = vmul.f32 %v1918, %v1950
  %v1967 = vmul.f32 %v1919, %v1951
  %v1968 = vmul.f32 %v1920, %v1952
  %v1969 = vmul.f32 %v1921, %v1953
  %v1970 = vmul.f32 %v1922, %v1954
  %v1971 = vmul.f32 %v1923, %v1955
  %v1972 = vmul.f32 %v1924, %v1956
  %v1973 = vmul.f32 %v1925, %v1957
  %v1974 = vmul.f32 %v1926, %v1958
  %v1975 = vmul.f32 %v1927, %v1959
  %v1976 = vmul.f32 %v1928, %v1960
  %v1977 = vmul.f32 %v1929, %v1961
  %v1978 = vmul.f32 %v1930, %v1962
  %v1980 = vlaneseq
  %v1981 = vshrl.u32 %v1980, 7
  %v1982 = vsub.s32 0, %v1981
  %v1983 = vrot.slane %v1601, %v1982
  %v1985 = vmul.f32 %v1963, %v1983
  %v1986 = vmul.f32 %v1964, %v1983
  %v1987 = vmul.f32 %v1965, %v1983
  %v1988 = vmul.f32 %v1966, %v1983
  %v1989 = vmul.f32 %v1967, %v1983
  %v1990 = vmul.f32 %v1968, %v1983
  %v1991 = vmul.f32 %v1969, %v1983
  %v1992 = vmul.f32 %v1970, %v1983
  %v1993 = vmul.f32 %v1971, %v1983
  %v1994 = vmul.f32 %v1972, %v1983
  %v1995 = vmul.f32 %v1973, %v1983
  %v1996 = vmul.f32 %v1974, %v1983
  %v1997 = vmul.f32 %v1975, %v1983
  %v1998 = vmul.f32 %v1976, %v1983
  %v1999 = vmul.f32 %v1977, %v1983
  %v2000 = vmul.f32 %v1978, %v1983
  %v2002 = vlaneseq
  %v2003 = vshrl.u32 %v2002, 7
  %v2004 = vsub.s32 0, %v2003
  %v2005 = vrot.slane %v1602, %v2004
  %v2007 = vadd.f32 %v1985, %v2005
  %v2008 = vadd.f32 %v1986, %v2005
  %v2009 = vadd.f32 %v1987, %v2005
  %v2010 = vadd.f32 %v1988, %v2005
  %v2011 = vadd.f32 %v1989, %v2005
  %v2012 = vadd.f32 %v1990, %v2005
  %v2013 = vadd.f32 %v1991, %v2005
  %v2014 = vadd.f32 %v1992, %v2005
  %v2015 = vadd.f32 %v1993, %v2005
  %v2016 = vadd.f32 %v1994, %v2005
  %v2017 = vadd.f32 %v1995, %v2005
  %v2018 = vadd.f32 %v1996, %v2005
  %v2019 = vadd.f32 %v1997, %v2005
  %v2020 = vadd.f32 %v1998, %v2005
  %v2021 = vadd.f32 %v1999, %v2005
  %v2022 = vadd.f32 %v2000, %v2005
  %v2023 = vmax.f32 %v2007, 0.0
  %v2024 = vmax.f32 %v2008, 0.0
  %v2025 = vmax.f32 %v2009, 0.0
  %v2026 = vmax.f32 %v2010, 0.0
  %v2027 = vmax.f32 %v2011, 0.0
  %v2028 = vmax.f32 %v2012, 0.0
  %v2029 = vmax.f32 %v2013, 0.0
  %v2030 = vmax.f32 %v2014, 0.0
  %v2031 = vmax.f32 %v2015, 0.0
  %v2032 = vmax.f32 %v2016, 0.0
  %v2033 = vmax.f32 %v2017, 0.0
  %v2034 = vmax.f32 %v2018, 0.0
  %v2035 = vmax.f32 %v2019, 0.0
  %v2036 = vmax.f32 %v2020, 0.0
  %v2037 = vmax.f32 %v2021, 0.0
  %v2038 = vmax.f32 %v2022, 0.0
  %v2039 = vmul.f32 %v2023, %v1508
  %v2040 = vmul.f32 %v2024, %v1513
  %v2041 = vmul.f32 %v2025, %v1518
  %v2042 = vmul.f32 %v2026, %v1523
  %v2043 = vmul.f32 %v2027, %v1528
  %v2044 = vmul.f32 %v2028, %v1533
  %v2045 = vmul.f32 %v2029, %v1538
  %v2046 = vmul.f32 %v2030, %v1543
  %v2047 = vmul.f32 %v2031, %v1548
  %v2048 = vmul.f32 %v2032, %v1553
  %v2049 = vmul.f32 %v2033, %v1558
  %v2050 = vmul.f32 %v2034, %v1563
  %v2051 = vmul.f32 %v2035, %v1568
  %v2052 = vmul.f32 %v2036, %v1573
  %v2053 = vmul.f32 %v2037, %v1578
  %v2054 = vmul.f32 %v2038, %v1583
  %v2055 = vld [vmem:[%s1] sm:$0xff]
  %v2056 = vld [vmem:[%s1 + $0x8] sm:$0xff]
  %v2057 = vld [vmem:[%s1 + $0x10] sm:$0xff]
  %v2058 = vld [vmem:[%s1 + $0x18] sm:$0xff]
  %v2059 = vld [vmem:[%s1 + $0x20] sm:$0xff]
  %v2060 = vld [vmem:[%s1 + $0x28] sm:$0xff]
  %v2061 = vld [vmem:[%s1 + $0x30] sm:$0xff]
  %v2062 = vld [vmem:[%s1 + $0x38] sm:$0xff]
  %v2063 = vld [vmem:[%s1 + $0x40] sm:$0xff]
  %v2064 = vld [vmem:[%s1 + $0x48] sm:$0xff]
  %v2065 = vld [vmem:[%s1 + $0x50] sm:$0xff]
  %v2066 = vld [vmem:[%s1 + $0x58] sm:$0xff]
  %v2067 = vld [vmem:[%s1 + $0x60] sm:$0xff]
  %v2068 = vld [vmem:[%s1 + $0x68] sm:$0xff]
  %v2069 = vld [vmem:[%s1 + $0x70] sm:$0xff]
  %v2070 = vld [vmem:[%s1 + $0x78] sm:$0xff]
  %v2071 = vadd.f32 %v2039, %v2055
  %v2072 = vadd.f32 %v2040, %v2056
  %v2073 = vadd.f32 %v2041, %v2057
  %v2074 = vadd.f32 %v2042, %v2058
  %v2075 = vadd.f32 %v2043, %v2059
  %v2076 = vadd.f32 %v2044, %v2060
  %v2077 = vadd.f32 %v2045, %v2061
  %v2078 = vadd.f32 %v2046, %v2062
  %v2079 = vadd.f32 %v2047, %v2063
  %v2080 = vadd.f32 %v2048, %v2064
  %v2081 = vadd.f32 %v2049, %v2065
  %v2082 = vadd.f32 %v2050, %v2066
  %v2083 = vadd.f32 %v2051, %v2067
  %v2084 = vadd.f32 %v2052, %v2068
  %v2085 = vadd.f32 %v2053, %v2069
  %v2086 = vadd.f32 %v2054, %v2070
  %2087 = vst [vmem:[%s12] sm:$0xff] %v2071
  %2088 = vst [vmem:[%s12 + $0x8] sm:$0xff] %v2072
  %2089 = vst [vmem:[%s12 + $0x10] sm:$0xff] %v2073
  %2090 = vst [vmem:[%s12 + $0x18] sm:$0xff] %v2074
  %2091 = vst [vmem:[%s12 + $0x20] sm:$0xff] %v2075
  %2092 = vst [vmem:[%s12 + $0x28] sm:$0xff] %v2076
  %2093 = vst [vmem:[%s12 + $0x30] sm:$0xff] %v2077
  %2094 = vst [vmem:[%s12 + $0x38] sm:$0xff] %v2078
  %2095 = vst [vmem:[%s12 + $0x40] sm:$0xff] %v2079
  %2096 = vst [vmem:[%s12 + $0x48] sm:$0xff] %v2080
  %2097 = vst [vmem:[%s12 + $0x50] sm:$0xff] %v2081
  %2098 = vst [vmem:[%s12 + $0x58] sm:$0xff] %v2082
  %2099 = vst [vmem:[%s12 + $0x60] sm:$0xff] %v2083
  %2100 = vst [vmem:[%s12 + $0x68] sm:$0xff] %v2084
  %2101 = vst [vmem:[%s12 + $0x70] sm:$0xff] %v2085
  %2102 = vst [vmem:[%s12 + $0x78] sm:$0xff] %v2086
  // Predicated region
  $region50: #{signnet_gnn_forward.15} parent=0 // pred_check
    _
  $region51: #{signnet_gnn_forward.15} parent=0 // pred_check_branch
    %2104 = sbr.rel (0) target = $region53
  $region52: #{signnet_gnn_forward.15} parent=0 // pred_region
    _
  $region53: #{signnet_gnn_forward.15} parent=0 // pred_fallthru
    _
  // Predicated region
  $region54: #{signnet_gnn_forward.15} parent=0 // pred_check
    _
  $region55: #{signnet_gnn_forward.15} parent=0 // pred_check_branch
    %2106 = sbr.rel (0) target = $region57
  $region56: #{signnet_gnn_forward.15} parent=0 // pred_region
    _
  $region57: #{signnet_gnn_forward.15} parent=0 // pred_fallthru
    _

// kernel: signnet_gnn_forward.17
$region0: #{signnet_gnn_forward.17}
  #allocation0 [shape = 'u32[]', space=smem, size = 0x4, offset = 0x4, fixed_abs, tag = 'smem constant byte address 0x4 - core index']
  #allocation1 [shape = 'u32[144,128]{1,0:T(1,128)}', space=vmem, size = 0x12000, scoped, tag = 'internal scratch']
  %s0 = inlined_call_operand.vmem [shape: f32[128,128], index: 0, kind: input, shape index: {}]
  %s1 = inlined_call_operand.vmem [shape: f32[128,128], index: 1, kind: input, shape index: {}]
  %s2 = inlined_call_operand.vmem [shape: f32[128,1], index: 2, kind: input, shape index: {}]
  %s3 = inlined_call_operand.vmem [shape: f32[128,1], index: 3, kind: input, shape index: {}]
  %s4 = inlined_call_operand.vmem [shape: bf16[128,128], index: 4, kind: input, shape index: {}]
  %s5 = inlined_call_operand.vmem [shape: f32[1,128], index: 5, kind: input, shape index: {}]
  %s6 = inlined_call_operand.vmem [shape: f32[1,128], index: 6, kind: input, shape index: {}]
  %s7 = inlined_call_operand.vmem [shape: bf16[128,128], index: 7, kind: input, shape index: {}]
  %s8 = inlined_call_operand.vmem [shape: f32[1,128], index: 8, kind: input, shape index: {}]
  %s9 = inlined_call_operand.vmem [shape: f32[1,128], index: 9, kind: input, shape index: {}]
  %s10 = inlined_call_operand.vmem [shape: f32[1,128], index: 10, kind: input, shape index: {}]
  %s11 = inlined_call_operand.vmem [shape: f32[1,128], index: 11, kind: input, shape index: {}]
  %s12 = inlined_call_operand.vmem [shape: f32[128,128], index: 12, kind: output, shape index: {}]
  %s13 = sld [smem:[#allocation0]]
  $region58: #{signnet_gnn_forward.17} parent=0
    _
  %s15 = ssub.s32 1, %s13
  %s16 = scalar_select 0, %s15, %s13
  // Predicated region
  $region2: #{signnet_gnn_forward.17} parent=0 // pred_check
    _
  $region3: #{signnet_gnn_forward.17} parent=0 // pred_check_branch
    %18 = sbr.rel (0) target = $region5
  $region4: #{signnet_gnn_forward.17} parent=0 // pred_region
    _
  $region5: #{signnet_gnn_forward.17} parent=0 // pred_fallthru
    _
  // Predicated region
  $region6: #{signnet_gnn_forward.17} parent=0 // pred_check
    _
  $region7: #{signnet_gnn_forward.17} parent=0 // pred_check_branch
    %20 = sbr.rel (0) target = $region9
  $region8: #{signnet_gnn_forward.17} parent=0 // pred_region
    _
  $region9: #{signnet_gnn_forward.17} parent=0 // pred_fallthru
    _
  // Predicated region
  $region10: #{signnet_gnn_forward.17} parent=0 // pred_check
    _
  $region11: #{signnet_gnn_forward.17} parent=0 // pred_check_branch
    %22 = sbr.rel (0) target = $region13
  $region12: #{signnet_gnn_forward.17} parent=0 // pred_region
    _
  $region13: #{signnet_gnn_forward.17} parent=0 // pred_fallthru
    _
  // Predicated region
  $region14: #{signnet_gnn_forward.17} parent=0 // pred_check
    _
  $region15: #{signnet_gnn_forward.17} parent=0 // pred_check_branch
    %24 = sbr.rel (0) target = $region17
  $region16: #{signnet_gnn_forward.17} parent=0 // pred_region
    _
  $region17: #{signnet_gnn_forward.17} parent=0 // pred_fallthru
    _
  // Predicated region
  $region18: #{signnet_gnn_forward.17} parent=0 // pred_check
    _
  $region19: #{signnet_gnn_forward.17} parent=0 // pred_check_branch
    %26 = sbr.rel (0) target = $region21
  $region20: #{signnet_gnn_forward.17} parent=0 // pred_region
    _
  $region21: #{signnet_gnn_forward.17} parent=0 // pred_fallthru
    _
  // Predicated region
  $region22: #{signnet_gnn_forward.17} parent=0 // pred_check
    _
  $region23: #{signnet_gnn_forward.17} parent=0 // pred_check_branch
    %28 = sbr.rel (0) target = $region25
  $region24: #{signnet_gnn_forward.17} parent=0 // pred_region
    _
  $region25: #{signnet_gnn_forward.17} parent=0 // pred_fallthru
    _
  // Predicated region
  $region26: #{signnet_gnn_forward.17} parent=0 // pred_check
    _
  $region27: #{signnet_gnn_forward.17} parent=0 // pred_check_branch
    %30 = sbr.rel (0) target = $region29
  $region28: #{signnet_gnn_forward.17} parent=0 // pred_region
    _
  $region29: #{signnet_gnn_forward.17} parent=0 // pred_fallthru
    _
  // Predicated region
  $region30: #{signnet_gnn_forward.17} parent=0 // pred_check
    _
  $region31: #{signnet_gnn_forward.17} parent=0 // pred_check_branch
    %32 = sbr.rel (0) target = $region33
  $region32: #{signnet_gnn_forward.17} parent=0 // pred_region
    _
  $region33: #{signnet_gnn_forward.17} parent=0 // pred_fallthru
    _
  // Predicated region
  $region34: #{signnet_gnn_forward.17} parent=0 // pred_check
    _
  $region35: #{signnet_gnn_forward.17} parent=0 // pred_check_branch
    %34 = sbr.rel (0) target = $region37
  $region36: #{signnet_gnn_forward.17} parent=0 // pred_region
    _
  $region37: #{signnet_gnn_forward.17} parent=0 // pred_fallthru
    _
  // Predicated region
  $region38: #{signnet_gnn_forward.17} parent=0 // pred_check
    _
  $region39: #{signnet_gnn_forward.17} parent=0 // pred_check_branch
    %36 = sbr.rel (0) target = $region41
  $region40: #{signnet_gnn_forward.17} parent=0 // pred_region
    _
  $region41: #{signnet_gnn_forward.17} parent=0 // pred_fallthru
    _
  // Predicated region
  $region42: #{signnet_gnn_forward.17} parent=0 // pred_check
    _
  $region43: #{signnet_gnn_forward.17} parent=0 // pred_check_branch
    %38 = sbr.rel (0) target = $region45
  $region44: #{signnet_gnn_forward.17} parent=0 // pred_region
    _
  $region45: #{signnet_gnn_forward.17} parent=0 // pred_fallthru
    _
  // Predicated region
  $region46: #{signnet_gnn_forward.17} parent=0 // pred_check
    _
  $region47: #{signnet_gnn_forward.17} parent=0 // pred_check_branch
    %40 = sbr.rel (0) target = $region49
  $region48: #{signnet_gnn_forward.17} parent=0 // pred_region
    _
  $region49: #{signnet_gnn_forward.17} parent=0 // pred_fallthru
    _
  %v42 = vld [vmem:[%s2] sm:$0xff]
  %v43 = vld [vmem:[%s2 + $0x8] sm:$0xff]
  %v44 = vld [vmem:[%s2 + $0x10] sm:$0xff]
  %v45 = vld [vmem:[%s2 + $0x18] sm:$0xff]
  %v46 = vld [vmem:[%s2 + $0x20] sm:$0xff]
  %v47 = vld [vmem:[%s2 + $0x28] sm:$0xff]
  %v48 = vld [vmem:[%s2 + $0x30] sm:$0xff]
  %v49 = vld [vmem:[%s2 + $0x38] sm:$0xff]
  %v50 = vld [vmem:[%s2 + $0x40] sm:$0xff]
  %v51 = vld [vmem:[%s2 + $0x48] sm:$0xff]
  %v52 = vld [vmem:[%s2 + $0x50] sm:$0xff]
  %v53 = vld [vmem:[%s2 + $0x58] sm:$0xff]
  %v54 = vld [vmem:[%s2 + $0x60] sm:$0xff]
  %v55 = vld [vmem:[%s2 + $0x68] sm:$0xff]
  %v56 = vld [vmem:[%s2 + $0x70] sm:$0xff]
  %v57 = vld [vmem:[%s2 + $0x78] sm:$0xff]
  %v58 = vld [vmem:[%s3] sm:$0xff]
  %v59 = vld [vmem:[%s3 + $0x8] sm:$0xff]
  %v60 = vld [vmem:[%s3 + $0x10] sm:$0xff]
  %v61 = vld [vmem:[%s3 + $0x18] sm:$0xff]
  %v62 = vld [vmem:[%s3 + $0x20] sm:$0xff]
  %v63 = vld [vmem:[%s3 + $0x28] sm:$0xff]
  %v64 = vld [vmem:[%s3 + $0x30] sm:$0xff]
  %v65 = vld [vmem:[%s3 + $0x38] sm:$0xff]
  %v66 = vld [vmem:[%s3 + $0x40] sm:$0xff]
  %v67 = vld [vmem:[%s3 + $0x48] sm:$0xff]
  %v68 = vld [vmem:[%s3 + $0x50] sm:$0xff]
  %v69 = vld [vmem:[%s3 + $0x58] sm:$0xff]
  %v70 = vld [vmem:[%s3 + $0x60] sm:$0xff]
  %v71 = vld [vmem:[%s3 + $0x68] sm:$0xff]
  %v72 = vld [vmem:[%s3 + $0x70] sm:$0xff]
  %v73 = vld [vmem:[%s3 + $0x78] sm:$0xff]
  %vm74 = vcmask 7168
  %v75 = vsel %vm74, %v42, 0.0
  %v76 = vsel %vm74, %v43, 0.0
  %v77 = vadd.f32 %v75, %v76
  %v78 = vsel %vm74, %v44, 0.0
  %v79 = vadd.f32 %v77, %v78
  %v80 = vsel %vm74, %v45, 0.0
  %v81 = vadd.f32 %v79, %v80
  %v82 = vsel %vm74, %v46, 0.0
  %v83 = vadd.f32 %v81, %v82
  %v84 = vsel %vm74, %v47, 0.0
  %v85 = vadd.f32 %v83, %v84
  %v86 = vsel %vm74, %v48, 0.0
  %v87 = vadd.f32 %v85, %v86
  %v88 = vsel %vm74, %v49, 0.0
  %v89 = vadd.f32 %v87, %v88
  %v90 = vsel %vm74, %v50, 0.0
  %v91 = vadd.f32 %v89, %v90
  %v92 = vsel %vm74, %v51, 0.0
  %v93 = vadd.f32 %v91, %v92
  %v94 = vsel %vm74, %v52, 0.0
  %v95 = vadd.f32 %v93, %v94
  %v96 = vsel %vm74, %v53, 0.0
  %v97 = vadd.f32 %v95, %v96
  %v98 = vsel %vm74, %v54, 0.0
  %v99 = vadd.f32 %v97, %v98
  %v100 = vsel %vm74, %v55, 0.0
  %v101 = vadd.f32 %v99, %v100
  %v102 = vsel %vm74, %v56, 0.0
  %v103 = vadd.f32 %v101, %v102
  %v104 = vsel %vm74, %v57, 0.0
  %v105 = vadd.f32 %v103, %v104
  %v106 = vrot.slane %v105, 4
  %v107 = vadd.f32 %v105, %v106
  %v108 = vrot.slane %v107, 2
  %v109 = vadd.f32 %v107, %v108
  %v110 = vrot.slane %v109, 1
  %v111 = vadd.f32 %v109, %v110
  %v112 = vmax.f32 %v111, 1.0
  %v113 = vrcp.pop %v112
  %v114 = vmul.f32 1.0, %v113
  %v115 = vsel %vm74, %v58, 0.0
  %v116 = vsel %vm74, %v59, 0.0
  %v117 = vadd.f32 %v115, %v116
  %v118 = vsel %vm74, %v60, 0.0
  %v119 = vadd.f32 %v117, %v118
  %v120 = vsel %vm74, %v61, 0.0
  %v121 = vadd.f32 %v119, %v120
  %v122 = vsel %vm74, %v62, 0.0
  %v123 = vadd.f32 %v121, %v122
  %v124 = vsel %vm74, %v63, 0.0
  %v125 = vadd.f32 %v123, %v124
  %v126 = vsel %vm74, %v64, 0.0
  %v127 = vadd.f32 %v125, %v126
  %v128 = vsel %vm74, %v65, 0.0
  %v129 = vadd.f32 %v127, %v128
  %v130 = vsel %vm74, %v66, 0.0
  %v131 = vadd.f32 %v129, %v130
  %v132 = vsel %vm74, %v67, 0.0
  %v133 = vadd.f32 %v131, %v132
  %v134 = vsel %vm74, %v68, 0.0
  %v135 = vadd.f32 %v133, %v134
  %v136 = vsel %vm74, %v69, 0.0
  %v137 = vadd.f32 %v135, %v136
  %v138 = vsel %vm74, %v70, 0.0
  %v139 = vadd.f32 %v137, %v138
  %v140 = vsel %vm74, %v71, 0.0
  %v141 = vadd.f32 %v139, %v140
  %v142 = vsel %vm74, %v72, 0.0
  %v143 = vadd.f32 %v141, %v142
  %v144 = vsel %vm74, %v73, 0.0
  %v145 = vadd.f32 %v143, %v144
  %v146 = vrot.slane %v145, 4
  %v147 = vadd.f32 %v145, %v146
  %v148 = vrot.slane %v147, 2
  %v149 = vadd.f32 %v147, %v148
  %v150 = vrot.slane %v149, 1
  %v151 = vadd.f32 %v149, %v150
  %v152 = vmax.f32 %v151, 1.0
  %v153 = vrcp.pop %v152
  %v154 = vmul.f32 1.0, %v153
  %v155 = vld [vmem:[%s0] sm:$0xff]
  %v156 = vld [vmem:[%s0 + $0x8] sm:$0xff]
  %v157 = vld [vmem:[%s0 + $0x10] sm:$0xff]
  %v158 = vld [vmem:[%s0 + $0x18] sm:$0xff]
  %v159 = vld [vmem:[%s0 + $0x20] sm:$0xff]
  %v160 = vld [vmem:[%s0 + $0x28] sm:$0xff]
  %v161 = vld [vmem:[%s0 + $0x30] sm:$0xff]
  %v162 = vld [vmem:[%s0 + $0x38] sm:$0xff]
  %v163 = vld [vmem:[%s0 + $0x40] sm:$0xff]
  %v164 = vld [vmem:[%s0 + $0x48] sm:$0xff]
  %v165 = vld [vmem:[%s0 + $0x50] sm:$0xff]
  %v166 = vld [vmem:[%s0 + $0x58] sm:$0xff]
  %v167 = vld [vmem:[%s0 + $0x60] sm:$0xff]
  %v168 = vld [vmem:[%s0 + $0x68] sm:$0xff]
  %v169 = vld [vmem:[%s0 + $0x70] sm:$0xff]
  %v170 = vld [vmem:[%s0 + $0x78] sm:$0xff]
  %v171 = vpack.c.bf16 %v156, %v155
  %v172 = vpack.c.bf16 %v158, %v157
  %v173 = vpack.c.bf16 %v160, %v159
  %v174 = vpack.c.bf16 %v162, %v161
  %v175 = vpack.c.bf16 %v164, %v163
  %v176 = vpack.c.bf16 %v166, %v165
  %v177 = vpack.c.bf16 %v168, %v167
  %v178 = vpack.c.bf16 %v170, %v169
  %v179 = vld [vmem:[%s4] sm:$0xf]
  %v180 = vld [vmem:[%s4 + $0x4] sm:$0xf]
  %v181 = vld [vmem:[%s4 + $0x8] sm:$0xf]
  %v182 = vld [vmem:[%s4 + $0xc] sm:$0xf]
  %v183 = vld [vmem:[%s4 + $0x10] sm:$0xf]
  %v184 = vld [vmem:[%s4 + $0x14] sm:$0xf]
  %v185 = vld [vmem:[%s4 + $0x18] sm:$0xf]
  %v186 = vld [vmem:[%s4 + $0x1c] sm:$0xf]
  %v187 = vld [vmem:[%s4 + $0x20] sm:$0xf]
  %v188 = vld [vmem:[%s4 + $0x24] sm:$0xf]
  %v189 = vld [vmem:[%s4 + $0x28] sm:$0xf]
  %v190 = vld [vmem:[%s4 + $0x2c] sm:$0xf]
  %v191 = vld [vmem:[%s4 + $0x30] sm:$0xf]
  %v192 = vld [vmem:[%s4 + $0x34] sm:$0xf]
  %v193 = vld [vmem:[%s4 + $0x38] sm:$0xf]
  %v194 = vld [vmem:[%s4 + $0x3c] sm:$0xf]
  %v211 = vunpack.c.l.b16 %v179
  %v212 = vunpack.c.l.b16 %v180
  %v213 = vunpack.c.l.b16 %v181
  %v214 = vunpack.c.l.b16 %v182
  %v215 = vunpack.c.l.b16 %v183
  %v216 = vunpack.c.l.b16 %v184
  %v217 = vunpack.c.l.b16 %v185
  %v218 = vunpack.c.l.b16 %v186
  %v219 = vunpack.c.l.b16 %v187
  %v220 = vunpack.c.l.b16 %v188
  %v221 = vunpack.c.l.b16 %v189
  %v222 = vunpack.c.l.b16 %v190
  %v223 = vunpack.c.l.b16 %v191
  %v224 = vunpack.c.l.b16 %v192
  %v225 = vunpack.c.l.b16 %v193
  %v226 = vunpack.c.l.b16 %v194
  %v227 = vpack.c.b16 %v212, %v211
  %v228 = vpack.c.b16 %v214, %v213
  %v229 = vpack.c.b16 %v216, %v215
  %v230 = vpack.c.b16 %v218, %v217
  %v231 = vpack.c.b16 %v220, %v219
  %v232 = vpack.c.b16 %v222, %v221
  %v233 = vpack.c.b16 %v224, %v223
  %v234 = vpack.c.b16 %v226, %v225
  %243 = vmatprep.subr.bf16.mxu0 0
  %244 = vmatpush1.bf16.msra.mxu0 %v227
  %245 = vmatprep.subr.bf16.mxu0 0
  %246 = vmatpush1.bf16.msra.mxu0 %v228
  %247 = vmatprep.subr.bf16.mxu0 0
  %248 = vmatpush1.bf16.msra.mxu0 %v229
  %249 = vmatprep.subr.bf16.mxu0 0
  %250 = vmatpush1.bf16.msra.mxu0 %v230
  %251 = vmatprep.subr.bf16.mxu0 0
  %252 = vmatpush1.bf16.msra.mxu0 %v231
  %253 = vmatprep.subr.bf16.mxu0 0
  %254 = vmatpush1.bf16.msra.mxu0 %v232
  %255 = vmatprep.subr.bf16.mxu0 0
  %256 = vmatpush1.bf16.msra.mxu0 %v233
  %257 = vmatprep.subr.bf16.mxu0 0
  %258 = vmatpush1.bf16.msra.mxu0 %v234
  %259 = vmatprep.subr.bf16.mxu0 0
  %260 = vmatpush1.bf16.msra.mxu0 0
  %261 = vmatprep.subr.bf16.mxu0 0
  %262 = vmatpush1.bf16.msra.mxu0 0
  %263 = vmatprep.subr.bf16.mxu0 0
  %264 = vmatpush1.bf16.msra.mxu0 0
  %265 = vmatprep.subr.bf16.mxu0 0
  %266 = vmatpush1.bf16.msra.mxu0 0
  %267 = vmatprep.subr.bf16.mxu0 0
  %268 = vmatpush1.bf16.msra.mxu0 0
  %269 = vmatprep.subr.bf16.mxu0 0
  %270 = vmatpush1.bf16.msra.mxu0 0
  %271 = vmatprep.subr.bf16.mxu0 0
  %272 = vmatpush1.bf16.msra.mxu0 0
  %273 = vmatprep.subr.bf16.mxu0 0
  %274 = vmatpush1.bf16.msra.mxu0 0
  %275 = vmatprep.mubr.bf16.mxu0 0
  %276 = vmatmul.mubr.bf16.gmra.mrb[0].mxu0 %v171
  %v277 = vpop.f32.mrb[0].mxu0
  %v278 = vadd.f32 0.0, %v277
  %v279 = vpop.f32.mrb[0].mxu0
  %v280 = vpop.f32.mrb[0].mxu0
  %v281 = vadd.f32 0.0, %v280
  %v282 = vpop.f32.mrb[0].mxu0
  %283 = vmatprep.mubr.bf16.mxu0 0
  %284 = vmatmul.mubr.bf16.gmra.mrb[0].mxu0 %v172
  %v285 = vpop.f32.mrb[0].mxu0
  %v286 = vadd.f32 0.0, %v285
  %v287 = vpop.f32.mrb[0].mxu0
  %v288 = vpop.f32.mrb[0].mxu0
  %v289 = vadd.f32 0.0, %v288
  %v290 = vpop.f32.mrb[0].mxu0
  %291 = vmatprep.mubr.bf16.mxu0 0
  %292 = vmatmul.mubr.bf16.gmra.mrb[0].mxu0 %v173
  %v293 = vpop.f32.mrb[0].mxu0
  %v294 = vadd.f32 0.0, %v293
  %v295 = vpop.f32.mrb[0].mxu0
  %v296 = vpop.f32.mrb[0].mxu0
  %v297 = vadd.f32 0.0, %v296
  %v298 = vpop.f32.mrb[0].mxu0
  %299 = vmatprep.mubr.bf16.mxu0 0
  %300 = vmatmul.mubr.bf16.gmra.mrb[0].mxu0 %v174
  %v301 = vpop.f32.mrb[0].mxu0
  %v302 = vadd.f32 0.0, %v301
  %v303 = vpop.f32.mrb[0].mxu0
  %v304 = vpop.f32.mrb[0].mxu0
  %v305 = vadd.f32 0.0, %v304
  %v306 = vpop.f32.mrb[0].mxu0
  %307 = vmatprep.mubr.bf16.mxu0 0
  %308 = vmatmul.mubr.bf16.gmra.mrb[0].mxu0 %v175
  %v309 = vpop.f32.mrb[0].mxu0
  %v310 = vadd.f32 0.0, %v309
  %v311 = vpop.f32.mrb[0].mxu0
  %v312 = vpop.f32.mrb[0].mxu0
  %v313 = vadd.f32 0.0, %v312
  %v314 = vpop.f32.mrb[0].mxu0
  %315 = vmatprep.mubr.bf16.mxu0 0
  %316 = vmatmul.mubr.bf16.gmra.mrb[0].mxu0 %v176
  %v317 = vpop.f32.mrb[0].mxu0
  %v318 = vadd.f32 0.0, %v317
  %v319 = vpop.f32.mrb[0].mxu0
  %v320 = vpop.f32.mrb[0].mxu0
  %v321 = vadd.f32 0.0, %v320
  %v322 = vpop.f32.mrb[0].mxu0
  %323 = vmatprep.mubr.bf16.mxu0 0
  %324 = vmatmul.mubr.bf16.gmra.mrb[0].mxu0 %v177
  %v325 = vpop.f32.mrb[0].mxu0
  %v326 = vadd.f32 0.0, %v325
  %v327 = vpop.f32.mrb[0].mxu0
  %v328 = vpop.f32.mrb[0].mxu0
  %v329 = vadd.f32 0.0, %v328
  %v330 = vpop.f32.mrb[0].mxu0
  %331 = vmatprep.mubr.bf16.mxu0 0
  %332 = vmatmul.mubr.bf16.gmra.mrb[0].mxu0 %v178
  %v333 = vpop.f32.mrb[0].mxu0
  %v334 = vadd.f32 0.0, %v333
  %v335 = vpop.f32.mrb[0].mxu0
  %v336 = vpop.f32.mrb[0].mxu0
  %v337 = vadd.f32 0.0, %v336
  %v338 = vpop.f32.mrb[0].mxu0
  %339 = vdwg.mxu0
  %v340 = vld [vmem:[%s5] sm:$0x1]
  %v341 = vld [vmem:[%s6] sm:$0x1]
  %343 = vset.pattern.permute.xlu0 0
  %344 = vperm.xlu0 %343, %v42
  %v345 = vpop.permute.xlu0 %344
  %348 = vset.pattern.permute.xlu0 0
  %349 = vperm.xlu0 %348, %v43
  %v350 = vpop.permute.xlu0 %349
  %353 = vset.pattern.permute.xlu0 0
  %354 = vperm.xlu0 %353, %v44
  %v355 = vpop.permute.xlu0 %354
  %358 = vset.pattern.permute.xlu0 0
  %359 = vperm.xlu0 %358, %v45
  %v360 = vpop.permute.xlu0 %359
  %363 = vset.pattern.permute.xlu0 0
  %364 = vperm.xlu0 %363, %v46
  %v365 = vpop.permute.xlu0 %364
  %368 = vset.pattern.permute.xlu0 0
  %369 = vperm.xlu0 %368, %v47
  %v370 = vpop.permute.xlu0 %369
  %373 = vset.pattern.permute.xlu0 0
  %374 = vperm.xlu0 %373, %v48
  %v375 = vpop.permute.xlu0 %374
  %378 = vset.pattern.permute.xlu0 0
  %379 = vperm.xlu0 %378, %v49
  %v380 = vpop.permute.xlu0 %379
  %383 = vset.pattern.permute.xlu0 0
  %384 = vperm.xlu0 %383, %v50
  %v385 = vpop.permute.xlu0 %384
  %388 = vset.pattern.permute.xlu0 0
  %389 = vperm.xlu0 %388, %v51
  %v390 = vpop.permute.xlu0 %389
  %393 = vset.pattern.permute.xlu0 0
  %394 = vperm.xlu0 %393, %v52
  %v395 = vpop.permute.xlu0 %394
  %398 = vset.pattern.permute.xlu0 0
  %399 = vperm.xlu0 %398, %v53
  %v400 = vpop.permute.xlu0 %399
  %403 = vset.pattern.permute.xlu0 0
  %404 = vperm.xlu0 %403, %v54
  %v405 = vpop.permute.xlu0 %404
  %408 = vset.pattern.permute.xlu0 0
  %409 = vperm.xlu0 %408, %v55
  %v410 = vpop.permute.xlu0 %409
  %413 = vset.pattern.permute.xlu0 0
  %414 = vperm.xlu0 %413, %v56
  %v415 = vpop.permute.xlu0 %414
  %418 = vset.pattern.permute.xlu0 0
  %419 = vperm.xlu0 %418, %v57
  %v420 = vpop.permute.xlu0 %419
  %v422 = vmul.f32 %v278, %v345
  %v423 = vmul.f32 %v281, %v350
  %v424 = vmul.f32 %v286, %v355
  %v425 = vmul.f32 %v289, %v360
  %v426 = vmul.f32 %v294, %v365
  %v427 = vmul.f32 %v297, %v370
  %v428 = vmul.f32 %v302, %v375
  %v429 = vmul.f32 %v305, %v380
  %v430 = vmul.f32 %v310, %v385
  %v431 = vmul.f32 %v313, %v390
  %v432 = vmul.f32 %v318, %v395
  %v433 = vmul.f32 %v321, %v400
  %v434 = vmul.f32 %v326, %v405
  %v435 = vmul.f32 %v329, %v410
  %v436 = vmul.f32 %v334, %v415
  %v437 = vmul.f32 %v337, %v420
  %v438 = vadd.f32 %v422, %v423
  %v439 = vadd.f32 %v438, %v424
  %v440 = vadd.f32 %v439, %v425
  %v441 = vadd.f32 %v440, %v426
  %v442 = vadd.f32 %v441, %v427
  %v443 = vadd.f32 %v442, %v428
  %v444 = vadd.f32 %v443, %v429
  %v445 = vadd.f32 %v444, %v430
  %v446 = vadd.f32 %v445, %v431
  %v447 = vadd.f32 %v446, %v432
  %v448 = vadd.f32 %v447, %v433
  %v449 = vadd.f32 %v448, %v434
  %v450 = vadd.f32 %v449, %v435
  %v451 = vadd.f32 %v450, %v436
  %v452 = vadd.f32 %v451, %v437
  %v453 = vrot.slane %v452, 4
  %v454 = vadd.f32 %v452, %v453
  %v455 = vrot.slane %v454, 2
  %v456 = vadd.f32 %v454, %v455
  %v457 = vrot.slane %v456, 1
  %v458 = vadd.f32 %v456, %v457
  %460 = vset.pattern.permute.xlu0 0
  %461 = vperm.xlu0 %460, %v114
  %v462 = vpop.permute.xlu0 %461
  %v464 = vmul.f32 %v458, %v462
  %v465 = vsub.f32 %v278, %v464
  %v466 = vsub.f32 %v281, %v464
  %v467 = vsub.f32 %v286, %v464
  %v468 = vsub.f32 %v289, %v464
  %v469 = vsub.f32 %v294, %v464
  %v470 = vsub.f32 %v297, %v464
  %v471 = vsub.f32 %v302, %v464
  %v472 = vsub.f32 %v305, %v464
  %v473 = vsub.f32 %v310, %v464
  %v474 = vsub.f32 %v313, %v464
  %v475 = vsub.f32 %v318, %v464
  %v476 = vsub.f32 %v321, %v464
  %v477 = vsub.f32 %v326, %v464
  %v478 = vsub.f32 %v329, %v464
  %v479 = vsub.f32 %v334, %v464
  %v480 = vsub.f32 %v337, %v464
  %v481 = vmul.f32 %v465, %v345
  %v482 = vmul.f32 %v466, %v350
  %v483 = vmul.f32 %v467, %v355
  %v484 = vmul.f32 %v468, %v360
  %v485 = vmul.f32 %v469, %v365
  %v486 = vmul.f32 %v470, %v370
  %v487 = vmul.f32 %v471, %v375
  %v488 = vmul.f32 %v472, %v380
  %v489 = vmul.f32 %v473, %v385
  %v490 = vmul.f32 %v474, %v390
  %v491 = vmul.f32 %v475, %v395
  %v492 = vmul.f32 %v476, %v400
  %v493 = vmul.f32 %v477, %v405
  %v494 = vmul.f32 %v478, %v410
  %v495 = vmul.f32 %v479, %v415
  %v496 = vmul.f32 %v480, %v420
  %v497 = vmul.f32 %v481, %v481
  %v498 = vmul.f32 %v482, %v482
  %v499 = vmul.f32 %v483, %v483
  %v500 = vmul.f32 %v484, %v484
  %v501 = vmul.f32 %v485, %v485
  %v502 = vmul.f32 %v486, %v486
  %v503 = vmul.f32 %v487, %v487
  %v504 = vmul.f32 %v488, %v488
  %v505 = vmul.f32 %v489, %v489
  %v506 = vmul.f32 %v490, %v490
  %v507 = vmul.f32 %v491, %v491
  %v508 = vmul.f32 %v492, %v492
  %v509 = vmul.f32 %v493, %v493
  %v510 = vmul.f32 %v494, %v494
  %v511 = vmul.f32 %v495, %v495
  %v512 = vmul.f32 %v496, %v496
  %v513 = vadd.f32 %v497, %v498
  %v514 = vadd.f32 %v513, %v499
  %v515 = vadd.f32 %v514, %v500
  %v516 = vadd.f32 %v515, %v501
  %v517 = vadd.f32 %v516, %v502
  %v518 = vadd.f32 %v517, %v503
  %v519 = vadd.f32 %v518, %v504
  %v520 = vadd.f32 %v519, %v505
  %v521 = vadd.f32 %v520, %v506
  %v522 = vadd.f32 %v521, %v507
  %v523 = vadd.f32 %v522, %v508
  %v524 = vadd.f32 %v523, %v509
  %v525 = vadd.f32 %v524, %v510
  %v526 = vadd.f32 %v525, %v511
  %v527 = vadd.f32 %v526, %v512
  %v528 = vrot.slane %v527, 4
  %v529 = vadd.f32 %v527, %v528
  %v530 = vrot.slane %v529, 2
  %v531 = vadd.f32 %v529, %v530
  %v532 = vrot.slane %v531, 1
  %v533 = vadd.f32 %v531, %v532
  %v534 = vmul.f32 %v533, %v462
  %536 = vset.pattern.permute.xlu0 0
  %537 = vperm.xlu0 %536, %v58
  %v538 = vpop.permute.xlu0 %537
  %541 = vset.pattern.permute.xlu0 0
  %542 = vperm.xlu0 %541, %v59
  %v543 = vpop.permute.xlu0 %542
  %546 = vset.pattern.permute.xlu0 0
  %547 = vperm.xlu0 %546, %v60
  %v548 = vpop.permute.xlu0 %547
  %551 = vset.pattern.permute.xlu0 0
  %552 = vperm.xlu0 %551, %v61
  %v553 = vpop.permute.xlu0 %552
  %556 = vset.pattern.permute.xlu0 0
  %557 = vperm.xlu0 %556, %v62
  %v558 = vpop.permute.xlu0 %557
  %561 = vset.pattern.permute.xlu0 0
  %562 = vperm.xlu0 %561, %v63
  %v563 = vpop.permute.xlu0 %562
  %566 = vset.pattern.permute.xlu0 0
  %567 = vperm.xlu0 %566, %v64
  %v568 = vpop.permute.xlu0 %567
  %571 = vset.pattern.permute.xlu0 0
  %572 = vperm.xlu0 %571, %v65
  %v573 = vpop.permute.xlu0 %572
  %576 = vset.pattern.permute.xlu0 0
  %577 = vperm.xlu0 %576, %v66
  %v578 = vpop.permute.xlu0 %577
  %581 = vset.pattern.permute.xlu0 0
  %582 = vperm.xlu0 %581, %v67
  %v583 = vpop.permute.xlu0 %582
  %586 = vset.pattern.permute.xlu0 0
  %587 = vperm.xlu0 %586, %v68
  %v588 = vpop.permute.xlu0 %587
  %591 = vset.pattern.permute.xlu0 0
  %592 = vperm.xlu0 %591, %v69
  %v593 = vpop.permute.xlu0 %592
  %596 = vset.pattern.permute.xlu0 0
  %597 = vperm.xlu0 %596, %v70
  %v598 = vpop.permute.xlu0 %597
  %601 = vset.pattern.permute.xlu0 0
  %602 = vperm.xlu0 %601, %v71
  %v603 = vpop.permute.xlu0 %602
  %606 = vset.pattern.permute.xlu0 0
  %607 = vperm.xlu0 %606, %v72
  %v608 = vpop.permute.xlu0 %607
  %611 = vset.pattern.permute.xlu0 0
  %612 = vperm.xlu0 %611, %v73
  %v613 = vpop.permute.xlu0 %612
  %v615 = vmul.f32 %v278, %v538
  %v616 = vmul.f32 %v281, %v543
  %v617 = vmul.f32 %v286, %v548
  %v618 = vmul.f32 %v289, %v553
  %v619 = vmul.f32 %v294, %v558
  %v620 = vmul.f32 %v297, %v563
  %v621 = vmul.f32 %v302, %v568
  %v622 = vmul.f32 %v305, %v573
  %v623 = vmul.f32 %v310, %v578
  %v624 = vmul.f32 %v313, %v583
  %v625 = vmul.f32 %v318, %v588
  %v626 = vmul.f32 %v321, %v593
  %v627 = vmul.f32 %v326, %v598
  %v628 = vmul.f32 %v329, %v603
  %v629 = vmul.f32 %v334, %v608
  %v630 = vmul.f32 %v337, %v613
  %v631 = vadd.f32 %v615, %v616
  %v632 = vadd.f32 %v631, %v617
  %v633 = vadd.f32 %v632, %v618
  %v634 = vadd.f32 %v633, %v619
  %v635 = vadd.f32 %v634, %v620
  %v636 = vadd.f32 %v635, %v621
  %v637 = vadd.f32 %v636, %v622
  %v638 = vadd.f32 %v637, %v623
  %v639 = vadd.f32 %v638, %v624
  %v640 = vadd.f32 %v639, %v625
  %v641 = vadd.f32 %v640, %v626
  %v642 = vadd.f32 %v641, %v627
  %v643 = vadd.f32 %v642, %v628
  %v644 = vadd.f32 %v643, %v629
  %v645 = vadd.f32 %v644, %v630
  %v646 = vrot.slane %v645, 4
  %v647 = vadd.f32 %v645, %v646
  %v648 = vrot.slane %v647, 2
  %v649 = vadd.f32 %v647, %v648
  %v650 = vrot.slane %v649, 1
  %v651 = vadd.f32 %v649, %v650
  %653 = vset.pattern.permute.xlu0 0
  %654 = vperm.xlu0 %653, %v154
  %v655 = vpop.permute.xlu0 %654
  %v657 = vmul.f32 %v651, %v655
  %v658 = vsub.f32 %v278, %v657
  %v659 = vsub.f32 %v281, %v657
  %v660 = vsub.f32 %v286, %v657
  %v661 = vsub.f32 %v289, %v657
  %v662 = vsub.f32 %v294, %v657
  %v663 = vsub.f32 %v297, %v657
  %v664 = vsub.f32 %v302, %v657
  %v665 = vsub.f32 %v305, %v657
  %v666 = vsub.f32 %v310, %v657
  %v667 = vsub.f32 %v313, %v657
  %v668 = vsub.f32 %v318, %v657
  %v669 = vsub.f32 %v321, %v657
  %v670 = vsub.f32 %v326, %v657
  %v671 = vsub.f32 %v329, %v657
  %v672 = vsub.f32 %v334, %v657
  %v673 = vsub.f32 %v337, %v657
  %v674 = vmul.f32 %v658, %v538
  %v675 = vmul.f32 %v659, %v543
  %v676 = vmul.f32 %v660, %v548
  %v677 = vmul.f32 %v661, %v553
  %v678 = vmul.f32 %v662, %v558
  %v679 = vmul.f32 %v663, %v563
  %v680 = vmul.f32 %v664, %v568
  %v681 = vmul.f32 %v665, %v573
  %v682 = vmul.f32 %v666, %v578
  %v683 = vmul.f32 %v667, %v583
  %v684 = vmul.f32 %v668, %v588
  %v685 = vmul.f32 %v669, %v593
  %v686 = vmul.f32 %v670, %v598
  %v687 = vmul.f32 %v671, %v603
  %v688 = vmul.f32 %v672, %v608
  %v689 = vmul.f32 %v673, %v613
  %v690 = vmul.f32 %v674, %v674
  %v691 = vmul.f32 %v675, %v675
  %v692 = vmul.f32 %v676, %v676
  %v693 = vmul.f32 %v677, %v677
  %v694 = vmul.f32 %v678, %v678
  %v695 = vmul.f32 %v679, %v679
  %v696 = vmul.f32 %v680, %v680
  %v697 = vmul.f32 %v681, %v681
  %v698 = vmul.f32 %v682, %v682
  %v699 = vmul.f32 %v683, %v683
  %v700 = vmul.f32 %v684, %v684
  %v701 = vmul.f32 %v685, %v685
  %v702 = vmul.f32 %v686, %v686
  %v703 = vmul.f32 %v687, %v687
  %v704 = vmul.f32 %v688, %v688
  %v705 = vmul.f32 %v689, %v689
  %v706 = vadd.f32 %v690, %v691
  %v707 = vadd.f32 %v706, %v692
  %v708 = vadd.f32 %v707, %v693
  %v709 = vadd.f32 %v708, %v694
  %v710 = vadd.f32 %v709, %v695
  %v711 = vadd.f32 %v710, %v696
  %v712 = vadd.f32 %v711, %v697
  %v713 = vadd.f32 %v712, %v698
  %v714 = vadd.f32 %v713, %v699
  %v715 = vadd.f32 %v714, %v700
  %v716 = vadd.f32 %v715, %v701
  %v717 = vadd.f32 %v716, %v702
  %v718 = vadd.f32 %v717, %v703
  %v719 = vadd.f32 %v718, %v704
  %v720 = vadd.f32 %v719, %v705
  %v721 = vrot.slane %v720, 4
  %v722 = vadd.f32 %v720, %v721
  %v723 = vrot.slane %v722, 2
  %v724 = vadd.f32 %v722, %v723
  %v725 = vrot.slane %v724, 1
  %v726 = vadd.f32 %v724, %v725
  %v727 = vmul.f32 %v726, %v655
  %v728 = vmul.f32 %v345, %v464
  %v729 = vmul.f32 %v350, %v464
  %v730 = vmul.f32 %v355, %v464
  %v731 = vmul.f32 %v360, %v464
  %v732 = vmul.f32 %v365, %v464
  %v733 = vmul.f32 %v370, %v464
  %v734 = vmul.f32 %v375, %v464
  %v735 = vmul.f32 %v380, %v464
  %v736 = vmul.f32 %v385, %v464
  %v737 = vmul.f32 %v390, %v464
  %v738 = vmul.f32 %v395, %v464
  %v739 = vmul.f32 %v400, %v464
  %v740 = vmul.f32 %v405, %v464
  %v741 = vmul.f32 %v410, %v464
  %v742 = vmul.f32 %v415, %v464
  %v743 = vmul.f32 %v420, %v464
  %v744 = vmul.f32 %v538, %v657
  %v745 = vmul.f32 %v543, %v657
  %v746 = vmul.f32 %v548, %v657
  %v747 = vmul.f32 %v553, %v657
  %v748 = vmul.f32 %v558, %v657
  %v749 = vmul.f32 %v563, %v657
  %v750 = vmul.f32 %v568, %v657
  %v751 = vmul.f32 %v573, %v657
  %v752 = vmul.f32 %v578, %v657
  %v753 = vmul.f32 %v583, %v657
  %v754 = vmul.f32 %v588, %v657
  %v755 = vmul.f32 %v593, %v657
  %v756 = vmul.f32 %v598, %v657
  %v757 = vmul.f32 %v603, %v657
  %v758 = vmul.f32 %v608, %v657
  %v759 = vmul.f32 %v613, %v657
  %v760 = vadd.f32 %v728, %v744
  %v761 = vadd.f32 %v729, %v745
  %v762 = vadd.f32 %v730, %v746
  %v763 = vadd.f32 %v731, %v747
  %v764 = vadd.f32 %v732, %v748
  %v765 = vadd.f32 %v733, %v749
  %v766 = vadd.f32 %v734, %v750
  %v767 = vadd.f32 %v735, %v751
  %v768 = vadd.f32 %v736, %v752
  %v769 = vadd.f32 %v737, %v753
  %v770 = vadd.f32 %v738, %v754
  %v771 = vadd.f32 %v739, %v755
  %v772 = vadd.f32 %v740, %v756
  %v773 = vadd.f32 %v741, %v757
  %v774 = vadd.f32 %v742, %v758
  %v775 = vadd.f32 %v743, %v759
  %v776 = vmul.f32 %v345, %v534
  %v777 = vmul.f32 %v350, %v534
  %v778 = vmul.f32 %v355, %v534
  %v779 = vmul.f32 %v360, %v534
  %v780 = vmul.f32 %v365, %v534
  %v781 = vmul.f32 %v370, %v534
  %v782 = vmul.f32 %v375, %v534
  %v783 = vmul.f32 %v380, %v534
  %v784 = vmul.f32 %v385, %v534
  %v785 = vmul.f32 %v390, %v534
  %v786 = vmul.f32 %v395, %v534
  %v787 = vmul.f32 %v400, %v534
  %v788 = vmul.f32 %v405, %v534
  %v789 = vmul.f32 %v410, %v534
  %v790 = vmul.f32 %v415, %v534
  %v791 = vmul.f32 %v420, %v534
  %v792 = vmul.f32 %v538, %v727
  %v793 = vmul.f32 %v543, %v727
  %v794 = vmul.f32 %v548, %v727
  %v795 = vmul.f32 %v553, %v727
  %v796 = vmul.f32 %v558, %v727
  %v797 = vmul.f32 %v563, %v727
  %v798 = vmul.f32 %v568, %v727
  %v799 = vmul.f32 %v573, %v727
  %v800 = vmul.f32 %v578, %v727
  %v801 = vmul.f32 %v583, %v727
  %v802 = vmul.f32 %v588, %v727
  %v803 = vmul.f32 %v593, %v727
  %v804 = vmul.f32 %v598, %v727
  %v805 = vmul.f32 %v603, %v727
  %v806 = vmul.f32 %v608, %v727
  %v807 = vmul.f32 %v613, %v727
  %v808 = vadd.f32 %v776, %v792
  %v809 = vadd.f32 %v777, %v793
  %v810 = vadd.f32 %v778, %v794
  %v811 = vadd.f32 %v779, %v795
  %v812 = vadd.f32 %v780, %v796
  %v813 = vadd.f32 %v781, %v797
  %v814 = vadd.f32 %v782, %v798
  %v815 = vadd.f32 %v783, %v799
  %v816 = vadd.f32 %v784, %v800
  %v817 = vadd.f32 %v785, %v801
  %v818 = vadd.f32 %v786, %v802
  %v819 = vadd.f32 %v787, %v803
  %v820 = vadd.f32 %v788, %v804
  %v821 = vadd.f32 %v789, %v805
  %v822 = vadd.f32 %v790, %v806
  %v823 = vadd.f32 %v791, %v807
  %v824 = vsub.f32 %v278, %v760
  %v825 = vsub.f32 %v281, %v761
  %v826 = vsub.f32 %v286, %v762
  %v827 = vsub.f32 %v289, %v763
  %v828 = vsub.f32 %v294, %v764
  %v829 = vsub.f32 %v297, %v765
  %v830 = vsub.f32 %v302, %v766
  %v831 = vsub.f32 %v305, %v767
  %v832 = vsub.f32 %v310, %v768
  %v833 = vsub.f32 %v313, %v769
  %v834 = vsub.f32 %v318, %v770
  %v835 = vsub.f32 %v321, %v771
  %v836 = vsub.f32 %v326, %v772
  %v837 = vsub.f32 %v329, %v773
  %v838 = vsub.f32 %v334, %v774
  %v839 = vsub.f32 %v337, %v775
  %v840 = vadd.f32 %v808, 1e-05
  %v841 = vadd.f32 %v809, 1e-05
  %v842 = vadd.f32 %v810, 1e-05
  %v843 = vadd.f32 %v811, 1e-05
  %v844 = vadd.f32 %v812, 1e-05
  %v845 = vadd.f32 %v813, 1e-05
  %v846 = vadd.f32 %v814, 1e-05
  %v847 = vadd.f32 %v815, 1e-05
  %v848 = vadd.f32 %v816, 1e-05
  %v849 = vadd.f32 %v817, 1e-05
  %v850 = vadd.f32 %v818, 1e-05
  %v851 = vadd.f32 %v819, 1e-05
  %v852 = vadd.f32 %v820, 1e-05
  %v853 = vadd.f32 %v821, 1e-05
  %v854 = vadd.f32 %v822, 1e-05
  %v855 = vadd.f32 %v823, 1e-05
  %v856 = vrsqrt.pop %v840
  %v857 = vrsqrt.pop %v841
  %v858 = vrsqrt.pop %v842
  %v859 = vrsqrt.pop %v843
  %v860 = vrsqrt.pop %v844
  %v861 = vrsqrt.pop %v845
  %v862 = vrsqrt.pop %v846
  %v863 = vrsqrt.pop %v847
  %v864 = vrsqrt.pop %v848
  %v865 = vrsqrt.pop %v849
  %v866 = vrsqrt.pop %v850
  %v867 = vrsqrt.pop %v851
  %v868 = vrsqrt.pop %v852
  %v869 = vrsqrt.pop %v853
  %v870 = vrsqrt.pop %v854
  %v871 = vrsqrt.pop %v855
  %v872 = vmul.f32 %v824, %v856
  %v873 = vmul.f32 %v825, %v857
  %v874 = vmul.f32 %v826, %v858
  %v875 = vmul.f32 %v827, %v859
  %v876 = vmul.f32 %v828, %v860
  %v877 = vmul.f32 %v829, %v861
  %v878 = vmul.f32 %v830, %v862
  %v879 = vmul.f32 %v831, %v863
  %v880 = vmul.f32 %v832, %v864
  %v881 = vmul.f32 %v833, %v865
  %v882 = vmul.f32 %v834, %v866
  %v883 = vmul.f32 %v835, %v867
  %v884 = vmul.f32 %v836, %v868
  %v885 = vmul.f32 %v837, %v869
  %v886 = vmul.f32 %v838, %v870
  %v887 = vmul.f32 %v839, %v871
  %v889 = vlaneseq
  %v890 = vshrl.u32 %v889, 7
  %v891 = vsub.s32 0, %v890
  %v892 = vrot.slane %v340, %v891
  %v894 = vmul.f32 %v872, %v892
  %v895 = vmul.f32 %v873, %v892
  %v896 = vmul.f32 %v874, %v892
  %v897 = vmul.f32 %v875, %v892
  %v898 = vmul.f32 %v876, %v892
  %v899 = vmul.f32 %v877, %v892
  %v900 = vmul.f32 %v878, %v892
  %v901 = vmul.f32 %v879, %v892
  %v902 = vmul.f32 %v880, %v892
  %v903 = vmul.f32 %v881, %v892
  %v904 = vmul.f32 %v882, %v892
  %v905 = vmul.f32 %v883, %v892
  %v906 = vmul.f32 %v884, %v892
  %v907 = vmul.f32 %v885, %v892
  %v908 = vmul.f32 %v886, %v892
  %v909 = vmul.f32 %v887, %v892
  %v911 = vlaneseq
  %v912 = vshrl.u32 %v911, 7
  %v913 = vsub.s32 0, %v912
  %v914 = vrot.slane %v341, %v913
  %v916 = vadd.f32 %v894, %v914
  %v917 = vadd.f32 %v895, %v914
  %v918 = vadd.f32 %v896, %v914
  %v919 = vadd.f32 %v897, %v914
  %v920 = vadd.f32 %v898, %v914
  %v921 = vadd.f32 %v899, %v914
  %v922 = vadd.f32 %v900, %v914
  %v923 = vadd.f32 %v901, %v914
  %v924 = vadd.f32 %v902, %v914
  %v925 = vadd.f32 %v903, %v914
  %v926 = vadd.f32 %v904, %v914
  %v927 = vadd.f32 %v905, %v914
  %v928 = vadd.f32 %v906, %v914
  %v929 = vadd.f32 %v907, %v914
  %v930 = vadd.f32 %v908, %v914
  %v931 = vadd.f32 %v909, %v914
  %v932 = vmax.f32 %v916, 0.0
  %v933 = vmax.f32 %v917, 0.0
  %v934 = vmax.f32 %v918, 0.0
  %v935 = vmax.f32 %v919, 0.0
  %v936 = vmax.f32 %v920, 0.0
  %v937 = vmax.f32 %v921, 0.0
  %v938 = vmax.f32 %v922, 0.0
  %v939 = vmax.f32 %v923, 0.0
  %v940 = vmax.f32 %v924, 0.0
  %v941 = vmax.f32 %v925, 0.0
  %v942 = vmax.f32 %v926, 0.0
  %v943 = vmax.f32 %v927, 0.0
  %v944 = vmax.f32 %v928, 0.0
  %v945 = vmax.f32 %v929, 0.0
  %v946 = vmax.f32 %v930, 0.0
  %v947 = vmax.f32 %v931, 0.0
  %v948 = vpack.c.bf16 %v933, %v932
  %v949 = vpack.c.bf16 %v935, %v934
  %v950 = vpack.c.bf16 %v937, %v936
  %v951 = vpack.c.bf16 %v939, %v938
  %v952 = vpack.c.bf16 %v941, %v940
  %v953 = vpack.c.bf16 %v943, %v942
  %v954 = vpack.c.bf16 %v945, %v944
  %v955 = vpack.c.bf16 %v947, %v946
  %v956 = vld [vmem:[%s7] sm:$0xf]
  %v957 = vld [vmem:[%s7 + $0x4] sm:$0xf]
  %v958 = vld [vmem:[%s7 + $0x8] sm:$0xf]
  %v959 = vld [vmem:[%s7 + $0xc] sm:$0xf]
  %v960 = vld [vmem:[%s7 + $0x10] sm:$0xf]
  %v961 = vld [vmem:[%s7 + $0x14] sm:$0xf]
  %v962 = vld [vmem:[%s7 + $0x18] sm:$0xf]
  %v963 = vld [vmem:[%s7 + $0x1c] sm:$0xf]
  %v964 = vld [vmem:[%s7 + $0x20] sm:$0xf]
  %v965 = vld [vmem:[%s7 + $0x24] sm:$0xf]
  %v966 = vld [vmem:[%s7 + $0x28] sm:$0xf]
  %v967 = vld [vmem:[%s7 + $0x2c] sm:$0xf]
  %v968 = vld [vmem:[%s7 + $0x30] sm:$0xf]
  %v969 = vld [vmem:[%s7 + $0x34] sm:$0xf]
  %v970 = vld [vmem:[%s7 + $0x38] sm:$0xf]
  %v971 = vld [vmem:[%s7 + $0x3c] sm:$0xf]
  %v988 = vunpack.c.l.b16 %v956
  %v989 = vunpack.c.l.b16 %v957
  %v990 = vunpack.c.l.b16 %v958
  %v991 = vunpack.c.l.b16 %v959
  %v992 = vunpack.c.l.b16 %v960
  %v993 = vunpack.c.l.b16 %v961
  %v994 = vunpack.c.l.b16 %v962
  %v995 = vunpack.c.l.b16 %v963
  %v996 = vunpack.c.l.b16 %v964
  %v997 = vunpack.c.l.b16 %v965
  %v998 = vunpack.c.l.b16 %v966
  %v999 = vunpack.c.l.b16 %v967
  %v1000 = vunpack.c.l.b16 %v968
  %v1001 = vunpack.c.l.b16 %v969
  %v1002 = vunpack.c.l.b16 %v970
  %v1003 = vunpack.c.l.b16 %v971
  %v1004 = vpack.c.b16 %v989, %v988
  %v1005 = vpack.c.b16 %v991, %v990
  %v1006 = vpack.c.b16 %v993, %v992
  %v1007 = vpack.c.b16 %v995, %v994
  %v1008 = vpack.c.b16 %v997, %v996
  %v1009 = vpack.c.b16 %v999, %v998
  %v1010 = vpack.c.b16 %v1001, %v1000
  %v1011 = vpack.c.b16 %v1003, %v1002
  %1020 = vmatprep.subr.bf16.mxu0 0
  %1021 = vmatpush1.bf16.msra.mxu0 %v1004
  %1022 = vmatprep.subr.bf16.mxu0 0
  %1023 = vmatpush1.bf16.msra.mxu0 %v1005
  %1024 = vmatprep.subr.bf16.mxu0 0
  %1025 = vmatpush1.bf16.msra.mxu0 %v1006
  %1026 = vmatprep.subr.bf16.mxu0 0
  %1027 = vmatpush1.bf16.msra.mxu0 %v1007
  %1028 = vmatprep.subr.bf16.mxu0 0
  %1029 = vmatpush1.bf16.msra.mxu0 %v1008
  %1030 = vmatprep.subr.bf16.mxu0 0
  %1031 = vmatpush1.bf16.msra.mxu0 %v1009
  %1032 = vmatprep.subr.bf16.mxu0 0
  %1033 = vmatpush1.bf16.msra.mxu0 %v1010
  %1034 = vmatprep.subr.bf16.mxu0 0
  %1035 = vmatpush1.bf16.msra.mxu0 %v1011
  %1036 = vmatprep.subr.bf16.mxu0 0
  %1037 = vmatpush1.bf16.msra.mxu0 0
  %1038 = vmatprep.subr.bf16.mxu0 0
  %1039 = vmatpush1.bf16.msra.mxu0 0
  %1040 = vmatprep.subr.bf16.mxu0 0
  %1041 = vmatpush1.bf16.msra.mxu0 0
  %1042 = vmatprep.subr.bf16.mxu0 0
  %1043 = vmatpush1.bf16.msra.mxu0 0
  %1044 = vmatprep.subr.bf16.mxu0 0
  %1045 = vmatpush1.bf16.msra.mxu0 0
  %1046 = vmatprep.subr.bf16.mxu0 0
  %1047 = vmatpush1.bf16.msra.mxu0 0
  %1048 = vmatprep.subr.bf16.mxu0 0
  %1049 = vmatpush1.bf16.msra.mxu0 0
  %1050 = vmatprep.subr.bf16.mxu0 0
  %1051 = vmatpush1.bf16.msra.mxu0 0
  %1052 = vmatprep.mubr.bf16.mxu0 0
  %1053 = vmatmul.mubr.bf16.gmra.mrb[0].mxu0 %v948
  %v1054 = vpop.f32.mrb[0].mxu0
  %v1055 = vadd.f32 0.0, %v1054
  %v1056 = vpop.f32.mrb[0].mxu0
  %v1057 = vpop.f32.mrb[0].mxu0
  %v1058 = vadd.f32 0.0, %v1057
  %v1059 = vpop.f32.mrb[0].mxu0
  %1060 = vmatprep.mubr.bf16.mxu0 0
  %1061 = vmatmul.mubr.bf16.gmra.mrb[0].mxu0 %v949
  %v1062 = vpop.f32.mrb[0].mxu0
  %v1063 = vadd.f32 0.0, %v1062
  %v1064 = vpop.f32.mrb[0].mxu0
  %v1065 = vpop.f32.mrb[0].mxu0
  %v1066 = vadd.f32 0.0, %v1065
  %v1067 = vpop.f32.mrb[0].mxu0
  %1068 = vmatprep.mubr.bf16.mxu0 0
  %1069 = vmatmul.mubr.bf16.gmra.mrb[0].mxu0 %v950
  %v1070 = vpop.f32.mrb[0].mxu0
  %v1071 = vadd.f32 0.0, %v1070
  %v1072 = vpop.f32.mrb[0].mxu0
  %v1073 = vpop.f32.mrb[0].mxu0
  %v1074 = vadd.f32 0.0, %v1073
  %v1075 = vpop.f32.mrb[0].mxu0
  %1076 = vmatprep.mubr.bf16.mxu0 0
  %1077 = vmatmul.mubr.bf16.gmra.mrb[0].mxu0 %v951
  %v1078 = vpop.f32.mrb[0].mxu0
  %v1079 = vadd.f32 0.0, %v1078
  %v1080 = vpop.f32.mrb[0].mxu0
  %v1081 = vpop.f32.mrb[0].mxu0
  %v1082 = vadd.f32 0.0, %v1081
  %v1083 = vpop.f32.mrb[0].mxu0
  %1084 = vmatprep.mubr.bf16.mxu0 0
  %1085 = vmatmul.mubr.bf16.gmra.mrb[0].mxu0 %v952
  %v1086 = vpop.f32.mrb[0].mxu0
  %v1087 = vadd.f32 0.0, %v1086
  %v1088 = vpop.f32.mrb[0].mxu0
  %v1089 = vpop.f32.mrb[0].mxu0
  %v1090 = vadd.f32 0.0, %v1089
  %v1091 = vpop.f32.mrb[0].mxu0
  %1092 = vmatprep.mubr.bf16.mxu0 0
  %1093 = vmatmul.mubr.bf16.gmra.mrb[0].mxu0 %v953
  %v1094 = vpop.f32.mrb[0].mxu0
  %v1095 = vadd.f32 0.0, %v1094
  %v1096 = vpop.f32.mrb[0].mxu0
  %v1097 = vpop.f32.mrb[0].mxu0
  %v1098 = vadd.f32 0.0, %v1097
  %v1099 = vpop.f32.mrb[0].mxu0
  %1100 = vmatprep.mubr.bf16.mxu0 0
  %1101 = vmatmul.mubr.bf16.gmra.mrb[0].mxu0 %v954
  %v1102 = vpop.f32.mrb[0].mxu0
  %v1103 = vadd.f32 0.0, %v1102
  %v1104 = vpop.f32.mrb[0].mxu0
  %v1105 = vpop.f32.mrb[0].mxu0
  %v1106 = vadd.f32 0.0, %v1105
  %v1107 = vpop.f32.mrb[0].mxu0
  %1108 = vmatprep.mubr.bf16.mxu0 0
  %1109 = vmatmul.mubr.bf16.gmra.mrb[0].mxu0 %v955
  %v1110 = vpop.f32.mrb[0].mxu0
  %v1111 = vadd.f32 0.0, %v1110
  %v1112 = vpop.f32.mrb[0].mxu0
  %v1113 = vpop.f32.mrb[0].mxu0
  %v1114 = vadd.f32 0.0, %v1113
  %v1115 = vpop.f32.mrb[0].mxu0
  %1116 = vdwg.mxu0
  %v1117 = vld [vmem:[%s8] sm:$0x1]
  %v1118 = vld [vmem:[%s9] sm:$0x1]
  %v1119 = vmul.f32 %v1055, %v345
  %v1120 = vmul.f32 %v1058, %v350
  %v1121 = vmul.f32 %v1063, %v355
  %v1122 = vmul.f32 %v1066, %v360
  %v1123 = vmul.f32 %v1071, %v365
  %v1124 = vmul.f32 %v1074, %v370
  %v1125 = vmul.f32 %v1079, %v375
  %v1126 = vmul.f32 %v1082, %v380
  %v1127 = vmul.f32 %v1087, %v385
  %v1128 = vmul.f32 %v1090, %v390
  %v1129 = vmul.f32 %v1095, %v395
  %v1130 = vmul.f32 %v1098, %v400
  %v1131 = vmul.f32 %v1103, %v405
  %v1132 = vmul.f32 %v1106, %v410
  %v1133 = vmul.f32 %v1111, %v415
  %v1134 = vmul.f32 %v1114, %v420
  %v1135 = vadd.f32 %v1119, %v1120
  %v1136 = vadd.f32 %v1135, %v1121
  %v1137 = vadd.f32 %v1136, %v1122
  %v1138 = vadd.f32 %v1137, %v1123
  %v1139 = vadd.f32 %v1138, %v1124
  %v1140 = vadd.f32 %v1139, %v1125
  %v1141 = vadd.f32 %v1140, %v1126
  %v1142 = vadd.f32 %v1141, %v1127
  %v1143 = vadd.f32 %v1142, %v1128
  %v1144 = vadd.f32 %v1143, %v1129
  %v1145 = vadd.f32 %v1144, %v1130
  %v1146 = vadd.f32 %v1145, %v1131
  %v1147 = vadd.f32 %v1146, %v1132
  %v1148 = vadd.f32 %v1147, %v1133
  %v1149 = vadd.f32 %v1148, %v1134
  %v1150 = vrot.slane %v1149, 4
  %v1151 = vadd.f32 %v1149, %v1150
  %v1152 = vrot.slane %v1151, 2
  %v1153 = vadd.f32 %v1151, %v1152
  %v1154 = vrot.slane %v1153, 1
  %v1155 = vadd.f32 %v1153, %v1154
  %v1156 = vmul.f32 %v1155, %v462
  %v1157 = vsub.f32 %v1055, %v1156
  %v1158 = vsub.f32 %v1058, %v1156
  %v1159 = vsub.f32 %v1063, %v1156
  %v1160 = vsub.f32 %v1066, %v1156
  %v1161 = vsub.f32 %v1071, %v1156
  %v1162 = vsub.f32 %v1074, %v1156
  %v1163 = vsub.f32 %v1079, %v1156
  %v1164 = vsub.f32 %v1082, %v1156
  %v1165 = vsub.f32 %v1087, %v1156
  %v1166 = vsub.f32 %v1090, %v1156
  %v1167 = vsub.f32 %v1095, %v1156
  %v1168 = vsub.f32 %v1098, %v1156
  %v1169 = vsub.f32 %v1103, %v1156
  %v1170 = vsub.f32 %v1106, %v1156
  %v1171 = vsub.f32 %v1111, %v1156
  %v1172 = vsub.f32 %v1114, %v1156
  %v1173 = vmul.f32 %v1157, %v345
  %v1174 = vmul.f32 %v1158, %v350
  %v1175 = vmul.f32 %v1159, %v355
  %v1176 = vmul.f32 %v1160, %v360
  %v1177 = vmul.f32 %v1161, %v365
  %v1178 = vmul.f32 %v1162, %v370
  %v1179 = vmul.f32 %v1163, %v375
  %v1180 = vmul.f32 %v1164, %v380
  %v1181 = vmul.f32 %v1165, %v385
  %v1182 = vmul.f32 %v1166, %v390
  %v1183 = vmul.f32 %v1167, %v395
  %v1184 = vmul.f32 %v1168, %v400
  %v1185 = vmul.f32 %v1169, %v405
  %v1186 = vmul.f32 %v1170, %v410
  %v1187 = vmul.f32 %v1171, %v415
  %v1188 = vmul.f32 %v1172, %v420
  %v1189 = vmul.f32 %v1173, %v1173
  %v1190 = vmul.f32 %v1174, %v1174
  %v1191 = vmul.f32 %v1175, %v1175
  %v1192 = vmul.f32 %v1176, %v1176
  %v1193 = vmul.f32 %v1177, %v1177
  %v1194 = vmul.f32 %v1178, %v1178
  %v1195 = vmul.f32 %v1179, %v1179
  %v1196 = vmul.f32 %v1180, %v1180
  %v1197 = vmul.f32 %v1181, %v1181
  %v1198 = vmul.f32 %v1182, %v1182
  %v1199 = vmul.f32 %v1183, %v1183
  %v1200 = vmul.f32 %v1184, %v1184
  %v1201 = vmul.f32 %v1185, %v1185
  %v1202 = vmul.f32 %v1186, %v1186
  %v1203 = vmul.f32 %v1187, %v1187
  %v1204 = vmul.f32 %v1188, %v1188
  %v1205 = vadd.f32 %v1189, %v1190
  %v1206 = vadd.f32 %v1205, %v1191
  %v1207 = vadd.f32 %v1206, %v1192
  %v1208 = vadd.f32 %v1207, %v1193
  %v1209 = vadd.f32 %v1208, %v1194
  %v1210 = vadd.f32 %v1209, %v1195
  %v1211 = vadd.f32 %v1210, %v1196
  %v1212 = vadd.f32 %v1211, %v1197
  %v1213 = vadd.f32 %v1212, %v1198
  %v1214 = vadd.f32 %v1213, %v1199
  %v1215 = vadd.f32 %v1214, %v1200
  %v1216 = vadd.f32 %v1215, %v1201
  %v1217 = vadd.f32 %v1216, %v1202
  %v1218 = vadd.f32 %v1217, %v1203
  %v1219 = vadd.f32 %v1218, %v1204
  %v1220 = vrot.slane %v1219, 4
  %v1221 = vadd.f32 %v1219, %v1220
  %v1222 = vrot.slane %v1221, 2
  %v1223 = vadd.f32 %v1221, %v1222
  %v1224 = vrot.slane %v1223, 1
  %v1225 = vadd.f32 %v1223, %v1224
  %v1226 = vmul.f32 %v1225, %v462
  %v1227 = vmul.f32 %v1055, %v538
  %v1228 = vmul.f32 %v1058, %v543
  %v1229 = vmul.f32 %v1063, %v548
  %v1230 = vmul.f32 %v1066, %v553
  %v1231 = vmul.f32 %v1071, %v558
  %v1232 = vmul.f32 %v1074, %v563
  %v1233 = vmul.f32 %v1079, %v568
  %v1234 = vmul.f32 %v1082, %v573
  %v1235 = vmul.f32 %v1087, %v578
  %v1236 = vmul.f32 %v1090, %v583
  %v1237 = vmul.f32 %v1095, %v588
  %v1238 = vmul.f32 %v1098, %v593
  %v1239 = vmul.f32 %v1103, %v598
  %v1240 = vmul.f32 %v1106, %v603
  %v1241 = vmul.f32 %v1111, %v608
  %v1242 = vmul.f32 %v1114, %v613
  %v1243 = vadd.f32 %v1227, %v1228
  %v1244 = vadd.f32 %v1243, %v1229
  %v1245 = vadd.f32 %v1244, %v1230
  %v1246 = vadd.f32 %v1245, %v1231
  %v1247 = vadd.f32 %v1246, %v1232
  %v1248 = vadd.f32 %v1247, %v1233
  %v1249 = vadd.f32 %v1248, %v1234
  %v1250 = vadd.f32 %v1249, %v1235
  %v1251 = vadd.f32 %v1250, %v1236
  %v1252 = vadd.f32 %v1251, %v1237
  %v1253 = vadd.f32 %v1252, %v1238
  %v1254 = vadd.f32 %v1253, %v1239
  %v1255 = vadd.f32 %v1254, %v1240
  %v1256 = vadd.f32 %v1255, %v1241
  %v1257 = vadd.f32 %v1256, %v1242
  %v1258 = vrot.slane %v1257, 4
  %v1259 = vadd.f32 %v1257, %v1258
  %v1260 = vrot.slane %v1259, 2
  %v1261 = vadd.f32 %v1259, %v1260
  %v1262 = vrot.slane %v1261, 1
  %v1263 = vadd.f32 %v1261, %v1262
  %v1264 = vmul.f32 %v1263, %v655
  %v1265 = vsub.f32 %v1055, %v1264
  %v1266 = vsub.f32 %v1058, %v1264
  %v1267 = vsub.f32 %v1063, %v1264
  %v1268 = vsub.f32 %v1066, %v1264
  %v1269 = vsub.f32 %v1071, %v1264
  %v1270 = vsub.f32 %v1074, %v1264
  %v1271 = vsub.f32 %v1079, %v1264
  %v1272 = vsub.f32 %v1082, %v1264
  %v1273 = vsub.f32 %v1087, %v1264
  %v1274 = vsub.f32 %v1090, %v1264
  %v1275 = vsub.f32 %v1095, %v1264
  %v1276 = vsub.f32 %v1098, %v1264
  %v1277 = vsub.f32 %v1103, %v1264
  %v1278 = vsub.f32 %v1106, %v1264
  %v1279 = vsub.f32 %v1111, %v1264
  %v1280 = vsub.f32 %v1114, %v1264
  %v1281 = vmul.f32 %v1265, %v538
  %v1282 = vmul.f32 %v1266, %v543
  %v1283 = vmul.f32 %v1267, %v548
  %v1284 = vmul.f32 %v1268, %v553
  %v1285 = vmul.f32 %v1269, %v558
  %v1286 = vmul.f32 %v1270, %v563
  %v1287 = vmul.f32 %v1271, %v568
  %v1288 = vmul.f32 %v1272, %v573
  %v1289 = vmul.f32 %v1273, %v578
  %v1290 = vmul.f32 %v1274, %v583
  %v1291 = vmul.f32 %v1275, %v588
  %v1292 = vmul.f32 %v1276, %v593
  %v1293 = vmul.f32 %v1277, %v598
  %v1294 = vmul.f32 %v1278, %v603
  %v1295 = vmul.f32 %v1279, %v608
  %v1296 = vmul.f32 %v1280, %v613
  %v1297 = vmul.f32 %v1281, %v1281
  %v1298 = vmul.f32 %v1282, %v1282
  %v1299 = vmul.f32 %v1283, %v1283
  %v1300 = vmul.f32 %v1284, %v1284
  %v1301 = vmul.f32 %v1285, %v1285
  %v1302 = vmul.f32 %v1286, %v1286
  %v1303 = vmul.f32 %v1287, %v1287
  %v1304 = vmul.f32 %v1288, %v1288
  %v1305 = vmul.f32 %v1289, %v1289
  %v1306 = vmul.f32 %v1290, %v1290
  %v1307 = vmul.f32 %v1291, %v1291
  %v1308 = vmul.f32 %v1292, %v1292
  %v1309 = vmul.f32 %v1293, %v1293
  %v1310 = vmul.f32 %v1294, %v1294
  %v1311 = vmul.f32 %v1295, %v1295
  %v1312 = vmul.f32 %v1296, %v1296
  %v1313 = vadd.f32 %v1297, %v1298
  %v1314 = vadd.f32 %v1313, %v1299
  %v1315 = vadd.f32 %v1314, %v1300
  %v1316 = vadd.f32 %v1315, %v1301
  %v1317 = vadd.f32 %v1316, %v1302
  %v1318 = vadd.f32 %v1317, %v1303
  %v1319 = vadd.f32 %v1318, %v1304
  %v1320 = vadd.f32 %v1319, %v1305
  %v1321 = vadd.f32 %v1320, %v1306
  %v1322 = vadd.f32 %v1321, %v1307
  %v1323 = vadd.f32 %v1322, %v1308
  %v1324 = vadd.f32 %v1323, %v1309
  %v1325 = vadd.f32 %v1324, %v1310
  %v1326 = vadd.f32 %v1325, %v1311
  %v1327 = vadd.f32 %v1326, %v1312
  %v1328 = vrot.slane %v1327, 4
  %v1329 = vadd.f32 %v1327, %v1328
  %v1330 = vrot.slane %v1329, 2
  %v1331 = vadd.f32 %v1329, %v1330
  %v1332 = vrot.slane %v1331, 1
  %v1333 = vadd.f32 %v1331, %v1332
  %v1334 = vmul.f32 %v1333, %v655
  %v1335 = vmul.f32 %v345, %v1156
  %v1336 = vmul.f32 %v350, %v1156
  %v1337 = vmul.f32 %v355, %v1156
  %v1338 = vmul.f32 %v360, %v1156
  %v1339 = vmul.f32 %v365, %v1156
  %v1340 = vmul.f32 %v370, %v1156
  %v1341 = vmul.f32 %v375, %v1156
  %v1342 = vmul.f32 %v380, %v1156
  %v1343 = vmul.f32 %v385, %v1156
  %v1344 = vmul.f32 %v390, %v1156
  %v1345 = vmul.f32 %v395, %v1156
  %v1346 = vmul.f32 %v400, %v1156
  %v1347 = vmul.f32 %v405, %v1156
  %v1348 = vmul.f32 %v410, %v1156
  %v1349 = vmul.f32 %v415, %v1156
  %v1350 = vmul.f32 %v420, %v1156
  %v1351 = vmul.f32 %v538, %v1264
  %v1352 = vmul.f32 %v543, %v1264
  %v1353 = vmul.f32 %v548, %v1264
  %v1354 = vmul.f32 %v553, %v1264
  %v1355 = vmul.f32 %v558, %v1264
  %v1356 = vmul.f32 %v563, %v1264
  %v1357 = vmul.f32 %v568, %v1264
  %v1358 = vmul.f32 %v573, %v1264
  %v1359 = vmul.f32 %v578, %v1264
  %v1360 = vmul.f32 %v583, %v1264
  %v1361 = vmul.f32 %v588, %v1264
  %v1362 = vmul.f32 %v593, %v1264
  %v1363 = vmul.f32 %v598, %v1264
  %v1364 = vmul.f32 %v603, %v1264
  %v1365 = vmul.f32 %v608, %v1264
  %v1366 = vmul.f32 %v613, %v1264
  %v1367 = vadd.f32 %v1335, %v1351
  %v1368 = vadd.f32 %v1336, %v1352
  %v1369 = vadd.f32 %v1337, %v1353
  %v1370 = vadd.f32 %v1338, %v1354
  %v1371 = vadd.f32 %v1339, %v1355
  %v1372 = vadd.f32 %v1340, %v1356
  %v1373 = vadd.f32 %v1341, %v1357
  %v1374 = vadd.f32 %v1342, %v1358
  %v1375 = vadd.f32 %v1343, %v1359
  %v1376 = vadd.f32 %v1344, %v1360
  %v1377 = vadd.f32 %v1345, %v1361
  %v1378 = vadd.f32 %v1346, %v1362
  %v1379 = vadd.f32 %v1347, %v1363
  %v1380 = vadd.f32 %v1348, %v1364
  %v1381 = vadd.f32 %v1349, %v1365
  %v1382 = vadd.f32 %v1350, %v1366
  %v1383 = vmul.f32 %v345, %v1226
  %v1384 = vmul.f32 %v350, %v1226
  %v1385 = vmul.f32 %v355, %v1226
  %v1386 = vmul.f32 %v360, %v1226
  %v1387 = vmul.f32 %v365, %v1226
  %v1388 = vmul.f32 %v370, %v1226
  %v1389 = vmul.f32 %v375, %v1226
  %v1390 = vmul.f32 %v380, %v1226
  %v1391 = vmul.f32 %v385, %v1226
  %v1392 = vmul.f32 %v390, %v1226
  %v1393 = vmul.f32 %v395, %v1226
  %v1394 = vmul.f32 %v400, %v1226
  %v1395 = vmul.f32 %v405, %v1226
  %v1396 = vmul.f32 %v410, %v1226
  %v1397 = vmul.f32 %v415, %v1226
  %v1398 = vmul.f32 %v420, %v1226
  %v1399 = vmul.f32 %v538, %v1334
  %v1400 = vmul.f32 %v543, %v1334
  %v1401 = vmul.f32 %v548, %v1334
  %v1402 = vmul.f32 %v553, %v1334
  %v1403 = vmul.f32 %v558, %v1334
  %v1404 = vmul.f32 %v563, %v1334
  %v1405 = vmul.f32 %v568, %v1334
  %v1406 = vmul.f32 %v573, %v1334
  %v1407 = vmul.f32 %v578, %v1334
  %v1408 = vmul.f32 %v583, %v1334
  %v1409 = vmul.f32 %v588, %v1334
  %v1410 = vmul.f32 %v593, %v1334
  %v1411 = vmul.f32 %v598, %v1334
  %v1412 = vmul.f32 %v603, %v1334
  %v1413 = vmul.f32 %v608, %v1334
  %v1414 = vmul.f32 %v613, %v1334
  %v1415 = vadd.f32 %v1383, %v1399
  %v1416 = vadd.f32 %v1384, %v1400
  %v1417 = vadd.f32 %v1385, %v1401
  %v1418 = vadd.f32 %v1386, %v1402
  %v1419 = vadd.f32 %v1387, %v1403
  %v1420 = vadd.f32 %v1388, %v1404
  %v1421 = vadd.f32 %v1389, %v1405
  %v1422 = vadd.f32 %v1390, %v1406
  %v1423 = vadd.f32 %v1391, %v1407
  %v1424 = vadd.f32 %v1392, %v1408
  %v1425 = vadd.f32 %v1393, %v1409
  %v1426 = vadd.f32 %v1394, %v1410
  %v1427 = vadd.f32 %v1395, %v1411
  %v1428 = vadd.f32 %v1396, %v1412
  %v1429 = vadd.f32 %v1397, %v1413
  %v1430 = vadd.f32 %v1398, %v1414
  %v1431 = vsub.f32 %v1055, %v1367
  %v1432 = vsub.f32 %v1058, %v1368
  %v1433 = vsub.f32 %v1063, %v1369
  %v1434 = vsub.f32 %v1066, %v1370
  %v1435 = vsub.f32 %v1071, %v1371
  %v1436 = vsub.f32 %v1074, %v1372
  %v1437 = vsub.f32 %v1079, %v1373
  %v1438 = vsub.f32 %v1082, %v1374
  %v1439 = vsub.f32 %v1087, %v1375
  %v1440 = vsub.f32 %v1090, %v1376
  %v1441 = vsub.f32 %v1095, %v1377
  %v1442 = vsub.f32 %v1098, %v1378
  %v1443 = vsub.f32 %v1103, %v1379
  %v1444 = vsub.f32 %v1106, %v1380
  %v1445 = vsub.f32 %v1111, %v1381
  %v1446 = vsub.f32 %v1114, %v1382
  %v1447 = vadd.f32 %v1415, 1e-05
  %v1448 = vadd.f32 %v1416, 1e-05
  %v1449 = vadd.f32 %v1417, 1e-05
  %v1450 = vadd.f32 %v1418, 1e-05
  %v1451 = vadd.f32 %v1419, 1e-05
  %v1452 = vadd.f32 %v1420, 1e-05
  %v1453 = vadd.f32 %v1421, 1e-05
  %v1454 = vadd.f32 %v1422, 1e-05
  %v1455 = vadd.f32 %v1423, 1e-05
  %v1456 = vadd.f32 %v1424, 1e-05
  %v1457 = vadd.f32 %v1425, 1e-05
  %v1458 = vadd.f32 %v1426, 1e-05
  %v1459 = vadd.f32 %v1427, 1e-05
  %v1460 = vadd.f32 %v1428, 1e-05
  %v1461 = vadd.f32 %v1429, 1e-05
  %v1462 = vadd.f32 %v1430, 1e-05
  %v1463 = vrsqrt.pop %v1447
  %v1464 = vrsqrt.pop %v1448
  %v1465 = vrsqrt.pop %v1449
  %v1466 = vrsqrt.pop %v1450
  %v1467 = vrsqrt.pop %v1451
  %v1468 = vrsqrt.pop %v1452
  %v1469 = vrsqrt.pop %v1453
  %v1470 = vrsqrt.pop %v1454
  %v1471 = vrsqrt.pop %v1455
  %v1472 = vrsqrt.pop %v1456
  %v1473 = vrsqrt.pop %v1457
  %v1474 = vrsqrt.pop %v1458
  %v1475 = vrsqrt.pop %v1459
  %v1476 = vrsqrt.pop %v1460
  %v1477 = vrsqrt.pop %v1461
  %v1478 = vrsqrt.pop %v1462
  %v1479 = vmul.f32 %v1431, %v1463
  %v1480 = vmul.f32 %v1432, %v1464
  %v1481 = vmul.f32 %v1433, %v1465
  %v1482 = vmul.f32 %v1434, %v1466
  %v1483 = vmul.f32 %v1435, %v1467
  %v1484 = vmul.f32 %v1436, %v1468
  %v1485 = vmul.f32 %v1437, %v1469
  %v1486 = vmul.f32 %v1438, %v1470
  %v1487 = vmul.f32 %v1439, %v1471
  %v1488 = vmul.f32 %v1440, %v1472
  %v1489 = vmul.f32 %v1441, %v1473
  %v1490 = vmul.f32 %v1442, %v1474
  %v1491 = vmul.f32 %v1443, %v1475
  %v1492 = vmul.f32 %v1444, %v1476
  %v1493 = vmul.f32 %v1445, %v1477
  %v1494 = vmul.f32 %v1446, %v1478
  %v1496 = vlaneseq
  %v1497 = vshrl.u32 %v1496, 7
  %v1498 = vsub.s32 0, %v1497
  %v1499 = vrot.slane %v1117, %v1498
  %v1501 = vmul.f32 %v1479, %v1499
  %v1502 = vmul.f32 %v1480, %v1499
  %v1503 = vmul.f32 %v1481, %v1499
  %v1504 = vmul.f32 %v1482, %v1499
  %v1505 = vmul.f32 %v1483, %v1499
  %v1506 = vmul.f32 %v1484, %v1499
  %v1507 = vmul.f32 %v1485, %v1499
  %v1508 = vmul.f32 %v1486, %v1499
  %v1509 = vmul.f32 %v1487, %v1499
  %v1510 = vmul.f32 %v1488, %v1499
  %v1511 = vmul.f32 %v1489, %v1499
  %v1512 = vmul.f32 %v1490, %v1499
  %v1513 = vmul.f32 %v1491, %v1499
  %v1514 = vmul.f32 %v1492, %v1499
  %v1515 = vmul.f32 %v1493, %v1499
  %v1516 = vmul.f32 %v1494, %v1499
  %v1518 = vlaneseq
  %v1519 = vshrl.u32 %v1518, 7
  %v1520 = vsub.s32 0, %v1519
  %v1521 = vrot.slane %v1118, %v1520
  %v1523 = vadd.f32 %v1501, %v1521
  %v1524 = vadd.f32 %v1502, %v1521
  %v1525 = vadd.f32 %v1503, %v1521
  %v1526 = vadd.f32 %v1504, %v1521
  %v1527 = vadd.f32 %v1505, %v1521
  %v1528 = vadd.f32 %v1506, %v1521
  %v1529 = vadd.f32 %v1507, %v1521
  %v1530 = vadd.f32 %v1508, %v1521
  %v1531 = vadd.f32 %v1509, %v1521
  %v1532 = vadd.f32 %v1510, %v1521
  %v1533 = vadd.f32 %v1511, %v1521
  %v1534 = vadd.f32 %v1512, %v1521
  %v1535 = vadd.f32 %v1513, %v1521
  %v1536 = vadd.f32 %v1514, %v1521
  %v1537 = vadd.f32 %v1515, %v1521
  %v1538 = vadd.f32 %v1516, %v1521
  %v1539 = vmax.f32 %v1523, 0.0
  %v1540 = vmax.f32 %v1524, 0.0
  %v1541 = vmax.f32 %v1525, 0.0
  %v1542 = vmax.f32 %v1526, 0.0
  %v1543 = vmax.f32 %v1527, 0.0
  %v1544 = vmax.f32 %v1528, 0.0
  %v1545 = vmax.f32 %v1529, 0.0
  %v1546 = vmax.f32 %v1530, 0.0
  %v1547 = vmax.f32 %v1531, 0.0
  %v1548 = vmax.f32 %v1532, 0.0
  %v1549 = vmax.f32 %v1533, 0.0
  %v1550 = vmax.f32 %v1534, 0.0
  %v1551 = vmax.f32 %v1535, 0.0
  %v1552 = vmax.f32 %v1536, 0.0
  %v1553 = vmax.f32 %v1537, 0.0
  %v1554 = vmax.f32 %v1538, 0.0
  %v1555 = vadd.f32 %v42, %v58
  %v1556 = vadd.f32 %v43, %v59
  %v1557 = vadd.f32 %v44, %v60
  %v1558 = vadd.f32 %v45, %v61
  %v1559 = vadd.f32 %v46, %v62
  %v1560 = vadd.f32 %v47, %v63
  %v1561 = vadd.f32 %v48, %v64
  %v1562 = vadd.f32 %v49, %v65
  %v1563 = vadd.f32 %v50, %v66
  %v1564 = vadd.f32 %v51, %v67
  %v1565 = vadd.f32 %v52, %v68
  %v1566 = vadd.f32 %v53, %v69
  %v1567 = vadd.f32 %v54, %v70
  %v1568 = vadd.f32 %v55, %v71
  %v1569 = vadd.f32 %v56, %v72
  %v1570 = vadd.f32 %v57, %v73
  %1572 = vset.pattern.permute.xlu0 0
  %1573 = vperm.xlu0 %1572, %v1555
  %v1574 = vpop.permute.xlu0 %1573
  %1577 = vset.pattern.permute.xlu0 0
  %1578 = vperm.xlu0 %1577, %v1556
  %v1579 = vpop.permute.xlu0 %1578
  %1582 = vset.pattern.permute.xlu0 0
  %1583 = vperm.xlu0 %1582, %v1557
  %v1584 = vpop.permute.xlu0 %1583
  %1587 = vset.pattern.permute.xlu0 0
  %1588 = vperm.xlu0 %1587, %v1558
  %v1589 = vpop.permute.xlu0 %1588
  %1592 = vset.pattern.permute.xlu0 0
  %1593 = vperm.xlu0 %1592, %v1559
  %v1594 = vpop.permute.xlu0 %1593
  %1597 = vset.pattern.permute.xlu0 0
  %1598 = vperm.xlu0 %1597, %v1560
  %v1599 = vpop.permute.xlu0 %1598
  %1602 = vset.pattern.permute.xlu0 0
  %1603 = vperm.xlu0 %1602, %v1561
  %v1604 = vpop.permute.xlu0 %1603
  %1607 = vset.pattern.permute.xlu0 0
  %1608 = vperm.xlu0 %1607, %v1562
  %v1609 = vpop.permute.xlu0 %1608
  %1612 = vset.pattern.permute.xlu0 0
  %1613 = vperm.xlu0 %1612, %v1563
  %v1614 = vpop.permute.xlu0 %1613
  %1617 = vset.pattern.permute.xlu0 0
  %1618 = vperm.xlu0 %1617, %v1564
  %v1619 = vpop.permute.xlu0 %1618
  %1622 = vset.pattern.permute.xlu0 0
  %1623 = vperm.xlu0 %1622, %v1565
  %v1624 = vpop.permute.xlu0 %1623
  %1627 = vset.pattern.permute.xlu0 0
  %1628 = vperm.xlu0 %1627, %v1566
  %v1629 = vpop.permute.xlu0 %1628
  %1632 = vset.pattern.permute.xlu0 0
  %1633 = vperm.xlu0 %1632, %v1567
  %v1634 = vpop.permute.xlu0 %1633
  %1637 = vset.pattern.permute.xlu0 0
  %1638 = vperm.xlu0 %1637, %v1568
  %v1639 = vpop.permute.xlu0 %1638
  %1642 = vset.pattern.permute.xlu0 0
  %1643 = vperm.xlu0 %1642, %v1569
  %v1644 = vpop.permute.xlu0 %1643
  %1647 = vset.pattern.permute.xlu0 0
  %1648 = vperm.xlu0 %1647, %v1570
  %v1649 = vpop.permute.xlu0 %1648
  %v1651 = vmul.f32 %v1539, %v1574
  %v1652 = vmul.f32 %v1540, %v1579
  %v1653 = vmul.f32 %v1541, %v1584
  %v1654 = vmul.f32 %v1542, %v1589
  %v1655 = vmul.f32 %v1543, %v1594
  %v1656 = vmul.f32 %v1544, %v1599
  %v1657 = vmul.f32 %v1545, %v1604
  %v1658 = vmul.f32 %v1546, %v1609
  %v1659 = vmul.f32 %v1547, %v1614
  %v1660 = vmul.f32 %v1548, %v1619
  %v1661 = vmul.f32 %v1549, %v1624
  %v1662 = vmul.f32 %v1550, %v1629
  %v1663 = vmul.f32 %v1551, %v1634
  %v1664 = vmul.f32 %v1552, %v1639
  %v1665 = vmul.f32 %v1553, %v1644
  %v1666 = vmul.f32 %v1554, %v1649
  %v1667 = vld [vmem:[%s10] sm:$0x1]
  %v1668 = vld [vmem:[%s11] sm:$0x1]
  %v1669 = vmul.f32 %v1651, %v345
  %v1670 = vmul.f32 %v1652, %v350
  %v1671 = vmul.f32 %v1653, %v355
  %v1672 = vmul.f32 %v1654, %v360
  %v1673 = vmul.f32 %v1655, %v365
  %v1674 = vmul.f32 %v1656, %v370
  %v1675 = vmul.f32 %v1657, %v375
  %v1676 = vmul.f32 %v1658, %v380
  %v1677 = vmul.f32 %v1659, %v385
  %v1678 = vmul.f32 %v1660, %v390
  %v1679 = vmul.f32 %v1661, %v395
  %v1680 = vmul.f32 %v1662, %v400
  %v1681 = vmul.f32 %v1663, %v405
  %v1682 = vmul.f32 %v1664, %v410
  %v1683 = vmul.f32 %v1665, %v415
  %v1684 = vmul.f32 %v1666, %v420
  %v1685 = vadd.f32 %v1669, %v1670
  %v1686 = vadd.f32 %v1685, %v1671
  %v1687 = vadd.f32 %v1686, %v1672
  %v1688 = vadd.f32 %v1687, %v1673
  %v1689 = vadd.f32 %v1688, %v1674
  %v1690 = vadd.f32 %v1689, %v1675
  %v1691 = vadd.f32 %v1690, %v1676
  %v1692 = vadd.f32 %v1691, %v1677
  %v1693 = vadd.f32 %v1692, %v1678
  %v1694 = vadd.f32 %v1693, %v1679
  %v1695 = vadd.f32 %v1694, %v1680
  %v1696 = vadd.f32 %v1695, %v1681
  %v1697 = vadd.f32 %v1696, %v1682
  %v1698 = vadd.f32 %v1697, %v1683
  %v1699 = vadd.f32 %v1698, %v1684
  %v1700 = vrot.slane %v1699, 4
  %v1701 = vadd.f32 %v1699, %v1700
  %v1702 = vrot.slane %v1701, 2
  %v1703 = vadd.f32 %v1701, %v1702
  %v1704 = vrot.slane %v1703, 1
  %v1705 = vadd.f32 %v1703, %v1704
  %v1706 = vmul.f32 %v1705, %v462
  %v1707 = vsub.f32 %v1651, %v1706
  %v1708 = vsub.f32 %v1652, %v1706
  %v1709 = vsub.f32 %v1653, %v1706
  %v1710 = vsub.f32 %v1654, %v1706
  %v1711 = vsub.f32 %v1655, %v1706
  %v1712 = vsub.f32 %v1656, %v1706
  %v1713 = vsub.f32 %v1657, %v1706
  %v1714 = vsub.f32 %v1658, %v1706
  %v1715 = vsub.f32 %v1659, %v1706
  %v1716 = vsub.f32 %v1660, %v1706
  %v1717 = vsub.f32 %v1661, %v1706
  %v1718 = vsub.f32 %v1662, %v1706
  %v1719 = vsub.f32 %v1663, %v1706
  %v1720 = vsub.f32 %v1664, %v1706
  %v1721 = vsub.f32 %v1665, %v1706
  %v1722 = vsub.f32 %v1666, %v1706
  %v1723 = vmul.f32 %v1707, %v345
  %v1724 = vmul.f32 %v1708, %v350
  %v1725 = vmul.f32 %v1709, %v355
  %v1726 = vmul.f32 %v1710, %v360
  %v1727 = vmul.f32 %v1711, %v365
  %v1728 = vmul.f32 %v1712, %v370
  %v1729 = vmul.f32 %v1713, %v375
  %v1730 = vmul.f32 %v1714, %v380
  %v1731 = vmul.f32 %v1715, %v385
  %v1732 = vmul.f32 %v1716, %v390
  %v1733 = vmul.f32 %v1717, %v395
  %v1734 = vmul.f32 %v1718, %v400
  %v1735 = vmul.f32 %v1719, %v405
  %v1736 = vmul.f32 %v1720, %v410
  %v1737 = vmul.f32 %v1721, %v415
  %v1738 = vmul.f32 %v1722, %v420
  %v1739 = vmul.f32 %v1723, %v1723
  %v1740 = vmul.f32 %v1724, %v1724
  %v1741 = vmul.f32 %v1725, %v1725
  %v1742 = vmul.f32 %v1726, %v1726
  %v1743 = vmul.f32 %v1727, %v1727
  %v1744 = vmul.f32 %v1728, %v1728
  %v1745 = vmul.f32 %v1729, %v1729
  %v1746 = vmul.f32 %v1730, %v1730
  %v1747 = vmul.f32 %v1731, %v1731
  %v1748 = vmul.f32 %v1732, %v1732
  %v1749 = vmul.f32 %v1733, %v1733
  %v1750 = vmul.f32 %v1734, %v1734
  %v1751 = vmul.f32 %v1735, %v1735
  %v1752 = vmul.f32 %v1736, %v1736
  %v1753 = vmul.f32 %v1737, %v1737
  %v1754 = vmul.f32 %v1738, %v1738
  %v1755 = vadd.f32 %v1739, %v1740
  %v1756 = vadd.f32 %v1755, %v1741
  %v1757 = vadd.f32 %v1756, %v1742
  %v1758 = vadd.f32 %v1757, %v1743
  %v1759 = vadd.f32 %v1758, %v1744
  %v1760 = vadd.f32 %v1759, %v1745
  %v1761 = vadd.f32 %v1760, %v1746
  %v1762 = vadd.f32 %v1761, %v1747
  %v1763 = vadd.f32 %v1762, %v1748
  %v1764 = vadd.f32 %v1763, %v1749
  %v1765 = vadd.f32 %v1764, %v1750
  %v1766 = vadd.f32 %v1765, %v1751
  %v1767 = vadd.f32 %v1766, %v1752
  %v1768 = vadd.f32 %v1767, %v1753
  %v1769 = vadd.f32 %v1768, %v1754
  %v1770 = vrot.slane %v1769, 4
  %v1771 = vadd.f32 %v1769, %v1770
  %v1772 = vrot.slane %v1771, 2
  %v1773 = vadd.f32 %v1771, %v1772
  %v1774 = vrot.slane %v1773, 1
  %v1775 = vadd.f32 %v1773, %v1774
  %v1776 = vmul.f32 %v1775, %v462
  %v1777 = vmul.f32 %v1651, %v538
  %v1778 = vmul.f32 %v1652, %v543
  %v1779 = vmul.f32 %v1653, %v548
  %v1780 = vmul.f32 %v1654, %v553
  %v1781 = vmul.f32 %v1655, %v558
  %v1782 = vmul.f32 %v1656, %v563
  %v1783 = vmul.f32 %v1657, %v568
  %v1784 = vmul.f32 %v1658, %v573
  %v1785 = vmul.f32 %v1659, %v578
  %v1786 = vmul.f32 %v1660, %v583
  %v1787 = vmul.f32 %v1661, %v588
  %v1788 = vmul.f32 %v1662, %v593
  %v1789 = vmul.f32 %v1663, %v598
  %v1790 = vmul.f32 %v1664, %v603
  %v1791 = vmul.f32 %v1665, %v608
  %v1792 = vmul.f32 %v1666, %v613
  %v1793 = vadd.f32 %v1777, %v1778
  %v1794 = vadd.f32 %v1793, %v1779
  %v1795 = vadd.f32 %v1794, %v1780
  %v1796 = vadd.f32 %v1795, %v1781
  %v1797 = vadd.f32 %v1796, %v1782
  %v1798 = vadd.f32 %v1797, %v1783
  %v1799 = vadd.f32 %v1798, %v1784
  %v1800 = vadd.f32 %v1799, %v1785
  %v1801 = vadd.f32 %v1800, %v1786
  %v1802 = vadd.f32 %v1801, %v1787
  %v1803 = vadd.f32 %v1802, %v1788
  %v1804 = vadd.f32 %v1803, %v1789
  %v1805 = vadd.f32 %v1804, %v1790
  %v1806 = vadd.f32 %v1805, %v1791
  %v1807 = vadd.f32 %v1806, %v1792
  %v1808 = vrot.slane %v1807, 4
  %v1809 = vadd.f32 %v1807, %v1808
  %v1810 = vrot.slane %v1809, 2
  %v1811 = vadd.f32 %v1809, %v1810
  %v1812 = vrot.slane %v1811, 1
  %v1813 = vadd.f32 %v1811, %v1812
  %v1814 = vmul.f32 %v1813, %v655
  %v1815 = vsub.f32 %v1651, %v1814
  %v1816 = vsub.f32 %v1652, %v1814
  %v1817 = vsub.f32 %v1653, %v1814
  %v1818 = vsub.f32 %v1654, %v1814
  %v1819 = vsub.f32 %v1655, %v1814
  %v1820 = vsub.f32 %v1656, %v1814
  %v1821 = vsub.f32 %v1657, %v1814
  %v1822 = vsub.f32 %v1658, %v1814
  %v1823 = vsub.f32 %v1659, %v1814
  %v1824 = vsub.f32 %v1660, %v1814
  %v1825 = vsub.f32 %v1661, %v1814
  %v1826 = vsub.f32 %v1662, %v1814
  %v1827 = vsub.f32 %v1663, %v1814
  %v1828 = vsub.f32 %v1664, %v1814
  %v1829 = vsub.f32 %v1665, %v1814
  %v1830 = vsub.f32 %v1666, %v1814
  %v1831 = vmul.f32 %v1815, %v538
  %v1832 = vmul.f32 %v1816, %v543
  %v1833 = vmul.f32 %v1817, %v548
  %v1834 = vmul.f32 %v1818, %v553
  %v1835 = vmul.f32 %v1819, %v558
  %v1836 = vmul.f32 %v1820, %v563
  %v1837 = vmul.f32 %v1821, %v568
  %v1838 = vmul.f32 %v1822, %v573
  %v1839 = vmul.f32 %v1823, %v578
  %v1840 = vmul.f32 %v1824, %v583
  %v1841 = vmul.f32 %v1825, %v588
  %v1842 = vmul.f32 %v1826, %v593
  %v1843 = vmul.f32 %v1827, %v598
  %v1844 = vmul.f32 %v1828, %v603
  %v1845 = vmul.f32 %v1829, %v608
  %v1846 = vmul.f32 %v1830, %v613
  %v1847 = vmul.f32 %v1831, %v1831
  %v1848 = vmul.f32 %v1832, %v1832
  %v1849 = vmul.f32 %v1833, %v1833
  %v1850 = vmul.f32 %v1834, %v1834
  %v1851 = vmul.f32 %v1835, %v1835
  %v1852 = vmul.f32 %v1836, %v1836
  %v1853 = vmul.f32 %v1837, %v1837
  %v1854 = vmul.f32 %v1838, %v1838
  %v1855 = vmul.f32 %v1839, %v1839
  %v1856 = vmul.f32 %v1840, %v1840
  %v1857 = vmul.f32 %v1841, %v1841
  %v1858 = vmul.f32 %v1842, %v1842
  %v1859 = vmul.f32 %v1843, %v1843
  %v1860 = vmul.f32 %v1844, %v1844
  %v1861 = vmul.f32 %v1845, %v1845
  %v1862 = vmul.f32 %v1846, %v1846
  %v1863 = vadd.f32 %v1847, %v1848
  %v1864 = vadd.f32 %v1863, %v1849
  %v1865 = vadd.f32 %v1864, %v1850
  %v1866 = vadd.f32 %v1865, %v1851
  %v1867 = vadd.f32 %v1866, %v1852
  %v1868 = vadd.f32 %v1867, %v1853
  %v1869 = vadd.f32 %v1868, %v1854
  %v1870 = vadd.f32 %v1869, %v1855
  %v1871 = vadd.f32 %v1870, %v1856
  %v1872 = vadd.f32 %v1871, %v1857
  %v1873 = vadd.f32 %v1872, %v1858
  %v1874 = vadd.f32 %v1873, %v1859
  %v1875 = vadd.f32 %v1874, %v1860
  %v1876 = vadd.f32 %v1875, %v1861
  %v1877 = vadd.f32 %v1876, %v1862
  %v1878 = vrot.slane %v1877, 4
  %v1879 = vadd.f32 %v1877, %v1878
  %v1880 = vrot.slane %v1879, 2
  %v1881 = vadd.f32 %v1879, %v1880
  %v1882 = vrot.slane %v1881, 1
  %v1883 = vadd.f32 %v1881, %v1882
  %v1884 = vmul.f32 %v1883, %v655
  %v1885 = vmul.f32 %v345, %v1706
  %v1886 = vmul.f32 %v350, %v1706
  %v1887 = vmul.f32 %v355, %v1706
  %v1888 = vmul.f32 %v360, %v1706
  %v1889 = vmul.f32 %v365, %v1706
  %v1890 = vmul.f32 %v370, %v1706
  %v1891 = vmul.f32 %v375, %v1706
  %v1892 = vmul.f32 %v380, %v1706
  %v1893 = vmul.f32 %v385, %v1706
  %v1894 = vmul.f32 %v390, %v1706
  %v1895 = vmul.f32 %v395, %v1706
  %v1896 = vmul.f32 %v400, %v1706
  %v1897 = vmul.f32 %v405, %v1706
  %v1898 = vmul.f32 %v410, %v1706
  %v1899 = vmul.f32 %v415, %v1706
  %v1900 = vmul.f32 %v420, %v1706
  %v1901 = vmul.f32 %v538, %v1814
  %v1902 = vmul.f32 %v543, %v1814
  %v1903 = vmul.f32 %v548, %v1814
  %v1904 = vmul.f32 %v553, %v1814
  %v1905 = vmul.f32 %v558, %v1814
  %v1906 = vmul.f32 %v563, %v1814
  %v1907 = vmul.f32 %v568, %v1814
  %v1908 = vmul.f32 %v573, %v1814
  %v1909 = vmul.f32 %v578, %v1814
  %v1910 = vmul.f32 %v583, %v1814
  %v1911 = vmul.f32 %v588, %v1814
  %v1912 = vmul.f32 %v593, %v1814
  %v1913 = vmul.f32 %v598, %v1814
  %v1914 = vmul.f32 %v603, %v1814
  %v1915 = vmul.f32 %v608, %v1814
  %v1916 = vmul.f32 %v613, %v1814
  %v1917 = vadd.f32 %v1885, %v1901
  %v1918 = vadd.f32 %v1886, %v1902
  %v1919 = vadd.f32 %v1887, %v1903
  %v1920 = vadd.f32 %v1888, %v1904
  %v1921 = vadd.f32 %v1889, %v1905
  %v1922 = vadd.f32 %v1890, %v1906
  %v1923 = vadd.f32 %v1891, %v1907
  %v1924 = vadd.f32 %v1892, %v1908
  %v1925 = vadd.f32 %v1893, %v1909
  %v1926 = vadd.f32 %v1894, %v1910
  %v1927 = vadd.f32 %v1895, %v1911
  %v1928 = vadd.f32 %v1896, %v1912
  %v1929 = vadd.f32 %v1897, %v1913
  %v1930 = vadd.f32 %v1898, %v1914
  %v1931 = vadd.f32 %v1899, %v1915
  %v1932 = vadd.f32 %v1900, %v1916
  %v1933 = vmul.f32 %v345, %v1776
  %v1934 = vmul.f32 %v350, %v1776
  %v1935 = vmul.f32 %v355, %v1776
  %v1936 = vmul.f32 %v360, %v1776
  %v1937 = vmul.f32 %v365, %v1776
  %v1938 = vmul.f32 %v370, %v1776
  %v1939 = vmul.f32 %v375, %v1776
  %v1940 = vmul.f32 %v380, %v1776
  %v1941 = vmul.f32 %v385, %v1776
  %v1942 = vmul.f32 %v390, %v1776
  %v1943 = vmul.f32 %v395, %v1776
  %v1944 = vmul.f32 %v400, %v1776
  %v1945 = vmul.f32 %v405, %v1776
  %v1946 = vmul.f32 %v410, %v1776
  %v1947 = vmul.f32 %v415, %v1776
  %v1948 = vmul.f32 %v420, %v1776
  %v1949 = vmul.f32 %v538, %v1884
  %v1950 = vmul.f32 %v543, %v1884
  %v1951 = vmul.f32 %v548, %v1884
  %v1952 = vmul.f32 %v553, %v1884
  %v1953 = vmul.f32 %v558, %v1884
  %v1954 = vmul.f32 %v563, %v1884
  %v1955 = vmul.f32 %v568, %v1884
  %v1956 = vmul.f32 %v573, %v1884
  %v1957 = vmul.f32 %v578, %v1884
  %v1958 = vmul.f32 %v583, %v1884
  %v1959 = vmul.f32 %v588, %v1884
  %v1960 = vmul.f32 %v593, %v1884
  %v1961 = vmul.f32 %v598, %v1884
  %v1962 = vmul.f32 %v603, %v1884
  %v1963 = vmul.f32 %v608, %v1884
  %v1964 = vmul.f32 %v613, %v1884
  %v1965 = vadd.f32 %v1933, %v1949
  %v1966 = vadd.f32 %v1934, %v1950
  %v1967 = vadd.f32 %v1935, %v1951
  %v1968 = vadd.f32 %v1936, %v1952
  %v1969 = vadd.f32 %v1937, %v1953
  %v1970 = vadd.f32 %v1938, %v1954
  %v1971 = vadd.f32 %v1939, %v1955
  %v1972 = vadd.f32 %v1940, %v1956
  %v1973 = vadd.f32 %v1941, %v1957
  %v1974 = vadd.f32 %v1942, %v1958
  %v1975 = vadd.f32 %v1943, %v1959
  %v1976 = vadd.f32 %v1944, %v1960
  %v1977 = vadd.f32 %v1945, %v1961
  %v1978 = vadd.f32 %v1946, %v1962
  %v1979 = vadd.f32 %v1947, %v1963
  %v1980 = vadd.f32 %v1948, %v1964
  %v1981 = vsub.f32 %v1651, %v1917
  %v1982 = vsub.f32 %v1652, %v1918
  %v1983 = vsub.f32 %v1653, %v1919
  %v1984 = vsub.f32 %v1654, %v1920
  %v1985 = vsub.f32 %v1655, %v1921
  %v1986 = vsub.f32 %v1656, %v1922
  %v1987 = vsub.f32 %v1657, %v1923
  %v1988 = vsub.f32 %v1658, %v1924
  %v1989 = vsub.f32 %v1659, %v1925
  %v1990 = vsub.f32 %v1660, %v1926
  %v1991 = vsub.f32 %v1661, %v1927
  %v1992 = vsub.f32 %v1662, %v1928
  %v1993 = vsub.f32 %v1663, %v1929
  %v1994 = vsub.f32 %v1664, %v1930
  %v1995 = vsub.f32 %v1665, %v1931
  %v1996 = vsub.f32 %v1666, %v1932
  %v1997 = vadd.f32 %v1965, 1e-05
  %v1998 = vadd.f32 %v1966, 1e-05
  %v1999 = vadd.f32 %v1967, 1e-05
  %v2000 = vadd.f32 %v1968, 1e-05
  %v2001 = vadd.f32 %v1969, 1e-05
  %v2002 = vadd.f32 %v1970, 1e-05
  %v2003 = vadd.f32 %v1971, 1e-05
  %v2004 = vadd.f32 %v1972, 1e-05
  %v2005 = vadd.f32 %v1973, 1e-05
  %v2006 = vadd.f32 %v1974, 1e-05
  %v2007 = vadd.f32 %v1975, 1e-05
  %v2008 = vadd.f32 %v1976, 1e-05
  %v2009 = vadd.f32 %v1977, 1e-05
  %v2010 = vadd.f32 %v1978, 1e-05
  %v2011 = vadd.f32 %v1979, 1e-05
  %v2012 = vadd.f32 %v1980, 1e-05
  %v2013 = vrsqrt.pop %v1997
  %v2014 = vrsqrt.pop %v1998
  %v2015 = vrsqrt.pop %v1999
  %v2016 = vrsqrt.pop %v2000
  %v2017 = vrsqrt.pop %v2001
  %v2018 = vrsqrt.pop %v2002
  %v2019 = vrsqrt.pop %v2003
  %v2020 = vrsqrt.pop %v2004
  %v2021 = vrsqrt.pop %v2005
  %v2022 = vrsqrt.pop %v2006
  %v2023 = vrsqrt.pop %v2007
  %v2024 = vrsqrt.pop %v2008
  %v2025 = vrsqrt.pop %v2009
  %v2026 = vrsqrt.pop %v2010
  %v2027 = vrsqrt.pop %v2011
  %v2028 = vrsqrt.pop %v2012
  %v2029 = vmul.f32 %v1981, %v2013
  %v2030 = vmul.f32 %v1982, %v2014
  %v2031 = vmul.f32 %v1983, %v2015
  %v2032 = vmul.f32 %v1984, %v2016
  %v2033 = vmul.f32 %v1985, %v2017
  %v2034 = vmul.f32 %v1986, %v2018
  %v2035 = vmul.f32 %v1987, %v2019
  %v2036 = vmul.f32 %v1988, %v2020
  %v2037 = vmul.f32 %v1989, %v2021
  %v2038 = vmul.f32 %v1990, %v2022
  %v2039 = vmul.f32 %v1991, %v2023
  %v2040 = vmul.f32 %v1992, %v2024
  %v2041 = vmul.f32 %v1993, %v2025
  %v2042 = vmul.f32 %v1994, %v2026
  %v2043 = vmul.f32 %v1995, %v2027
  %v2044 = vmul.f32 %v1996, %v2028
  %v2046 = vlaneseq
  %v2047 = vshrl.u32 %v2046, 7
  %v2048 = vsub.s32 0, %v2047
  %v2049 = vrot.slane %v1667, %v2048
  %v2051 = vmul.f32 %v2029, %v2049
  %v2052 = vmul.f32 %v2030, %v2049
  %v2053 = vmul.f32 %v2031, %v2049
  %v2054 = vmul.f32 %v2032, %v2049
  %v2055 = vmul.f32 %v2033, %v2049
  %v2056 = vmul.f32 %v2034, %v2049
  %v2057 = vmul.f32 %v2035, %v2049
  %v2058 = vmul.f32 %v2036, %v2049
  %v2059 = vmul.f32 %v2037, %v2049
  %v2060 = vmul.f32 %v2038, %v2049
  %v2061 = vmul.f32 %v2039, %v2049
  %v2062 = vmul.f32 %v2040, %v2049
  %v2063 = vmul.f32 %v2041, %v2049
  %v2064 = vmul.f32 %v2042, %v2049
  %v2065 = vmul.f32 %v2043, %v2049
  %v2066 = vmul.f32 %v2044, %v2049
  %v2068 = vlaneseq
  %v2069 = vshrl.u32 %v2068, 7
  %v2070 = vsub.s32 0, %v2069
  %v2071 = vrot.slane %v1668, %v2070
  %v2073 = vadd.f32 %v2051, %v2071
  %v2074 = vadd.f32 %v2052, %v2071
  %v2075 = vadd.f32 %v2053, %v2071
  %v2076 = vadd.f32 %v2054, %v2071
  %v2077 = vadd.f32 %v2055, %v2071
  %v2078 = vadd.f32 %v2056, %v2071
  %v2079 = vadd.f32 %v2057, %v2071
  %v2080 = vadd.f32 %v2058, %v2071
  %v2081 = vadd.f32 %v2059, %v2071
  %v2082 = vadd.f32 %v2060, %v2071
  %v2083 = vadd.f32 %v2061, %v2071
  %v2084 = vadd.f32 %v2062, %v2071
  %v2085 = vadd.f32 %v2063, %v2071
  %v2086 = vadd.f32 %v2064, %v2071
  %v2087 = vadd.f32 %v2065, %v2071
  %v2088 = vadd.f32 %v2066, %v2071
  %v2089 = vmax.f32 %v2073, 0.0
  %v2090 = vmax.f32 %v2074, 0.0
  %v2091 = vmax.f32 %v2075, 0.0
  %v2092 = vmax.f32 %v2076, 0.0
  %v2093 = vmax.f32 %v2077, 0.0
  %v2094 = vmax.f32 %v2078, 0.0
  %v2095 = vmax.f32 %v2079, 0.0
  %v2096 = vmax.f32 %v2080, 0.0
  %v2097 = vmax.f32 %v2081, 0.0
  %v2098 = vmax.f32 %v2082, 0.0
  %v2099 = vmax.f32 %v2083, 0.0
  %v2100 = vmax.f32 %v2084, 0.0
  %v2101 = vmax.f32 %v2085, 0.0
  %v2102 = vmax.f32 %v2086, 0.0
  %v2103 = vmax.f32 %v2087, 0.0
  %v2104 = vmax.f32 %v2088, 0.0
  %v2105 = vmul.f32 %v2089, %v1574
  %v2106 = vmul.f32 %v2090, %v1579
  %v2107 = vmul.f32 %v2091, %v1584
  %v2108 = vmul.f32 %v2092, %v1589
  %v2109 = vmul.f32 %v2093, %v1594
  %v2110 = vmul.f32 %v2094, %v1599
  %v2111 = vmul.f32 %v2095, %v1604
  %v2112 = vmul.f32 %v2096, %v1609
  %v2113 = vmul.f32 %v2097, %v1614
  %v2114 = vmul.f32 %v2098, %v1619
  %v2115 = vmul.f32 %v2099, %v1624
  %v2116 = vmul.f32 %v2100, %v1629
  %v2117 = vmul.f32 %v2101, %v1634
  %v2118 = vmul.f32 %v2102, %v1639
  %v2119 = vmul.f32 %v2103, %v1644
  %v2120 = vmul.f32 %v2104, %v1649
  %v2121 = vld [vmem:[%s1] sm:$0xff]
  %v2122 = vld [vmem:[%s1 + $0x8] sm:$0xff]
  %v2123 = vld [vmem:[%s1 + $0x10] sm:$0xff]
  %v2124 = vld [vmem:[%s1 + $0x18] sm:$0xff]
  %v2125 = vld [vmem:[%s1 + $0x20] sm:$0xff]
  %v2126 = vld [vmem:[%s1 + $0x28] sm:$0xff]
  %v2127 = vld [vmem:[%s1 + $0x30] sm:$0xff]
  %v2128 = vld [vmem:[%s1 + $0x38] sm:$0xff]
  %v2129 = vld [vmem:[%s1 + $0x40] sm:$0xff]
  %v2130 = vld [vmem:[%s1 + $0x48] sm:$0xff]
  %v2131 = vld [vmem:[%s1 + $0x50] sm:$0xff]
  %v2132 = vld [vmem:[%s1 + $0x58] sm:$0xff]
  %v2133 = vld [vmem:[%s1 + $0x60] sm:$0xff]
  %v2134 = vld [vmem:[%s1 + $0x68] sm:$0xff]
  %v2135 = vld [vmem:[%s1 + $0x70] sm:$0xff]
  %v2136 = vld [vmem:[%s1 + $0x78] sm:$0xff]
  %v2137 = vadd.f32 %v2105, %v2121
  %v2138 = vadd.f32 %v2106, %v2122
  %v2139 = vadd.f32 %v2107, %v2123
  %v2140 = vadd.f32 %v2108, %v2124
  %v2141 = vadd.f32 %v2109, %v2125
  %v2142 = vadd.f32 %v2110, %v2126
  %v2143 = vadd.f32 %v2111, %v2127
  %v2144 = vadd.f32 %v2112, %v2128
  %v2145 = vadd.f32 %v2113, %v2129
  %v2146 = vadd.f32 %v2114, %v2130
  %v2147 = vadd.f32 %v2115, %v2131
  %v2148 = vadd.f32 %v2116, %v2132
  %v2149 = vadd.f32 %v2117, %v2133
  %v2150 = vadd.f32 %v2118, %v2134
  %v2151 = vadd.f32 %v2119, %v2135
  %v2152 = vadd.f32 %v2120, %v2136
  %2153 = vst [vmem:[%s12] sm:$0xff] %v2137
  %2154 = vst [vmem:[%s12 + $0x8] sm:$0xff] %v2138
  %2155 = vst [vmem:[%s12 + $0x10] sm:$0xff] %v2139
  %2156 = vst [vmem:[%s12 + $0x18] sm:$0xff] %v2140
  %2157 = vst [vmem:[%s12 + $0x20] sm:$0xff] %v2141
  %2158 = vst [vmem:[%s12 + $0x28] sm:$0xff] %v2142
  %2159 = vst [vmem:[%s12 + $0x30] sm:$0xff] %v2143
  %2160 = vst [vmem:[%s12 + $0x38] sm:$0xff] %v2144
  %2161 = vst [vmem:[%s12 + $0x40] sm:$0xff] %v2145
  %2162 = vst [vmem:[%s12 + $0x48] sm:$0xff] %v2146
  %2163 = vst [vmem:[%s12 + $0x50] sm:$0xff] %v2147
  %2164 = vst [vmem:[%s12 + $0x58] sm:$0xff] %v2148
  %2165 = vst [vmem:[%s12 + $0x60] sm:$0xff] %v2149
  %2166 = vst [vmem:[%s12 + $0x68] sm:$0xff] %v2150
  %2167 = vst [vmem:[%s12 + $0x70] sm:$0xff] %v2151
  %2168 = vst [vmem:[%s12 + $0x78] sm:$0xff] %v2152
  // Predicated region
  $region50: #{signnet_gnn_forward.17} parent=0 // pred_check
    _
  $region51: #{signnet_gnn_forward.17} parent=0 // pred_check_branch
    %2170 = sbr.rel (0) target = $region53
  $region52: #{signnet_gnn_forward.17} parent=0 // pred_region
    _
  $region53: #{signnet_gnn_forward.17} parent=0 // pred_fallthru
    _
  // Predicated region
  $region54: #{signnet_gnn_forward.17} parent=0 // pred_check
    _
  $region55: #{signnet_gnn_forward.17} parent=0 // pred_check_branch
    %2172 = sbr.rel (0) target = $region57
  $region56: #{signnet_gnn_forward.17} parent=0 // pred_region
    _
  $region57: #{signnet_gnn_forward.17} parent=0 // pred_fallthru
    _

// kernel: signnet_gnn_forward.18
$region0: #{signnet_gnn_forward.18}
  #allocation0 [shape = 'u32[]', space=smem, size = 0x4, offset = 0x4, fixed_abs, tag = 'smem constant byte address 0x4 - core index']
  #allocation1 [shape = 'u32[144,128]{1,0:T(1,128)}', space=vmem, size = 0x12000, scoped, tag = 'internal scratch']
  #allocation2 [shape = 'f32[64,128]{1,0:T(8,128)}', space=vmem, size = 0x8000, scoped, tag = 'scratch operand']
  %s0 = inlined_call_operand.vmem [shape: f32[64,128], index: 0, kind: input, shape index: {}]
  %s1 = inlined_call_operand.vmem [shape: bf16[128,128], index: 1, kind: input, shape index: {}]
  %s2 = inlined_call_operand.vmem [shape: f32[1,128], index: 2, kind: input, shape index: {}]
  %s3 = inlined_call_operand.vmem [shape: bf16[64,128], index: 3, kind: output, shape index: {}]
  %s4 = sld [smem:[#allocation0]]
  $region30: #{signnet_gnn_forward.18} parent=0
    _
  %s6 = ssub.s32 1, %s4
  %s7 = scalar_select 0, %s6, %s4
  // Predicated region
  $region2: #{signnet_gnn_forward.18} parent=0 // pred_check
    _
  $region3: #{signnet_gnn_forward.18} parent=0 // pred_check_branch
    %9 = sbr.rel (0) target = $region5
  $region4: #{signnet_gnn_forward.18} parent=0 // pred_region
    _
  $region5: #{signnet_gnn_forward.18} parent=0 // pred_fallthru
    _
  // Predicated region
  $region6: #{signnet_gnn_forward.18} parent=0 // pred_check
    _
  $region7: #{signnet_gnn_forward.18} parent=0 // pred_check_branch
    %11 = sbr.rel (0) target = $region9
  $region8: #{signnet_gnn_forward.18} parent=0 // pred_region
    _
  $region9: #{signnet_gnn_forward.18} parent=0 // pred_fallthru
    _
  // Predicated region
  $region10: #{signnet_gnn_forward.18} parent=0 // pred_check
    _
  $region11: #{signnet_gnn_forward.18} parent=0 // pred_check_branch
    %13 = sbr.rel (0) target = $region13
  $region12: #{signnet_gnn_forward.18} parent=0 // pred_region
    _
  $region13: #{signnet_gnn_forward.18} parent=0 // pred_fallthru
    _
  %p15 = scmp.eq.s32.totalorder 0, 0
  // Predicated region
  $region14: #{signnet_gnn_forward.18} parent=0 // pred_check
    %p16 = pneg %p15
  $region15: #{signnet_gnn_forward.18} parent=0 // pred_check_branch
    %18 = sbr.rel (%p16) target = $region17
  $region16: #{signnet_gnn_forward.18} parent=0 // pred_region
    %19 = vst [vmem:[#allocation2] sm:$0xff] 0.0
    %20 = vst [vmem:[#allocation2 + $0x8] sm:$0xff] 0.0
    %21 = vst [vmem:[#allocation2 + $0x10] sm:$0xff] 0.0
    %22 = vst [vmem:[#allocation2 + $0x18] sm:$0xff] 0.0
    %23 = vst [vmem:[#allocation2 + $0x20] sm:$0xff] 0.0
    %24 = vst [vmem:[#allocation2 + $0x28] sm:$0xff] 0.0
    %25 = vst [vmem:[#allocation2 + $0x30] sm:$0xff] 0.0
    %26 = vst [vmem:[#allocation2 + $0x38] sm:$0xff] 0.0
  $region17: #{signnet_gnn_forward.18} parent=0 // pred_fallthru
    _
  %v27 = vld [vmem:[#allocation2] sm:$0xff]
  %v28 = vld [vmem:[#allocation2 + $0x8] sm:$0xff]
  %v29 = vld [vmem:[#allocation2 + $0x10] sm:$0xff]
  %v30 = vld [vmem:[#allocation2 + $0x18] sm:$0xff]
  %v31 = vld [vmem:[#allocation2 + $0x20] sm:$0xff]
  %v32 = vld [vmem:[#allocation2 + $0x28] sm:$0xff]
  %v33 = vld [vmem:[#allocation2 + $0x30] sm:$0xff]
  %v34 = vld [vmem:[#allocation2 + $0x38] sm:$0xff]
  %v35 = vld [vmem:[%s0] sm:$0xff]
  %v36 = vld [vmem:[%s0 + $0x8] sm:$0xff]
  %v37 = vld [vmem:[%s0 + $0x10] sm:$0xff]
  %v38 = vld [vmem:[%s0 + $0x18] sm:$0xff]
  %v39 = vld [vmem:[%s0 + $0x20] sm:$0xff]
  %v40 = vld [vmem:[%s0 + $0x28] sm:$0xff]
  %v41 = vld [vmem:[%s0 + $0x30] sm:$0xff]
  %v42 = vld [vmem:[%s0 + $0x38] sm:$0xff]
  %v43 = vpack.c.bf16 %v36, %v35
  %v44 = vpack.c.bf16 %v38, %v37
  %v45 = vpack.c.bf16 %v40, %v39
  %v46 = vpack.c.bf16 %v42, %v41
  %v47 = vld [vmem:[%s1] sm:$0xf]
  %v48 = vld [vmem:[%s1 + $0x4] sm:$0xf]
  %v49 = vld [vmem:[%s1 + $0x8] sm:$0xf]
  %v50 = vld [vmem:[%s1 + $0xc] sm:$0xf]
  %v51 = vld [vmem:[%s1 + $0x10] sm:$0xf]
  %v52 = vld [vmem:[%s1 + $0x14] sm:$0xf]
  %v53 = vld [vmem:[%s1 + $0x18] sm:$0xf]
  %v54 = vld [vmem:[%s1 + $0x1c] sm:$0xf]
  %v55 = vld [vmem:[%s1 + $0x20] sm:$0xf]
  %v56 = vld [vmem:[%s1 + $0x24] sm:$0xf]
  %v57 = vld [vmem:[%s1 + $0x28] sm:$0xf]
  %v58 = vld [vmem:[%s1 + $0x2c] sm:$0xf]
  %v59 = vld [vmem:[%s1 + $0x30] sm:$0xf]
  %v60 = vld [vmem:[%s1 + $0x34] sm:$0xf]
  %v61 = vld [vmem:[%s1 + $0x38] sm:$0xf]
  %v62 = vld [vmem:[%s1 + $0x3c] sm:$0xf]
  %v79 = vunpack.c.l.b16 %v47
  %v80 = vunpack.c.l.b16 %v48
  %v81 = vunpack.c.l.b16 %v49
  %v82 = vunpack.c.l.b16 %v50
  %v83 = vunpack.c.l.b16 %v51
  %v84 = vunpack.c.l.b16 %v52
  %v85 = vunpack.c.l.b16 %v53
  %v86 = vunpack.c.l.b16 %v54
  %v87 = vunpack.c.l.b16 %v55
  %v88 = vunpack.c.l.b16 %v56
  %v89 = vunpack.c.l.b16 %v57
  %v90 = vunpack.c.l.b16 %v58
  %v91 = vunpack.c.l.b16 %v59
  %v92 = vunpack.c.l.b16 %v60
  %v93 = vunpack.c.l.b16 %v61
  %v94 = vunpack.c.l.b16 %v62
  %v95 = vpack.c.b16 %v80, %v79
  %v96 = vpack.c.b16 %v82, %v81
  %v97 = vpack.c.b16 %v84, %v83
  %v98 = vpack.c.b16 %v86, %v85
  %v99 = vpack.c.b16 %v88, %v87
  %v100 = vpack.c.b16 %v90, %v89
  %v101 = vpack.c.b16 %v92, %v91
  %v102 = vpack.c.b16 %v94, %v93
  %111 = vmatprep.subr.bf16.mxu0 0
  %112 = vmatpush1.bf16.msra.mxu0 %v95
  %113 = vmatprep.subr.bf16.mxu0 0
  %114 = vmatpush1.bf16.msra.mxu0 %v96
  %115 = vmatprep.subr.bf16.mxu0 0
  %116 = vmatpush1.bf16.msra.mxu0 %v97
  %117 = vmatprep.subr.bf16.mxu0 0
  %118 = vmatpush1.bf16.msra.mxu0 %v98
  %119 = vmatprep.subr.bf16.mxu0 0
  %120 = vmatpush1.bf16.msra.mxu0 %v99
  %121 = vmatprep.subr.bf16.mxu0 0
  %122 = vmatpush1.bf16.msra.mxu0 %v100
  %123 = vmatprep.subr.bf16.mxu0 0
  %124 = vmatpush1.bf16.msra.mxu0 %v101
  %125 = vmatprep.subr.bf16.mxu0 0
  %126 = vmatpush1.bf16.msra.mxu0 %v102
  %127 = vmatprep.subr.bf16.mxu0 0
  %128 = vmatpush1.bf16.msra.mxu0 0
  %129 = vmatprep.subr.bf16.mxu0 0
  %130 = vmatpush1.bf16.msra.mxu0 0
  %131 = vmatprep.subr.bf16.mxu0 0
  %132 = vmatpush1.bf16.msra.mxu0 0
  %133 = vmatprep.subr.bf16.mxu0 0
  %134 = vmatpush1.bf16.msra.mxu0 0
  %135 = vmatprep.subr.bf16.mxu0 0
  %136 = vmatpush1.bf16.msra.mxu0 0
  %137 = vmatprep.subr.bf16.mxu0 0
  %138 = vmatpush1.bf16.msra.mxu0 0
  %139 = vmatprep.subr.bf16.mxu0 0
  %140 = vmatpush1.bf16.msra.mxu0 0
  %141 = vmatprep.subr.bf16.mxu0 0
  %142 = vmatpush1.bf16.msra.mxu0 0
  %143 = vmatprep.mubr.bf16.mxu0 0
  %144 = vmatmul.mubr.bf16.gmra.mrb[0].mxu0 %v43
  %v145 = vpop.f32.mrb[0].mxu0
  %v146 = vadd.f32 0.0, %v145
  %v147 = vpop.f32.mrb[0].mxu0
  %v148 = vpop.f32.mrb[0].mxu0
  %v149 = vadd.f32 0.0, %v148
  %v150 = vpop.f32.mrb[0].mxu0
  %151 = vmatprep.mubr.bf16.mxu0 0
  %152 = vmatmul.mubr.bf16.gmra.mrb[0].mxu0 %v44
  %v153 = vpop.f32.mrb[0].mxu0
  %v154 = vadd.f32 0.0, %v153
  %v155 = vpop.f32.mrb[0].mxu0
  %v156 = vpop.f32.mrb[0].mxu0
  %v157 = vadd.f32 0.0, %v156
  %v158 = vpop.f32.mrb[0].mxu0
  %159 = vmatprep.mubr.bf16.mxu0 0
  %160 = vmatmul.mubr.bf16.gmra.mrb[0].mxu0 %v45
  %v161 = vpop.f32.mrb[0].mxu0
  %v162 = vadd.f32 0.0, %v161
  %v163 = vpop.f32.mrb[0].mxu0
  %v164 = vpop.f32.mrb[0].mxu0
  %v165 = vadd.f32 0.0, %v164
  %v166 = vpop.f32.mrb[0].mxu0
  %167 = vmatprep.mubr.bf16.mxu0 0
  %168 = vmatmul.mubr.bf16.gmra.mrb[0].mxu0 %v46
  %v169 = vpop.f32.mrb[0].mxu0
  %v170 = vadd.f32 0.0, %v169
  %v171 = vpop.f32.mrb[0].mxu0
  %v172 = vpop.f32.mrb[0].mxu0
  %v173 = vadd.f32 0.0, %v172
  %v174 = vpop.f32.mrb[0].mxu0
  %175 = vdwg.mxu0
  %v176 = vadd.f32 %v27, %v146
  %v177 = vadd.f32 %v28, %v149
  %v178 = vadd.f32 %v29, %v154
  %v179 = vadd.f32 %v30, %v157
  %v180 = vadd.f32 %v31, %v162
  %v181 = vadd.f32 %v32, %v165
  %v182 = vadd.f32 %v33, %v170
  %v183 = vadd.f32 %v34, %v173
  %184 = vst [vmem:[#allocation2] sm:$0xff] %v176
  %185 = vst [vmem:[#allocation2 + $0x8] sm:$0xff] %v177
  %186 = vst [vmem:[#allocation2 + $0x10] sm:$0xff] %v178
  %187 = vst [vmem:[#allocation2 + $0x18] sm:$0xff] %v179
  %188 = vst [vmem:[#allocation2 + $0x20] sm:$0xff] %v180
  %189 = vst [vmem:[#allocation2 + $0x28] sm:$0xff] %v181
  %190 = vst [vmem:[#allocation2 + $0x30] sm:$0xff] %v182
  %191 = vst [vmem:[#allocation2 + $0x38] sm:$0xff] %v183
  // Predicated region
  $region18: #{signnet_gnn_forward.18} parent=0 // pred_check
    %p192 = pneg %p15
  $region19: #{signnet_gnn_forward.18} parent=0 // pred_check_branch
    %194 = sbr.rel (%p192) target = $region21
  $region20: #{signnet_gnn_forward.18} parent=0 // pred_region
    %v195 = vld [vmem:[#allocation2] sm:$0xff]
    %v196 = vld [vmem:[#allocation2 + $0x8] sm:$0xff]
    %v197 = vld [vmem:[#allocation2 + $0x10] sm:$0xff]
    %v198 = vld [vmem:[#allocation2 + $0x18] sm:$0xff]
    %v199 = vld [vmem:[#allocation2 + $0x20] sm:$0xff]
    %v200 = vld [vmem:[#allocation2 + $0x28] sm:$0xff]
    %v201 = vld [vmem:[#allocation2 + $0x30] sm:$0xff]
    %v202 = vld [vmem:[#allocation2 + $0x38] sm:$0xff]
    %v203 = vld [vmem:[%s2] sm:$0x1]
    %v205 = vlaneseq
    %v206 = vshrl.u32 %v205, 7
    %v207 = vsub.s32 0, %v206
    %v208 = vrot.slane %v203, %v207
    %v210 = vadd.f32 %v195, %v208
    %v211 = vadd.f32 %v196, %v208
    %v212 = vadd.f32 %v197, %v208
    %v213 = vadd.f32 %v198, %v208
    %v214 = vadd.f32 %v199, %v208
    %v215 = vadd.f32 %v200, %v208
    %v216 = vadd.f32 %v201, %v208
    %v217 = vadd.f32 %v202, %v208
    %v218 = vpack.c.bf16 %v211, %v210
    %v219 = vpack.c.bf16 %v213, %v212
    %v220 = vpack.c.bf16 %v215, %v214
    %v221 = vpack.c.bf16 %v217, %v216
    %v226 = vunpack.c.l.b16 %v218
    %v227 = vunpack.c.h.b16 %v218
    %v228 = vunpack.c.l.b16 %v219
    %v229 = vunpack.c.h.b16 %v219
    %v230 = vunpack.c.l.b16 %v220
    %v231 = vunpack.c.h.b16 %v220
    %v232 = vunpack.c.l.b16 %v221
    %v233 = vunpack.c.h.b16 %v221
    %v234 = vpack.c.b16 %v226, %v226
    %v235 = vpack.c.b16 %v227, %v227
    %v236 = vpack.c.b16 %v228, %v228
    %v237 = vpack.c.b16 %v229, %v229
    %v238 = vpack.c.b16 %v230, %v230
    %v239 = vpack.c.b16 %v231, %v231
    %v240 = vpack.c.b16 %v232, %v232
    %v241 = vpack.c.b16 %v233, %v233
    %250 = vst [vmem:[%s3] sm:$0xf] %v234
    %251 = vst [vmem:[%s3 + $0x4] sm:$0xf] %v235
    %252 = vst [vmem:[%s3 + $0x8] sm:$0xf] %v236
    %253 = vst [vmem:[%s3 + $0xc] sm:$0xf] %v237
    %254 = vst [vmem:[%s3 + $0x10] sm:$0xf] %v238
    %255 = vst [vmem:[%s3 + $0x14] sm:$0xf] %v239
    %256 = vst [vmem:[%s3 + $0x18] sm:$0xf] %v240
    %257 = vst [vmem:[%s3 + $0x1c] sm:$0xf] %v241
  $region21: #{signnet_gnn_forward.18} parent=0 // pred_fallthru
    _
  // Predicated region
  $region22: #{signnet_gnn_forward.18} parent=0 // pred_check
    _
  $region23: #{signnet_gnn_forward.18} parent=0 // pred_check_branch
    %259 = sbr.rel (0) target = $region25
  $region24: #{signnet_gnn_forward.18} parent=0 // pred_region
    _
  $region25: #{signnet_gnn_forward.18} parent=0 // pred_fallthru
    _
  // Predicated region
  $region26: #{signnet_gnn_forward.18} parent=0 // pred_check
    _
  $region27: #{signnet_gnn_forward.18} parent=0 // pred_check_branch
    %261 = sbr.rel (0) target = $region29
  $region28: #{signnet_gnn_forward.18} parent=0 // pred_region
    _
  $region29: #{signnet_gnn_forward.18} parent=0 // pred_fallthru
    _

// kernel: signnet_gnn_forward.20
$region0: #{signnet_gnn_forward.20}
  #allocation0 [shape = 'u32[]', space=smem, size = 0x4, offset = 0x4, fixed_abs, tag = 'smem constant byte address 0x4 - core index']
  #allocation1 [shape = 'u32[144,128]{1,0:T(1,128)}', space=vmem, size = 0x12000, scoped, tag = 'internal scratch']
  #allocation2 [shape = 'f32[64,128]{1,0:T(8,128)}', space=vmem, size = 0x8000, scoped, tag = 'scratch operand']
  %s0 = inlined_call_operand.vmem [shape: f32[64,32], index: 0, kind: input, shape index: {}]
  %s1 = inlined_call_operand.vmem [shape: bf16[32,128], index: 1, kind: input, shape index: {}]
  %s2 = inlined_call_operand.vmem [shape: f32[1,128], index: 2, kind: input, shape index: {}]
  %s3 = inlined_call_operand.vmem [shape: f32[64,128], index: 3, kind: output, shape index: {}]
  %s4 = sld [smem:[#allocation0]]
  $region30: #{signnet_gnn_forward.20} parent=0
    _
  %s6 = ssub.s32 1, %s4
  %s7 = scalar_select 0, %s6, %s4
  // Predicated region
  $region2: #{signnet_gnn_forward.20} parent=0 // pred_check
    _
  $region3: #{signnet_gnn_forward.20} parent=0 // pred_check_branch
    %9 = sbr.rel (0) target = $region5
  $region4: #{signnet_gnn_forward.20} parent=0 // pred_region
    _
  $region5: #{signnet_gnn_forward.20} parent=0 // pred_fallthru
    _
  // Predicated region
  $region6: #{signnet_gnn_forward.20} parent=0 // pred_check
    _
  $region7: #{signnet_gnn_forward.20} parent=0 // pred_check_branch
    %11 = sbr.rel (0) target = $region9
  $region8: #{signnet_gnn_forward.20} parent=0 // pred_region
    _
  $region9: #{signnet_gnn_forward.20} parent=0 // pred_fallthru
    _
  // Predicated region
  $region10: #{signnet_gnn_forward.20} parent=0 // pred_check
    _
  $region11: #{signnet_gnn_forward.20} parent=0 // pred_check_branch
    %13 = sbr.rel (0) target = $region13
  $region12: #{signnet_gnn_forward.20} parent=0 // pred_region
    _
  $region13: #{signnet_gnn_forward.20} parent=0 // pred_fallthru
    _
  %p15 = scmp.eq.s32.totalorder 0, 0
  // Predicated region
  $region14: #{signnet_gnn_forward.20} parent=0 // pred_check
    %p16 = pneg %p15
  $region15: #{signnet_gnn_forward.20} parent=0 // pred_check_branch
    %18 = sbr.rel (%p16) target = $region17
  $region16: #{signnet_gnn_forward.20} parent=0 // pred_region
    %19 = vst [vmem:[#allocation2] sm:$0xff] 0.0
    %20 = vst [vmem:[#allocation2 + $0x8] sm:$0xff] 0.0
    %21 = vst [vmem:[#allocation2 + $0x10] sm:$0xff] 0.0
    %22 = vst [vmem:[#allocation2 + $0x18] sm:$0xff] 0.0
    %23 = vst [vmem:[#allocation2 + $0x20] sm:$0xff] 0.0
    %24 = vst [vmem:[#allocation2 + $0x28] sm:$0xff] 0.0
    %25 = vst [vmem:[#allocation2 + $0x30] sm:$0xff] 0.0
    %26 = vst [vmem:[#allocation2 + $0x38] sm:$0xff] 0.0
  $region17: #{signnet_gnn_forward.20} parent=0 // pred_fallthru
    _
  %v27 = vld [vmem:[#allocation2] sm:$0xff]
  %v28 = vld [vmem:[#allocation2 + $0x8] sm:$0xff]
  %v29 = vld [vmem:[#allocation2 + $0x10] sm:$0xff]
  %v30 = vld [vmem:[#allocation2 + $0x18] sm:$0xff]
  %v31 = vld [vmem:[#allocation2 + $0x20] sm:$0xff]
  %v32 = vld [vmem:[#allocation2 + $0x28] sm:$0xff]
  %v33 = vld [vmem:[#allocation2 + $0x30] sm:$0xff]
  %v34 = vld [vmem:[#allocation2 + $0x38] sm:$0xff]
  %v35 = vld [vmem:[%s0] sm:$0xff]
  %v36 = vld [vmem:[%s0 + $0x8] sm:$0xff]
  %v37 = vld [vmem:[%s0 + $0x10] sm:$0xff]
  %v38 = vld [vmem:[%s0 + $0x18] sm:$0xff]
  %v39 = vld [vmem:[%s0 + $0x20] sm:$0xff]
  %v40 = vld [vmem:[%s0 + $0x28] sm:$0xff]
  %v41 = vld [vmem:[%s0 + $0x30] sm:$0xff]
  %v42 = vld [vmem:[%s0 + $0x38] sm:$0xff]
  %v43 = vpack.c.bf16 %v36, %v35
  %v44 = vpack.c.bf16 %v38, %v37
  %v45 = vpack.c.bf16 %v40, %v39
  %v46 = vpack.c.bf16 %v42, %v41
  %v47 = vld [vmem:[%s1] sm:$0xf]
  %v48 = vld [vmem:[%s1 + $0x4] sm:$0xf]
  %v49 = vld [vmem:[%s1 + $0x8] sm:$0xf]
  %v50 = vld [vmem:[%s1 + $0xc] sm:$0xf]
  %v55 = vunpack.c.l.b16 %v47
  %v56 = vunpack.c.l.b16 %v48
  %v57 = vunpack.c.l.b16 %v49
  %v58 = vunpack.c.l.b16 %v50
  %v59 = vpack.c.b16 %v56, %v55
  %v60 = vpack.c.b16 %v58, %v57
  %vm63 = vcmask 261120
  %v65 = vsel %vm63, %v43, 0
  %v68 = vsel %vm63, %v44, 0
  %v71 = vsel %vm63, %v45, 0
  %v74 = vsel %vm63, %v46, 0
  %76 = vmatprep.subr.bf16.mxu0 0
  %77 = vmatpush1.bf16.msra.mxu0 %v59
  %78 = vmatprep.subr.bf16.mxu0 0
  %79 = vmatpush1.bf16.msra.mxu0 %v60
  %80 = vmatprep.subr.bf16.mxu0 0
  %81 = vmatpush1.bf16.msra.mxu0 0
  %82 = vmatprep.subr.bf16.mxu0 0
  %83 = vmatpush1.bf16.msra.mxu0 0
  %84 = vmatprep.subr.bf16.mxu0 0
  %85 = vmatpush1.bf16.msra.mxu0 0
  %86 = vmatprep.subr.bf16.mxu0 0
  %87 = vmatpush1.bf16.msra.mxu0 0
  %88 = vmatprep.subr.bf16.mxu0 0
  %89 = vmatpush1.bf16.msra.mxu0 0
  %90 = vmatprep.subr.bf16.mxu0 0
  %91 = vmatpush1.bf16.msra.mxu0 0
  %92 = vmatprep.subr.bf16.mxu0 0
  %93 = vmatpush1.bf16.msra.mxu0 0
  %94 = vmatprep.subr.bf16.mxu0 0
  %95 = vmatpush1.bf16.msra.mxu0 0
  %96 = vmatprep.subr.bf16.mxu0 0
  %97 = vmatpush1.bf16.msra.mxu0 0
  %98 = vmatprep.subr.bf16.mxu0 0
  %99 = vmatpush1.bf16.msra.mxu0 0
  %100 = vmatprep.subr.bf16.mxu0 0
  %101 = vmatpush1.bf16.msra.mxu0 0
  %102 = vmatprep.subr.bf16.mxu0 0
  %103 = vmatpush1.bf16.msra.mxu0 0
  %104 = vmatprep.subr.bf16.mxu0 0
  %105 = vmatpush1.bf16.msra.mxu0 0
  %106 = vmatprep.subr.bf16.mxu0 0
  %107 = vmatpush1.bf16.msra.mxu0 0
  %108 = vmatprep.mubr.bf16.mxu0 0
  %109 = vmatmul.mubr.bf16.gmra.mrb[0].mxu0 %v65
  %v110 = vpop.f32.mrb[0].mxu0
  %v111 = vadd.f32 0.0, %v110
  %v112 = vpop.f32.mrb[0].mxu0
  %v113 = vpop.f32.mrb[0].mxu0
  %v114 = vadd.f32 0.0, %v113
  %v115 = vpop.f32.mrb[0].mxu0
  %116 = vmatprep.mubr.bf16.mxu0 0
  %117 = vmatmul.mubr.bf16.gmra.mrb[0].mxu0 %v68
  %v118 = vpop.f32.mrb[0].mxu0
  %v119 = vadd.f32 0.0, %v118
  %v120 = vpop.f32.mrb[0].mxu0
  %v121 = vpop.f32.mrb[0].mxu0
  %v122 = vadd.f32 0.0, %v121
  %v123 = vpop.f32.mrb[0].mxu0
  %124 = vmatprep.mubr.bf16.mxu0 0
  %125 = vmatmul.mubr.bf16.gmra.mrb[0].mxu0 %v71
  %v126 = vpop.f32.mrb[0].mxu0
  %v127 = vadd.f32 0.0, %v126
  %v128 = vpop.f32.mrb[0].mxu0
  %v129 = vpop.f32.mrb[0].mxu0
  %v130 = vadd.f32 0.0, %v129
  %v131 = vpop.f32.mrb[0].mxu0
  %132 = vmatprep.mubr.bf16.mxu0 0
  %133 = vmatmul.mubr.bf16.gmra.mrb[0].mxu0 %v74
  %v134 = vpop.f32.mrb[0].mxu0
  %v135 = vadd.f32 0.0, %v134
  %v136 = vpop.f32.mrb[0].mxu0
  %v137 = vpop.f32.mrb[0].mxu0
  %v138 = vadd.f32 0.0, %v137
  %v139 = vpop.f32.mrb[0].mxu0
  %140 = vdwg.mxu0
  %v141 = vadd.f32 %v27, %v111
  %v142 = vadd.f32 %v28, %v114
  %v143 = vadd.f32 %v29, %v119
  %v144 = vadd.f32 %v30, %v122
  %v145 = vadd.f32 %v31, %v127
  %v146 = vadd.f32 %v32, %v130
  %v147 = vadd.f32 %v33, %v135
  %v148 = vadd.f32 %v34, %v138
  %149 = vst [vmem:[#allocation2] sm:$0xff] %v141
  %150 = vst [vmem:[#allocation2 + $0x8] sm:$0xff] %v142
  %151 = vst [vmem:[#allocation2 + $0x10] sm:$0xff] %v143
  %152 = vst [vmem:[#allocation2 + $0x18] sm:$0xff] %v144
  %153 = vst [vmem:[#allocation2 + $0x20] sm:$0xff] %v145
  %154 = vst [vmem:[#allocation2 + $0x28] sm:$0xff] %v146
  %155 = vst [vmem:[#allocation2 + $0x30] sm:$0xff] %v147
  %156 = vst [vmem:[#allocation2 + $0x38] sm:$0xff] %v148
  // Predicated region
  $region18: #{signnet_gnn_forward.20} parent=0 // pred_check
    %p157 = pneg %p15
  $region19: #{signnet_gnn_forward.20} parent=0 // pred_check_branch
    %159 = sbr.rel (%p157) target = $region21
  $region20: #{signnet_gnn_forward.20} parent=0 // pred_region
    %v160 = vld [vmem:[#allocation2] sm:$0xff]
    %v161 = vld [vmem:[#allocation2 + $0x8] sm:$0xff]
    %v162 = vld [vmem:[#allocation2 + $0x10] sm:$0xff]
    %v163 = vld [vmem:[#allocation2 + $0x18] sm:$0xff]
    %v164 = vld [vmem:[#allocation2 + $0x20] sm:$0xff]
    %v165 = vld [vmem:[#allocation2 + $0x28] sm:$0xff]
    %v166 = vld [vmem:[#allocation2 + $0x30] sm:$0xff]
    %v167 = vld [vmem:[#allocation2 + $0x38] sm:$0xff]
    %v168 = vld [vmem:[%s2] sm:$0x1]
    %v170 = vlaneseq
    %v171 = vshrl.u32 %v170, 7
    %v172 = vsub.s32 0, %v171
    %v173 = vrot.slane %v168, %v172
    %v175 = vadd.f32 %v160, %v173
    %v176 = vadd.f32 %v161, %v173
    %v177 = vadd.f32 %v162, %v173
    %v178 = vadd.f32 %v163, %v173
    %v179 = vadd.f32 %v164, %v173
    %v180 = vadd.f32 %v165, %v173
    %v181 = vadd.f32 %v166, %v173
    %v182 = vadd.f32 %v167, %v173
    %183 = vst [vmem:[%s3] sm:$0xff] %v175
    %184 = vst [vmem:[%s3 + $0x8] sm:$0xff] %v176
    %185 = vst [vmem:[%s3 + $0x10] sm:$0xff] %v177
    %186 = vst [vmem:[%s3 + $0x18] sm:$0xff] %v178
    %187 = vst [vmem:[%s3 + $0x20] sm:$0xff] %v179
    %188 = vst [vmem:[%s3 + $0x28] sm:$0xff] %v180
    %189 = vst [vmem:[%s3 + $0x30] sm:$0xff] %v181
    %190 = vst [vmem:[%s3 + $0x38] sm:$0xff] %v182
  $region21: #{signnet_gnn_forward.20} parent=0 // pred_fallthru
    _
  // Predicated region
  $region22: #{signnet_gnn_forward.20} parent=0 // pred_check
    _
  $region23: #{signnet_gnn_forward.20} parent=0 // pred_check_branch
    %192 = sbr.rel (0) target = $region25
  $region24: #{signnet_gnn_forward.20} parent=0 // pred_region
    _
  $region25: #{signnet_gnn_forward.20} parent=0 // pred_fallthru
    _
  // Predicated region
  $region26: #{signnet_gnn_forward.20} parent=0 // pred_check
    _
  $region27: #{signnet_gnn_forward.20} parent=0 // pred_check_branch
    %194 = sbr.rel (0) target = $region29
  $region28: #{signnet_gnn_forward.20} parent=0 // pred_region
    _
  $region29: #{signnet_gnn_forward.20} parent=0 // pred_fallthru
    _

// kernel: signnet_gnn_forward.19
$region0: #{signnet_gnn_forward.19}
  #allocation0 [shape = 'u32[]', space=smem, size = 0x4, offset = 0x4, fixed_abs, tag = 'smem constant byte address 0x4 - core index']
  #allocation1 [shape = 'u32[144,128]{1,0:T(1,128)}', space=vmem, size = 0x12000, scoped, tag = 'internal scratch']
  %s0 = inlined_call_operand.vmem [shape: bf16[32,8,128], index: 0, kind: input, shape index: {}]
  %s1 = inlined_call_operand.vmem [shape: bf16[32,8,128], index: 1, kind: input, shape index: {}]
  %s2 = inlined_call_operand.vmem [shape: bf16[32,8,128], index: 2, kind: input, shape index: {}]
  %s3 = inlined_call_operand.vmem [shape: f32[32,1,8], index: 3, kind: input, shape index: {}]
  %s4 = inlined_call_operand.vmem [shape: f32[32,8,128], index: 4, kind: output, shape index: {}]
  %s5 = sld [smem:[#allocation0]]
  $region49: #{signnet_gnn_forward.19} parent=0
    _
  %s7 = ssub.s32 1, %s5
  %s8 = scalar_select 0, %s7, %s5
  loop: start=0, step=1, limit=6
  $region2: #{signnet_gnn_forward.19} parent=0 // loop_pre_header
    _
  $region3: #{signnet_gnn_forward.19} parent=0 // loop_header
    %s10 = sphi 0, %s14
    %p11 = scmp.ge.s32.totalorder %s10, 6
    %s20 = sphi 0, %s22
    %s23 = sphi 0, %s20
    %s24 = sphi 0, %s23
    %s40 = sphi 0, %s24
    %s46 = sphi 0, %s48
    %s49 = sphi 0, %s46
    %s50 = sphi 0, %s49
    %s66 = sphi 0, %s50
    %s72 = sphi 0, %s74
    %s75 = sphi 0, %s72
    %s76 = sphi 0, %s75
    %s92 = sphi 0, %s76
    %s98 = sphi 0, %s100
    %s101 = sphi 0, %s98
    %s102 = sphi 0, %s101
    %s118 = sphi 0, %s102
    %s124 = sphi 0, %s126
    %s127 = sphi 0, %s124
    %s128 = sphi 0, %s127
    %s144 = sphi 0, %s128
  $region4: #{signnet_gnn_forward.19} parent=0 // loop_header_branch
    %13 = sbr.rel (%p11) target = $region8
  $region5: #{signnet_gnn_forward.19} parent=0 // loop_body
    %s15 = ssub.s32 %s10, 1
    %s16 = ssub.s32 %s10, 2
    %s17 = sadd.s32 %s10, 1
    %s18 = ssub.s32 %s10, %s17
    %p19 = scmp.eq.s32.totalorder %s18, 0
    %s21 = sadd.s32 %s20, 1
    %s22 = scalar_select %p19, %s20, %s21
    %p25 = pneg %p19
    %p26 = scmp.eq.s32.totalorder %s10, 3
    %p27 = por %p25, %p26
    %p28 = scmp.ne.s32.totalorder %s20, %s23
    %p29 = scmp.eq.s32.totalorder %s10, 0
    %p30 = por %p28, %p29
    %p31 = scmp.ne.s32.totalorder %s20, %s23
    %p32 = scmp.eq.s32.totalorder %s15, 3
    %p33 = por %p31, %p32
    %p34 = scmp.ne.s32.totalorder %s23, %s24
    %p35 = scmp.eq.s32.totalorder %s15, 0
    %p36 = por %p34, %p35
    %p37 = scmp.ne.s32.totalorder %s23, %s24
    %p38 = scmp.eq.s32.totalorder %s16, 3
    %p39 = por %p37, %p38
    %p41 = scmp.ne.s32.totalorder %s24, %s40
    %p42 = scmp.eq.s32.totalorder %s16, 0
    %p43 = por %p41, %p42
    %s44 = ssub.s32 %s10, %s17
    %p45 = scmp.eq.s32.totalorder %s44, 0
    %s47 = sadd.s32 %s46, 1
    %s48 = scalar_select %p45, %s46, %s47
    %p51 = pneg %p45
    %p52 = scmp.eq.s32.totalorder %s10, 3
    %p53 = por %p51, %p52
    %p54 = scmp.ne.s32.totalorder %s46, %s49
    %p55 = scmp.eq.s32.totalorder %s10, 0
    %p56 = por %p54, %p55
    %p57 = scmp.ne.s32.totalorder %s46, %s49
    %p58 = scmp.eq.s32.totalorder %s15, 3
    %p59 = por %p57, %p58
    %p60 = scmp.ne.s32.totalorder %s49, %s50
    %p61 = scmp.eq.s32.totalorder %s15, 0
    %p62 = por %p60, %p61
    %p63 = scmp.ne.s32.totalorder %s49, %s50
    %p64 = scmp.eq.s32.totalorder %s16, 3
    %p65 = por %p63, %p64
    %p67 = scmp.ne.s32.totalorder %s50, %s66
    %p68 = scmp.eq.s32.totalorder %s16, 0
    %p69 = por %p67, %p68
    %s70 = ssub.s32 %s10, %s17
    %p71 = scmp.eq.s32.totalorder %s70, 0
    %s73 = sadd.s32 %s72, 1
    %s74 = scalar_select %p71, %s72, %s73
    %p77 = pneg %p71
    %p78 = scmp.eq.s32.totalorder %s10, 3
    %p79 = por %p77, %p78
    %p80 = scmp.ne.s32.totalorder %s72, %s75
    %p81 = scmp.eq.s32.totalorder %s10, 0
    %p82 = por %p80, %p81
    %p83 = scmp.ne.s32.totalorder %s72, %s75
    %p84 = scmp.eq.s32.totalorder %s15, 3
    %p85 = por %p83, %p84
    %p86 = scmp.ne.s32.totalorder %s75, %s76
    %p87 = scmp.eq.s32.totalorder %s15, 0
    %p88 = por %p86, %p87
    %p89 = scmp.ne.s32.totalorder %s75, %s76
    %p90 = scmp.eq.s32.totalorder %s16, 3
    %p91 = por %p89, %p90
    %p93 = scmp.ne.s32.totalorder %s76, %s92
    %p94 = scmp.eq.s32.totalorder %s16, 0
    %p95 = por %p93, %p94
    %s96 = ssub.s32 %s10, %s17
    %p97 = scmp.eq.s32.totalorder %s96, 0
    %s99 = sadd.s32 %s98, 1
    %s100 = scalar_select %p97, %s98, %s99
    %p103 = pneg %p97
    %p104 = scmp.eq.s32.totalorder %s10, 3
    %p105 = por %p103, %p104
    %p106 = scmp.ne.s32.totalorder %s98, %s101
    %p107 = scmp.eq.s32.totalorder %s10, 0
    %p108 = por %p106, %p107
    %p109 = scmp.ne.s32.totalorder %s98, %s101
    %p110 = scmp.eq.s32.totalorder %s15, 3
    %p111 = por %p109, %p110
    %p112 = scmp.ne.s32.totalorder %s101, %s102
    %p113 = scmp.eq.s32.totalorder %s15, 0
    %p114 = por %p112, %p113
    %p115 = scmp.ne.s32.totalorder %s101, %s102
    %p116 = scmp.eq.s32.totalorder %s16, 3
    %p117 = por %p115, %p116
    %p119 = scmp.ne.s32.totalorder %s102, %s118
    %p120 = scmp.eq.s32.totalorder %s16, 0
    %p121 = por %p119, %p120
    %s122 = ssub.s32 %s10, %s17
    %p123 = scmp.eq.s32.totalorder %s122, 0
    %s125 = sadd.s32 %s124, 1
    %s126 = scalar_select %p123, %s124, %s125
    %p129 = pneg %p123
    %p130 = scmp.eq.s32.totalorder %s10, 3
    %p131 = por %p129, %p130
    %p132 = scmp.ne.s32.totalorder %s124, %s127
    %p133 = scmp.eq.s32.totalorder %s10, 0
    %p134 = por %p132, %p133
    %p135 = scmp.ne.s32.totalorder %s124, %s127
    %p136 = scmp.eq.s32.totalorder %s15, 3
    %p137 = por %p135, %p136
    %p138 = scmp.ne.s32.totalorder %s127, %s128
    %p139 = scmp.eq.s32.totalorder %s15, 0
    %p140 = por %p138, %p139
    %p141 = scmp.ne.s32.totalorder %s127, %s128
    %p142 = scmp.eq.s32.totalorder %s16, 3
    %p143 = por %p141, %p142
    %p145 = scmp.ne.s32.totalorder %s128, %s144
    %p146 = scmp.eq.s32.totalorder %s16, 0
    %p147 = por %p145, %p146
    %p148 = scmp.le.s32.totalorder 1, %s10
    %p149 = scmp.lt.s32.totalorder %s10, 5
    %p150 = pnand %p148, %p149
    %p151 = pneg %p150
    // Predicated region
    $region9: #{signnet_gnn_forward.19} parent=5 // pred_check
      _
    $region10: #{signnet_gnn_forward.19} parent=5 // pred_check_branch
      %153 = sbr.rel (%p150) target = $region12
    $region11: #{signnet_gnn_forward.19} parent=5 // pred_region
      %s154 = ssub.s32 %s10, 1
    $region12: #{signnet_gnn_forward.19} parent=5 // pred_fallthru
      _
    %p155 = scmp.lt.s32.totalorder %s10, 4
    // Predicated region
    $region13: #{signnet_gnn_forward.19} parent=5 // pred_check
      %p156 = pneg %p155
    $region14: #{signnet_gnn_forward.19} parent=5 // pred_check_branch
      %158 = sbr.rel (%p156) target = $region16
    $region15: #{signnet_gnn_forward.19} parent=5 // pred_region
      // Predicated region
      $region17: #{signnet_gnn_forward.19} parent=15 // pred_check
        %p159 = pneg %p30
      $region18: #{signnet_gnn_forward.19} parent=15 // pred_check_branch
        %161 = sbr.rel (%p159) target = $region20
      $region19: #{signnet_gnn_forward.19} parent=15 // pred_region
        %s162 = smul.u32 8, %s10
        %p163 = scmp.lt.s32.totalorder %s162, 31
        %s164 = scalar_select %p163, %s162, 31
        %s165 = smul.addr %s164, 4
        %s166 = scalar_lea.vmem %s0, %s165
        %s167 = smul.u32 8, %s10
      $region20: #{signnet_gnn_forward.19} parent=15 // pred_fallthru
        _
      // Predicated region
      $region21: #{signnet_gnn_forward.19} parent=15 // pred_check
        %p168 = pneg %p56
      $region22: #{signnet_gnn_forward.19} parent=15 // pred_check_branch
        %170 = sbr.rel (%p168) target = $region24
      $region23: #{signnet_gnn_forward.19} parent=15 // pred_region
        %s171 = smul.u32 8, %s10
        %p172 = scmp.lt.s32.totalorder %s171, 31
        %s173 = scalar_select %p172, %s171, 31
        %s174 = smul.addr %s173, 4
        %s175 = scalar_lea.vmem %s1, %s174
        %s176 = smul.u32 8, %s10
      $region24: #{signnet_gnn_forward.19} parent=15 // pred_fallthru
        _
      // Predicated region
      $region25: #{signnet_gnn_forward.19} parent=15 // pred_check
        %p177 = pneg %p82
      $region26: #{signnet_gnn_forward.19} parent=15 // pred_check_branch
        %179 = sbr.rel (%p177) target = $region28
      $region27: #{signnet_gnn_forward.19} parent=15 // pred_region
        %s180 = smul.u32 8, %s10
        %p181 = scmp.lt.s32.totalorder %s180, 31
        %s182 = scalar_select %p181, %s180, 31
        %s183 = smul.addr %s182, 4
        %s184 = scalar_lea.vmem %s2, %s183
        %s185 = smul.u32 8, %s10
      $region28: #{signnet_gnn_forward.19} parent=15 // pred_fallthru
        _
      // Predicated region
      $region29: #{signnet_gnn_forward.19} parent=15 // pred_check
        %p186 = pneg %p108
      $region30: #{signnet_gnn_forward.19} parent=15 // pred_check_branch
        %188 = sbr.rel (%p186) target = $region32
      $region31: #{signnet_gnn_forward.19} parent=15 // pred_region
        %s189 = smul.u32 8, %s10
        %p190 = scmp.lt.s32.totalorder %s189, 31
        %s191 = scalar_select %p190, %s189, 31
        %s192 = scalar_lea.vmem %s3, %s191
        %s193 = smul.u32 8, %s10
      $region32: #{signnet_gnn_forward.19} parent=15 // pred_fallthru
        _
    $region16: #{signnet_gnn_forward.19} parent=5 // pred_fallthru
      _
    %p194 = scmp.le.s32.totalorder 1, %s10
    %p195 = scmp.lt.s32.totalorder %s10, 5
    %p196 = pnand %p194, %p195
    %p197 = pneg %p196
    // Predicated region
    $region33: #{signnet_gnn_forward.19} parent=5 // pred_check
      _
    $region34: #{signnet_gnn_forward.19} parent=5 // pred_check_branch
      %199 = sbr.rel (%p196) target = $region36
    $region35: #{signnet_gnn_forward.19} parent=5 // pred_region
      %s200 = ssub.s32 %s10, 1
      %s201 = smul.u32 8, %s15
      %p202 = scmp.lt.s32.totalorder %s201, 31
      %s203 = scalar_select %p202, %s201, 31
      %s204 = smul.addr %s203, 4
      %s205 = scalar_lea.vmem %s0, %s204
      %p206 = pneg %p36
      %p207 = pneg %p33
      %s208 = smul.u32 8, %s15
      %p209 = scmp.lt.s32.totalorder %s208, 31
      %s210 = scalar_select %p209, %s208, 31
      %s211 = smul.addr %s210, 4
      %s212 = scalar_lea.vmem %s1, %s211
      %p213 = pneg %p62
      %p214 = pneg %p59
      %s215 = smul.u32 8, %s15
      %p216 = scmp.lt.s32.totalorder %s215, 31
      %s217 = scalar_select %p216, %s215, 31
      %s218 = smul.addr %s217, 4
      %s219 = scalar_lea.vmem %s2, %s218
      %p220 = pneg %p88
      %p221 = pneg %p85
      %s222 = smul.u32 8, %s15
      %p223 = scmp.lt.s32.totalorder %s222, 31
      %s224 = scalar_select %p223, %s222, 31
      %s225 = scalar_lea.vmem %s3, %s224
      %p226 = pneg %p114
      %p227 = pneg %p111
      %p228 = pneg %p140
      %p229 = pneg %p137
      %s230 = smul.u32 8, %s15
      %p231 = scmp.lt.s32.totalorder %s230, 31
      %s232 = scalar_select %p231, %s230, 31
      %s233 = smul.addr %s232, 8
      %s234 = scalar_lea.vmem %s4, %s233
      %s235 = smul.u32 8, %s15
      %p236 = scmp.lt.s32.totalorder %s235, 31
      %s237 = scalar_select %p236, %s235, 31
      %s238 = smul.addr %s237, 4
      %s239 = scalar_lea.vmem %s0, %s238
      %s240 = smul.u32 8, %s15
      %s241 = smul.u32 8, %s15
      %p242 = scmp.lt.s32.totalorder %s241, 31
      %s243 = scalar_select %p242, %s241, 31
      %s244 = smul.addr %s243, 4
      %s245 = scalar_lea.vmem %s1, %s244
      %s246 = smul.u32 8, %s15
      %s247 = smul.u32 8, %s15
      %p248 = scmp.lt.s32.totalorder %s247, 31
      %s249 = scalar_select %p248, %s247, 31
      %s250 = smul.addr %s249, 4
      %s251 = scalar_lea.vmem %s2, %s250
      %s252 = smul.u32 8, %s15
      %s253 = smul.u32 8, %s15
      %p254 = scmp.lt.s32.totalorder %s253, 31
      %s255 = scalar_select %p254, %s253, 31
      %s256 = scalar_lea.vmem %s3, %s255
      %s257 = smul.u32 8, %s15
      %s258 = smul.u32 8, %s15
      %p259 = scmp.lt.s32.totalorder %s258, 31
      %s260 = scalar_select %p259, %s258, 31
      %s261 = smul.addr %s260, 8
      %s262 = scalar_lea.vmem %s4, %s261
      %s263 = smul.u32 8, %s15
      %v265 = vld [vmem:[%s239] sm:$0xf]
      %v266 = vld [vmem:[%s239 + $0x4] sm:$0xf]
      %v267 = vld [vmem:[%s239 + $0x8] sm:$0xf]
      %v268 = vld [vmem:[%s239 + $0xc] sm:$0xf]
      %v269 = vld [vmem:[%s239 + $0x10] sm:$0xf]
      %v270 = vld [vmem:[%s239 + $0x14] sm:$0xf]
      %v271 = vld [vmem:[%s239 + $0x18] sm:$0xf]
      %v272 = vld [vmem:[%s239 + $0x1c] sm:$0xf]
      %v273 = vld [vmem:[%s245] sm:$0xf]
      %v274 = vld [vmem:[%s245 + $0x4] sm:$0xf]
      %v275 = vld [vmem:[%s245 + $0x8] sm:$0xf]
      %v276 = vld [vmem:[%s245 + $0xc] sm:$0xf]
      %v277 = vld [vmem:[%s245 + $0x10] sm:$0xf]
      %v278 = vld [vmem:[%s245 + $0x14] sm:$0xf]
      %v279 = vld [vmem:[%s245 + $0x18] sm:$0xf]
      %v280 = vld [vmem:[%s245 + $0x1c] sm:$0xf]
      %281 = vmatprep.subr.bf16.mxu0 0
      %282 = vmatpush1.bf16.xpose.msra.mxu0 %v273
      %283 = vmatprep.subr.bf16.mxu0 0
      %284 = vmatpush1.bf16.xpose.msra.mxu0 0
      %285 = vmatprep.subr.bf16.mxu0 0
      %286 = vmatpush1.bf16.xpose.msra.mxu0 0
      %287 = vmatprep.subr.bf16.mxu0 0
      %288 = vmatpush1.bf16.xpose.msra.mxu0 0
      %289 = vmatprep.subr.bf16.mxu0 0
      %290 = vmatpush1.bf16.xpose.msra.mxu0 0
      %291 = vmatprep.subr.bf16.mxu0 0
      %292 = vmatpush1.bf16.xpose.msra.mxu0 0
      %293 = vmatprep.subr.bf16.mxu0 0
      %294 = vmatpush1.bf16.xpose.msra.mxu0 0
      %295 = vmatprep.subr.bf16.mxu0 0
      %296 = vmatpush1.bf16.xpose.msra.mxu0 0
      %297 = vmatprep.subr.bf16.mxu0 0
      %298 = vmatpush1.bf16.xpose.msra.mxu0 0
      %299 = vmatprep.subr.bf16.mxu0 0
      %300 = vmatpush1.bf16.xpose.msra.mxu0 0
      %301 = vmatprep.subr.bf16.mxu0 0
      %302 = vmatpush1.bf16.xpose.msra.mxu0 0
      %303 = vmatprep.subr.bf16.mxu0 0
      %304 = vmatpush1.bf16.xpose.msra.mxu0 0
      %305 = vmatprep.subr.bf16.mxu0 0
      %306 = vmatpush1.bf16.xpose.msra.mxu0 0
      %307 = vmatprep.subr.bf16.mxu0 0
      %308 = vmatpush1.bf16.xpose.msra.mxu0 0
      %309 = vmatprep.subr.bf16.mxu0 0
      %310 = vmatpush1.bf16.xpose.msra.mxu0 0
      %311 = vmatprep.subr.bf16.mxu0 0
      %312 = vmatpush1.bf16.xpose.msra.mxu0 0
      %313 = vmatprep.mubr.bf16.mxu0 0
      %314 = vmatmul.mubr.bf16.gmra.mrb[0].mxu0 %v265
      %v315 = vpop.f32.mrb[0].mxu0
      %v316 = vadd.f32 0.0, %v315
      %v317 = vpop.f32.mrb[0].mxu0
      %v318 = vpop.f32.mrb[0].mxu0
      %v319 = vpop.f32.mrb[0].mxu0
      %320 = vdwg.mxu0
      %321 = vmatprep.subr.bf16.mxu0 0
      %322 = vmatpush1.bf16.xpose.msra.mxu0 %v274
      %323 = vmatprep.subr.bf16.mxu0 0
      %324 = vmatpush1.bf16.xpose.msra.mxu0 0
      %325 = vmatprep.subr.bf16.mxu0 0
      %326 = vmatpush1.bf16.xpose.msra.mxu0 0
      %327 = vmatprep.subr.bf16.mxu0 0
      %328 = vmatpush1.bf16.xpose.msra.mxu0 0
      %329 = vmatprep.subr.bf16.mxu0 0
      %330 = vmatpush1.bf16.xpose.msra.mxu0 0
      %331 = vmatprep.subr.bf16.mxu0 0
      %332 = vmatpush1.bf16.xpose.msra.mxu0 0
      %333 = vmatprep.subr.bf16.mxu0 0
      %334 = vmatpush1.bf16.xpose.msra.mxu0 0
      %335 = vmatprep.subr.bf16.mxu0 0
      %336 = vmatpush1.bf16.xpose.msra.mxu0 0
      %337 = vmatprep.subr.bf16.mxu0 0
      %338 = vmatpush1.bf16.xpose.msra.mxu0 0
      %339 = vmatprep.subr.bf16.mxu0 0
      %340 = vmatpush1.bf16.xpose.msra.mxu0 0
      %341 = vmatprep.subr.bf16.mxu0 0
      %342 = vmatpush1.bf16.xpose.msra.mxu0 0
      %343 = vmatprep.subr.bf16.mxu0 0
      %344 = vmatpush1.bf16.xpose.msra.mxu0 0
      %345 = vmatprep.subr.bf16.mxu0 0
      %346 = vmatpush1.bf16.xpose.msra.mxu0 0
      %347 = vmatprep.subr.bf16.mxu0 0
      %348 = vmatpush1.bf16.xpose.msra.mxu0 0
      %349 = vmatprep.subr.bf16.mxu0 0
      %350 = vmatpush1.bf16.xpose.msra.mxu0 0
      %351 = vmatprep.subr.bf16.mxu0 0
      %352 = vmatpush1.bf16.xpose.msra.mxu0 0
      %353 = vmatprep.mubr.bf16.mxu0 0
      %354 = vmatmul.mubr.bf16.gmra.mrb[0].mxu0 %v266
      %v355 = vpop.f32.mrb[0].mxu0
      %v356 = vadd.f32 0.0, %v355
      %v357 = vpop.f32.mrb[0].mxu0
      %v358 = vpop.f32.mrb[0].mxu0
      %v359 = vpop.f32.mrb[0].mxu0
      %360 = vdwg.mxu0
      %361 = vmatprep.subr.bf16.mxu0 0
      %362 = vmatpush1.bf16.xpose.msra.mxu0 %v275
      %363 = vmatprep.subr.bf16.mxu0 0
      %364 = vmatpush1.bf16.xpose.msra.mxu0 0
      %365 = vmatprep.subr.bf16.mxu0 0
      %366 = vmatpush1.bf16.xpose.msra.mxu0 0
      %367 = vmatprep.subr.bf16.mxu0 0
      %368 = vmatpush1.bf16.xpose.msra.mxu0 0
      %369 = vmatprep.subr.bf16.mxu0 0
      %370 = vmatpush1.bf16.xpose.msra.mxu0 0
      %371 = vmatprep.subr.bf16.mxu0 0
      %372 = vmatpush1.bf16.xpose.msra.mxu0 0
      %373 = vmatprep.subr.bf16.mxu0 0
      %374 = vmatpush1.bf16.xpose.msra.mxu0 0
      %375 = vmatprep.subr.bf16.mxu0 0
      %376 = vmatpush1.bf16.xpose.msra.mxu0 0
      %377 = vmatprep.subr.bf16.mxu0 0
      %378 = vmatpush1.bf16.xpose.msra.mxu0 0
      %379 = vmatprep.subr.bf16.mxu0 0
      %380 = vmatpush1.bf16.xpose.msra.mxu0 0
      %381 = vmatprep.subr.bf16.mxu0 0
      %382 = vmatpush1.bf16.xpose.msra.mxu0 0
      %383 = vmatprep.subr.bf16.mxu0 0
      %384 = vmatpush1.bf16.xpose.msra.mxu0 0
      %385 = vmatprep.subr.bf16.mxu0 0
      %386 = vmatpush1.bf16.xpose.msra.mxu0 0
      %387 = vmatprep.subr.bf16.mxu0 0
      %388 = vmatpush1.bf16.xpose.msra.mxu0 0
      %389 = vmatprep.subr.bf16.mxu0 0
      %390 = vmatpush1.bf16.xpose.msra.mxu0 0
      %391 = vmatprep.subr.bf16.mxu0 0
      %392 = vmatpush1.bf16.xpose.msra.mxu0 0
      %393 = vmatprep.mubr.bf16.mxu0 0
      %394 = vmatmul.mubr.bf16.gmra.mrb[0].mxu0 %v267
      %v395 = vpop.f32.mrb[0].mxu0
      %v396 = vadd.f32 0.0, %v395
      %v397 = vpop.f32.mrb[0].mxu0
      %v398 = vpop.f32.mrb[0].mxu0
      %v399 = vpop.f32.mrb[0].mxu0
      %400 = vdwg.mxu0
      %401 = vmatprep.subr.bf16.mxu0 0
      %402 = vmatpush1.bf16.xpose.msra.mxu0 %v276
      %403 = vmatprep.subr.bf16.mxu0 0
      %404 = vmatpush1.bf16.xpose.msra.mxu0 0
      %405 = vmatprep.subr.bf16.mxu0 0
      %406 = vmatpush1.bf16.xpose.msra.mxu0 0
      %407 = vmatprep.subr.bf16.mxu0 0
      %408 = vmatpush1.bf16.xpose.msra.mxu0 0
      %409 = vmatprep.subr.bf16.mxu0 0
      %410 = vmatpush1.bf16.xpose.msra.mxu0 0
      %411 = vmatprep.subr.bf16.mxu0 0
      %412 = vmatpush1.bf16.xpose.msra.mxu0 0
      %413 = vmatprep.subr.bf16.mxu0 0
      %414 = vmatpush1.bf16.xpose.msra.mxu0 0
      %415 = vmatprep.subr.bf16.mxu0 0
      %416 = vmatpush1.bf16.xpose.msra.mxu0 0
      %417 = vmatprep.subr.bf16.mxu0 0
      %418 = vmatpush1.bf16.xpose.msra.mxu0 0
      %419 = vmatprep.subr.bf16.mxu0 0
      %420 = vmatpush1.bf16.xpose.msra.mxu0 0
      %421 = vmatprep.subr.bf16.mxu0 0
      %422 = vmatpush1.bf16.xpose.msra.mxu0 0
      %423 = vmatprep.subr.bf16.mxu0 0
      %424 = vmatpush1.bf16.xpose.msra.mxu0 0
      %425 = vmatprep.subr.bf16.mxu0 0
      %426 = vmatpush1.bf16.xpose.msra.mxu0 0
      %427 = vmatprep.subr.bf16.mxu0 0
      %428 = vmatpush1.bf16.xpose.msra.mxu0 0
      %429 = vmatprep.subr.bf16.mxu0 0
      %430 = vmatpush1.bf16.xpose.msra.mxu0 0
      %431 = vmatprep.subr.bf16.mxu0 0
      %432 = vmatpush1.bf16.xpose.msra.mxu0 0
      %433 = vmatprep.mubr.bf16.mxu0 0
      %434 = vmatmul.mubr.bf16.gmra.mrb[0].mxu0 %v268
      %v435 = vpop.f32.mrb[0].mxu0
      %v436 = vadd.f32 0.0, %v435
      %v437 = vpop.f32.mrb[0].mxu0
      %v438 = vpop.f32.mrb[0].mxu0
      %v439 = vpop.f32.mrb[0].mxu0
      %440 = vdwg.mxu0
      %441 = vmatprep.subr.bf16.mxu0 0
      %442 = vmatpush1.bf16.xpose.msra.mxu0 %v277
      %443 = vmatprep.subr.bf16.mxu0 0
      %444 = vmatpush1.bf16.xpose.msra.mxu0 0
      %445 = vmatprep.subr.bf16.mxu0 0
      %446 = vmatpush1.bf16.xpose.msra.mxu0 0
      %447 = vmatprep.subr.bf16.mxu0 0
      %448 = vmatpush1.bf16.xpose.msra.mxu0 0
      %449 = vmatprep.subr.bf16.mxu0 0
      %450 = vmatpush1.bf16.xpose.msra.mxu0 0
      %451 = vmatprep.subr.bf16.mxu0 0
      %452 = vmatpush1.bf16.xpose.msra.mxu0 0
      %453 = vmatprep.subr.bf16.mxu0 0
      %454 = vmatpush1.bf16.xpose.msra.mxu0 0
      %455 = vmatprep.subr.bf16.mxu0 0
      %456 = vmatpush1.bf16.xpose.msra.mxu0 0
      %457 = vmatprep.subr.bf16.mxu0 0
      %458 = vmatpush1.bf16.xpose.msra.mxu0 0
      %459 = vmatprep.subr.bf16.mxu0 0
      %460 = vmatpush1.bf16.xpose.msra.mxu0 0
      %461 = vmatprep.subr.bf16.mxu0 0
      %462 = vmatpush1.bf16.xpose.msra.mxu0 0
      %463 = vmatprep.subr.bf16.mxu0 0
      %464 = vmatpush1.bf16.xpose.msra.mxu0 0
      %465 = vmatprep.subr.bf16.mxu0 0
      %466 = vmatpush1.bf16.xpose.msra.mxu0 0
      %467 = vmatprep.subr.bf16.mxu0 0
      %468 = vmatpush1.bf16.xpose.msra.mxu0 0
      %469 = vmatprep.subr.bf16.mxu0 0
      %470 = vmatpush1.bf16.xpose.msra.mxu0 0
      %471 = vmatprep.subr.bf16.mxu0 0
      %472 = vmatpush1.bf16.xpose.msra.mxu0 0
      %473 = vmatprep.mubr.bf16.mxu0 0
      %474 = vmatmul.mubr.bf16.gmra.mrb[0].mxu0 %v269
      %v475 = vpop.f32.mrb[0].mxu0
      %v476 = vadd.f32 0.0, %v475
      %v477 = vpop.f32.mrb[0].mxu0
      %v478 = vpop.f32.mrb[0].mxu0
      %v479 = vpop.f32.mrb[0].mxu0
      %480 = vdwg.mxu0
      %481 = vmatprep.subr.bf16.mxu0 0
      %482 = vmatpush1.bf16.xpose.msra.mxu0 %v278
      %483 = vmatprep.subr.bf16.mxu0 0
      %484 = vmatpush1.bf16.xpose.msra.mxu0 0
      %485 = vmatprep.subr.bf16.mxu0 0
      %486 = vmatpush1.bf16.xpose.msra.mxu0 0
      %487 = vmatprep.subr.bf16.mxu0 0
      %488 = vmatpush1.bf16.xpose.msra.mxu0 0
      %489 = vmatprep.subr.bf16.mxu0 0
      %490 = vmatpush1.bf16.xpose.msra.mxu0 0
      %491 = vmatprep.subr.bf16.mxu0 0
      %492 = vmatpush1.bf16.xpose.msra.mxu0 0
      %493 = vmatprep.subr.bf16.mxu0 0
      %494 = vmatpush1.bf16.xpose.msra.mxu0 0
      %495 = vmatprep.subr.bf16.mxu0 0
      %496 = vmatpush1.bf16.xpose.msra.mxu0 0
      %497 = vmatprep.subr.bf16.mxu0 0
      %498 = vmatpush1.bf16.xpose.msra.mxu0 0
      %499 = vmatprep.subr.bf16.mxu0 0
      %500 = vmatpush1.bf16.xpose.msra.mxu0 0
      %501 = vmatprep.subr.bf16.mxu0 0
      %502 = vmatpush1.bf16.xpose.msra.mxu0 0
      %503 = vmatprep.subr.bf16.mxu0 0
      %504 = vmatpush1.bf16.xpose.msra.mxu0 0
      %505 = vmatprep.subr.bf16.mxu0 0
      %506 = vmatpush1.bf16.xpose.msra.mxu0 0
      %507 = vmatprep.subr.bf16.mxu0 0
      %508 = vmatpush1.bf16.xpose.msra.mxu0 0
      %509 = vmatprep.subr.bf16.mxu0 0
      %510 = vmatpush1.bf16.xpose.msra.mxu0 0
      %511 = vmatprep.subr.bf16.mxu0 0
      %512 = vmatpush1.bf16.xpose.msra.mxu0 0
      %513 = vmatprep.mubr.bf16.mxu0 0
      %514 = vmatmul.mubr.bf16.gmra.mrb[0].mxu0 %v270
      %v515 = vpop.f32.mrb[0].mxu0
      %v516 = vadd.f32 0.0, %v515
      %v517 = vpop.f32.mrb[0].mxu0
      %v518 = vpop.f32.mrb[0].mxu0
      %v519 = vpop.f32.mrb[0].mxu0
      %520 = vdwg.mxu0
      %521 = vmatprep.subr.bf16.mxu0 0
      %522 = vmatpush1.bf16.xpose.msra.mxu0 %v279
      %523 = vmatprep.subr.bf16.mxu0 0
      %524 = vmatpush1.bf16.xpose.msra.mxu0 0
      %525 = vmatprep.subr.bf16.mxu0 0
      %526 = vmatpush1.bf16.xpose.msra.mxu0 0
      %527 = vmatprep.subr.bf16.mxu0 0
      %528 = vmatpush1.bf16.xpose.msra.mxu0 0
      %529 = vmatprep.subr.bf16.mxu0 0
      %530 = vmatpush1.bf16.xpose.msra.mxu0 0
      %531 = vmatprep.subr.bf16.mxu0 0
      %532 = vmatpush1.bf16.xpose.msra.mxu0 0
      %533 = vmatprep.subr.bf16.mxu0 0
      %534 = vmatpush1.bf16.xpose.msra.mxu0 0
      %535 = vmatprep.subr.bf16.mxu0 0
      %536 = vmatpush1.bf16.xpose.msra.mxu0 0
      %537 = vmatprep.subr.bf16.mxu0 0
      %538 = vmatpush1.bf16.xpose.msra.mxu0 0
      %539 = vmatprep.subr.bf16.mxu0 0
      %540 = vmatpush1.bf16.xpose.msra.mxu0 0
      %541 = vmatprep.subr.bf16.mxu0 0
      %542 = vmatpush1.bf16.xpose.msra.mxu0 0
      %543 = vmatprep.subr.bf16.mxu0 0
      %544 = vmatpush1.bf16.xpose.msra.mxu0 0
      %545 = vmatprep.subr.bf16.mxu0 0
      %546 = vmatpush1.bf16.xpose.msra.mxu0 0
      %547 = vmatprep.subr.bf16.mxu0 0
      %548 = vmatpush1.bf16.xpose.msra.mxu0 0
      %549 = vmatprep.subr.bf16.mxu0 0
      %550 = vmatpush1.bf16.xpose.msra.mxu0 0
      %551 = vmatprep.subr.bf16.mxu0 0
      %552 = vmatpush1.bf16.xpose.msra.mxu0 0
      %553 = vmatprep.mubr.bf16.mxu0 0
      %554 = vmatmul.mubr.bf16.gmra.mrb[0].mxu0 %v271
      %v555 = vpop.f32.mrb[0].mxu0
      %v556 = vadd.f32 0.0, %v555
      %v557 = vpop.f32.mrb[0].mxu0
      %v558 = vpop.f32.mrb[0].mxu0
      %v559 = vpop.f32.mrb[0].mxu0
      %560 = vdwg.mxu0
      %561 = vmatprep.subr.bf16.mxu0 0
      %562 = vmatpush1.bf16.xpose.msra.mxu0 %v280
      %563 = vmatprep.subr.bf16.mxu0 0
      %564 = vmatpush1.bf16.xpose.msra.mxu0 0
      %565 = vmatprep.subr.bf16.mxu0 0
      %566 = vmatpush1.bf16.xpose.msra.mxu0 0
      %567 = vmatprep.subr.bf16.mxu0 0
      %568 = vmatpush1.bf16.xpose.msra.mxu0 0
      %569 = vmatprep.subr.bf16.mxu0 0
      %570 = vmatpush1.bf16.xpose.msra.mxu0 0
      %571 = vmatprep.subr.bf16.mxu0 0
      %572 = vmatpush1.bf16.xpose.msra.mxu0 0
      %573 = vmatprep.subr.bf16.mxu0 0
      %574 = vmatpush1.bf16.xpose.msra.mxu0 0
      %575 = vmatprep.subr.bf16.mxu0 0
      %576 = vmatpush1.bf16.xpose.msra.mxu0 0
      %577 = vmatprep.subr.bf16.mxu0 0
      %578 = vmatpush1.bf16.xpose.msra.mxu0 0
      %579 = vmatprep.subr.bf16.mxu0 0
      %580 = vmatpush1.bf16.xpose.msra.mxu0 0
      %581 = vmatprep.subr.bf16.mxu0 0
      %582 = vmatpush1.bf16.xpose.msra.mxu0 0
      %583 = vmatprep.subr.bf16.mxu0 0
      %584 = vmatpush1.bf16.xpose.msra.mxu0 0
      %585 = vmatprep.subr.bf16.mxu0 0
      %586 = vmatpush1.bf16.xpose.msra.mxu0 0
      %587 = vmatprep.subr.bf16.mxu0 0
      %588 = vmatpush1.bf16.xpose.msra.mxu0 0
      %589 = vmatprep.subr.bf16.mxu0 0
      %590 = vmatpush1.bf16.xpose.msra.mxu0 0
      %591 = vmatprep.subr.bf16.mxu0 0
      %592 = vmatpush1.bf16.xpose.msra.mxu0 0
      %593 = vmatprep.mubr.bf16.mxu0 0
      %594 = vmatmul.mubr.bf16.gmra.mrb[0].mxu0 %v272
      %v595 = vpop.f32.mrb[0].mxu0
      %v596 = vadd.f32 0.0, %v595
      %v597 = vpop.f32.mrb[0].mxu0
      %v598 = vpop.f32.mrb[0].mxu0
      %v599 = vpop.f32.mrb[0].mxu0
      %600 = vdwg.mxu0
      %v601 = vmul.f32 %v316, 0.35355338
      %v602 = vmul.f32 %v356, 0.35355338
      %v603 = vmul.f32 %v396, 0.35355338
      %v604 = vmul.f32 %v436, 0.35355338
      %v605 = vmul.f32 %v476, 0.35355338
      %v606 = vmul.f32 %v516, 0.35355338
      %v607 = vmul.f32 %v556, 0.35355338
      %v608 = vmul.f32 %v596, 0.35355338
      %v609 = vld [vmem:[%s256] sm:$0x1]
      %v610 = vld [vmem:[%s256 + $0x1] sm:$0x1]
      %v611 = vld [vmem:[%s256 + $0x2] sm:$0x1]
      %v612 = vld [vmem:[%s256 + $0x3] sm:$0x1]
      %v613 = vld [vmem:[%s256 + $0x4] sm:$0x1]
      %v614 = vld [vmem:[%s256 + $0x5] sm:$0x1]
      %v615 = vld [vmem:[%s256 + $0x6] sm:$0x1]
      %v616 = vld [vmem:[%s256 + $0x7] sm:$0x1]
      %vm617 = vcmp.gt.f32.partialorder %v609, 0.5
      %vm618 = vcmp.gt.f32.partialorder %v610, 0.5
      %vm619 = vcmp.gt.f32.partialorder %v611, 0.5
      %vm620 = vcmp.gt.f32.partialorder %v612, 0.5
      %vm621 = vcmp.gt.f32.partialorder %v613, 0.5
      %vm622 = vcmp.gt.f32.partialorder %v614, 0.5
      %vm623 = vcmp.gt.f32.partialorder %v615, 0.5
      %vm624 = vcmp.gt.f32.partialorder %v616, 0.5
      %v625 = vsel %vm617, 0.0, -1e+30
      %v626 = vsel %vm618, 0.0, -1e+30
      %v627 = vsel %vm619, 0.0, -1e+30
      %v628 = vsel %vm620, 0.0, -1e+30
      %v629 = vsel %vm621, 0.0, -1e+30
      %v630 = vsel %vm622, 0.0, -1e+30
      %v631 = vsel %vm623, 0.0, -1e+30
      %v632 = vsel %vm624, 0.0, -1e+30
      %v641 = vlaneseq
      %v642 = vshrl.u32 %v641, 7
      %v643 = vsub.s32 0, %v642
      %v644 = vrot.slane %v625, %v643
      %v645 = vlaneseq
      %v646 = vshrl.u32 %v645, 7
      %v647 = vsub.s32 0, %v646
      %v648 = vrot.slane %v626, %v647
      %v649 = vlaneseq
      %v650 = vshrl.u32 %v649, 7
      %v651 = vsub.s32 0, %v650
      %v652 = vrot.slane %v627, %v651
      %v653 = vlaneseq
      %v654 = vshrl.u32 %v653, 7
      %v655 = vsub.s32 0, %v654
      %v656 = vrot.slane %v628, %v655
      %v657 = vlaneseq
      %v658 = vshrl.u32 %v657, 7
      %v659 = vsub.s32 0, %v658
      %v660 = vrot.slane %v629, %v659
      %v661 = vlaneseq
      %v662 = vshrl.u32 %v661, 7
      %v663 = vsub.s32 0, %v662
      %v664 = vrot.slane %v630, %v663
      %v665 = vlaneseq
      %v666 = vshrl.u32 %v665, 7
      %v667 = vsub.s32 0, %v666
      %v668 = vrot.slane %v631, %v667
      %v669 = vlaneseq
      %v670 = vshrl.u32 %v669, 7
      %v671 = vsub.s32 0, %v670
      %v672 = vrot.slane %v632, %v671
      %v681 = vadd.f32 %v601, %v644
      %v682 = vadd.f32 %v602, %v648
      %v683 = vadd.f32 %v603, %v652
      %v684 = vadd.f32 %v604, %v656
      %v685 = vadd.f32 %v605, %v660
      %v686 = vadd.f32 %v606, %v664
      %v687 = vadd.f32 %v607, %v668
      %v688 = vadd.f32 %v608, %v672
      %vm689 = vcmask 64512
      %v690 = vsel %vm689, %v681, -inf
      %691 = vmax.xlane.f32.xlu0 %v690
      %v692 = vpop.xlane.xlu0 %691
      %v693 = vsel %vm689, %v682, -inf
      %694 = vmax.xlane.f32.xlu0 %v693
      %v695 = vpop.xlane.xlu0 %694
      %v696 = vsel %vm689, %v683, -inf
      %697 = vmax.xlane.f32.xlu0 %v696
      %v698 = vpop.xlane.xlu0 %697
      %v699 = vsel %vm689, %v684, -inf
      %700 = vmax.xlane.f32.xlu0 %v699
      %v701 = vpop.xlane.xlu0 %700
      %v702 = vsel %vm689, %v685, -inf
      %703 = vmax.xlane.f32.xlu0 %v702
      %v704 = vpop.xlane.xlu0 %703
      %v705 = vsel %vm689, %v686, -inf
      %706 = vmax.xlane.f32.xlu0 %v705
      %v707 = vpop.xlane.xlu0 %706
      %v708 = vsel %vm689, %v687, -inf
      %709 = vmax.xlane.f32.xlu0 %v708
      %v710 = vpop.xlane.xlu0 %709
      %v711 = vsel %vm689, %v688, -inf
      %712 = vmax.xlane.f32.xlu0 %v711
      %v713 = vpop.xlane.xlu0 %712
      %v714 = vsub.f32 %v681, %v692
      %v715 = vsub.f32 %v682, %v695
      %v716 = vsub.f32 %v683, %v698
      %v717 = vsub.f32 %v684, %v701
      %v718 = vsub.f32 %v685, %v704
      %v719 = vsub.f32 %v686, %v707
      %v720 = vsub.f32 %v687, %v710
      %v721 = vsub.f32 %v688, %v713
      %v722 = vmul.f32 %v714, 1.442695
      %v723 = vpow.pop %v722
      %v724 = vmul.f32 %v715, 1.442695
      %v725 = vpow.pop %v724
      %v726 = vmul.f32 %v716, 1.442695
      %v727 = vpow.pop %v726
      %v728 = vmul.f32 %v717, 1.442695
      %v729 = vpow.pop %v728
      %v730 = vmul.f32 %v718, 1.442695
      %v731 = vpow.pop %v730
      %v732 = vmul.f32 %v719, 1.442695
      %v733 = vpow.pop %v732
      %v734 = vmul.f32 %v720, 1.442695
      %v735 = vpow.pop %v734
      %v736 = vmul.f32 %v721, 1.442695
      %v737 = vpow.pop %v736
      %v738 = vsel %vm689, %v723, 0.0
      %739 = vadd.xlane.f32.xlu0 %v738
      %v740 = vpop.xlane.xlu0 %739
      %v741 = vsel %vm689, %v725, 0.0
      %742 = vadd.xlane.f32.xlu0 %v741
      %v743 = vpop.xlane.xlu0 %742
      %v744 = vsel %vm689, %v727, 0.0
      %745 = vadd.xlane.f32.xlu0 %v744
      %v746 = vpop.xlane.xlu0 %745
      %v747 = vsel %vm689, %v729, 0.0
      %748 = vadd.xlane.f32.xlu0 %v747
      %v749 = vpop.xlane.xlu0 %748
      %v750 = vsel %vm689, %v731, 0.0
      %751 = vadd.xlane.f32.xlu0 %v750
      %v752 = vpop.xlane.xlu0 %751
      %v753 = vsel %vm689, %v733, 0.0
      %754 = vadd.xlane.f32.xlu0 %v753
      %v755 = vpop.xlane.xlu0 %754
      %v756 = vsel %vm689, %v735, 0.0
      %757 = vadd.xlane.f32.xlu0 %v756
      %v758 = vpop.xlane.xlu0 %757
      %v759 = vsel %vm689, %v737, 0.0
      %760 = vadd.xlane.f32.xlu0 %v759
      %v761 = vpop.xlane.xlu0 %760
      %v762 = vrcp.pop %v740
      %v763 = vrcp.pop %v743
      %v764 = vrcp.pop %v746
      %v765 = vrcp.pop %v749
      %v766 = vrcp.pop %v752
      %v767 = vrcp.pop %v755
      %v768 = vrcp.pop %v758
      %v769 = vrcp.pop %v761
      %v770 = vmul.f32 %v723, %v762
      %v771 = vmul.f32 %v725, %v763
      %v772 = vmul.f32 %v727, %v764
      %v773 = vmul.f32 %v729, %v765
      %v774 = vmul.f32 %v731, %v766
      %v775 = vmul.f32 %v733, %v767
      %v776 = vmul.f32 %v735, %v768
      %v777 = vmul.f32 %v737, %v769
      %v778 = vpack.c.bf16 %v770, %v770
      %v779 = vpack.c.bf16 %v771, %v771
      %v780 = vpack.c.bf16 %v772, %v772
      %v781 = vpack.c.bf16 %v773, %v773
      %v782 = vpack.c.bf16 %v774, %v774
      %v783 = vpack.c.bf16 %v775, %v775
      %v784 = vpack.c.bf16 %v776, %v776
      %v785 = vpack.c.bf16 %v777, %v777
      %v786 = vld [vmem:[%s251] sm:$0xf]
      %v787 = vld [vmem:[%s251 + $0x4] sm:$0xf]
      %v788 = vld [vmem:[%s251 + $0x8] sm:$0xf]
      %v789 = vld [vmem:[%s251 + $0xc] sm:$0xf]
      %v790 = vld [vmem:[%s251 + $0x10] sm:$0xf]
      %v791 = vld [vmem:[%s251 + $0x14] sm:$0xf]
      %v792 = vld [vmem:[%s251 + $0x18] sm:$0xf]
      %v793 = vld [vmem:[%s251 + $0x1c] sm:$0xf]
      %v795 = vsel %vm689, %v778, 0
      %vm797 = vcmask 1043456
      %v799 = vsel %vm797, %v786, 0
      %801 = vmatprep.subr.bf16.mxu0 0
      %802 = vmatpush1.bf16.msra.mxu0 %v799
      %803 = vmatprep.subr.bf16.mxu0 0
      %804 = vmatpush1.bf16.msra.mxu0 0
      %805 = vmatprep.subr.bf16.mxu0 0
      %806 = vmatpush1.bf16.msra.mxu0 0
      %807 = vmatprep.subr.bf16.mxu0 0
      %808 = vmatpush1.bf16.msra.mxu0 0
      %809 = vmatprep.subr.bf16.mxu0 0
      %810 = vmatpush1.bf16.msra.mxu0 0
      %811 = vmatprep.subr.bf16.mxu0 0
      %812 = vmatpush1.bf16.msra.mxu0 0
      %813 = vmatprep.subr.bf16.mxu0 0
      %814 = vmatpush1.bf16.msra.mxu0 0
      %815 = vmatprep.subr.bf16.mxu0 0
      %816 = vmatpush1.bf16.msra.mxu0 0
      %817 = vmatprep.subr.bf16.mxu0 0
      %818 = vmatpush1.bf16.msra.mxu0 0
      %819 = vmatprep.subr.bf16.mxu0 0
      %820 = vmatpush1.bf16.msra.mxu0 0
      %821 = vmatprep.subr.bf16.mxu0 0
      %822 = vmatpush1.bf16.msra.mxu0 0
      %823 = vmatprep.subr.bf16.mxu0 0
      %824 = vmatpush1.bf16.msra.mxu0 0
      %825 = vmatprep.subr.bf16.mxu0 0
      %826 = vmatpush1.bf16.msra.mxu0 0
      %827 = vmatprep.subr.bf16.mxu0 0
      %828 = vmatpush1.bf16.msra.mxu0 0
      %829 = vmatprep.subr.bf16.mxu0 0
      %830 = vmatpush1.bf16.msra.mxu0 0
      %831 = vmatprep.subr.bf16.mxu0 0
      %832 = vmatpush1.bf16.msra.mxu0 0
      %833 = vmatprep.mubr.bf16.mxu0 0
      %834 = vmatmul.mubr.bf16.gmra.mrb[0].mxu0 %v795
      %v835 = vpop.f32.mrb[0].mxu0
      %v836 = vadd.f32 0.0, %v835
      %v837 = vpop.f32.mrb[0].mxu0
      %v838 = vpop.f32.mrb[0].mxu0
      %v839 = vpop.f32.mrb[0].mxu0
      %840 = vdwg.mxu0
      %v842 = vsel %vm689, %v779, 0
      %v845 = vsel %vm797, %v787, 0
      %847 = vmatprep.subr.bf16.mxu0 0
      %848 = vmatpush1.bf16.msra.mxu0 %v845
      %849 = vmatprep.subr.bf16.mxu0 0
      %850 = vmatpush1.bf16.msra.mxu0 0
      %851 = vmatprep.subr.bf16.mxu0 0
      %852 = vmatpush1.bf16.msra.mxu0 0
      %853 = vmatprep.subr.bf16.mxu0 0
      %854 = vmatpush1.bf16.msra.mxu0 0
      %855 = vmatprep.subr.bf16.mxu0 0
      %856 = vmatpush1.bf16.msra.mxu0 0
      %857 = vmatprep.subr.bf16.mxu0 0
      %858 = vmatpush1.bf16.msra.mxu0 0
      %859 = vmatprep.subr.bf16.mxu0 0
      %860 = vmatpush1.bf16.msra.mxu0 0
      %861 = vmatprep.subr.bf16.mxu0 0
      %862 = vmatpush1.bf16.msra.mxu0 0
      %863 = vmatprep.subr.bf16.mxu0 0
      %864 = vmatpush1.bf16.msra.mxu0 0
      %865 = vmatprep.subr.bf16.mxu0 0
      %866 = vmatpush1.bf16.msra.mxu0 0
      %867 = vmatprep.subr.bf16.mxu0 0
      %868 = vmatpush1.bf16.msra.mxu0 0
      %869 = vmatprep.subr.bf16.mxu0 0
      %870 = vmatpush1.bf16.msra.mxu0 0
      %871 = vmatprep.subr.bf16.mxu0 0
      %872 = vmatpush1.bf16.msra.mxu0 0
      %873 = vmatprep.subr.bf16.mxu0 0
      %874 = vmatpush1.bf16.msra.mxu0 0
      %875 = vmatprep.subr.bf16.mxu0 0
      %876 = vmatpush1.bf16.msra.mxu0 0
      %877 = vmatprep.subr.bf16.mxu0 0
      %878 = vmatpush1.bf16.msra.mxu0 0
      %879 = vmatprep.mubr.bf16.mxu0 0
      %880 = vmatmul.mubr.bf16.gmra.mrb[0].mxu0 %v842
      %v881 = vpop.f32.mrb[0].mxu0
      %v882 = vadd.f32 0.0, %v881
      %v883 = vpop.f32.mrb[0].mxu0
      %v884 = vpop.f32.mrb[0].mxu0
      %v885 = vpop.f32.mrb[0].mxu0
      %886 = vdwg.mxu0
      %v888 = vsel %vm689, %v780, 0
      %v891 = vsel %vm797, %v788, 0
      %893 = vmatprep.subr.bf16.mxu0 0
      %894 = vmatpush1.bf16.msra.mxu0 %v891
      %895 = vmatprep.subr.bf16.mxu0 0
      %896 = vmatpush1.bf16.msra.mxu0 0
      %897 = vmatprep.subr.bf16.mxu0 0
      %898 = vmatpush1.bf16.msra.mxu0 0
      %899 = vmatprep.subr.bf16.mxu0 0
      %900 = vmatpush1.bf16.msra.mxu0 0
      %901 = vmatprep.subr.bf16.mxu0 0
      %902 = vmatpush1.bf16.msra.mxu0 0
      %903 = vmatprep.subr.bf16.mxu0 0
      %904 = vmatpush1.bf16.msra.mxu0 0
      %905 = vmatprep.subr.bf16.mxu0 0
      %906 = vmatpush1.bf16.msra.mxu0 0
      %907 = vmatprep.subr.bf16.mxu0 0
      %908 = vmatpush1.bf16.msra.mxu0 0
      %909 = vmatprep.subr.bf16.mxu0 0
      %910 = vmatpush1.bf16.msra.mxu0 0
      %911 = vmatprep.subr.bf16.mxu0 0
      %912 = vmatpush1.bf16.msra.mxu0 0
      %913 = vmatprep.subr.bf16.mxu0 0
      %914 = vmatpush1.bf16.msra.mxu0 0
      %915 = vmatprep.subr.bf16.mxu0 0
      %916 = vmatpush1.bf16.msra.mxu0 0
      %917 = vmatprep.subr.bf16.mxu0 0
      %918 = vmatpush1.bf16.msra.mxu0 0
      %919 = vmatprep.subr.bf16.mxu0 0
      %920 = vmatpush1.bf16.msra.mxu0 0
      %921 = vmatprep.subr.bf16.mxu0 0
      %922 = vmatpush1.bf16.msra.mxu0 0
      %923 = vmatprep.subr.bf16.mxu0 0
      %924 = vmatpush1.bf16.msra.mxu0 0
      %925 = vmatprep.mubr.bf16.mxu0 0
      %926 = vmatmul.mubr.bf16.gmra.mrb[0].mxu0 %v888
      %v927 = vpop.f32.mrb[0].mxu0
      %v928 = vadd.f32 0.0, %v927
      %v929 = vpop.f32.mrb[0].mxu0
      %v930 = vpop.f32.mrb[0].mxu0
      %v931 = vpop.f32.mrb[0].mxu0
      %932 = vdwg.mxu0
      %v934 = vsel %vm689, %v781, 0
      %v937 = vsel %vm797, %v789, 0
      %939 = vmatprep.subr.bf16.mxu0 0
      %940 = vmatpush1.bf16.msra.mxu0 %v937
      %941 = vmatprep.subr.bf16.mxu0 0
      %942 = vmatpush1.bf16.msra.mxu0 0
      %943 = vmatprep.subr.bf16.mxu0 0
      %944 = vmatpush1.bf16.msra.mxu0 0
      %945 = vmatprep.subr.bf16.mxu0 0
      %946 = vmatpush1.bf16.msra.mxu0 0
      %947 = vmatprep.subr.bf16.mxu0 0
      %948 = vmatpush1.bf16.msra.mxu0 0
      %949 = vmatprep.subr.bf16.mxu0 0
      %950 = vmatpush1.bf16.msra.mxu0 0
      %951 = vmatprep.subr.bf16.mxu0 0
      %952 = vmatpush1.bf16.msra.mxu0 0
      %953 = vmatprep.subr.bf16.mxu0 0
      %954 = vmatpush1.bf16.msra.mxu0 0
      %955 = vmatprep.subr.bf16.mxu0 0
      %956 = vmatpush1.bf16.msra.mxu0 0
      %957 = vmatprep.subr.bf16.mxu0 0
      %958 = vmatpush1.bf16.msra.mxu0 0
      %959 = vmatprep.subr.bf16.mxu0 0
      %960 = vmatpush1.bf16.msra.mxu0 0
      %961 = vmatprep.subr.bf16.mxu0 0
      %962 = vmatpush1.bf16.msra.mxu0 0
      %963 = vmatprep.subr.bf16.mxu0 0
      %964 = vmatpush1.bf16.msra.mxu0 0
      %965 = vmatprep.subr.bf16.mxu0 0
      %966 = vmatpush1.bf16.msra.mxu0 0
      %967 = vmatprep.subr.bf16.mxu0 0
      %968 = vmatpush1.bf16.msra.mxu0 0
      %969 = vmatprep.subr.bf16.mxu0 0
      %970 = vmatpush1.bf16.msra.mxu0 0
      %971 = vmatprep.mubr.bf16.mxu0 0
      %972 = vmatmul.mubr.bf16.gmra.mrb[0].mxu0 %v934
      %v973 = vpop.f32.mrb[0].mxu0
      %v974 = vadd.f32 0.0, %v973
      %v975 = vpop.f32.mrb[0].mxu0
      %v976 = vpop.f32.mrb[0].mxu0
      %v977 = vpop.f32.mrb[0].mxu0
      %978 = vdwg.mxu0
      %v980 = vsel %vm689, %v782, 0
      %v983 = vsel %vm797, %v790, 0
      %985 = vmatprep.subr.bf16.mxu0 0
      %986 = vmatpush1.bf16.msra.mxu0 %v983
      %987 = vmatprep.subr.bf16.mxu0 0
      %988 = vmatpush1.bf16.msra.mxu0 0
      %989 = vmatprep.subr.bf16.mxu0 0
      %990 = vmatpush1.bf16.msra.mxu0 0
      %991 = vmatprep.subr.bf16.mxu0 0
      %992 = vmatpush1.bf16.msra.mxu0 0
      %993 = vmatprep.subr.bf16.mxu0 0
      %994 = vmatpush1.bf16.msra.mxu0 0
      %995 = vmatprep.subr.bf16.mxu0 0
      %996 = vmatpush1.bf16.msra.mxu0 0
      %997 = vmatprep.subr.bf16.mxu0 0
      %998 = vmatpush1.bf16.msra.mxu0 0
      %999 = vmatprep.subr.bf16.mxu0 0
      %1000 = vmatpush1.bf16.msra.mxu0 0
      %1001 = vmatprep.subr.bf16.mxu0 0
      %1002 = vmatpush1.bf16.msra.mxu0 0
      %1003 = vmatprep.subr.bf16.mxu0 0
      %1004 = vmatpush1.bf16.msra.mxu0 0
      %1005 = vmatprep.subr.bf16.mxu0 0
      %1006 = vmatpush1.bf16.msra.mxu0 0
      %1007 = vmatprep.subr.bf16.mxu0 0
      %1008 = vmatpush1.bf16.msra.mxu0 0
      %1009 = vmatprep.subr.bf16.mxu0 0
      %1010 = vmatpush1.bf16.msra.mxu0 0
      %1011 = vmatprep.subr.bf16.mxu0 0
      %1012 = vmatpush1.bf16.msra.mxu0 0
      %1013 = vmatprep.subr.bf16.mxu0 0
      %1014 = vmatpush1.bf16.msra.mxu0 0
      %1015 = vmatprep.subr.bf16.mxu0 0
      %1016 = vmatpush1.bf16.msra.mxu0 0
      %1017 = vmatprep.mubr.bf16.mxu0 0
      %1018 = vmatmul.mubr.bf16.gmra.mrb[0].mxu0 %v980
      %v1019 = vpop.f32.mrb[0].mxu0
      %v1020 = vadd.f32 0.0, %v1019
      %v1021 = vpop.f32.mrb[0].mxu0
      %v1022 = vpop.f32.mrb[0].mxu0
      %v1023 = vpop.f32.mrb[0].mxu0
      %1024 = vdwg.mxu0
      %v1026 = vsel %vm689, %v783, 0
      %v1029 = vsel %vm797, %v791, 0
      %1031 = vmatprep.subr.bf16.mxu0 0
      %1032 = vmatpush1.bf16.msra.mxu0 %v1029
      %1033 = vmatprep.subr.bf16.mxu0 0
      %1034 = vmatpush1.bf16.msra.mxu0 0
      %1035 = vmatprep.subr.bf16.mxu0 0
      %1036 = vmatpush1.bf16.msra.mxu0 0
      %1037 = vmatprep.subr.bf16.mxu0 0
      %1038 = vmatpush1.bf16.msra.mxu0 0
      %1039 = vmatprep.subr.bf16.mxu0 0
      %1040 = vmatpush1.bf16.msra.mxu0 0
      %1041 = vmatprep.subr.bf16.mxu0 0
      %1042 = vmatpush1.bf16.msra.mxu0 0
      %1043 = vmatprep.subr.bf16.mxu0 0
      %1044 = vmatpush1.bf16.msra.mxu0 0
      %1045 = vmatprep.subr.bf16.mxu0 0
      %1046 = vmatpush1.bf16.msra.mxu0 0
      %1047 = vmatprep.subr.bf16.mxu0 0
      %1048 = vmatpush1.bf16.msra.mxu0 0
      %1049 = vmatprep.subr.bf16.mxu0 0
      %1050 = vmatpush1.bf16.msra.mxu0 0
      %1051 = vmatprep.subr.bf16.mxu0 0
      %1052 = vmatpush1.bf16.msra.mxu0 0
      %1053 = vmatprep.subr.bf16.mxu0 0
      %1054 = vmatpush1.bf16.msra.mxu0 0
      %1055 = vmatprep.subr.bf16.mxu0 0
      %1056 = vmatpush1.bf16.msra.mxu0 0
      %1057 = vmatprep.subr.bf16.mxu0 0
      %1058 = vmatpush1.bf16.msra.mxu0 0
      %1059 = vmatprep.subr.bf16.mxu0 0
      %1060 = vmatpush1.bf16.msra.mxu0 0
      %1061 = vmatprep.subr.bf16.mxu0 0
      %1062 = vmatpush1.bf16.msra.mxu0 0
      %1063 = vmatprep.mubr.bf16.mxu0 0
      %1064 = vmatmul.mubr.bf16.gmra.mrb[0].mxu0 %v1026
      %v1065 = vpop.f32.mrb[0].mxu0
      %v1066 = vadd.f32 0.0, %v1065
      %v1067 = vpop.f32.mrb[0].mxu0
      %v1068 = vpop.f32.mrb[0].mxu0
      %v1069 = vpop.f32.mrb[0].mxu0
      %1070 = vdwg.mxu0
      %v1072 = vsel %vm689, %v784, 0
      %v1075 = vsel %vm797, %v792, 0
      %1077 = vmatprep.subr.bf16.mxu0 0
      %1078 = vmatpush1.bf16.msra.mxu0 %v1075
      %1079 = vmatprep.subr.bf16.mxu0 0
      %1080 = vmatpush1.bf16.msra.mxu0 0
      %1081 = vmatprep.subr.bf16.mxu0 0
      %1082 = vmatpush1.bf16.msra.mxu0 0
      %1083 = vmatprep.subr.bf16.mxu0 0
      %1084 = vmatpush1.bf16.msra.mxu0 0
      %1085 = vmatprep.subr.bf16.mxu0 0
      %1086 = vmatpush1.bf16.msra.mxu0 0
      %1087 = vmatprep.subr.bf16.mxu0 0
      %1088 = vmatpush1.bf16.msra.mxu0 0
      %1089 = vmatprep.subr.bf16.mxu0 0
      %1090 = vmatpush1.bf16.msra.mxu0 0
      %1091 = vmatprep.subr.bf16.mxu0 0
      %1092 = vmatpush1.bf16.msra.mxu0 0
      %1093 = vmatprep.subr.bf16.mxu0 0
      %1094 = vmatpush1.bf16.msra.mxu0 0
      %1095 = vmatprep.subr.bf16.mxu0 0
      %1096 = vmatpush1.bf16.msra.mxu0 0
      %1097 = vmatprep.subr.bf16.mxu0 0
      %1098 = vmatpush1.bf16.msra.mxu0 0
      %1099 = vmatprep.subr.bf16.mxu0 0
      %1100 = vmatpush1.bf16.msra.mxu0 0
      %1101 = vmatprep.subr.bf16.mxu0 0
      %1102 = vmatpush1.bf16.msra.mxu0 0
      %1103 = vmatprep.subr.bf16.mxu0 0
      %1104 = vmatpush1.bf16.msra.mxu0 0
      %1105 = vmatprep.subr.bf16.mxu0 0
      %1106 = vmatpush1.bf16.msra.mxu0 0
      %1107 = vmatprep.subr.bf16.mxu0 0
      %1108 = vmatpush1.bf16.msra.mxu0 0
      %1109 = vmatprep.mubr.bf16.mxu0 0
      %1110 = vmatmul.mubr.bf16.gmra.mrb[0].mxu0 %v1072
      %v1111 = vpop.f32.mrb[0].mxu0
      %v1112 = vadd.f32 0.0, %v1111
      %v1113 = vpop.f32.mrb[0].mxu0
      %v1114 = vpop.f32.mrb[0].mxu0
      %v1115 = vpop.f32.mrb[0].mxu0
      %1116 = vdwg.mxu0
      %v1118 = vsel %vm689, %v785, 0
      %v1121 = vsel %vm797, %v793, 0
      %1123 = vmatprep.subr.bf16.mxu0 0
      %1124 = vmatpush1.bf16.msra.mxu0 %v1121
      %1125 = vmatprep.subr.bf16.mxu0 0
      %1126 = vmatpush1.bf16.msra.mxu0 0
      %1127 = vmatprep.subr.bf16.mxu0 0
      %1128 = vmatpush1.bf16.msra.mxu0 0
      %1129 = vmatprep.subr.bf16.mxu0 0
      %1130 = vmatpush1.bf16.msra.mxu0 0
      %1131 = vmatprep.subr.bf16.mxu0 0
      %1132 = vmatpush1.bf16.msra.mxu0 0
      %1133 = vmatprep.subr.bf16.mxu0 0
      %1134 = vmatpush1.bf16.msra.mxu0 0
      %1135 = vmatprep.subr.bf16.mxu0 0
      %1136 = vmatpush1.bf16.msra.mxu0 0
      %1137 = vmatprep.subr.bf16.mxu0 0
      %1138 = vmatpush1.bf16.msra.mxu0 0
      %1139 = vmatprep.subr.bf16.mxu0 0
      %1140 = vmatpush1.bf16.msra.mxu0 0
      %1141 = vmatprep.subr.bf16.mxu0 0
      %1142 = vmatpush1.bf16.msra.mxu0 0
      %1143 = vmatprep.subr.bf16.mxu0 0
      %1144 = vmatpush1.bf16.msra.mxu0 0
      %1145 = vmatprep.subr.bf16.mxu0 0
      %1146 = vmatpush1.bf16.msra.mxu0 0
      %1147 = vmatprep.subr.bf16.mxu0 0
      %1148 = vmatpush1.bf16.msra.mxu0 0
      %1149 = vmatprep.subr.bf16.mxu0 0
      %1150 = vmatpush1.bf16.msra.mxu0 0
      %1151 = vmatprep.subr.bf16.mxu0 0
      %1152 = vmatpush1.bf16.msra.mxu0 0
      %1153 = vmatprep.subr.bf16.mxu0 0
      %1154 = vmatpush1.bf16.msra.mxu0 0
      %1155 = vmatprep.mubr.bf16.mxu0 0
      %1156 = vmatmul.mubr.bf16.gmra.mrb[0].mxu0 %v1118
      %v1157 = vpop.f32.mrb[0].mxu0
      %v1158 = vadd.f32 0.0, %v1157
      %v1159 = vpop.f32.mrb[0].mxu0
      %v1160 = vpop.f32.mrb[0].mxu0
      %v1161 = vpop.f32.mrb[0].mxu0
      %1162 = vdwg.mxu0
      %1163 = vst [vmem:[%s262] sm:$0xff] %v836
      %1164 = vst [vmem:[%s262 + $0x8] sm:$0xff] %v882
      %1165 = vst [vmem:[%s262 + $0x10] sm:$0xff] %v928
      %1166 = vst [vmem:[%s262 + $0x18] sm:$0xff] %v974
      %1167 = vst [vmem:[%s262 + $0x20] sm:$0xff] %v1020
      %1168 = vst [vmem:[%s262 + $0x28] sm:$0xff] %v1066
      %1169 = vst [vmem:[%s262 + $0x30] sm:$0xff] %v1112
      %1170 = vst [vmem:[%s262 + $0x38] sm:$0xff] %v1158
      %s1171 = smul.u32 8, %s15
      %p1172 = scmp.lt.s32.totalorder %s1171, 31
      %s1173 = scalar_select %p1172, %s1171, 31
      %s1174 = smul.addr %s1173, 8
      %s1175 = scalar_lea.vmem %s4, %s1174
      // Predicated region
      $region37: #{signnet_gnn_forward.19} parent=35 // pred_check
        %p1176 = pneg %p137
      $region38: #{signnet_gnn_forward.19} parent=35 // pred_check_branch
        %1178 = sbr.rel (%p1176) target = $region40
      $region39: #{signnet_gnn_forward.19} parent=35 // pred_region
        %s1179 = smul.u32 8, %s15
      $region40: #{signnet_gnn_forward.19} parent=35 // pred_fallthru
        _
    $region36: #{signnet_gnn_forward.19} parent=5 // pred_fallthru
      _
    %p1180 = scmp.le.s32.totalorder 2, %s10
    // Predicated region
    $region41: #{signnet_gnn_forward.19} parent=5 // pred_check
      %p1181 = pneg %p1180
    $region42: #{signnet_gnn_forward.19} parent=5 // pred_check_branch
      %1183 = sbr.rel (%p1181) target = $region44
    $region43: #{signnet_gnn_forward.19} parent=5 // pred_region
      %s1184 = ssub.s32 %s10, 2
      // Predicated region
      $region45: #{signnet_gnn_forward.19} parent=43 // pred_check
        %p1185 = pneg %p143
      $region46: #{signnet_gnn_forward.19} parent=43 // pred_check_branch
        %1187 = sbr.rel (%p1185) target = $region48
      $region47: #{signnet_gnn_forward.19} parent=43 // pred_region
        %s1188 = smul.u32 8, %s16
        %p1189 = scmp.lt.s32.totalorder %s1188, 31
        %s1190 = scalar_select %p1189, %s1188, 31
        %s1191 = smul.addr %s1190, 8
        %s1192 = scalar_lea.vmem %s4, %s1191
      $region48: #{signnet_gnn_forward.19} parent=43 // pred_fallthru
        _
    $region44: #{signnet_gnn_forward.19} parent=5 // pred_fallthru
      _
  $region6: #{signnet_gnn_forward.19} parent=0 // loop_footer
    %s14 = sadd.s32 1, %s10
  $region7: #{signnet_gnn_forward.19} parent=0 // loop_footer_branch
    %9 = sbr.rel target = $region3
  $region8: #{signnet_gnn_forward.19} parent=0 // loop_exit
    _

// kernel: signnet_gnn_forward.22
$region0: #{signnet_gnn_forward.22}
  #allocation0 [shape = 'u32[]', space=smem, size = 0x4, offset = 0x4, fixed_abs, tag = 'smem constant byte address 0x4 - core index']
  #allocation1 [shape = 'u32[144,128]{1,0:T(1,128)}', space=vmem, size = 0x12000, scoped, tag = 'internal scratch']
  #allocation2 [shape = 'f32[64,128]{1,0:T(8,128)}', space=vmem, size = 0x8000, scoped, tag = 'scratch operand']
  %s0 = inlined_call_operand.vmem [shape: f32[64,128], index: 0, kind: input, shape index: {}]
  %s1 = inlined_call_operand.vmem [shape: bf16[128,128], index: 1, kind: input, shape index: {}]
  %s2 = inlined_call_operand.vmem [shape: f32[1,128], index: 2, kind: input, shape index: {}]
  %s3 = inlined_call_operand.vmem [shape: bf16[64,128], index: 3, kind: output, shape index: {}]
  %s4 = sld [smem:[#allocation0]]
  $region30: #{signnet_gnn_forward.22} parent=0
    _
  %s6 = ssub.s32 1, %s4
  %s7 = scalar_select 0, %s6, %s4
  // Predicated region
  $region2: #{signnet_gnn_forward.22} parent=0 // pred_check
    _
  $region3: #{signnet_gnn_forward.22} parent=0 // pred_check_branch
    %9 = sbr.rel (0) target = $region5
  $region4: #{signnet_gnn_forward.22} parent=0 // pred_region
    _
  $region5: #{signnet_gnn_forward.22} parent=0 // pred_fallthru
    _
  // Predicated region
  $region6: #{signnet_gnn_forward.22} parent=0 // pred_check
    _
  $region7: #{signnet_gnn_forward.22} parent=0 // pred_check_branch
    %11 = sbr.rel (0) target = $region9
  $region8: #{signnet_gnn_forward.22} parent=0 // pred_region
    _
  $region9: #{signnet_gnn_forward.22} parent=0 // pred_fallthru
    _
  // Predicated region
  $region10: #{signnet_gnn_forward.22} parent=0 // pred_check
    _
  $region11: #{signnet_gnn_forward.22} parent=0 // pred_check_branch
    %13 = sbr.rel (0) target = $region13
  $region12: #{signnet_gnn_forward.22} parent=0 // pred_region
    _
  $region13: #{signnet_gnn_forward.22} parent=0 // pred_fallthru
    _
  %p15 = scmp.eq.s32.totalorder 0, 0
  // Predicated region
  $region14: #{signnet_gnn_forward.22} parent=0 // pred_check
    %p16 = pneg %p15
  $region15: #{signnet_gnn_forward.22} parent=0 // pred_check_branch
    %18 = sbr.rel (%p16) target = $region17
  $region16: #{signnet_gnn_forward.22} parent=0 // pred_region
    %19 = vst [vmem:[#allocation2] sm:$0xff] 0.0
    %20 = vst [vmem:[#allocation2 + $0x8] sm:$0xff] 0.0
    %21 = vst [vmem:[#allocation2 + $0x10] sm:$0xff] 0.0
    %22 = vst [vmem:[#allocation2 + $0x18] sm:$0xff] 0.0
    %23 = vst [vmem:[#allocation2 + $0x20] sm:$0xff] 0.0
    %24 = vst [vmem:[#allocation2 + $0x28] sm:$0xff] 0.0
    %25 = vst [vmem:[#allocation2 + $0x30] sm:$0xff] 0.0
    %26 = vst [vmem:[#allocation2 + $0x38] sm:$0xff] 0.0
  $region17: #{signnet_gnn_forward.22} parent=0 // pred_fallthru
    _
  %v27 = vld [vmem:[#allocation2] sm:$0xff]
  %v28 = vld [vmem:[#allocation2 + $0x8] sm:$0xff]
  %v29 = vld [vmem:[#allocation2 + $0x10] sm:$0xff]
  %v30 = vld [vmem:[#allocation2 + $0x18] sm:$0xff]
  %v31 = vld [vmem:[#allocation2 + $0x20] sm:$0xff]
  %v32 = vld [vmem:[#allocation2 + $0x28] sm:$0xff]
  %v33 = vld [vmem:[#allocation2 + $0x30] sm:$0xff]
  %v34 = vld [vmem:[#allocation2 + $0x38] sm:$0xff]
  %v35 = vld [vmem:[%s0] sm:$0xff]
  %v36 = vld [vmem:[%s0 + $0x8] sm:$0xff]
  %v37 = vld [vmem:[%s0 + $0x10] sm:$0xff]
  %v38 = vld [vmem:[%s0 + $0x18] sm:$0xff]
  %v39 = vld [vmem:[%s0 + $0x20] sm:$0xff]
  %v40 = vld [vmem:[%s0 + $0x28] sm:$0xff]
  %v41 = vld [vmem:[%s0 + $0x30] sm:$0xff]
  %v42 = vld [vmem:[%s0 + $0x38] sm:$0xff]
  %v43 = vpack.c.bf16 %v36, %v35
  %v44 = vpack.c.bf16 %v38, %v37
  %v45 = vpack.c.bf16 %v40, %v39
  %v46 = vpack.c.bf16 %v42, %v41
  %v47 = vld [vmem:[%s1] sm:$0xf]
  %v48 = vld [vmem:[%s1 + $0x4] sm:$0xf]
  %v49 = vld [vmem:[%s1 + $0x8] sm:$0xf]
  %v50 = vld [vmem:[%s1 + $0xc] sm:$0xf]
  %v51 = vld [vmem:[%s1 + $0x10] sm:$0xf]
  %v52 = vld [vmem:[%s1 + $0x14] sm:$0xf]
  %v53 = vld [vmem:[%s1 + $0x18] sm:$0xf]
  %v54 = vld [vmem:[%s1 + $0x1c] sm:$0xf]
  %v55 = vld [vmem:[%s1 + $0x20] sm:$0xf]
  %v56 = vld [vmem:[%s1 + $0x24] sm:$0xf]
  %v57 = vld [vmem:[%s1 + $0x28] sm:$0xf]
  %v58 = vld [vmem:[%s1 + $0x2c] sm:$0xf]
  %v59 = vld [vmem:[%s1 + $0x30] sm:$0xf]
  %v60 = vld [vmem:[%s1 + $0x34] sm:$0xf]
  %v61 = vld [vmem:[%s1 + $0x38] sm:$0xf]
  %v62 = vld [vmem:[%s1 + $0x3c] sm:$0xf]
  %v79 = vunpack.c.l.b16 %v47
  %v80 = vunpack.c.l.b16 %v48
  %v81 = vunpack.c.l.b16 %v49
  %v82 = vunpack.c.l.b16 %v50
  %v83 = vunpack.c.l.b16 %v51
  %v84 = vunpack.c.l.b16 %v52
  %v85 = vunpack.c.l.b16 %v53
  %v86 = vunpack.c.l.b16 %v54
  %v87 = vunpack.c.l.b16 %v55
  %v88 = vunpack.c.l.b16 %v56
  %v89 = vunpack.c.l.b16 %v57
  %v90 = vunpack.c.l.b16 %v58
  %v91 = vunpack.c.l.b16 %v59
  %v92 = vunpack.c.l.b16 %v60
  %v93 = vunpack.c.l.b16 %v61
  %v94 = vunpack.c.l.b16 %v62
  %v95 = vpack.c.b16 %v80, %v79
  %v96 = vpack.c.b16 %v82, %v81
  %v97 = vpack.c.b16 %v84, %v83
  %v98 = vpack.c.b16 %v86, %v85
  %v99 = vpack.c.b16 %v88, %v87
  %v100 = vpack.c.b16 %v90, %v89
  %v101 = vpack.c.b16 %v92, %v91
  %v102 = vpack.c.b16 %v94, %v93
  %111 = vmatprep.subr.bf16.mxu0 0
  %112 = vmatpush1.bf16.msra.mxu0 %v95
  %113 = vmatprep.subr.bf16.mxu0 0
  %114 = vmatpush1.bf16.msra.mxu0 %v96
  %115 = vmatprep.subr.bf16.mxu0 0
  %116 = vmatpush1.bf16.msra.mxu0 %v97
  %117 = vmatprep.subr.bf16.mxu0 0
  %118 = vmatpush1.bf16.msra.mxu0 %v98
  %119 = vmatprep.subr.bf16.mxu0 0
  %120 = vmatpush1.bf16.msra.mxu0 %v99
  %121 = vmatprep.subr.bf16.mxu0 0
  %122 = vmatpush1.bf16.msra.mxu0 %v100
  %123 = vmatprep.subr.bf16.mxu0 0
  %124 = vmatpush1.bf16.msra.mxu0 %v101
  %125 = vmatprep.subr.bf16.mxu0 0
  %126 = vmatpush1.bf16.msra.mxu0 %v102
  %127 = vmatprep.subr.bf16.mxu0 0
  %128 = vmatpush1.bf16.msra.mxu0 0
  %129 = vmatprep.subr.bf16.mxu0 0
  %130 = vmatpush1.bf16.msra.mxu0 0
  %131 = vmatprep.subr.bf16.mxu0 0
  %132 = vmatpush1.bf16.msra.mxu0 0
  %133 = vmatprep.subr.bf16.mxu0 0
  %134 = vmatpush1.bf16.msra.mxu0 0
  %135 = vmatprep.subr.bf16.mxu0 0
  %136 = vmatpush1.bf16.msra.mxu0 0
  %137 = vmatprep.subr.bf16.mxu0 0
  %138 = vmatpush1.bf16.msra.mxu0 0
  %139 = vmatprep.subr.bf16.mxu0 0
  %140 = vmatpush1.bf16.msra.mxu0 0
  %141 = vmatprep.subr.bf16.mxu0 0
  %142 = vmatpush1.bf16.msra.mxu0 0
  %143 = vmatprep.mubr.bf16.mxu0 0
  %144 = vmatmul.mubr.bf16.gmra.mrb[0].mxu0 %v43
  %v145 = vpop.f32.mrb[0].mxu0
  %v146 = vadd.f32 0.0, %v145
  %v147 = vpop.f32.mrb[0].mxu0
  %v148 = vpop.f32.mrb[0].mxu0
  %v149 = vadd.f32 0.0, %v148
  %v150 = vpop.f32.mrb[0].mxu0
  %151 = vmatprep.mubr.bf16.mxu0 0
  %152 = vmatmul.mubr.bf16.gmra.mrb[0].mxu0 %v44
  %v153 = vpop.f32.mrb[0].mxu0
  %v154 = vadd.f32 0.0, %v153
  %v155 = vpop.f32.mrb[0].mxu0
  %v156 = vpop.f32.mrb[0].mxu0
  %v157 = vadd.f32 0.0, %v156
  %v158 = vpop.f32.mrb[0].mxu0
  %159 = vmatprep.mubr.bf16.mxu0 0
  %160 = vmatmul.mubr.bf16.gmra.mrb[0].mxu0 %v45
  %v161 = vpop.f32.mrb[0].mxu0
  %v162 = vadd.f32 0.0, %v161
  %v163 = vpop.f32.mrb[0].mxu0
  %v164 = vpop.f32.mrb[0].mxu0
  %v165 = vadd.f32 0.0, %v164
  %v166 = vpop.f32.mrb[0].mxu0
  %167 = vmatprep.mubr.bf16.mxu0 0
  %168 = vmatmul.mubr.bf16.gmra.mrb[0].mxu0 %v46
  %v169 = vpop.f32.mrb[0].mxu0
  %v170 = vadd.f32 0.0, %v169
  %v171 = vpop.f32.mrb[0].mxu0
  %v172 = vpop.f32.mrb[0].mxu0
  %v173 = vadd.f32 0.0, %v172
  %v174 = vpop.f32.mrb[0].mxu0
  %175 = vdwg.mxu0
  %v176 = vadd.f32 %v27, %v146
  %v177 = vadd.f32 %v28, %v149
  %v178 = vadd.f32 %v29, %v154
  %v179 = vadd.f32 %v30, %v157
  %v180 = vadd.f32 %v31, %v162
  %v181 = vadd.f32 %v32, %v165
  %v182 = vadd.f32 %v33, %v170
  %v183 = vadd.f32 %v34, %v173
  %184 = vst [vmem:[#allocation2] sm:$0xff] %v176
  %185 = vst [vmem:[#allocation2 + $0x8] sm:$0xff] %v177
  %186 = vst [vmem:[#allocation2 + $0x10] sm:$0xff] %v178
  %187 = vst [vmem:[#allocation2 + $0x18] sm:$0xff] %v179
  %188 = vst [vmem:[#allocation2 + $0x20] sm:$0xff] %v180
  %189 = vst [vmem:[#allocation2 + $0x28] sm:$0xff] %v181
  %190 = vst [vmem:[#allocation2 + $0x30] sm:$0xff] %v182
  %191 = vst [vmem:[#allocation2 + $0x38] sm:$0xff] %v183
  // Predicated region
  $region18: #{signnet_gnn_forward.22} parent=0 // pred_check
    %p192 = pneg %p15
  $region19: #{signnet_gnn_forward.22} parent=0 // pred_check_branch
    %194 = sbr.rel (%p192) target = $region21
  $region20: #{signnet_gnn_forward.22} parent=0 // pred_region
    %v195 = vld [vmem:[#allocation2] sm:$0xff]
    %v196 = vld [vmem:[#allocation2 + $0x8] sm:$0xff]
    %v197 = vld [vmem:[#allocation2 + $0x10] sm:$0xff]
    %v198 = vld [vmem:[#allocation2 + $0x18] sm:$0xff]
    %v199 = vld [vmem:[#allocation2 + $0x20] sm:$0xff]
    %v200 = vld [vmem:[#allocation2 + $0x28] sm:$0xff]
    %v201 = vld [vmem:[#allocation2 + $0x30] sm:$0xff]
    %v202 = vld [vmem:[#allocation2 + $0x38] sm:$0xff]
    %v203 = vld [vmem:[%s2] sm:$0x1]
    %v205 = vlaneseq
    %v206 = vshrl.u32 %v205, 7
    %v207 = vsub.s32 0, %v206
    %v208 = vrot.slane %v203, %v207
    %v210 = vadd.f32 %v195, %v208
    %v211 = vadd.f32 %v196, %v208
    %v212 = vadd.f32 %v197, %v208
    %v213 = vadd.f32 %v198, %v208
    %v214 = vadd.f32 %v199, %v208
    %v215 = vadd.f32 %v200, %v208
    %v216 = vadd.f32 %v201, %v208
    %v217 = vadd.f32 %v202, %v208
    %v218 = vmax.f32 %v210, 0.0
    %v219 = vmax.f32 %v211, 0.0
    %v220 = vmax.f32 %v212, 0.0
    %v221 = vmax.f32 %v213, 0.0
    %v222 = vmax.f32 %v214, 0.0
    %v223 = vmax.f32 %v215, 0.0
    %v224 = vmax.f32 %v216, 0.0
    %v225 = vmax.f32 %v217, 0.0
    %v226 = vpack.c.bf16 %v219, %v218
    %v227 = vpack.c.bf16 %v221, %v220
    %v228 = vpack.c.bf16 %v223, %v222
    %v229 = vpack.c.bf16 %v225, %v224
    %v234 = vunpack.c.l.b16 %v226
    %v235 = vunpack.c.h.b16 %v226
    %v236 = vunpack.c.l.b16 %v227
    %v237 = vunpack.c.h.b16 %v227
    %v238 = vunpack.c.l.b16 %v228
    %v239 = vunpack.c.h.b16 %v228
    %v240 = vunpack.c.l.b16 %v229
    %v241 = vunpack.c.h.b16 %v229
    %v242 = vpack.c.b16 %v234, %v234
    %v243 = vpack.c.b16 %v235, %v235
    %v244 = vpack.c.b16 %v236, %v236
    %v245 = vpack.c.b16 %v237, %v237
    %v246 = vpack.c.b16 %v238, %v238
    %v247 = vpack.c.b16 %v239, %v239
    %v248 = vpack.c.b16 %v240, %v240
    %v249 = vpack.c.b16 %v241, %v241
    %258 = vst [vmem:[%s3] sm:$0xf] %v242
    %259 = vst [vmem:[%s3 + $0x4] sm:$0xf] %v243
    %260 = vst [vmem:[%s3 + $0x8] sm:$0xf] %v244
    %261 = vst [vmem:[%s3 + $0xc] sm:$0xf] %v245
    %262 = vst [vmem:[%s3 + $0x10] sm:$0xf] %v246
    %263 = vst [vmem:[%s3 + $0x14] sm:$0xf] %v247
    %264 = vst [vmem:[%s3 + $0x18] sm:$0xf] %v248
    %265 = vst [vmem:[%s3 + $0x1c] sm:$0xf] %v249
  $region21: #{signnet_gnn_forward.22} parent=0 // pred_fallthru
    _
  // Predicated region
  $region22: #{signnet_gnn_forward.22} parent=0 // pred_check
    _
  $region23: #{signnet_gnn_forward.22} parent=0 // pred_check_branch
    %267 = sbr.rel (0) target = $region25
  $region24: #{signnet_gnn_forward.22} parent=0 // pred_region
    _
  $region25: #{signnet_gnn_forward.22} parent=0 // pred_fallthru
    _
  // Predicated region
  $region26: #{signnet_gnn_forward.22} parent=0 // pred_check
    _
  $region27: #{signnet_gnn_forward.22} parent=0 // pred_check_branch
    %269 = sbr.rel (0) target = $region29
  $region28: #{signnet_gnn_forward.22} parent=0 // pred_region
    _
  $region29: #{signnet_gnn_forward.22} parent=0 // pred_fallthru
    _

// kernel: signnet_gnn_forward.21
$region0: #{signnet_gnn_forward.21}
  #allocation0 [shape = 'u32[]', space=smem, size = 0x4, offset = 0x4, fixed_abs, tag = 'smem constant byte address 0x4 - core index']
  #allocation1 [shape = 'u32[144,128]{1,0:T(1,128)}', space=vmem, size = 0x12000, scoped, tag = 'internal scratch']
  %s0 = inlined_call_operand.vmem [shape: f32[64,128], index: 0, kind: input, shape index: {}]
  %s1 = inlined_call_operand.vmem [shape: f32[64,128], index: 1, kind: input, shape index: {}]
  %s2 = inlined_call_operand.vmem [shape: f32[64,1], index: 2, kind: input, shape index: {}]
  %s3 = inlined_call_operand.vmem [shape: f32[1,128], index: 3, kind: input, shape index: {}]
  %s4 = inlined_call_operand.vmem [shape: f32[1,128], index: 4, kind: input, shape index: {}]
  %s5 = inlined_call_operand.vmem [shape: f32[64,128], index: 5, kind: output, shape index: {}]
  %s6 = sld [smem:[#allocation0]]
  $region30: #{signnet_gnn_forward.21} parent=0
    _
  %s8 = ssub.s32 1, %s6
  %s9 = scalar_select 0, %s8, %s6
  // Predicated region
  $region2: #{signnet_gnn_forward.21} parent=0 // pred_check
    _
  $region3: #{signnet_gnn_forward.21} parent=0 // pred_check_branch
    %11 = sbr.rel (0) target = $region5
  $region4: #{signnet_gnn_forward.21} parent=0 // pred_region
    _
  $region5: #{signnet_gnn_forward.21} parent=0 // pred_fallthru
    _
  // Predicated region
  $region6: #{signnet_gnn_forward.21} parent=0 // pred_check
    _
  $region7: #{signnet_gnn_forward.21} parent=0 // pred_check_branch
    %13 = sbr.rel (0) target = $region9
  $region8: #{signnet_gnn_forward.21} parent=0 // pred_region
    _
  $region9: #{signnet_gnn_forward.21} parent=0 // pred_fallthru
    _
  // Predicated region
  $region10: #{signnet_gnn_forward.21} parent=0 // pred_check
    _
  $region11: #{signnet_gnn_forward.21} parent=0 // pred_check_branch
    %15 = sbr.rel (0) target = $region13
  $region12: #{signnet_gnn_forward.21} parent=0 // pred_region
    _
  $region13: #{signnet_gnn_forward.21} parent=0 // pred_fallthru
    _
  // Predicated region
  $region14: #{signnet_gnn_forward.21} parent=0 // pred_check
    _
  $region15: #{signnet_gnn_forward.21} parent=0 // pred_check_branch
    %17 = sbr.rel (0) target = $region17
  $region16: #{signnet_gnn_forward.21} parent=0 // pred_region
    _
  $region17: #{signnet_gnn_forward.21} parent=0 // pred_fallthru
    _
  // Predicated region
  $region18: #{signnet_gnn_forward.21} parent=0 // pred_check
    _
  $region19: #{signnet_gnn_forward.21} parent=0 // pred_check_branch
    %19 = sbr.rel (0) target = $region21
  $region20: #{signnet_gnn_forward.21} parent=0 // pred_region
    _
  $region21: #{signnet_gnn_forward.21} parent=0 // pred_fallthru
    _
  %v20 = vld [vmem:[%s0] sm:$0xff]
  %v21 = vld [vmem:[%s0 + $0x8] sm:$0xff]
  %v22 = vld [vmem:[%s0 + $0x10] sm:$0xff]
  %v23 = vld [vmem:[%s0 + $0x18] sm:$0xff]
  %v24 = vld [vmem:[%s0 + $0x20] sm:$0xff]
  %v25 = vld [vmem:[%s0 + $0x28] sm:$0xff]
  %v26 = vld [vmem:[%s0 + $0x30] sm:$0xff]
  %v27 = vld [vmem:[%s0 + $0x38] sm:$0xff]
  %v28 = vld [vmem:[%s1] sm:$0xff]
  %v29 = vld [vmem:[%s1 + $0x8] sm:$0xff]
  %v30 = vld [vmem:[%s1 + $0x10] sm:$0xff]
  %v31 = vld [vmem:[%s1 + $0x18] sm:$0xff]
  %v32 = vld [vmem:[%s1 + $0x20] sm:$0xff]
  %v33 = vld [vmem:[%s1 + $0x28] sm:$0xff]
  %v34 = vld [vmem:[%s1 + $0x30] sm:$0xff]
  %v35 = vld [vmem:[%s1 + $0x38] sm:$0xff]
  %v36 = vadd.f32 %v20, %v28
  %v37 = vadd.f32 %v21, %v29
  %v38 = vadd.f32 %v22, %v30
  %v39 = vadd.f32 %v23, %v31
  %v40 = vadd.f32 %v24, %v32
  %v41 = vadd.f32 %v25, %v33
  %v42 = vadd.f32 %v26, %v34
  %v43 = vadd.f32 %v27, %v35
  %v44 = vlaneseq
  %v45 = vand.u32 %v44, 127
  %vm46 = vcmp.lt.s32.totalorder %v45, 32
  %v47 = vsel %vm46, 1, 0
  %v48 = vcvt.s32.f32 %v47
  %v49 = vmul.f32 %v36, %v48
  %v50 = vmul.f32 %v37, %v48
  %v51 = vmul.f32 %v38, %v48
  %v52 = vmul.f32 %v39, %v48
  %v53 = vmul.f32 %v40, %v48
  %v54 = vmul.f32 %v41, %v48
  %v55 = vmul.f32 %v42, %v48
  %v56 = vmul.f32 %v43, %v48
  %57 = vadd.xlane.f32.xlu0 %v49
  %v58 = vpop.xlane.xlu0 %57
  %59 = vadd.xlane.f32.xlu0 %v50
  %v60 = vpop.xlane.xlu0 %59
  %61 = vadd.xlane.f32.xlu0 %v51
  %v62 = vpop.xlane.xlu0 %61
  %63 = vadd.xlane.f32.xlu0 %v52
  %v64 = vpop.xlane.xlu0 %63
  %65 = vadd.xlane.f32.xlu0 %v53
  %v66 = vpop.xlane.xlu0 %65
  %67 = vadd.xlane.f32.xlu0 %v54
  %v68 = vpop.xlane.xlu0 %67
  %69 = vadd.xlane.f32.xlu0 %v55
  %v70 = vpop.xlane.xlu0 %69
  %71 = vadd.xlane.f32.xlu0 %v56
  %v72 = vpop.xlane.xlu0 %71
  %v73 = vmul.f32 %v58, 0.03125
  %v74 = vmul.f32 %v60, 0.03125
  %v75 = vmul.f32 %v62, 0.03125
  %v76 = vmul.f32 %v64, 0.03125
  %v77 = vmul.f32 %v66, 0.03125
  %v78 = vmul.f32 %v68, 0.03125
  %v79 = vmul.f32 %v70, 0.03125
  %v80 = vmul.f32 %v72, 0.03125
  %v81 = vsub.f32 %v36, %v73
  %v82 = vsub.f32 %v37, %v74
  %v83 = vsub.f32 %v38, %v75
  %v84 = vsub.f32 %v39, %v76
  %v85 = vsub.f32 %v40, %v77
  %v86 = vsub.f32 %v41, %v78
  %v87 = vsub.f32 %v42, %v79
  %v88 = vsub.f32 %v43, %v80
  %v89 = vmul.f32 %v81, %v48
  %v90 = vmul.f32 %v82, %v48
  %v91 = vmul.f32 %v83, %v48
  %v92 = vmul.f32 %v84, %v48
  %v93 = vmul.f32 %v85, %v48
  %v94 = vmul.f32 %v86, %v48
  %v95 = vmul.f32 %v87, %v48
  %v96 = vmul.f32 %v88, %v48
  %v97 = vmul.f32 %v89, %v89
  %v98 = vmul.f32 %v90, %v90
  %v99 = vmul.f32 %v91, %v91
  %v100 = vmul.f32 %v92, %v92
  %v101 = vmul.f32 %v93, %v93
  %v102 = vmul.f32 %v94, %v94
  %v103 = vmul.f32 %v95, %v95
  %v104 = vmul.f32 %v96, %v96
  %105 = vadd.xlane.f32.xlu0 %v97
  %v106 = vpop.xlane.xlu0 %105
  %107 = vadd.xlane.f32.xlu0 %v98
  %v108 = vpop.xlane.xlu0 %107
  %109 = vadd.xlane.f32.xlu0 %v99
  %v110 = vpop.xlane.xlu0 %109
  %111 = vadd.xlane.f32.xlu0 %v100
  %v112 = vpop.xlane.xlu0 %111
  %113 = vadd.xlane.f32.xlu0 %v101
  %v114 = vpop.xlane.xlu0 %113
  %115 = vadd.xlane.f32.xlu0 %v102
  %v116 = vpop.xlane.xlu0 %115
  %117 = vadd.xlane.f32.xlu0 %v103
  %v118 = vpop.xlane.xlu0 %117
  %119 = vadd.xlane.f32.xlu0 %v104
  %v120 = vpop.xlane.xlu0 %119
  %v121 = vmul.f32 %v106, 0.03125
  %v122 = vmul.f32 %v108, 0.03125
  %v123 = vmul.f32 %v110, 0.03125
  %v124 = vmul.f32 %v112, 0.03125
  %v125 = vmul.f32 %v114, 0.03125
  %v126 = vmul.f32 %v116, 0.03125
  %v127 = vmul.f32 %v118, 0.03125
  %v128 = vmul.f32 %v120, 0.03125
  %v129 = vadd.f32 %v121, 1e-05
  %v130 = vadd.f32 %v122, 1e-05
  %v131 = vadd.f32 %v123, 1e-05
  %v132 = vadd.f32 %v124, 1e-05
  %v133 = vadd.f32 %v125, 1e-05
  %v134 = vadd.f32 %v126, 1e-05
  %v135 = vadd.f32 %v127, 1e-05
  %v136 = vadd.f32 %v128, 1e-05
  %v137 = vrsqrt.pop %v129
  %v138 = vrsqrt.pop %v130
  %v139 = vrsqrt.pop %v131
  %v140 = vrsqrt.pop %v132
  %v141 = vrsqrt.pop %v133
  %v142 = vrsqrt.pop %v134
  %v143 = vrsqrt.pop %v135
  %v144 = vrsqrt.pop %v136
  %v145 = vmul.f32 %v89, %v137
  %v146 = vmul.f32 %v90, %v138
  %v147 = vmul.f32 %v91, %v139
  %v148 = vmul.f32 %v92, %v140
  %v149 = vmul.f32 %v93, %v141
  %v150 = vmul.f32 %v94, %v142
  %v151 = vmul.f32 %v95, %v143
  %v152 = vmul.f32 %v96, %v144
  %v153 = vld [vmem:[%s3] sm:$0x1]
  %v155 = vlaneseq
  %v156 = vshrl.u32 %v155, 7
  %v157 = vsub.s32 0, %v156
  %v158 = vrot.slane %v153, %v157
  %v160 = vmul.f32 %v145, %v158
  %v161 = vmul.f32 %v146, %v158
  %v162 = vmul.f32 %v147, %v158
  %v163 = vmul.f32 %v148, %v158
  %v164 = vmul.f32 %v149, %v158
  %v165 = vmul.f32 %v150, %v158
  %v166 = vmul.f32 %v151, %v158
  %v167 = vmul.f32 %v152, %v158
  %v168 = vld [vmem:[%s4] sm:$0x1]
  %v170 = vlaneseq
  %v171 = vshrl.u32 %v170, 7
  %v172 = vsub.s32 0, %v171
  %v173 = vrot.slane %v168, %v172
  %v175 = vadd.f32 %v160, %v173
  %v176 = vadd.f32 %v161, %v173
  %v177 = vadd.f32 %v162, %v173
  %v178 = vadd.f32 %v163, %v173
  %v179 = vadd.f32 %v164, %v173
  %v180 = vadd.f32 %v165, %v173
  %v181 = vadd.f32 %v166, %v173
  %v182 = vadd.f32 %v167, %v173
  %v183 = vld [vmem:[%s2] sm:$0xff]
  %v184 = vld [vmem:[%s2 + $0x8] sm:$0xff]
  %v185 = vld [vmem:[%s2 + $0x10] sm:$0xff]
  %v186 = vld [vmem:[%s2 + $0x18] sm:$0xff]
  %v187 = vld [vmem:[%s2 + $0x20] sm:$0xff]
  %v188 = vld [vmem:[%s2 + $0x28] sm:$0xff]
  %v189 = vld [vmem:[%s2 + $0x30] sm:$0xff]
  %v190 = vld [vmem:[%s2 + $0x38] sm:$0xff]
  %192 = vset.pattern.permute.xlu0 0
  %193 = vperm.xlu0 %192, %v183
  %v194 = vpop.permute.xlu0 %193
  %197 = vset.pattern.permute.xlu0 0
  %198 = vperm.xlu0 %197, %v184
  %v199 = vpop.permute.xlu0 %198
  %202 = vset.pattern.permute.xlu0 0
  %203 = vperm.xlu0 %202, %v185
  %v204 = vpop.permute.xlu0 %203
  %207 = vset.pattern.permute.xlu0 0
  %208 = vperm.xlu0 %207, %v186
  %v209 = vpop.permute.xlu0 %208
  %212 = vset.pattern.permute.xlu0 0
  %213 = vperm.xlu0 %212, %v187
  %v214 = vpop.permute.xlu0 %213
  %217 = vset.pattern.permute.xlu0 0
  %218 = vperm.xlu0 %217, %v188
  %v219 = vpop.permute.xlu0 %218
  %222 = vset.pattern.permute.xlu0 0
  %223 = vperm.xlu0 %222, %v189
  %v224 = vpop.permute.xlu0 %223
  %227 = vset.pattern.permute.xlu0 0
  %228 = vperm.xlu0 %227, %v190
  %v229 = vpop.permute.xlu0 %228
  %v231 = vmul.f32 %v175, %v194
  %v232 = vmul.f32 %v176, %v199
  %v233 = vmul.f32 %v177, %v204
  %v234 = vmul.f32 %v178, %v209
  %v235 = vmul.f32 %v179, %v214
  %v236 = vmul.f32 %v180, %v219
  %v237 = vmul.f32 %v181, %v224
  %v238 = vmul.f32 %v182, %v229
  %239 = vst [vmem:[%s5] sm:$0xff] %v231
  %240 = vst [vmem:[%s5 + $0x8] sm:$0xff] %v232
  %241 = vst [vmem:[%s5 + $0x10] sm:$0xff] %v233
  %242 = vst [vmem:[%s5 + $0x18] sm:$0xff] %v234
  %243 = vst [vmem:[%s5 + $0x20] sm:$0xff] %v235
  %244 = vst [vmem:[%s5 + $0x28] sm:$0xff] %v236
  %245 = vst [vmem:[%s5 + $0x30] sm:$0xff] %v237
  %246 = vst [vmem:[%s5 + $0x38] sm:$0xff] %v238
  // Predicated region
  $region22: #{signnet_gnn_forward.21} parent=0 // pred_check
    _
  $region23: #{signnet_gnn_forward.21} parent=0 // pred_check_branch
    %248 = sbr.rel (0) target = $region25
  $region24: #{signnet_gnn_forward.21} parent=0 // pred_region
    _
  $region25: #{signnet_gnn_forward.21} parent=0 // pred_fallthru
    _
  // Predicated region
  $region26: #{signnet_gnn_forward.21} parent=0 // pred_check
    _
  $region27: #{signnet_gnn_forward.21} parent=0 // pred_check_branch
    %250 = sbr.rel (0) target = $region29
  $region28: #{signnet_gnn_forward.21} parent=0 // pred_region
    _
  $region29: #{signnet_gnn_forward.21} parent=0 // pred_fallthru
    _

// kernel: signnet_gnn_forward.23
$region0: #{signnet_gnn_forward.23}
  #allocation0 [shape = 'u32[]', space=smem, size = 0x4, offset = 0x4, fixed_abs, tag = 'smem constant byte address 0x4 - core index']
  #allocation1 [shape = 'u32[144,128]{1,0:T(1,128)}', space=vmem, size = 0x12000, scoped, tag = 'internal scratch']
  #allocation2 [shape = 'f32[64,128]{1,0:T(8,128)}', space=vmem, size = 0x8000, scoped, tag = 'scratch operand']
  %s0 = inlined_call_operand.vmem [shape: bf16[64,128], index: 0, kind: input, shape index: {}]
  %s1 = inlined_call_operand.vmem [shape: bf16[128,128], index: 1, kind: input, shape index: {}]
  %s2 = inlined_call_operand.vmem [shape: f32[1,128], index: 2, kind: input, shape index: {}]
  %s3 = inlined_call_operand.vmem [shape: f32[64,128], index: 3, kind: output, shape index: {}]
  %s4 = sld [smem:[#allocation0]]
  $region30: #{signnet_gnn_forward.23} parent=0
    _
  %s6 = ssub.s32 1, %s4
  %s7 = scalar_select 0, %s6, %s4
  // Predicated region
  $region2: #{signnet_gnn_forward.23} parent=0 // pred_check
    _
  $region3: #{signnet_gnn_forward.23} parent=0 // pred_check_branch
    %9 = sbr.rel (0) target = $region5
  $region4: #{signnet_gnn_forward.23} parent=0 // pred_region
    _
  $region5: #{signnet_gnn_forward.23} parent=0 // pred_fallthru
    _
  // Predicated region
  $region6: #{signnet_gnn_forward.23} parent=0 // pred_check
    _
  $region7: #{signnet_gnn_forward.23} parent=0 // pred_check_branch
    %11 = sbr.rel (0) target = $region9
  $region8: #{signnet_gnn_forward.23} parent=0 // pred_region
    _
  $region9: #{signnet_gnn_forward.23} parent=0 // pred_fallthru
    _
  // Predicated region
  $region10: #{signnet_gnn_forward.23} parent=0 // pred_check
    _
  $region11: #{signnet_gnn_forward.23} parent=0 // pred_check_branch
    %13 = sbr.rel (0) target = $region13
  $region12: #{signnet_gnn_forward.23} parent=0 // pred_region
    _
  $region13: #{signnet_gnn_forward.23} parent=0 // pred_fallthru
    _
  %p15 = scmp.eq.s32.totalorder 0, 0
  // Predicated region
  $region14: #{signnet_gnn_forward.23} parent=0 // pred_check
    %p16 = pneg %p15
  $region15: #{signnet_gnn_forward.23} parent=0 // pred_check_branch
    %18 = sbr.rel (%p16) target = $region17
  $region16: #{signnet_gnn_forward.23} parent=0 // pred_region
    %19 = vst [vmem:[#allocation2] sm:$0xff] 0.0
    %20 = vst [vmem:[#allocation2 + $0x8] sm:$0xff] 0.0
    %21 = vst [vmem:[#allocation2 + $0x10] sm:$0xff] 0.0
    %22 = vst [vmem:[#allocation2 + $0x18] sm:$0xff] 0.0
    %23 = vst [vmem:[#allocation2 + $0x20] sm:$0xff] 0.0
    %24 = vst [vmem:[#allocation2 + $0x28] sm:$0xff] 0.0
    %25 = vst [vmem:[#allocation2 + $0x30] sm:$0xff] 0.0
    %26 = vst [vmem:[#allocation2 + $0x38] sm:$0xff] 0.0
  $region17: #{signnet_gnn_forward.23} parent=0 // pred_fallthru
    _
  %v27 = vld [vmem:[#allocation2] sm:$0xff]
  %v28 = vld [vmem:[#allocation2 + $0x8] sm:$0xff]
  %v29 = vld [vmem:[#allocation2 + $0x10] sm:$0xff]
  %v30 = vld [vmem:[#allocation2 + $0x18] sm:$0xff]
  %v31 = vld [vmem:[#allocation2 + $0x20] sm:$0xff]
  %v32 = vld [vmem:[#allocation2 + $0x28] sm:$0xff]
  %v33 = vld [vmem:[#allocation2 + $0x30] sm:$0xff]
  %v34 = vld [vmem:[#allocation2 + $0x38] sm:$0xff]
  %v35 = vld [vmem:[%s0] sm:$0xf]
  %v36 = vld [vmem:[%s0 + $0x4] sm:$0xf]
  %v37 = vld [vmem:[%s0 + $0x8] sm:$0xf]
  %v38 = vld [vmem:[%s0 + $0xc] sm:$0xf]
  %v39 = vld [vmem:[%s0 + $0x10] sm:$0xf]
  %v40 = vld [vmem:[%s0 + $0x14] sm:$0xf]
  %v41 = vld [vmem:[%s0 + $0x18] sm:$0xf]
  %v42 = vld [vmem:[%s0 + $0x1c] sm:$0xf]
  %v43 = vld [vmem:[%s1] sm:$0xf]
  %v44 = vld [vmem:[%s1 + $0x4] sm:$0xf]
  %v45 = vld [vmem:[%s1 + $0x8] sm:$0xf]
  %v46 = vld [vmem:[%s1 + $0xc] sm:$0xf]
  %v47 = vld [vmem:[%s1 + $0x10] sm:$0xf]
  %v48 = vld [vmem:[%s1 + $0x14] sm:$0xf]
  %v49 = vld [vmem:[%s1 + $0x18] sm:$0xf]
  %v50 = vld [vmem:[%s1 + $0x1c] sm:$0xf]
  %v51 = vld [vmem:[%s1 + $0x20] sm:$0xf]
  %v52 = vld [vmem:[%s1 + $0x24] sm:$0xf]
  %v53 = vld [vmem:[%s1 + $0x28] sm:$0xf]
  %v54 = vld [vmem:[%s1 + $0x2c] sm:$0xf]
  %v55 = vld [vmem:[%s1 + $0x30] sm:$0xf]
  %v56 = vld [vmem:[%s1 + $0x34] sm:$0xf]
  %v57 = vld [vmem:[%s1 + $0x38] sm:$0xf]
  %v58 = vld [vmem:[%s1 + $0x3c] sm:$0xf]
  %v67 = vunpack.c.l.b16 %v35
  %v68 = vunpack.c.l.b16 %v36
  %v69 = vunpack.c.l.b16 %v37
  %v70 = vunpack.c.l.b16 %v38
  %v71 = vunpack.c.l.b16 %v39
  %v72 = vunpack.c.l.b16 %v40
  %v73 = vunpack.c.l.b16 %v41
  %v74 = vunpack.c.l.b16 %v42
  %v75 = vpack.c.b16 %v68, %v67
  %v76 = vpack.c.b16 %v70, %v69
  %v77 = vpack.c.b16 %v72, %v71
  %v78 = vpack.c.b16 %v74, %v73
  %v99 = vunpack.c.l.b16 %v43
  %v100 = vunpack.c.l.b16 %v44
  %v101 = vunpack.c.l.b16 %v45
  %v102 = vunpack.c.l.b16 %v46
  %v103 = vunpack.c.l.b16 %v47
  %v104 = vunpack.c.l.b16 %v48
  %v105 = vunpack.c.l.b16 %v49
  %v106 = vunpack.c.l.b16 %v50
  %v107 = vunpack.c.l.b16 %v51
  %v108 = vunpack.c.l.b16 %v52
  %v109 = vunpack.c.l.b16 %v53
  %v110 = vunpack.c.l.b16 %v54
  %v111 = vunpack.c.l.b16 %v55
  %v112 = vunpack.c.l.b16 %v56
  %v113 = vunpack.c.l.b16 %v57
  %v114 = vunpack.c.l.b16 %v58
  %v115 = vpack.c.b16 %v100, %v99
  %v116 = vpack.c.b16 %v102, %v101
  %v117 = vpack.c.b16 %v104, %v103
  %v118 = vpack.c.b16 %v106, %v105
  %v119 = vpack.c.b16 %v108, %v107
  %v120 = vpack.c.b16 %v110, %v109
  %v121 = vpack.c.b16 %v112, %v111
  %v122 = vpack.c.b16 %v114, %v113
  %131 = vmatprep.subr.bf16.mxu0 0
  %132 = vmatpush1.bf16.msra.mxu0 %v115
  %133 = vmatprep.subr.bf16.mxu0 0
  %134 = vmatpush1.bf16.msra.mxu0 %v116
  %135 = vmatprep.subr.bf16.mxu0 0
  %136 = vmatpush1.bf16.msra.mxu0 %v117
  %137 = vmatprep.subr.bf16.mxu0 0
  %138 = vmatpush1.bf16.msra.mxu0 %v118
  %139 = vmatprep.subr.bf16.mxu0 0
  %140 = vmatpush1.bf16.msra.mxu0 %v119
  %141 = vmatprep.subr.bf16.mxu0 0
  %142 = vmatpush1.bf16.msra.mxu0 %v120
  %143 = vmatprep.subr.bf16.mxu0 0
  %144 = vmatpush1.bf16.msra.mxu0 %v121
  %145 = vmatprep.subr.bf16.mxu0 0
  %146 = vmatpush1.bf16.msra.mxu0 %v122
  %147 = vmatprep.subr.bf16.mxu0 0
  %148 = vmatpush1.bf16.msra.mxu0 0
  %149 = vmatprep.subr.bf16.mxu0 0
  %150 = vmatpush1.bf16.msra.mxu0 0
  %151 = vmatprep.subr.bf16.mxu0 0
  %152 = vmatpush1.bf16.msra.mxu0 0
  %153 = vmatprep.subr.bf16.mxu0 0
  %154 = vmatpush1.bf16.msra.mxu0 0
  %155 = vmatprep.subr.bf16.mxu0 0
  %156 = vmatpush1.bf16.msra.mxu0 0
  %157 = vmatprep.subr.bf16.mxu0 0
  %158 = vmatpush1.bf16.msra.mxu0 0
  %159 = vmatprep.subr.bf16.mxu0 0
  %160 = vmatpush1.bf16.msra.mxu0 0
  %161 = vmatprep.subr.bf16.mxu0 0
  %162 = vmatpush1.bf16.msra.mxu0 0
  %163 = vmatprep.mubr.bf16.mxu0 0
  %164 = vmatmul.mubr.bf16.gmra.mrb[0].mxu0 %v75
  %v165 = vpop.f32.mrb[0].mxu0
  %v166 = vadd.f32 0.0, %v165
  %v167 = vpop.f32.mrb[0].mxu0
  %v168 = vpop.f32.mrb[0].mxu0
  %v169 = vadd.f32 0.0, %v168
  %v170 = vpop.f32.mrb[0].mxu0
  %171 = vmatprep.mubr.bf16.mxu0 0
  %172 = vmatmul.mubr.bf16.gmra.mrb[0].mxu0 %v76
  %v173 = vpop.f32.mrb[0].mxu0
  %v174 = vadd.f32 0.0, %v173
  %v175 = vpop.f32.mrb[0].mxu0
  %v176 = vpop.f32.mrb[0].mxu0
  %v177 = vadd.f32 0.0, %v176
  %v178 = vpop.f32.mrb[0].mxu0
  %179 = vmatprep.mubr.bf16.mxu0 0
  %180 = vmatmul.mubr.bf16.gmra.mrb[0].mxu0 %v77
  %v181 = vpop.f32.mrb[0].mxu0
  %v182 = vadd.f32 0.0, %v181
  %v183 = vpop.f32.mrb[0].mxu0
  %v184 = vpop.f32.mrb[0].mxu0
  %v185 = vadd.f32 0.0, %v184
  %v186 = vpop.f32.mrb[0].mxu0
  %187 = vmatprep.mubr.bf16.mxu0 0
  %188 = vmatmul.mubr.bf16.gmra.mrb[0].mxu0 %v78
  %v189 = vpop.f32.mrb[0].mxu0
  %v190 = vadd.f32 0.0, %v189
  %v191 = vpop.f32.mrb[0].mxu0
  %v192 = vpop.f32.mrb[0].mxu0
  %v193 = vadd.f32 0.0, %v192
  %v194 = vpop.f32.mrb[0].mxu0
  %195 = vdwg.mxu0
  %v196 = vadd.f32 %v27, %v166
  %v197 = vadd.f32 %v28, %v169
  %v198 = vadd.f32 %v29, %v174
  %v199 = vadd.f32 %v30, %v177
  %v200 = vadd.f32 %v31, %v182
  %v201 = vadd.f32 %v32, %v185
  %v202 = vadd.f32 %v33, %v190
  %v203 = vadd.f32 %v34, %v193
  %204 = vst [vmem:[#allocation2] sm:$0xff] %v196
  %205 = vst [vmem:[#allocation2 + $0x8] sm:$0xff] %v197
  %206 = vst [vmem:[#allocation2 + $0x10] sm:$0xff] %v198
  %207 = vst [vmem:[#allocation2 + $0x18] sm:$0xff] %v199
  %208 = vst [vmem:[#allocation2 + $0x20] sm:$0xff] %v200
  %209 = vst [vmem:[#allocation2 + $0x28] sm:$0xff] %v201
  %210 = vst [vmem:[#allocation2 + $0x30] sm:$0xff] %v202
  %211 = vst [vmem:[#allocation2 + $0x38] sm:$0xff] %v203
  // Predicated region
  $region18: #{signnet_gnn_forward.23} parent=0 // pred_check
    %p212 = pneg %p15
  $region19: #{signnet_gnn_forward.23} parent=0 // pred_check_branch
    %214 = sbr.rel (%p212) target = $region21
  $region20: #{signnet_gnn_forward.23} parent=0 // pred_region
    %v215 = vld [vmem:[#allocation2] sm:$0xff]
    %v216 = vld [vmem:[#allocation2 + $0x8] sm:$0xff]
    %v217 = vld [vmem:[#allocation2 + $0x10] sm:$0xff]
    %v218 = vld [vmem:[#allocation2 + $0x18] sm:$0xff]
    %v219 = vld [vmem:[#allocation2 + $0x20] sm:$0xff]
    %v220 = vld [vmem:[#allocation2 + $0x28] sm:$0xff]
    %v221 = vld [vmem:[#allocation2 + $0x30] sm:$0xff]
    %v222 = vld [vmem:[#allocation2 + $0x38] sm:$0xff]
    %v223 = vld [vmem:[%s2] sm:$0x1]
    %v225 = vlaneseq
    %v226 = vshrl.u32 %v225, 7
    %v227 = vsub.s32 0, %v226
    %v228 = vrot.slane %v223, %v227
    %v230 = vadd.f32 %v215, %v228
    %v231 = vadd.f32 %v216, %v228
    %v232 = vadd.f32 %v217, %v228
    %v233 = vadd.f32 %v218, %v228
    %v234 = vadd.f32 %v219, %v228
    %v235 = vadd.f32 %v220, %v228
    %v236 = vadd.f32 %v221, %v228
    %v237 = vadd.f32 %v222, %v228
    %238 = vst [vmem:[%s3] sm:$0xff] %v230
    %239 = vst [vmem:[%s3 + $0x8] sm:$0xff] %v231
    %240 = vst [vmem:[%s3 + $0x10] sm:$0xff] %v232
    %241 = vst [vmem:[%s3 + $0x18] sm:$0xff] %v233
    %242 = vst [vmem:[%s3 + $0x20] sm:$0xff] %v234
    %243 = vst [vmem:[%s3 + $0x28] sm:$0xff] %v235
    %244 = vst [vmem:[%s3 + $0x30] sm:$0xff] %v236
    %245 = vst [vmem:[%s3 + $0x38] sm:$0xff] %v237
  $region21: #{signnet_gnn_forward.23} parent=0 // pred_fallthru
    _
  // Predicated region
  $region22: #{signnet_gnn_forward.23} parent=0 // pred_check
    _
  $region23: #{signnet_gnn_forward.23} parent=0 // pred_check_branch
    %247 = sbr.rel (0) target = $region25
  $region24: #{signnet_gnn_forward.23} parent=0 // pred_region
    _
  $region25: #{signnet_gnn_forward.23} parent=0 // pred_fallthru
    _
  // Predicated region
  $region26: #{signnet_gnn_forward.23} parent=0 // pred_check
    _
  $region27: #{signnet_gnn_forward.23} parent=0 // pred_check_branch
    %249 = sbr.rel (0) target = $region29
  $region28: #{signnet_gnn_forward.23} parent=0 // pred_region
    _
  $region29: #{signnet_gnn_forward.23} parent=0 // pred_fallthru
    _

// kernel: signnet_gnn_forward.25
$region0: #{signnet_gnn_forward.25}
  #allocation0 [shape = 'u32[]', space=smem, size = 0x4, offset = 0x4, fixed_abs, tag = 'smem constant byte address 0x4 - core index']
  #allocation1 [shape = 'u32[144,128]{1,0:T(1,128)}', space=vmem, size = 0x12000, scoped, tag = 'internal scratch']
  #allocation2 [shape = 'f32[8,128]{1,0:T(8,128)}', space=vmem, size = 0x1000, scoped, tag = 'scratch operand']
  %s0 = inlined_call_operand.vmem [shape: f32[8,128], index: 0, kind: input, shape index: {}]
  %s1 = inlined_call_operand.vmem [shape: bf16[128,128], index: 1, kind: input, shape index: {}]
  %s2 = inlined_call_operand.vmem [shape: f32[1,128], index: 2, kind: input, shape index: {}]
  %s3 = inlined_call_operand.vmem [shape: f32[8,128], index: 3, kind: output, shape index: {}]
  %s4 = sld [smem:[#allocation0]]
  $region30: #{signnet_gnn_forward.25} parent=0
    _
  %s6 = ssub.s32 1, %s4
  %s7 = scalar_select 0, %s6, %s4
  // Predicated region
  $region2: #{signnet_gnn_forward.25} parent=0 // pred_check
    _
  $region3: #{signnet_gnn_forward.25} parent=0 // pred_check_branch
    %9 = sbr.rel (0) target = $region5
  $region4: #{signnet_gnn_forward.25} parent=0 // pred_region
    _
  $region5: #{signnet_gnn_forward.25} parent=0 // pred_fallthru
    _
  // Predicated region
  $region6: #{signnet_gnn_forward.25} parent=0 // pred_check
    _
  $region7: #{signnet_gnn_forward.25} parent=0 // pred_check_branch
    %11 = sbr.rel (0) target = $region9
  $region8: #{signnet_gnn_forward.25} parent=0 // pred_region
    _
  $region9: #{signnet_gnn_forward.25} parent=0 // pred_fallthru
    _
  // Predicated region
  $region10: #{signnet_gnn_forward.25} parent=0 // pred_check
    _
  $region11: #{signnet_gnn_forward.25} parent=0 // pred_check_branch
    %13 = sbr.rel (0) target = $region13
  $region12: #{signnet_gnn_forward.25} parent=0 // pred_region
    _
  $region13: #{signnet_gnn_forward.25} parent=0 // pred_fallthru
    _
  %p15 = scmp.eq.s32.totalorder 0, 0
  // Predicated region
  $region14: #{signnet_gnn_forward.25} parent=0 // pred_check
    %p16 = pneg %p15
  $region15: #{signnet_gnn_forward.25} parent=0 // pred_check_branch
    %18 = sbr.rel (%p16) target = $region17
  $region16: #{signnet_gnn_forward.25} parent=0 // pred_region
    %19 = vst [vmem:[#allocation2] sm:$0xff] 0.0
  $region17: #{signnet_gnn_forward.25} parent=0 // pred_fallthru
    _
  %v20 = vld [vmem:[#allocation2] sm:$0xff]
  %v21 = vld [vmem:[%s0] sm:$0xff]
  %v22 = vpack.c.bf16 %v21, %v21
  %v23 = vld [vmem:[%s1] sm:$0xf]
  %v24 = vld [vmem:[%s1 + $0x4] sm:$0xf]
  %v25 = vld [vmem:[%s1 + $0x8] sm:$0xf]
  %v26 = vld [vmem:[%s1 + $0xc] sm:$0xf]
  %v27 = vld [vmem:[%s1 + $0x10] sm:$0xf]
  %v28 = vld [vmem:[%s1 + $0x14] sm:$0xf]
  %v29 = vld [vmem:[%s1 + $0x18] sm:$0xf]
  %v30 = vld [vmem:[%s1 + $0x1c] sm:$0xf]
  %v31 = vld [vmem:[%s1 + $0x20] sm:$0xf]
  %v32 = vld [vmem:[%s1 + $0x24] sm:$0xf]
  %v33 = vld [vmem:[%s1 + $0x28] sm:$0xf]
  %v34 = vld [vmem:[%s1 + $0x2c] sm:$0xf]
  %v35 = vld [vmem:[%s1 + $0x30] sm:$0xf]
  %v36 = vld [vmem:[%s1 + $0x34] sm:$0xf]
  %v37 = vld [vmem:[%s1 + $0x38] sm:$0xf]
  %v38 = vld [vmem:[%s1 + $0x3c] sm:$0xf]
  %v55 = vunpack.c.l.b16 %v23
  %v56 = vunpack.c.l.b16 %v24
  %v57 = vunpack.c.l.b16 %v25
  %v58 = vunpack.c.l.b16 %v26
  %v59 = vunpack.c.l.b16 %v27
  %v60 = vunpack.c.l.b16 %v28
  %v61 = vunpack.c.l.b16 %v29
  %v62 = vunpack.c.l.b16 %v30
  %v63 = vunpack.c.l.b16 %v31
  %v64 = vunpack.c.l.b16 %v32
  %v65 = vunpack.c.l.b16 %v33
  %v66 = vunpack.c.l.b16 %v34
  %v67 = vunpack.c.l.b16 %v35
  %v68 = vunpack.c.l.b16 %v36
  %v69 = vunpack.c.l.b16 %v37
  %v70 = vunpack.c.l.b16 %v38
  %v71 = vpack.c.b16 %v56, %v55
  %v72 = vpack.c.b16 %v58, %v57
  %v73 = vpack.c.b16 %v60, %v59
  %v74 = vpack.c.b16 %v62, %v61
  %v75 = vpack.c.b16 %v64, %v63
  %v76 = vpack.c.b16 %v66, %v65
  %v77 = vpack.c.b16 %v68, %v67
  %v78 = vpack.c.b16 %v70, %v69
  %87 = vmatprep.subr.bf16.mxu0 0
  %88 = vmatpush1.bf16.msra.mxu0 %v71
  %89 = vmatprep.subr.bf16.mxu0 0
  %90 = vmatpush1.bf16.msra.mxu0 %v72
  %91 = vmatprep.subr.bf16.mxu0 0
  %92 = vmatpush1.bf16.msra.mxu0 %v73
  %93 = vmatprep.subr.bf16.mxu0 0
  %94 = vmatpush1.bf16.msra.mxu0 %v74
  %95 = vmatprep.subr.bf16.mxu0 0
  %96 = vmatpush1.bf16.msra.mxu0 %v75
  %97 = vmatprep.subr.bf16.mxu0 0
  %98 = vmatpush1.bf16.msra.mxu0 %v76
  %99 = vmatprep.subr.bf16.mxu0 0
  %100 = vmatpush1.bf16.msra.mxu0 %v77
  %101 = vmatprep.subr.bf16.mxu0 0
  %102 = vmatpush1.bf16.msra.mxu0 %v78
  %103 = vmatprep.subr.bf16.mxu0 0
  %104 = vmatpush1.bf16.msra.mxu0 0
  %105 = vmatprep.subr.bf16.mxu0 0
  %106 = vmatpush1.bf16.msra.mxu0 0
  %107 = vmatprep.subr.bf16.mxu0 0
  %108 = vmatpush1.bf16.msra.mxu0 0
  %109 = vmatprep.subr.bf16.mxu0 0
  %110 = vmatpush1.bf16.msra.mxu0 0
  %111 = vmatprep.subr.bf16.mxu0 0
  %112 = vmatpush1.bf16.msra.mxu0 0
  %113 = vmatprep.subr.bf16.mxu0 0
  %114 = vmatpush1.bf16.msra.mxu0 0
  %115 = vmatprep.subr.bf16.mxu0 0
  %116 = vmatpush1.bf16.msra.mxu0 0
  %117 = vmatprep.subr.bf16.mxu0 0
  %118 = vmatpush1.bf16.msra.mxu0 0
  %119 = vmatprep.mubr.bf16.mxu0 0
  %120 = vmatmul.mubr.bf16.gmra.mrb[0].mxu0 %v22
  %v121 = vpop.f32.mrb[0].mxu0
  %v122 = vadd.f32 0.0, %v121
  %v123 = vpop.f32.mrb[0].mxu0
  %v124 = vpop.f32.mrb[0].mxu0
  %v125 = vpop.f32.mrb[0].mxu0
  %126 = vdwg.mxu0
  %v127 = vadd.f32 %v20, %v122
  %128 = vst [vmem:[#allocation2] sm:$0xff] %v127
  // Predicated region
  $region18: #{signnet_gnn_forward.25} parent=0 // pred_check
    %p129 = pneg %p15
  $region19: #{signnet_gnn_forward.25} parent=0 // pred_check_branch
    %131 = sbr.rel (%p129) target = $region21
  $region20: #{signnet_gnn_forward.25} parent=0 // pred_region
    %v132 = vld [vmem:[#allocation2] sm:$0xff]
    %v133 = vld [vmem:[%s2] sm:$0x1]
    %v135 = vlaneseq
    %v136 = vshrl.u32 %v135, 7
    %v137 = vsub.s32 0, %v136
    %v138 = vrot.slane %v133, %v137
    %v140 = vadd.f32 %v132, %v138
    %141 = vst [vmem:[%s3] sm:$0xff] %v140
  $region21: #{signnet_gnn_forward.25} parent=0 // pred_fallthru
    _
  // Predicated region
  $region22: #{signnet_gnn_forward.25} parent=0 // pred_check
    _
  $region23: #{signnet_gnn_forward.25} parent=0 // pred_check_branch
    %143 = sbr.rel (0) target = $region25
  $region24: #{signnet_gnn_forward.25} parent=0 // pred_region
    _
  $region25: #{signnet_gnn_forward.25} parent=0 // pred_fallthru
    _
  // Predicated region
  $region26: #{signnet_gnn_forward.25} parent=0 // pred_check
    _
  $region27: #{signnet_gnn_forward.25} parent=0 // pred_check_branch
    %145 = sbr.rel (0) target = $region29
  $region28: #{signnet_gnn_forward.25} parent=0 // pred_region
    _
  $region29: #{signnet_gnn_forward.25} parent=0 // pred_fallthru
    _

</llo_original>
